<compile_context>
chip_gen: v7x
topology: tpu7x:2x2x1
jax: 0.10.0
libtpu: 0.0.40
codegen_flags: <defaults>
</compile_context>

<pallas_src>
import jax
import jax.numpy as jnp
from jax.experimental import pallas as pl
from jax.experimental.pallas import tpu as pltpu


# ---------------------------------------------------------------------------
# Model / tiling constants (layer dims are fixed by the PyTorch module).
# ---------------------------------------------------------------------------
TILE = 512                       # all weight chunks are (512, 512)
FEAT_DIM = 2048                  # backbone input features
HID_DIM = 1024                   # ResBlock hidden width
OUT_DIM = 512                    # backbone output width
N_RESBLOCKS = 3

N_FEAT_CHUNKS = FEAT_DIM // TILE     # 4 K-chunks for the fc layer
N_HID_CHUNKS = HID_DIM // TILE       # 2 N-chunks / K-chunks per ResBlock
CHUNKS_PER_STEP = 4                  # (512,512) weight chunks per grid step
N_STEPS = 1 + N_RESBLOCKS            # step 0 = fc, steps 1..3 = ResBlocks


# ---------------------------------------------------------------------------
# Fused backbone kernel.  Grid = 4 sequential steps; one 2 MB bf16 weight
# block streamed per step; activations never leave VMEM.
# ---------------------------------------------------------------------------
def _backbone_kernel(feat_ref, w_ref, b_ref, o_ref, x_f32_ref, x_bf16_ref):
    s = pl.program_id(0)

    # All bias rows for this step (VMEM-resident, no per-step bias DMA).
    b_all = b_ref[s]                                 # (CHUNKS_PER_STEP, TILE) f32

    # ---- step 0: fc = Linear(2048 -> 512) + ReLU ----------------------------
    # K-tiled over 4 feature chunks read directly from the resident feature
    # block (no staging copy).  Bias folded into the accumulator init.
    @pl.when(s == 0)
    def _():
        acc = b_all[0:1, :]                          # (1, 512) broadcasts over B
        for k in range(N_FEAT_CHUNKS):
            xk = feat_ref[:, k * TILE:(k + 1) * TILE].astype(jnp.bfloat16)
            acc = acc + jnp.dot(xk, w_ref[k],
                                preferred_element_type=jnp.float32)
        x = jnp.maximum(acc, 0.0)
        x_f32_ref[...] = x
        x_bf16_ref[...] = x.astype(jnp.bfloat16)

    # ---- steps 1..3: ResBlock(512, 1024, 512) --------------------------------
    #   h = ReLU(x @ W1 + b1)         (N-tiled: weight chunks 0, 1)
    #   y = ReLU(h @ W2 + b2 + x)     (K-tiled: weight chunks 2, 3; residual f32)
    @pl.when(s != 0)
    def _():
        xb = x_bf16_ref[...]                         # bf16 MXU feed of x
        h0 = jnp.maximum(
            jnp.dot(xb, w_ref[0], preferred_element_type=jnp.float32)
            + b_all[0:1, :], 0.0)
        h1 = jnp.maximum(
            jnp.dot(xb, w_ref[1], preferred_element_type=jnp.float32)
            + b_all[1:2, :], 0.0)
        acc = x_f32_ref[...] + b_all[2:3, :]         # residual + bias init
        acc = acc + jnp.dot(h0.astype(jnp.bfloat16), w_ref[2],
                            preferred_element_type=jnp.float32)
        acc = acc + jnp.dot(h1.astype(jnp.bfloat16), w_ref[3],
                            preferred_element_type=jnp.float32)
        y = jnp.maximum(acc, 0.0)
        x_f32_ref[...] = y
        x_bf16_ref[...] = y.astype(jnp.bfloat16)

    # ---- write the backbone output once, on the last step --------------------
    @pl.when(s == pl.num_programs(0) - 1)
    def _():
        o_ref[...] = x_f32_ref[...].astype(o_ref.dtype)


# ---------------------------------------------------------------------------
# Weight packing: 16 (512,512) chunks in execution order, grouped 4 per grid
# step, cast to bf16.  Biases packed as one small resident f32 tensor.
# ---------------------------------------------------------------------------
def pack_backbone_params(params):
    w_fc, b_fc = params["fc"]
    zeros = jnp.zeros((OUT_DIM,), jnp.float32)

    w_chunks = [w_fc[k * TILE:(k + 1) * TILE, :] for k in range(N_FEAT_CHUNKS)]
    b_steps = [jnp.stack([b_fc, zeros, zeros, zeros])]

    for i in range(N_RESBLOCKS):
        (w1, b1), (w2, b2) = params[f"res{i + 1}"]
        w_chunks += [
            w1[:, 0 * TILE:1 * TILE],      # hidden N-chunk 0
            w1[:, 1 * TILE:2 * TILE],      # hidden N-chunk 1
            w2[0 * TILE:1 * TILE, :],      # output K-chunk 0
            w2[1 * TILE:2 * TILE, :],      # output K-chunk 1
        ]
        b_steps.append(jnp.stack([b1[0 * TILE:1 * TILE],
                                  b1[1 * TILE:2 * TILE],
                                  b2, zeros]))

    w_packed = jnp.stack(w_chunks).astype(jnp.bfloat16)   # (16, 512, 512) bf16
    b_packed = jnp.stack(b_steps).astype(jnp.float32)     # (4, 4, 512) f32
    return {"w": w_packed, "b": b_packed}


@jax.jit
def backbone_forward(packed, feature):
    B = feature.shape[0]
    assert feature.shape[1] == FEAT_DIM and B % 8 == 0
    w_packed, b_packed = packed["w"], packed["b"]

    grid_spec = pltpu.PrefetchScalarGridSpec(
        num_scalar_prefetch=0,
        grid=(N_STEPS,),
        in_specs=[
            # input feature: resident for the whole kernel (DMA'd once)
            pl.BlockSpec((B, FEAT_DIM), lambda s: (0, 0)),
            # bf16 weights: 4 chunks (2 MB) streamed per step, double-buffered
            pl.BlockSpec((CHUNKS_PER_STEP, TILE, TILE), lambda s: (s, 0, 0)),
            # f32 biases: fully VMEM-resident (32 KB), indexed by step in-kernel
            pl.BlockSpec((N_STEPS, CHUNKS_PER_STEP, TILE), lambda s: (0, 0, 0)),
        ],
        out_specs=pl.BlockSpec((B, OUT_DIM), lambda s: (0, 0)),
        scratch_shapes=[
            pltpu.VMEM((B, TILE), jnp.float32),    # x (f32 residual carry)
            pltpu.VMEM((B, TILE), jnp.bfloat16),   # bf16 shadow of x (MXU feed)
        ],
    )

    return pl.pallas_call(
        _backbone_kernel,
        out_shape=jax.ShapeDtypeStruct((B, OUT_DIM), jnp.float32),
        grid_spec=grid_spec,
        compiler_params=pltpu.CompilerParams(
            # layer l+1 depends on layer l -> strictly sequential grid
            dimension_semantics=("arbitrary",),
            vmem_limit_bytes=32 * 1024 * 1024,
        ),
    )(feature, w_packed, b_packed)


# ---------------------------------------------------------------------------
# Parameter construction (deterministic, synthetic) and pure-JAX reference.
# Weights are stored as (in_features, out_features), i.e. y = x @ W + b.
# ---------------------------------------------------------------------------
def _init_linear(key, in_dim, out_dim, scale=0.02):
    kw, kb = jax.random.split(key)
    w = scale * jax.random.normal(kw, (in_dim, out_dim), dtype=jnp.float32)
    b = scale * jax.random.normal(kb, (out_dim,), dtype=jnp.float32)
    return w, b


def init_backbone_params(key):
    keys = jax.random.split(key, 7)
    params = {"fc": _init_linear(keys[0], FEAT_DIM, OUT_DIM)}
    for i in range(N_RESBLOCKS):
        w1 = _init_linear(keys[1 + 2 * i], OUT_DIM, HID_DIM)
        w2 = _init_linear(keys[2 + 2 * i], HID_DIM, OUT_DIM)
        params[f"res{i + 1}"] = (w1, w2)
    return params


def backbone_ref(params, feature):
    """Reference with the same bf16 matmul inputs / f32 accumulation."""
    def lin(x, w, b):
        return jnp.dot(x.astype(jnp.bfloat16), w.astype(jnp.bfloat16),
                       preferred_element_type=jnp.float32) + b

    w, b = params["fc"]
    x = jax.nn.relu(lin(feature, w, b))
    for i in range(N_RESBLOCKS):
        (w1, b1), (w2, b2) = params[f"res{i + 1}"]
        h = jax.nn.relu(lin(x, w1, b1))
        x = jax.nn.relu(lin(h, w2, b2) + x)
    return x


if __name__ == "__main__":
    key = jax.random.PRNGKey(0)
    k_params, k_in = jax.random.split(key)

    params = init_backbone_params(k_params)
    packed = pack_backbone_params(params)
    feature = jax.random.normal(k_in, (8, FEAT_DIM), dtype=jnp.float32)

    out = jax.block_until_ready(backbone_forward(packed, feature))
    ref = jax.block_until_ready(backbone_ref(params, feature))

    assert out.shape == (8, OUT_DIM), out.shape
    max_err = float(jnp.max(jnp.abs(out - ref)))
    assert max_err < 1e-2, max_err
    print("KERNEL_OK")
</pallas_src>

<mosaic_0001>
module attributes {stable_mosaic.version = 11 : i64} {
  func.func @_backbone_kernel(%arg0: i32, %arg1: memref<8x2048xf32, #tpu.memory_space<vmem>>, %arg2: memref<4x512x512xbf16, #tpu.memory_space<vmem>>, %arg3: memref<4x4x512xf32, #tpu.memory_space<vmem>>, %arg4: memref<8x512xf32, #tpu.memory_space<vmem>>, %arg5: memref<8x512xf32, #tpu.memory_space<vmem>>, %arg6: memref<8x512xbf16, #tpu.memory_space<vmem>>) attributes {dimension_semantics = [#tpu.dimension_semantics<arbitrary>], iteration_bounds = array<i64: 4>, scalar_prefetch = 0 : i64, scratch_operands = 2 : i64, tpu.core_type = #tpu.core_type<tc>, window_params = [{pipeline_mode = #tpu.pipeline_mode<synchronous>, transform_indices = @transform_0, window_bounds = array<i64: 8, 2048>}, {transform_indices = @transform_1, window_bounds = array<i64: 4, 512, 512>}, {pipeline_mode = #tpu.pipeline_mode<synchronous>, transform_indices = @transform_2, window_bounds = array<i64: 4, 4, 512>}, {pipeline_mode = #tpu.pipeline_mode<synchronous>, transform_indices = @transform_3, window_bounds = array<i64: 8, 512>}]} {
    %0 = arith.index_cast %arg0 : i32 to index
    %c0 = arith.constant 0 : index
    %c0_0 = arith.constant 0 : index
    %1 = vector.load %arg3[%0, %c0, %c0_0] : memref<4x4x512xf32, #tpu.memory_space<vmem>>, vector<1x4x512xf32>
    %2 = vector.shape_cast %1 : vector<1x4x512xf32> to vector<4x512xf32>
    %c0_i32 = arith.constant 0 : i32
    %3 = arith.cmpi eq, %arg0, %c0_i32 : i32
    %4 = arith.extui %3 : i1 to i32
    %c0_i32_1 = arith.constant 0 : i32
    %5 = arith.cmpi ne, %4, %c0_i32_1 : i32
    scf.if %5 {
      %12 = vector.extract_strided_slice %2 {offsets = [0, 0], sizes = [1, 512], strides = [1, 1]} : vector<4x512xf32> to vector<1x512xf32>
      %c0_5 = arith.constant 0 : index
      %c0_6 = arith.constant 0 : index
      %13 = vector.load %arg1[%c0_5, %c0_6] : memref<8x2048xf32, #tpu.memory_space<vmem>>, vector<8x512xf32>
      %14 = arith.truncf %13 : vector<8x512xf32> to vector<8x512xbf16>
      %c0_7 = arith.constant 0 : index
      %c0_8 = arith.constant 0 : index
      %c0_9 = arith.constant 0 : index
      %15 = vector.load %arg2[%c0_7, %c0_8, %c0_9] : memref<4x512x512xbf16, #tpu.memory_space<vmem>>, vector<1x512x512xbf16>
      %16 = vector.shape_cast %15 : vector<1x512x512xbf16> to vector<512x512xbf16>
      %cst = arith.constant dense<0.000000e+00> : vector<8x512xf32>
      %17 = tpu.matmul %14, %16, %cst {dimension_numbers = #tpu.dot_dimension_numbers<[1], [0], [0], [1], [0, 0, 1, 1], [], []>} : vector<8x512xbf16>, vector<512x512xbf16>, vector<8x512xf32> -> vector<8x512xf32>
      %18 = vector.broadcast %12 : vector<1x512xf32> to vector<8x512xf32>
      %19 = arith.addf %18, %17 : vector<8x512xf32>
      %c0_10 = arith.constant 0 : index
      %c512 = arith.constant 512 : index
      %20 = vector.load %arg1[%c0_10, %c512] : memref<8x2048xf32, #tpu.memory_space<vmem>>, vector<8x512xf32>
      %21 = arith.truncf %20 : vector<8x512xf32> to vector<8x512xbf16>
      %c1 = arith.constant 1 : index
      %c0_11 = arith.constant 0 : index
      %c0_12 = arith.constant 0 : index
      %22 = vector.load %arg2[%c1, %c0_11, %c0_12] : memref<4x512x512xbf16, #tpu.memory_space<vmem>>, vector<1x512x512xbf16>
      %23 = vector.shape_cast %22 : vector<1x512x512xbf16> to vector<512x512xbf16>
      %cst_13 = arith.constant dense<0.000000e+00> : vector<8x512xf32>
      %24 = tpu.matmul %21, %23, %cst_13 {dimension_numbers = #tpu.dot_dimension_numbers<[1], [0], [0], [1], [0, 0, 1, 1], [], []>} : vector<8x512xbf16>, vector<512x512xbf16>, vector<8x512xf32> -> vector<8x512xf32>
      %25 = arith.addf %19, %24 : vector<8x512xf32>
      %c0_14 = arith.constant 0 : index
      %c1024 = arith.constant 1024 : index
      %26 = vector.load %arg1[%c0_14, %c1024] : memref<8x2048xf32, #tpu.memory_space<vmem>>, vector<8x512xf32>
      %27 = arith.truncf %26 : vector<8x512xf32> to vector<8x512xbf16>
      %c2 = arith.constant 2 : index
      %c0_15 = arith.constant 0 : index
      %c0_16 = arith.constant 0 : index
      %28 = vector.load %arg2[%c2, %c0_15, %c0_16] : memref<4x512x512xbf16, #tpu.memory_space<vmem>>, vector<1x512x512xbf16>
      %29 = vector.shape_cast %28 : vector<1x512x512xbf16> to vector<512x512xbf16>
      %cst_17 = arith.constant dense<0.000000e+00> : vector<8x512xf32>
      %30 = tpu.matmul %27, %29, %cst_17 {dimension_numbers = #tpu.dot_dimension_numbers<[1], [0], [0], [1], [0, 0, 1, 1], [], []>} : vector<8x512xbf16>, vector<512x512xbf16>, vector<8x512xf32> -> vector<8x512xf32>
      %31 = arith.addf %25, %30 : vector<8x512xf32>
      %c0_18 = arith.constant 0 : index
      %c1536 = arith.constant 1536 : index
      %32 = vector.load %arg1[%c0_18, %c1536] : memref<8x2048xf32, #tpu.memory_space<vmem>>, vector<8x512xf32>
      %33 = arith.truncf %32 : vector<8x512xf32> to vector<8x512xbf16>
      %c3 = arith.constant 3 : index
      %c0_19 = arith.constant 0 : index
      %c0_20 = arith.constant 0 : index
      %34 = vector.load %arg2[%c3, %c0_19, %c0_20] : memref<4x512x512xbf16, #tpu.memory_space<vmem>>, vector<1x512x512xbf16>
      %35 = vector.shape_cast %34 : vector<1x512x512xbf16> to vector<512x512xbf16>
      %cst_21 = arith.constant dense<0.000000e+00> : vector<8x512xf32>
      %36 = tpu.matmul %33, %35, %cst_21 {dimension_numbers = #tpu.dot_dimension_numbers<[1], [0], [0], [1], [0, 0, 1, 1], [], []>} : vector<8x512xbf16>, vector<512x512xbf16>, vector<8x512xf32> -> vector<8x512xf32>
      %37 = arith.addf %31, %36 : vector<8x512xf32>
      %cst_22 = arith.constant 0.000000e+00 : f32
      %38 = vector.broadcast %cst_22 : f32 to vector<8x512xf32>
      %39 = arith.maximumf %37, %38 : vector<8x512xf32>
      %c0_23 = arith.constant 0 : index
      %c0_24 = arith.constant 0 : index
      %40 = vector.load %arg5[%c0_23, %c0_24] : memref<8x512xf32, #tpu.memory_space<vmem>>, vector<8x512xf32>
      tpu.vector_store %arg5[%c0_23, %c0_24], %39 {strides = array<i32>} : memref<8x512xf32, #tpu.memory_space<vmem>>, vector<8x512xf32>,
      %41 = arith.truncf %39 : vector<8x512xf32> to vector<8x512xbf16>
      %c0_25 = arith.constant 0 : index
      %c0_26 = arith.constant 0 : index
      %42 = vector.load %arg6[%c0_25, %c0_26] : memref<8x512xbf16, #tpu.memory_space<vmem>>, vector<8x512xbf16>
      tpu.vector_store %arg6[%c0_25, %c0_26], %41 {strides = array<i32>} : memref<8x512xbf16, #tpu.memory_space<vmem>>, vector<8x512xbf16>,
    } else {
    }
    %c0_i32_2 = arith.constant 0 : i32
    %6 = arith.cmpi ne, %arg0, %c0_i32_2 : i32
    %7 = arith.extui %6 : i1 to i32
    %c0_i32_3 = arith.constant 0 : i32
    %8 = arith.cmpi ne, %7, %c0_i32_3 : i32
    scf.if %8 {
      %c0_5 = arith.constant 0 : index
      %c0_6 = arith.constant 0 : index
      %12 = vector.load %arg6[%c0_5, %c0_6] : memref<8x512xbf16, #tpu.memory_space<vmem>>, vector<8x512xbf16>
      %c0_7 = arith.constant 0 : index
      %c0_8 = arith.constant 0 : index
      %c0_9 = arith.constant 0 : index
      %13 = vector.load %arg2[%c0_7, %c0_8, %c0_9] : memref<4x512x512xbf16, #tpu.memory_space<vmem>>, vector<1x512x512xbf16>
      %14 = vector.shape_cast %13 : vector<1x512x512xbf16> to vector<512x512xbf16>
      %cst = arith.constant dense<0.000000e+00> : vector<8x512xf32>
      %15 = tpu.matmul %12, %14, %cst {dimension_numbers = #tpu.dot_dimension_numbers<[1], [0], [0], [1], [0, 0, 1, 1], [], []>} : vector<8x512xbf16>, vector<512x512xbf16>, vector<8x512xf32> -> vector<8x512xf32>
      %16 = vector.extract_strided_slice %2 {offsets = [0, 0], sizes = [1, 512], strides = [1, 1]} : vector<4x512xf32> to vector<1x512xf32>
      %17 = vector.broadcast %16 : vector<1x512xf32> to vector<8x512xf32>
      %18 = arith.addf %15, %17 : vector<8x512xf32>
      %cst_10 = arith.constant 0.000000e+00 : f32
      %19 = vector.broadcast %cst_10 : f32 to vector<8x512xf32>
      %20 = arith.maximumf %18, %19 : vector<8x512xf32>
      %c1 = arith.constant 1 : index
      %c0_11 = arith.constant 0 : index
      %c0_12 = arith.constant 0 : index
      %21 = vector.load %arg2[%c1, %c0_11, %c0_12] : memref<4x512x512xbf16, #tpu.memory_space<vmem>>, vector<1x512x512xbf16>
      %22 = vector.shape_cast %21 : vector<1x512x512xbf16> to vector<512x512xbf16>
      %cst_13 = arith.constant dense<0.000000e+00> : vector<8x512xf32>
      %23 = tpu.matmul %12, %22, %cst_13 {dimension_numbers = #tpu.dot_dimension_numbers<[1], [0], [0], [1], [0, 0, 1, 1], [], []>} : vector<8x512xbf16>, vector<512x512xbf16>, vector<8x512xf32> -> vector<8x512xf32>
      %24 = vector.extract_strided_slice %2 {offsets = [1, 0], sizes = [1, 512], strides = [1, 1]} : vector<4x512xf32> to vector<1x512xf32>
      %25 = vector.broadcast %24 : vector<1x512xf32> to vector<8x512xf32>
      %26 = arith.addf %23, %25 : vector<8x512xf32>
      %cst_14 = arith.constant 0.000000e+00 : f32
      %27 = vector.broadcast %cst_14 : f32 to vector<8x512xf32>
      %28 = arith.maximumf %26, %27 : vector<8x512xf32>
      %c0_15 = arith.constant 0 : index
      %c0_16 = arith.constant 0 : index
      %29 = vector.load %arg5[%c0_15, %c0_16] : memref<8x512xf32, #tpu.memory_space<vmem>>, vector<8x512xf32>
      %30 = vector.extract_strided_slice %2 {offsets = [2, 0], sizes = [1, 512], strides = [1, 1]} : vector<4x512xf32> to vector<1x512xf32>
      %31 = vector.broadcast %30 : vector<1x512xf32> to vector<8x512xf32>
      %32 = arith.addf %29, %31 : vector<8x512xf32>
      %33 = arith.truncf %20 : vector<8x512xf32> to vector<8x512xbf16>
      %c2 = arith.constant 2 : index
      %c0_17 = arith.constant 0 : index
      %c0_18 = arith.constant 0 : index
      %34 = vector.load %arg2[%c2, %c0_17, %c0_18] : memref<4x512x512xbf16, #tpu.memory_space<vmem>>, vector<1x512x512xbf16>
      %35 = vector.shape_cast %34 : vector<1x512x512xbf16> to vector<512x512xbf16>
      %cst_19 = arith.constant dense<0.000000e+00> : vector<8x512xf32>
      %36 = tpu.matmul %33, %35, %cst_19 {dimension_numbers = #tpu.dot_dimension_numbers<[1], [0], [0], [1], [0, 0, 1, 1], [], []>} : vector<8x512xbf16>, vector<512x512xbf16>, vector<8x512xf32> -> vector<8x512xf32>
      %37 = arith.addf %32, %36 : vector<8x512xf32>
      %38 = arith.truncf %28 : vector<8x512xf32> to vector<8x512xbf16>
      %c3 = arith.constant 3 : index
      %c0_20 = arith.constant 0 : index
      %c0_21 = arith.constant 0 : index
      %39 = vector.load %arg2[%c3, %c0_20, %c0_21] : memref<4x512x512xbf16, #tpu.memory_space<vmem>>, vector<1x512x512xbf16>
      %40 = vector.shape_cast %39 : vector<1x512x512xbf16> to vector<512x512xbf16>
      %cst_22 = arith.constant dense<0.000000e+00> : vector<8x512xf32>
      %41 = tpu.matmul %38, %40, %cst_22 {dimension_numbers = #tpu.dot_dimension_numbers<[1], [0], [0], [1], [0, 0, 1, 1], [], []>} : vector<8x512xbf16>, vector<512x512xbf16>, vector<8x512xf32> -> vector<8x512xf32>
      %42 = arith.addf %37, %41 : vector<8x512xf32>
      %cst_23 = arith.constant 0.000000e+00 : f32
      %43 = vector.broadcast %cst_23 : f32 to vector<8x512xf32>
      %44 = arith.maximumf %42, %43 : vector<8x512xf32>
      %c0_24 = arith.constant 0 : index
      %c0_25 = arith.constant 0 : index
      %45 = vector.load %arg5[%c0_24, %c0_25] : memref<8x512xf32, #tpu.memory_space<vmem>>, vector<8x512xf32>
      tpu.vector_store %arg5[%c0_24, %c0_25], %44 {strides = array<i32>} : memref<8x512xf32, #tpu.memory_space<vmem>>, vector<8x512xf32>,
      %46 = arith.truncf %44 : vector<8x512xf32> to vector<8x512xbf16>
      %c0_26 = arith.constant 0 : index
      %c0_27 = arith.constant 0 : index
      %47 = vector.load %arg6[%c0_26, %c0_27] : memref<8x512xbf16, #tpu.memory_space<vmem>>, vector<8x512xbf16>
      tpu.vector_store %arg6[%c0_26, %c0_27], %46 {strides = array<i32>} : memref<8x512xbf16, #tpu.memory_space<vmem>>, vector<8x512xbf16>,
    } else {
    }
    %c3_i32 = arith.constant 3 : i32
    %9 = arith.cmpi eq, %arg0, %c3_i32 : i32
    %10 = arith.extui %9 : i1 to i32
    %c0_i32_4 = arith.constant 0 : i32
    %11 = arith.cmpi ne, %10, %c0_i32_4 : i32
    scf.if %11 {
      %c0_5 = arith.constant 0 : index
      %c0_6 = arith.constant 0 : index
      %12 = vector.load %arg5[%c0_5, %c0_6] : memref<8x512xf32, #tpu.memory_space<vmem>>, vector<8x512xf32>
      %c0_7 = arith.constant 0 : index
      %c0_8 = arith.constant 0 : index
      %13 = vector.load %arg4[%c0_7, %c0_8] : memref<8x512xf32, #tpu.memory_space<vmem>>, vector<8x512xf32>
      tpu.vector_store %arg4[%c0_7, %c0_8], %12 {strides = array<i32>} : memref<8x512xf32, #tpu.memory_space<vmem>>, vector<8x512xf32>,
    } else {
    }
    return
  }
  func.func @transform_0(%arg0: i32) -> (i32, i32) {
    %c0_i32 = arith.constant 0 : i32
    %c0_i32_0 = arith.constant 0 : i32
    %c0_i32_1 = arith.constant 0 : i32
    return %c0_i32, %c0_i32_0 : i32, i32
  }
  func.func @transform_1(%arg0: i32) -> (i32, i32, i32) {
    %c0_i32 = arith.constant 0 : i32
    %c0_i32_0 = arith.constant 0 : i32
    %c0_i32_1 = arith.constant 0 : i32
    return %arg0, %c0_i32, %c0_i32_0 : i32, i32, i32
  }
  func.func @transform_2(%arg0: i32) -> (i32, i32, i32) {
    %c0_i32 = arith.constant 0 : i32
    %c0_i32_0 = arith.constant 0 : i32
    %c0_i32_1 = arith.constant 0 : i32
    %c0_i32_2 = arith.constant 0 : i32
    return %c0_i32, %c0_i32_0, %c0_i32_1 : i32, i32, i32
  }
  func.func @transform_3(%arg0: i32) -> (i32, i32) {
    %c0_i32 = arith.constant 0 : i32
    %c0_i32_0 = arith.constant 0 : i32
    %c0_i32_1 = arith.constant 0 : i32
    return %c0_i32, %c0_i32_0 : i32, i32
  }
}

</mosaic_0001>

<llo_original>
// kernel: backbone_forward.1
$region0: #{backbone_forward.1}
  #allocation0 [shape = 'u32[]', space=smem, size = 0x4, offset = 0x4, fixed_abs, tag = 'smem constant byte address 0x4 - core index']
  #allocation1 [shape = 'u32[144,128]{1,0:T(1,128)}', space=vmem, size = 0x12000, scoped, tag = 'internal scratch']
  #allocation2 [shape = 'f32[8,512]{1,0:T(8,128)}', space=vmem, size = 0x4000, scoped, tag = 'scratch operand']
  #allocation3 [shape = 'bf16[8,512]{1,0:T(8,128)(2,1)}', space=vmem, size = 0x2000, scoped, tag = 'scratch operand']
  %s0 = inlined_call_operand.hbm [shape: f32[8,2048], index: 0, kind: input, shape index: {}]
  %s1 = inlined_call_operand.hbm [shape: bf16[16,512,512], index: 1, kind: input, shape index: {}]
  %s2 = inlined_call_operand.hbm [shape: f32[4,4,512], index: 2, kind: input, shape index: {}]
  %s3 = inlined_call_operand.hbm [shape: f32[8,512], index: 3, kind: output, shape index: {}]
  %s4 = sld [smem:[#allocation0]]
  $region69: #{backbone_forward.1} parent=0
    _
  %s6 = ssub.s32 1, %s4
  %s7 = scalar_select 0, %s6, %s4
  $region1: #{backbone_forward.1} parent=0
    #allocation4 [shape = 'u8[65536]{0}', space=vmem, size = 0x10000, scoped, tag = 'input window, operand 0, single buffered']
    #allocation5 [shape = 's32[2]{0}', space=sflag, size = 0x8, scoped, tag = 'scoped memory for backbone_forward.1']
    #allocation6 [shape = 's32[2]{0}', space=sflag, size = 0x8, scoped, tag = 'scoped memory for backbone_forward.1']
    #allocation7 [shape = 'u8[4194304]{0}', space=vmem, size = 0x400000, scoped, tag = 'input window, operand 1']
    #allocation8 [shape = 's32[2]{0}', space=sflag, size = 0x8, scoped, tag = 'scoped memory for backbone_forward.1']
    #allocation9 [shape = 'u8[32768]{0}', space=vmem, size = 0x8000, scoped, tag = 'input window, operand 2, single buffered']
    #allocation10 [shape = 'u8[16384]{0}', space=vmem, size = 0x4000, scoped, tag = 'output window, operand 0, single buffered']
    %8 = vsyncpa [#allocation5], 0
    %9 = vsyncpa [#allocation8], 0
    %s10 = scalar_lea.sflag [#allocation8], 1
    %11 = vsyncpa %s10, 0
    %12 = vsyncpa [#allocation6], 0
    loop: start=0, step=1, limit=6
    $region2: #{backbone_forward.1} parent=1 // loop_pre_header
      _
    $region3: #{backbone_forward.1} parent=1 // loop_header
      %s14 = sphi 0, %s18
      %p15 = scmp.ge.s32.totalorder %s14, 6
      %s22 = sphi 0, %s22
      %s24 = sphi 0, %s22
      %s25 = sphi 0, %s24
      %s39 = sphi 0, %s25
      %s45 = sphi 0, %s47
      %s48 = sphi 0, %s45
      %s49 = sphi 0, %s48
      %s65 = sphi 0, %s49
      %s69 = sphi 0, %s69
      %s71 = sphi 0, %s69
      %s72 = sphi 0, %s71
      %s86 = sphi 0, %s72
      %s90 = sphi 0, %s90
      %s92 = sphi 0, %s90
      %s93 = sphi 0, %s92
      %s107 = sphi 0, %s93
    $region4: #{backbone_forward.1} parent=1 // loop_header_branch
      %17 = sbr.rel (%p15) target = $region8
    $region5: #{backbone_forward.1} parent=1 // loop_body
      %s19 = ssub.s32 %s14, 1
      %s20 = ssub.s32 %s14, 2
      %s21 = sadd.s32 %s14, 1
      %s23 = sadd.s32 %s22, 1
      %p26 = scmp.eq.s32.totalorder %s14, 3
      %p27 = scmp.ne.s32.totalorder %s22, %s24
      %p28 = scmp.eq.s32.totalorder %s14, 0
      %p29 = por %p27, %p28
      %p30 = scmp.ne.s32.totalorder %s22, %s24
      %p31 = scmp.eq.s32.totalorder %s19, 3
      %p32 = por %p30, %p31
      %p33 = scmp.ne.s32.totalorder %s24, %s25
      %p34 = scmp.eq.s32.totalorder %s19, 0
      %p35 = por %p33, %p34
      %p36 = scmp.ne.s32.totalorder %s24, %s25
      %p37 = scmp.eq.s32.totalorder %s20, 3
      %p38 = por %p36, %p37
      %p40 = scmp.ne.s32.totalorder %s25, %s39
      %p41 = scmp.eq.s32.totalorder %s20, 0
      %p42 = por %p40, %p41
      %s43 = ssub.s32 %s14, %s21
      %p44 = scmp.eq.s32.totalorder %s43, 0
      %s46 = sadd.s32 %s45, 1
      %s47 = scalar_select %p44, %s45, %s46
      %p50 = pneg %p44
      %p51 = scmp.eq.s32.totalorder %s14, 3
      %p52 = por %p50, %p51
      %p53 = scmp.ne.s32.totalorder %s45, %s48
      %p54 = scmp.eq.s32.totalorder %s14, 0
      %p55 = por %p53, %p54
      %p56 = scmp.ne.s32.totalorder %s45, %s48
      %p57 = scmp.eq.s32.totalorder %s19, 3
      %p58 = por %p56, %p57
      %p59 = scmp.ne.s32.totalorder %s48, %s49
      %p60 = scmp.eq.s32.totalorder %s19, 0
      %p61 = por %p59, %p60
      %p62 = scmp.ne.s32.totalorder %s48, %s49
      %p63 = scmp.eq.s32.totalorder %s20, 3
      %p64 = por %p62, %p63
      %p66 = scmp.ne.s32.totalorder %s49, %s65
      %p67 = scmp.eq.s32.totalorder %s20, 0
      %p68 = por %p66, %p67
      %s70 = sadd.s32 %s69, 1
      %p73 = scmp.eq.s32.totalorder %s14, 3
      %p74 = scmp.ne.s32.totalorder %s69, %s71
      %p75 = scmp.eq.s32.totalorder %s14, 0
      %p76 = por %p74, %p75
      %p77 = scmp.ne.s32.totalorder %s69, %s71
      %p78 = scmp.eq.s32.totalorder %s19, 3
      %p79 = por %p77, %p78
      %p80 = scmp.ne.s32.totalorder %s71, %s72
      %p81 = scmp.eq.s32.totalorder %s19, 0
      %p82 = por %p80, %p81
      %p83 = scmp.ne.s32.totalorder %s71, %s72
      %p84 = scmp.eq.s32.totalorder %s20, 3
      %p85 = por %p83, %p84
      %p87 = scmp.ne.s32.totalorder %s72, %s86
      %p88 = scmp.eq.s32.totalorder %s20, 0
      %p89 = por %p87, %p88
      %s91 = sadd.s32 %s90, 1
      %p94 = scmp.eq.s32.totalorder %s14, 3
      %p95 = scmp.ne.s32.totalorder %s90, %s92
      %p96 = scmp.eq.s32.totalorder %s14, 0
      %p97 = por %p95, %p96
      %p98 = scmp.ne.s32.totalorder %s90, %s92
      %p99 = scmp.eq.s32.totalorder %s19, 3
      %p100 = por %p98, %p99
      %p101 = scmp.ne.s32.totalorder %s92, %s93
      %p102 = scmp.eq.s32.totalorder %s19, 0
      %p103 = por %p101, %p102
      %p104 = scmp.ne.s32.totalorder %s92, %s93
      %p105 = scmp.eq.s32.totalorder %s20, 3
      %p106 = por %p104, %p105
      %p108 = scmp.ne.s32.totalorder %s93, %s107
      %p109 = scmp.eq.s32.totalorder %s20, 0
      %p110 = por %p108, %p109
      %p111 = scmp.le.s32.totalorder 1, %s14
      %p112 = scmp.lt.s32.totalorder %s14, 5
      %p113 = pnand %p111, %p112
      %p114 = pneg %p113
      // Predicated region
      $region9: #{backbone_forward.1} parent=5 // pred_check
        _
      $region10: #{backbone_forward.1} parent=5 // pred_check_branch
        %116 = sbr.rel (%p113) target = $region12
      $region11: #{backbone_forward.1} parent=5 // pred_region
        %s117 = ssub.s32 %s14, 1
        // Predicated region
        $region13: #{backbone_forward.1} parent=11 // pred_check
          %p118 = pneg %p35
        $region14: #{backbone_forward.1} parent=11 // pred_check_branch
          %120 = sbr.rel (%p118) target = $region16
        $region15: #{backbone_forward.1} parent=11 // pred_region
          %s122 = ssub.s32 2048, 2048
          %123 = vsyncadd [#allocation5], %s122
          %s125 = sshll.u32 [#allocation4], 4
          %s126 = int_to_ptr.vmem [resolvable:$true] %s125
          %128 = dma.hbm_to_vmem [thread:$0]  %s0, 2048, %s126, [#allocation5]
        $region16: #{backbone_forward.1} parent=11 // pred_fallthru
          _
        // Predicated region
        $region17: #{backbone_forward.1} parent=11 // pred_check
          %p129 = pneg %p82
        $region18: #{backbone_forward.1} parent=11 // pred_check_branch
          %131 = sbr.rel (%p129) target = $region20
        $region19: #{backbone_forward.1} parent=11 // pred_region
          %s133 = ssub.s32 1024, 1024
          %134 = vsyncadd [#allocation8], %s133
          %s135 = sshll.u32 [#allocation9], 4
          %s136 = int_to_ptr.vmem [resolvable:$true] %s135
          %141 = dma.hbm_to_vmem [thread:$0]  %s2, 1024, %s136, [#allocation8], 256, 256, 16
        $region20: #{backbone_forward.1} parent=11 // pred_fallthru
          _
      $region12: #{backbone_forward.1} parent=5 // pred_fallthru
        _
      %p142 = scmp.lt.s32.totalorder %s14, 4
      // Predicated region
      $region21: #{backbone_forward.1} parent=5 // pred_check
        %p143 = pneg %p142
      $region22: #{backbone_forward.1} parent=5 // pred_check_branch
        %145 = sbr.rel (%p143) target = $region24
      $region23: #{backbone_forward.1} parent=5 // pred_region
        // Predicated region
        $region25: #{backbone_forward.1} parent=23 // pred_check
          %p146 = pneg %p55
        $region26: #{backbone_forward.1} parent=23 // pred_check_branch
          %148 = sbr.rel (%p146) target = $region28
        $region27: #{backbone_forward.1} parent=23 // pred_region
          %s149 = sand.u32 %s14, 1
          %s150 = scalar_lea.sflag [#allocation8], %s149
          %s151 = sand.u32 %s45, 1
          %s152 = smul.addr %s151, 4096
          %s153 = scalar_lea.vmem [#allocation7], %s152
          %s154 = smul.u32 4, %s14
          %s156 = ssub.s32 65536, 65536
          %157 = vsyncadd %s150, %s156
          %s158 = smul.addr %s154, 256
          %s159 = smul.addr %s158, 64
          %s160 = scalar_lea.hbm %s1, %s159
          %s161 = sshll.u32 %s153, 4
          %s162 = int_to_ptr.vmem [resolvable:$true] %s161
          %167 = dma.hbm_to_vmem [thread:$0]  %s160, 65536, %s162, %s150, 256, 256, 16
        $region28: #{backbone_forward.1} parent=23 // pred_fallthru
          _
      $region24: #{backbone_forward.1} parent=5 // pred_fallthru
        _
      %p168 = scmp.le.s32.totalorder 1, %s14
      %p169 = scmp.lt.s32.totalorder %s14, 5
      %p170 = pnand %p168, %p169
      %p171 = pneg %p170
      // Predicated region
      $region29: #{backbone_forward.1} parent=5 // pred_check
        _
      $region30: #{backbone_forward.1} parent=5 // pred_check_branch
        %173 = sbr.rel (%p170) target = $region32
      $region31: #{backbone_forward.1} parent=5 // pred_region
        %s174 = ssub.s32 %s14, 1
        // Predicated region
        $region33: #{backbone_forward.1} parent=31 // pred_check
          %p175 = pneg %p35
        $region34: #{backbone_forward.1} parent=31 // pred_check_branch
          %177 = sbr.rel (%p175) target = $region36
        $region35: #{backbone_forward.1} parent=31 // pred_region
          %178 = dma.done [#allocation5], 2048
        $region36: #{backbone_forward.1} parent=31 // pred_fallthru
          _
        %s179 = sand.u32 %s19, 1
        %s180 = scalar_lea.sflag [#allocation8], %s179
        %s181 = sand.u32 %s48, 1
        %s182 = smul.addr %s181, 4096
        %s183 = scalar_lea.vmem [#allocation7], %s182
        // Predicated region
        $region37: #{backbone_forward.1} parent=31 // pred_check
          %p184 = pneg %p61
        $region38: #{backbone_forward.1} parent=31 // pred_check_branch
          %186 = sbr.rel (%p184) target = $region40
        $region39: #{backbone_forward.1} parent=31 // pred_region
          %187 = dma.done %s180, 65536
        $region40: #{backbone_forward.1} parent=31 // pred_fallthru
          _
        // Predicated region
        $region41: #{backbone_forward.1} parent=31 // pred_check
          %p188 = pneg %p82
        $region42: #{backbone_forward.1} parent=31 // pred_check_branch
          %190 = sbr.rel (%p188) target = $region44
        $region43: #{backbone_forward.1} parent=31 // pred_region
          %191 = dma.done [#allocation8], 1024
        $region44: #{backbone_forward.1} parent=31 // pred_fallthru
          _
        %p192 = pneg %p35
        %p193 = pneg %p32
        %s194 = sand.u32 %s19, 1
        %s195 = scalar_lea.sflag [#allocation8], %s194
        %s196 = sand.u32 %s48, 1
        %s197 = smul.addr %s196, 4096
        %s198 = scalar_lea.vmem [#allocation7], %s197
        %p199 = pneg %p61
        %p200 = pneg %p58
        %p201 = pneg %p82
        %p202 = pneg %p79
        %p203 = pneg %p103
        %p204 = pneg %p100
        %s205 = smul.u32 4, %s19
        %s206 = smul.u32 %s19, 4
        %s207 = smul.addr %s206, 4
        %s208 = scalar_lea.vmem [#allocation9], %s207
        %v209 = vld [vmem:[%s208] sm:$0xff]
        %v210 = vld [vmem:[%s208 + $0x8] sm:$0xff]
        %p211 = scmp.eq.s32.totalorder %s19, 0
        // Predicated region
        $region45: #{backbone_forward.1} parent=31 // pred_check
          %p212 = pneg %p211
        $region46: #{backbone_forward.1} parent=31 // pred_check_branch
          %214 = sbr.rel (%p212) target = $region48
        $region47: #{backbone_forward.1} parent=31 // pred_region
          %v215 = vld [vmem:[#allocation4] sm:$0xff]
          %v216 = vld [vmem:[#allocation4 + $0x8] sm:$0xff]
          %v217 = vld [vmem:[#allocation4 + $0x10] sm:$0xff]
          %v218 = vld [vmem:[#allocation4 + $0x18] sm:$0xff]
          %v219 = vpack.c.bf16 %v215, %v215
          %v220 = vpack.c.bf16 %v216, %v216
          %v221 = vpack.c.bf16 %v217, %v217
          %v222 = vpack.c.bf16 %v218, %v218
          %v223 = vld [vmem:[%s183] sm:$0xff]
          %v224 = vld [vmem:[%s183 + $0x8] sm:$0xff]
          %v225 = vld [vmem:[%s183 + $0x10] sm:$0xff]
          %v226 = vld [vmem:[%s183 + $0x18] sm:$0xff]
          %v227 = vld [vmem:[%s183 + $0x20] sm:$0xff]
          %v228 = vld [vmem:[%s183 + $0x28] sm:$0xff]
          %v229 = vld [vmem:[%s183 + $0x30] sm:$0xff]
          %v230 = vld [vmem:[%s183 + $0x38] sm:$0xff]
          %v231 = vld [vmem:[%s183 + $0x40] sm:$0xff]
          %v232 = vld [vmem:[%s183 + $0x48] sm:$0xff]
          %v233 = vld [vmem:[%s183 + $0x50] sm:$0xff]
          %v234 = vld [vmem:[%s183 + $0x58] sm:$0xff]
          %v235 = vld [vmem:[%s183 + $0x60] sm:$0xff]
          %v236 = vld [vmem:[%s183 + $0x68] sm:$0xff]
          %v237 = vld [vmem:[%s183 + $0x70] sm:$0xff]
          %v238 = vld [vmem:[%s183 + $0x78] sm:$0xff]
          %v239 = vld [vmem:[%s183 + $0x80] sm:$0xff]
          %v240 = vld [vmem:[%s183 + $0x88] sm:$0xff]
          %v241 = vld [vmem:[%s183 + $0x90] sm:$0xff]
          %v242 = vld [vmem:[%s183 + $0x98] sm:$0xff]
          %v243 = vld [vmem:[%s183 + $0xa0] sm:$0xff]
          %v244 = vld [vmem:[%s183 + $0xa8] sm:$0xff]
          %v245 = vld [vmem:[%s183 + $0xb0] sm:$0xff]
          %v246 = vld [vmem:[%s183 + $0xb8] sm:$0xff]
          %v247 = vld [vmem:[%s183 + $0xc0] sm:$0xff]
          %v248 = vld [vmem:[%s183 + $0xc8] sm:$0xff]
          %v249 = vld [vmem:[%s183 + $0xd0] sm:$0xff]
          %v250 = vld [vmem:[%s183 + $0xd8] sm:$0xff]
          %v251 = vld [vmem:[%s183 + $0xe0] sm:$0xff]
          %v252 = vld [vmem:[%s183 + $0xe8] sm:$0xff]
          %v253 = vld [vmem:[%s183 + $0xf0] sm:$0xff]
          %v254 = vld [vmem:[%s183 + $0xf8] sm:$0xff]
          %v255 = vld [vmem:[%s183 + $0x100] sm:$0xff]
          %v256 = vld [vmem:[%s183 + $0x108] sm:$0xff]
          %v257 = vld [vmem:[%s183 + $0x110] sm:$0xff]
          %v258 = vld [vmem:[%s183 + $0x118] sm:$0xff]
          %v259 = vld [vmem:[%s183 + $0x120] sm:$0xff]
          %v260 = vld [vmem:[%s183 + $0x128] sm:$0xff]
          %v261 = vld [vmem:[%s183 + $0x130] sm:$0xff]
          %v262 = vld [vmem:[%s183 + $0x138] sm:$0xff]
          %v263 = vld [vmem:[%s183 + $0x140] sm:$0xff]
          %v264 = vld [vmem:[%s183 + $0x148] sm:$0xff]
          %v265 = vld [vmem:[%s183 + $0x150] sm:$0xff]
          %v266 = vld [vmem:[%s183 + $0x158] sm:$0xff]
          %v267 = vld [vmem:[%s183 + $0x160] sm:$0xff]
          %v268 = vld [vmem:[%s183 + $0x168] sm:$0xff]
          %v269 = vld [vmem:[%s183 + $0x170] sm:$0xff]
          %v270 = vld [vmem:[%s183 + $0x178] sm:$0xff]
          %v271 = vld [vmem:[%s183 + $0x180] sm:$0xff]
          %v272 = vld [vmem:[%s183 + $0x188] sm:$0xff]
          %v273 = vld [vmem:[%s183 + $0x190] sm:$0xff]
          %v274 = vld [vmem:[%s183 + $0x198] sm:$0xff]
          %v275 = vld [vmem:[%s183 + $0x1a0] sm:$0xff]
          %v276 = vld [vmem:[%s183 + $0x1a8] sm:$0xff]
          %v277 = vld [vmem:[%s183 + $0x1b0] sm:$0xff]
          %v278 = vld [vmem:[%s183 + $0x1b8] sm:$0xff]
          %v279 = vld [vmem:[%s183 + $0x1c0] sm:$0xff]
          %v280 = vld [vmem:[%s183 + $0x1c8] sm:$0xff]
          %v281 = vld [vmem:[%s183 + $0x1d0] sm:$0xff]
          %v282 = vld [vmem:[%s183 + $0x1d8] sm:$0xff]
          %v283 = vld [vmem:[%s183 + $0x1e0] sm:$0xff]
          %v284 = vld [vmem:[%s183 + $0x1e8] sm:$0xff]
          %v285 = vld [vmem:[%s183 + $0x1f0] sm:$0xff]
          %v286 = vld [vmem:[%s183 + $0x1f8] sm:$0xff]
          %v287 = vld [vmem:[%s183 + $0x200] sm:$0xff]
          %v288 = vld [vmem:[%s183 + $0x208] sm:$0xff]
          %v289 = vld [vmem:[%s183 + $0x210] sm:$0xff]
          %v290 = vld [vmem:[%s183 + $0x218] sm:$0xff]
          %v291 = vld [vmem:[%s183 + $0x220] sm:$0xff]
          %v292 = vld [vmem:[%s183 + $0x228] sm:$0xff]
          %v293 = vld [vmem:[%s183 + $0x230] sm:$0xff]
          %v294 = vld [vmem:[%s183 + $0x238] sm:$0xff]
          %v295 = vld [vmem:[%s183 + $0x240] sm:$0xff]
          %v296 = vld [vmem:[%s183 + $0x248] sm:$0xff]
          %v297 = vld [vmem:[%s183 + $0x250] sm:$0xff]
          %v298 = vld [vmem:[%s183 + $0x258] sm:$0xff]
          %v299 = vld [vmem:[%s183 + $0x260] sm:$0xff]
          %v300 = vld [vmem:[%s183 + $0x268] sm:$0xff]
          %v301 = vld [vmem:[%s183 + $0x270] sm:$0xff]
          %v302 = vld [vmem:[%s183 + $0x278] sm:$0xff]
          %v303 = vld [vmem:[%s183 + $0x280] sm:$0xff]
          %v304 = vld [vmem:[%s183 + $0x288] sm:$0xff]
          %v305 = vld [vmem:[%s183 + $0x290] sm:$0xff]
          %v306 = vld [vmem:[%s183 + $0x298] sm:$0xff]
          %v307 = vld [vmem:[%s183 + $0x2a0] sm:$0xff]
          %v308 = vld [vmem:[%s183 + $0x2a8] sm:$0xff]
          %v309 = vld [vmem:[%s183 + $0x2b0] sm:$0xff]
          %v310 = vld [vmem:[%s183 + $0x2b8] sm:$0xff]
          %v311 = vld [vmem:[%s183 + $0x2c0] sm:$0xff]
          %v312 = vld [vmem:[%s183 + $0x2c8] sm:$0xff]
          %v313 = vld [vmem:[%s183 + $0x2d0] sm:$0xff]
          %v314 = vld [vmem:[%s183 + $0x2d8] sm:$0xff]
          %v315 = vld [vmem:[%s183 + $0x2e0] sm:$0xff]
          %v316 = vld [vmem:[%s183 + $0x2e8] sm:$0xff]
          %v317 = vld [vmem:[%s183 + $0x2f0] sm:$0xff]
          %v318 = vld [vmem:[%s183 + $0x2f8] sm:$0xff]
          %v319 = vld [vmem:[%s183 + $0x300] sm:$0xff]
          %v320 = vld [vmem:[%s183 + $0x308] sm:$0xff]
          %v321 = vld [vmem:[%s183 + $0x310] sm:$0xff]
          %v322 = vld [vmem:[%s183 + $0x318] sm:$0xff]
          %v323 = vld [vmem:[%s183 + $0x320] sm:$0xff]
          %v324 = vld [vmem:[%s183 + $0x328] sm:$0xff]
          %v325 = vld [vmem:[%s183 + $0x330] sm:$0xff]
          %v326 = vld [vmem:[%s183 + $0x338] sm:$0xff]
          %v327 = vld [vmem:[%s183 + $0x340] sm:$0xff]
          %v328 = vld [vmem:[%s183 + $0x348] sm:$0xff]
          %v329 = vld [vmem:[%s183 + $0x350] sm:$0xff]
          %v330 = vld [vmem:[%s183 + $0x358] sm:$0xff]
          %v331 = vld [vmem:[%s183 + $0x360] sm:$0xff]
          %v332 = vld [vmem:[%s183 + $0x368] sm:$0xff]
          %v333 = vld [vmem:[%s183 + $0x370] sm:$0xff]
          %v334 = vld [vmem:[%s183 + $0x378] sm:$0xff]
          %v335 = vld [vmem:[%s183 + $0x380] sm:$0xff]
          %v336 = vld [vmem:[%s183 + $0x388] sm:$0xff]
          %v337 = vld [vmem:[%s183 + $0x390] sm:$0xff]
          %v338 = vld [vmem:[%s183 + $0x398] sm:$0xff]
          %v339 = vld [vmem:[%s183 + $0x3a0] sm:$0xff]
          %v340 = vld [vmem:[%s183 + $0x3a8] sm:$0xff]
          %v341 = vld [vmem:[%s183 + $0x3b0] sm:$0xff]
          %v342 = vld [vmem:[%s183 + $0x3b8] sm:$0xff]
          %v343 = vld [vmem:[%s183 + $0x3c0] sm:$0xff]
          %v344 = vld [vmem:[%s183 + $0x3c8] sm:$0xff]
          %v345 = vld [vmem:[%s183 + $0x3d0] sm:$0xff]
          %v346 = vld [vmem:[%s183 + $0x3d8] sm:$0xff]
          %v347 = vld [vmem:[%s183 + $0x3e0] sm:$0xff]
          %v348 = vld [vmem:[%s183 + $0x3e8] sm:$0xff]
          %v349 = vld [vmem:[%s183 + $0x3f0] sm:$0xff]
          %v350 = vld [vmem:[%s183 + $0x3f8] sm:$0xff]
          %v479 = vunpack.c.l.b16 %v223
          %v480 = vunpack.c.h.b16 %v223
          %v481 = vunpack.c.l.b16 %v224
          %v482 = vunpack.c.h.b16 %v224
          %v483 = vunpack.c.l.b16 %v225
          %v484 = vunpack.c.h.b16 %v225
          %v485 = vunpack.c.l.b16 %v226
          %v486 = vunpack.c.h.b16 %v226
          %v487 = vunpack.c.l.b16 %v227
          %v488 = vunpack.c.h.b16 %v227
          %v489 = vunpack.c.l.b16 %v228
          %v490 = vunpack.c.h.b16 %v228
          %v491 = vunpack.c.l.b16 %v229
          %v492 = vunpack.c.h.b16 %v229
          %v493 = vunpack.c.l.b16 %v230
          %v494 = vunpack.c.h.b16 %v230
          %v495 = vunpack.c.l.b16 %v231
          %v496 = vunpack.c.h.b16 %v231
          %v497 = vunpack.c.l.b16 %v232
          %v498 = vunpack.c.h.b16 %v232
          %v499 = vunpack.c.l.b16 %v233
          %v500 = vunpack.c.h.b16 %v233
          %v501 = vunpack.c.l.b16 %v234
          %v502 = vunpack.c.h.b16 %v234
          %v503 = vunpack.c.l.b16 %v235
          %v504 = vunpack.c.h.b16 %v235
          %v505 = vunpack.c.l.b16 %v236
          %v506 = vunpack.c.h.b16 %v236
          %v507 = vunpack.c.l.b16 %v237
          %v508 = vunpack.c.h.b16 %v237
          %v509 = vunpack.c.l.b16 %v238
          %v510 = vunpack.c.h.b16 %v238
          %v511 = vunpack.c.l.b16 %v239
          %v512 = vunpack.c.h.b16 %v239
          %v513 = vunpack.c.l.b16 %v240
          %v514 = vunpack.c.h.b16 %v240
          %v515 = vunpack.c.l.b16 %v241
          %v516 = vunpack.c.h.b16 %v241
          %v517 = vunpack.c.l.b16 %v242
          %v518 = vunpack.c.h.b16 %v242
          %v519 = vunpack.c.l.b16 %v243
          %v520 = vunpack.c.h.b16 %v243
          %v521 = vunpack.c.l.b16 %v244
          %v522 = vunpack.c.h.b16 %v244
          %v523 = vunpack.c.l.b16 %v245
          %v524 = vunpack.c.h.b16 %v245
          %v525 = vunpack.c.l.b16 %v246
          %v526 = vunpack.c.h.b16 %v246
          %v527 = vunpack.c.l.b16 %v247
          %v528 = vunpack.c.h.b16 %v247
          %v529 = vunpack.c.l.b16 %v248
          %v530 = vunpack.c.h.b16 %v248
          %v531 = vunpack.c.l.b16 %v249
          %v532 = vunpack.c.h.b16 %v249
          %v533 = vunpack.c.l.b16 %v250
          %v534 = vunpack.c.h.b16 %v250
          %v535 = vunpack.c.l.b16 %v251
          %v536 = vunpack.c.h.b16 %v251
          %v537 = vunpack.c.l.b16 %v252
          %v538 = vunpack.c.h.b16 %v252
          %v539 = vunpack.c.l.b16 %v253
          %v540 = vunpack.c.h.b16 %v253
          %v541 = vunpack.c.l.b16 %v254
          %v542 = vunpack.c.h.b16 %v254
          %v543 = vunpack.c.l.b16 %v255
          %v544 = vunpack.c.h.b16 %v255
          %v545 = vunpack.c.l.b16 %v256
          %v546 = vunpack.c.h.b16 %v256
          %v547 = vunpack.c.l.b16 %v257
          %v548 = vunpack.c.h.b16 %v257
          %v549 = vunpack.c.l.b16 %v258
          %v550 = vunpack.c.h.b16 %v258
          %v551 = vunpack.c.l.b16 %v259
          %v552 = vunpack.c.h.b16 %v259
          %v553 = vunpack.c.l.b16 %v260
          %v554 = vunpack.c.h.b16 %v260
          %v555 = vunpack.c.l.b16 %v261
          %v556 = vunpack.c.h.b16 %v261
          %v557 = vunpack.c.l.b16 %v262
          %v558 = vunpack.c.h.b16 %v262
          %v559 = vunpack.c.l.b16 %v263
          %v560 = vunpack.c.h.b16 %v263
          %v561 = vunpack.c.l.b16 %v264
          %v562 = vunpack.c.h.b16 %v264
          %v563 = vunpack.c.l.b16 %v265
          %v564 = vunpack.c.h.b16 %v265
          %v565 = vunpack.c.l.b16 %v266
          %v566 = vunpack.c.h.b16 %v266
          %v567 = vunpack.c.l.b16 %v267
          %v568 = vunpack.c.h.b16 %v267
          %v569 = vunpack.c.l.b16 %v268
          %v570 = vunpack.c.h.b16 %v268
          %v571 = vunpack.c.l.b16 %v269
          %v572 = vunpack.c.h.b16 %v269
          %v573 = vunpack.c.l.b16 %v270
          %v574 = vunpack.c.h.b16 %v270
          %v575 = vunpack.c.l.b16 %v271
          %v576 = vunpack.c.h.b16 %v271
          %v577 = vunpack.c.l.b16 %v272
          %v578 = vunpack.c.h.b16 %v272
          %v579 = vunpack.c.l.b16 %v273
          %v580 = vunpack.c.h.b16 %v273
          %v581 = vunpack.c.l.b16 %v274
          %v582 = vunpack.c.h.b16 %v274
          %v583 = vunpack.c.l.b16 %v275
          %v584 = vunpack.c.h.b16 %v275
          %v585 = vunpack.c.l.b16 %v276
          %v586 = vunpack.c.h.b16 %v276
          %v587 = vunpack.c.l.b16 %v277
          %v588 = vunpack.c.h.b16 %v277
          %v589 = vunpack.c.l.b16 %v278
          %v590 = vunpack.c.h.b16 %v278
          %v591 = vunpack.c.l.b16 %v279
          %v592 = vunpack.c.h.b16 %v279
          %v593 = vunpack.c.l.b16 %v280
          %v594 = vunpack.c.h.b16 %v280
          %v595 = vunpack.c.l.b16 %v281
          %v596 = vunpack.c.h.b16 %v281
          %v597 = vunpack.c.l.b16 %v282
          %v598 = vunpack.c.h.b16 %v282
          %v599 = vunpack.c.l.b16 %v283
          %v600 = vunpack.c.h.b16 %v283
          %v601 = vunpack.c.l.b16 %v284
          %v602 = vunpack.c.h.b16 %v284
          %v603 = vunpack.c.l.b16 %v285
          %v604 = vunpack.c.h.b16 %v285
          %v605 = vunpack.c.l.b16 %v286
          %v606 = vunpack.c.h.b16 %v286
          %v607 = vunpack.c.l.b16 %v287
          %v608 = vunpack.c.h.b16 %v287
          %v609 = vunpack.c.l.b16 %v288
          %v610 = vunpack.c.h.b16 %v288
          %v611 = vunpack.c.l.b16 %v289
          %v612 = vunpack.c.h.b16 %v289
          %v613 = vunpack.c.l.b16 %v290
          %v614 = vunpack.c.h.b16 %v290
          %v615 = vunpack.c.l.b16 %v291
          %v616 = vunpack.c.h.b16 %v291
          %v617 = vunpack.c.l.b16 %v292
          %v618 = vunpack.c.h.b16 %v292
          %v619 = vunpack.c.l.b16 %v293
          %v620 = vunpack.c.h.b16 %v293
          %v621 = vunpack.c.l.b16 %v294
          %v622 = vunpack.c.h.b16 %v294
          %v623 = vunpack.c.l.b16 %v295
          %v624 = vunpack.c.h.b16 %v295
          %v625 = vunpack.c.l.b16 %v296
          %v626 = vunpack.c.h.b16 %v296
          %v627 = vunpack.c.l.b16 %v297
          %v628 = vunpack.c.h.b16 %v297
          %v629 = vunpack.c.l.b16 %v298
          %v630 = vunpack.c.h.b16 %v298
          %v631 = vunpack.c.l.b16 %v299
          %v632 = vunpack.c.h.b16 %v299
          %v633 = vunpack.c.l.b16 %v300
          %v634 = vunpack.c.h.b16 %v300
          %v635 = vunpack.c.l.b16 %v301
          %v636 = vunpack.c.h.b16 %v301
          %v637 = vunpack.c.l.b16 %v302
          %v638 = vunpack.c.h.b16 %v302
          %v639 = vunpack.c.l.b16 %v303
          %v640 = vunpack.c.h.b16 %v303
          %v641 = vunpack.c.l.b16 %v304
          %v642 = vunpack.c.h.b16 %v304
          %v643 = vunpack.c.l.b16 %v305
          %v644 = vunpack.c.h.b16 %v305
          %v645 = vunpack.c.l.b16 %v306
          %v646 = vunpack.c.h.b16 %v306
          %v647 = vunpack.c.l.b16 %v307
          %v648 = vunpack.c.h.b16 %v307
          %v649 = vunpack.c.l.b16 %v308
          %v650 = vunpack.c.h.b16 %v308
          %v651 = vunpack.c.l.b16 %v309
          %v652 = vunpack.c.h.b16 %v309
          %v653 = vunpack.c.l.b16 %v310
          %v654 = vunpack.c.h.b16 %v310
          %v655 = vunpack.c.l.b16 %v311
          %v656 = vunpack.c.h.b16 %v311
          %v657 = vunpack.c.l.b16 %v312
          %v658 = vunpack.c.h.b16 %v312
          %v659 = vunpack.c.l.b16 %v313
          %v660 = vunpack.c.h.b16 %v313
          %v661 = vunpack.c.l.b16 %v314
          %v662 = vunpack.c.h.b16 %v314
          %v663 = vunpack.c.l.b16 %v315
          %v664 = vunpack.c.h.b16 %v315
          %v665 = vunpack.c.l.b16 %v316
          %v666 = vunpack.c.h.b16 %v316
          %v667 = vunpack.c.l.b16 %v317
          %v668 = vunpack.c.h.b16 %v317
          %v669 = vunpack.c.l.b16 %v318
          %v670 = vunpack.c.h.b16 %v318
          %v671 = vunpack.c.l.b16 %v319
          %v672 = vunpack.c.h.b16 %v319
          %v673 = vunpack.c.l.b16 %v320
          %v674 = vunpack.c.h.b16 %v320
          %v675 = vunpack.c.l.b16 %v321
          %v676 = vunpack.c.h.b16 %v321
          %v677 = vunpack.c.l.b16 %v322
          %v678 = vunpack.c.h.b16 %v322
          %v679 = vunpack.c.l.b16 %v323
          %v680 = vunpack.c.h.b16 %v323
          %v681 = vunpack.c.l.b16 %v324
          %v682 = vunpack.c.h.b16 %v324
          %v683 = vunpack.c.l.b16 %v325
          %v684 = vunpack.c.h.b16 %v325
          %v685 = vunpack.c.l.b16 %v326
          %v686 = vunpack.c.h.b16 %v326
          %v687 = vunpack.c.l.b16 %v327
          %v688 = vunpack.c.h.b16 %v327
          %v689 = vunpack.c.l.b16 %v328
          %v690 = vunpack.c.h.b16 %v328
          %v691 = vunpack.c.l.b16 %v329
          %v692 = vunpack.c.h.b16 %v329
          %v693 = vunpack.c.l.b16 %v330
          %v694 = vunpack.c.h.b16 %v330
          %v695 = vunpack.c.l.b16 %v331
          %v696 = vunpack.c.h.b16 %v331
          %v697 = vunpack.c.l.b16 %v332
          %v698 = vunpack.c.h.b16 %v332
          %v699 = vunpack.c.l.b16 %v333
          %v700 = vunpack.c.h.b16 %v333
          %v701 = vunpack.c.l.b16 %v334
          %v702 = vunpack.c.h.b16 %v334
          %v703 = vunpack.c.l.b16 %v335
          %v704 = vunpack.c.h.b16 %v335
          %v705 = vunpack.c.l.b16 %v336
          %v706 = vunpack.c.h.b16 %v336
          %v707 = vunpack.c.l.b16 %v337
          %v708 = vunpack.c.h.b16 %v337
          %v709 = vunpack.c.l.b16 %v338
          %v710 = vunpack.c.h.b16 %v338
          %v711 = vunpack.c.l.b16 %v339
          %v712 = vunpack.c.h.b16 %v339
          %v713 = vunpack.c.l.b16 %v340
          %v714 = vunpack.c.h.b16 %v340
          %v715 = vunpack.c.l.b16 %v341
          %v716 = vunpack.c.h.b16 %v341
          %v717 = vunpack.c.l.b16 %v342
          %v718 = vunpack.c.h.b16 %v342
          %v719 = vunpack.c.l.b16 %v343
          %v720 = vunpack.c.h.b16 %v343
          %v721 = vunpack.c.l.b16 %v344
          %v722 = vunpack.c.h.b16 %v344
          %v723 = vunpack.c.l.b16 %v345
          %v724 = vunpack.c.h.b16 %v345
          %v725 = vunpack.c.l.b16 %v346
          %v726 = vunpack.c.h.b16 %v346
          %v727 = vunpack.c.l.b16 %v347
          %v728 = vunpack.c.h.b16 %v347
          %v729 = vunpack.c.l.b16 %v348
          %v730 = vunpack.c.h.b16 %v348
          %v731 = vunpack.c.l.b16 %v349
          %v732 = vunpack.c.h.b16 %v349
          %v733 = vunpack.c.l.b16 %v350
          %v734 = vunpack.c.h.b16 %v350
          %v735 = vpack.c.b16 %v483, %v479
          %v736 = vpack.c.b16 %v484, %v480
          %v737 = vpack.c.b16 %v485, %v481
          %v738 = vpack.c.b16 %v486, %v482
          %v739 = vpack.c.b16 %v491, %v487
          %v740 = vpack.c.b16 %v492, %v488
          %v741 = vpack.c.b16 %v493, %v489
          %v742 = vpack.c.b16 %v494, %v490
          %v743 = vpack.c.b16 %v499, %v495
          %v744 = vpack.c.b16 %v500, %v496
          %v745 = vpack.c.b16 %v501, %v497
          %v746 = vpack.c.b16 %v502, %v498
          %v747 = vpack.c.b16 %v507, %v503
          %v748 = vpack.c.b16 %v508, %v504
          %v749 = vpack.c.b16 %v509, %v505
          %v750 = vpack.c.b16 %v510, %v506
          %v751 = vpack.c.b16 %v515, %v511
          %v752 = vpack.c.b16 %v516, %v512
          %v753 = vpack.c.b16 %v517, %v513
          %v754 = vpack.c.b16 %v518, %v514
          %v755 = vpack.c.b16 %v523, %v519
          %v756 = vpack.c.b16 %v524, %v520
          %v757 = vpack.c.b16 %v525, %v521
          %v758 = vpack.c.b16 %v526, %v522
          %v759 = vpack.c.b16 %v531, %v527
          %v760 = vpack.c.b16 %v532, %v528
          %v761 = vpack.c.b16 %v533, %v529
          %v762 = vpack.c.b16 %v534, %v530
          %v763 = vpack.c.b16 %v539, %v535
          %v764 = vpack.c.b16 %v540, %v536
          %v765 = vpack.c.b16 %v541, %v537
          %v766 = vpack.c.b16 %v542, %v538
          %v767 = vpack.c.b16 %v547, %v543
          %v768 = vpack.c.b16 %v548, %v544
          %v769 = vpack.c.b16 %v549, %v545
          %v770 = vpack.c.b16 %v550, %v546
          %v771 = vpack.c.b16 %v555, %v551
          %v772 = vpack.c.b16 %v556, %v552
          %v773 = vpack.c.b16 %v557, %v553
          %v774 = vpack.c.b16 %v558, %v554
          %v775 = vpack.c.b16 %v563, %v559
          %v776 = vpack.c.b16 %v564, %v560
          %v777 = vpack.c.b16 %v565, %v561
          %v778 = vpack.c.b16 %v566, %v562
          %v779 = vpack.c.b16 %v571, %v567
          %v780 = vpack.c.b16 %v572, %v568
          %v781 = vpack.c.b16 %v573, %v569
          %v782 = vpack.c.b16 %v574, %v570
          %v783 = vpack.c.b16 %v579, %v575
          %v784 = vpack.c.b16 %v580, %v576
          %v785 = vpack.c.b16 %v581, %v577
          %v786 = vpack.c.b16 %v582, %v578
          %v787 = vpack.c.b16 %v587, %v583
          %v788 = vpack.c.b16 %v588, %v584
          %v789 = vpack.c.b16 %v589, %v585
          %v790 = vpack.c.b16 %v590, %v586
          %v791 = vpack.c.b16 %v595, %v591
          %v792 = vpack.c.b16 %v596, %v592
          %v793 = vpack.c.b16 %v597, %v593
          %v794 = vpack.c.b16 %v598, %v594
          %v795 = vpack.c.b16 %v603, %v599
          %v796 = vpack.c.b16 %v604, %v600
          %v797 = vpack.c.b16 %v605, %v601
          %v798 = vpack.c.b16 %v606, %v602
          %v799 = vpack.c.b16 %v611, %v607
          %v800 = vpack.c.b16 %v612, %v608
          %v801 = vpack.c.b16 %v613, %v609
          %v802 = vpack.c.b16 %v614, %v610
          %v803 = vpack.c.b16 %v619, %v615
          %v804 = vpack.c.b16 %v620, %v616
          %v805 = vpack.c.b16 %v621, %v617
          %v806 = vpack.c.b16 %v622, %v618
          %v807 = vpack.c.b16 %v627, %v623
          %v808 = vpack.c.b16 %v628, %v624
          %v809 = vpack.c.b16 %v629, %v625
          %v810 = vpack.c.b16 %v630, %v626
          %v811 = vpack.c.b16 %v635, %v631
          %v812 = vpack.c.b16 %v636, %v632
          %v813 = vpack.c.b16 %v637, %v633
          %v814 = vpack.c.b16 %v638, %v634
          %v815 = vpack.c.b16 %v643, %v639
          %v816 = vpack.c.b16 %v644, %v640
          %v817 = vpack.c.b16 %v645, %v641
          %v818 = vpack.c.b16 %v646, %v642
          %v819 = vpack.c.b16 %v651, %v647
          %v820 = vpack.c.b16 %v652, %v648
          %v821 = vpack.c.b16 %v653, %v649
          %v822 = vpack.c.b16 %v654, %v650
          %v823 = vpack.c.b16 %v659, %v655
          %v824 = vpack.c.b16 %v660, %v656
          %v825 = vpack.c.b16 %v661, %v657
          %v826 = vpack.c.b16 %v662, %v658
          %v827 = vpack.c.b16 %v667, %v663
          %v828 = vpack.c.b16 %v668, %v664
          %v829 = vpack.c.b16 %v669, %v665
          %v830 = vpack.c.b16 %v670, %v666
          %v831 = vpack.c.b16 %v675, %v671
          %v832 = vpack.c.b16 %v676, %v672
          %v833 = vpack.c.b16 %v677, %v673
          %v834 = vpack.c.b16 %v678, %v674
          %v835 = vpack.c.b16 %v683, %v679
          %v836 = vpack.c.b16 %v684, %v680
          %v837 = vpack.c.b16 %v685, %v681
          %v838 = vpack.c.b16 %v686, %v682
          %v839 = vpack.c.b16 %v691, %v687
          %v840 = vpack.c.b16 %v692, %v688
          %v841 = vpack.c.b16 %v693, %v689
          %v842 = vpack.c.b16 %v694, %v690
          %v843 = vpack.c.b16 %v699, %v695
          %v844 = vpack.c.b16 %v700, %v696
          %v845 = vpack.c.b16 %v701, %v697
          %v846 = vpack.c.b16 %v702, %v698
          %v847 = vpack.c.b16 %v707, %v703
          %v848 = vpack.c.b16 %v708, %v704
          %v849 = vpack.c.b16 %v709, %v705
          %v850 = vpack.c.b16 %v710, %v706
          %v851 = vpack.c.b16 %v715, %v711
          %v852 = vpack.c.b16 %v716, %v712
          %v853 = vpack.c.b16 %v717, %v713
          %v854 = vpack.c.b16 %v718, %v714
          %v855 = vpack.c.b16 %v723, %v719
          %v856 = vpack.c.b16 %v724, %v720
          %v857 = vpack.c.b16 %v725, %v721
          %v858 = vpack.c.b16 %v726, %v722
          %v859 = vpack.c.b16 %v731, %v727
          %v860 = vpack.c.b16 %v732, %v728
          %v861 = vpack.c.b16 %v733, %v729
          %v862 = vpack.c.b16 %v734, %v730
          %991 = vmatprep.subr.bf16.mxu0 %v736
          %992 = vmatpush1.bf16.msra.mxu0 %v735
          %993 = vmatprep.subr.bf16.mxu0 %v740
          %994 = vmatpush1.bf16.msra.mxu0 %v739
          %995 = vmatprep.subr.bf16.mxu0 %v744
          %996 = vmatpush1.bf16.msra.mxu0 %v743
          %997 = vmatprep.subr.bf16.mxu0 %v748
          %998 = vmatpush1.bf16.msra.mxu0 %v747
          %999 = vmatprep.subr.bf16.mxu0 %v752
          %1000 = vmatpush1.bf16.msra.mxu0 %v751
          %1001 = vmatprep.subr.bf16.mxu0 %v756
          %1002 = vmatpush1.bf16.msra.mxu0 %v755
          %1003 = vmatprep.subr.bf16.mxu0 %v760
          %1004 = vmatpush1.bf16.msra.mxu0 %v759
          %1005 = vmatprep.subr.bf16.mxu0 %v764
          %1006 = vmatpush1.bf16.msra.mxu0 %v763
          %1007 = vmatprep.subr.bf16.mxu0 %v768
          %1008 = vmatpush1.bf16.msra.mxu0 %v767
          %1009 = vmatprep.subr.bf16.mxu0 %v772
          %1010 = vmatpush1.bf16.msra.mxu0 %v771
          %1011 = vmatprep.subr.bf16.mxu0 %v776
          %1012 = vmatpush1.bf16.msra.mxu0 %v775
          %1013 = vmatprep.subr.bf16.mxu0 %v780
          %1014 = vmatpush1.bf16.msra.mxu0 %v779
          %1015 = vmatprep.subr.bf16.mxu0 %v784
          %1016 = vmatpush1.bf16.msra.mxu0 %v783
          %1017 = vmatprep.subr.bf16.mxu0 %v788
          %1018 = vmatpush1.bf16.msra.mxu0 %v787
          %1019 = vmatprep.subr.bf16.mxu0 %v792
          %1020 = vmatpush1.bf16.msra.mxu0 %v791
          %1021 = vmatprep.subr.bf16.mxu0 %v796
          %1022 = vmatpush1.bf16.msra.mxu0 %v795
          %1023 = vmatprep.mubr.bf16.mxu0 %v220
          %1024 = vmatmul.mubr.bf16.gmra.mrb[0].mxu0 %v219
          %v1025 = vpop.f32.mrb[0].mxu0
          %v1026 = vadd.f32 0.0, %v1025
          %v1027 = vpop.f32.mrb[0].mxu0
          %v1028 = vadd.f32 0.0, %v1027
          %v1029 = vpop.f32.mrb[0].mxu0
          %v1030 = vpop.f32.mrb[0].mxu0
          %1031 = vdwg.mxu0
          %1032 = vmatprep.subr.bf16.mxu0 %v800
          %1033 = vmatpush1.bf16.msra.mxu0 %v799
          %1034 = vmatprep.subr.bf16.mxu0 %v804
          %1035 = vmatpush1.bf16.msra.mxu0 %v803
          %1036 = vmatprep.subr.bf16.mxu0 %v808
          %1037 = vmatpush1.bf16.msra.mxu0 %v807
          %1038 = vmatprep.subr.bf16.mxu0 %v812
          %1039 = vmatpush1.bf16.msra.mxu0 %v811
          %1040 = vmatprep.subr.bf16.mxu0 %v816
          %1041 = vmatpush1.bf16.msra.mxu0 %v815
          %1042 = vmatprep.subr.bf16.mxu0 %v820
          %1043 = vmatpush1.bf16.msra.mxu0 %v819
          %1044 = vmatprep.subr.bf16.mxu0 %v824
          %1045 = vmatpush1.bf16.msra.mxu0 %v823
          %1046 = vmatprep.subr.bf16.mxu0 %v828
          %1047 = vmatpush1.bf16.msra.mxu0 %v827
          %1048 = vmatprep.subr.bf16.mxu0 %v832
          %1049 = vmatpush1.bf16.msra.mxu0 %v831
          %1050 = vmatprep.subr.bf16.mxu0 %v836
          %1051 = vmatpush1.bf16.msra.mxu0 %v835
          %1052 = vmatprep.subr.bf16.mxu0 %v840
          %1053 = vmatpush1.bf16.msra.mxu0 %v839
          %1054 = vmatprep.subr.bf16.mxu0 %v844
          %1055 = vmatpush1.bf16.msra.mxu0 %v843
          %1056 = vmatprep.subr.bf16.mxu0 %v848
          %1057 = vmatpush1.bf16.msra.mxu0 %v847
          %1058 = vmatprep.subr.bf16.mxu0 %v852
          %1059 = vmatpush1.bf16.msra.mxu0 %v851
          %1060 = vmatprep.subr.bf16.mxu0 %v856
          %1061 = vmatpush1.bf16.msra.mxu0 %v855
          %1062 = vmatprep.subr.bf16.mxu0 %v860
          %1063 = vmatpush1.bf16.msra.mxu0 %v859
          %1064 = vmatprep.mubr.bf16.mxu0 %v222
          %1065 = vmatmul.mubr.bf16.gmra.mrb[0].mxu0 %v221
          %v1066 = vpop.f32.mrb[0].mxu0
          %v1067 = vadd.f32 %v1026, %v1066
          %v1068 = vpop.f32.mrb[0].mxu0
          %v1069 = vadd.f32 %v1028, %v1068
          %v1070 = vpop.f32.mrb[0].mxu0
          %v1071 = vpop.f32.mrb[0].mxu0
          %1072 = vdwg.mxu0
          %1073 = vmatprep.subr.bf16.mxu0 %v738
          %1074 = vmatpush1.bf16.msra.mxu0 %v737
          %1075 = vmatprep.subr.bf16.mxu0 %v742
          %1076 = vmatpush1.bf16.msra.mxu0 %v741
          %1077 = vmatprep.subr.bf16.mxu0 %v746
          %1078 = vmatpush1.bf16.msra.mxu0 %v745
          %1079 = vmatprep.subr.bf16.mxu0 %v750
          %1080 = vmatpush1.bf16.msra.mxu0 %v749
          %1081 = vmatprep.subr.bf16.mxu0 %v754
          %1082 = vmatpush1.bf16.msra.mxu0 %v753
          %1083 = vmatprep.subr.bf16.mxu0 %v758
          %1084 = vmatpush1.bf16.msra.mxu0 %v757
          %1085 = vmatprep.subr.bf16.mxu0 %v762
          %1086 = vmatpush1.bf16.msra.mxu0 %v761
          %1087 = vmatprep.subr.bf16.mxu0 %v766
          %1088 = vmatpush1.bf16.msra.mxu0 %v765
          %1089 = vmatprep.subr.bf16.mxu0 %v770
          %1090 = vmatpush1.bf16.msra.mxu0 %v769
          %1091 = vmatprep.subr.bf16.mxu0 %v774
          %1092 = vmatpush1.bf16.msra.mxu0 %v773
          %1093 = vmatprep.subr.bf16.mxu0 %v778
          %1094 = vmatpush1.bf16.msra.mxu0 %v777
          %1095 = vmatprep.subr.bf16.mxu0 %v782
          %1096 = vmatpush1.bf16.msra.mxu0 %v781
          %1097 = vmatprep.subr.bf16.mxu0 %v786
          %1098 = vmatpush1.bf16.msra.mxu0 %v785
          %1099 = vmatprep.subr.bf16.mxu0 %v790
          %1100 = vmatpush1.bf16.msra.mxu0 %v789
          %1101 = vmatprep.subr.bf16.mxu0 %v794
          %1102 = vmatpush1.bf16.msra.mxu0 %v793
          %1103 = vmatprep.subr.bf16.mxu0 %v798
          %1104 = vmatpush1.bf16.msra.mxu0 %v797
          %1105 = vmatprep.mubr.bf16.mxu0 %v220
          %1106 = vmatmul.mubr.bf16.gmra.mrb[0].mxu0 %v219
          %v1107 = vpop.f32.mrb[0].mxu0
          %v1108 = vadd.f32 0.0, %v1107
          %v1109 = vpop.f32.mrb[0].mxu0
          %v1110 = vadd.f32 0.0, %v1109
          %v1111 = vpop.f32.mrb[0].mxu0
          %v1112 = vpop.f32.mrb[0].mxu0
          %1113 = vdwg.mxu0
          %1114 = vmatprep.subr.bf16.mxu0 %v802
          %1115 = vmatpush1.bf16.msra.mxu0 %v801
          %1116 = vmatprep.subr.bf16.mxu0 %v806
          %1117 = vmatpush1.bf16.msra.mxu0 %v805
          %1118 = vmatprep.subr.bf16.mxu0 %v810
          %1119 = vmatpush1.bf16.msra.mxu0 %v809
          %1120 = vmatprep.subr.bf16.mxu0 %v814
          %1121 = vmatpush1.bf16.msra.mxu0 %v813
          %1122 = vmatprep.subr.bf16.mxu0 %v818
          %1123 = vmatpush1.bf16.msra.mxu0 %v817
          %1124 = vmatprep.subr.bf16.mxu0 %v822
          %1125 = vmatpush1.bf16.msra.mxu0 %v821
          %1126 = vmatprep.subr.bf16.mxu0 %v826
          %1127 = vmatpush1.bf16.msra.mxu0 %v825
          %1128 = vmatprep.subr.bf16.mxu0 %v830
          %1129 = vmatpush1.bf16.msra.mxu0 %v829
          %1130 = vmatprep.subr.bf16.mxu0 %v834
          %1131 = vmatpush1.bf16.msra.mxu0 %v833
          %1132 = vmatprep.subr.bf16.mxu0 %v838
          %1133 = vmatpush1.bf16.msra.mxu0 %v837
          %1134 = vmatprep.subr.bf16.mxu0 %v842
          %1135 = vmatpush1.bf16.msra.mxu0 %v841
          %1136 = vmatprep.subr.bf16.mxu0 %v846
          %1137 = vmatpush1.bf16.msra.mxu0 %v845
          %1138 = vmatprep.subr.bf16.mxu0 %v850
          %1139 = vmatpush1.bf16.msra.mxu0 %v849
          %1140 = vmatprep.subr.bf16.mxu0 %v854
          %1141 = vmatpush1.bf16.msra.mxu0 %v853
          %1142 = vmatprep.subr.bf16.mxu0 %v858
          %1143 = vmatpush1.bf16.msra.mxu0 %v857
          %1144 = vmatprep.subr.bf16.mxu0 %v862
          %1145 = vmatpush1.bf16.msra.mxu0 %v861
          %1146 = vmatprep.mubr.bf16.mxu0 %v222
          %1147 = vmatmul.mubr.bf16.gmra.mrb[0].mxu0 %v221
          %v1148 = vpop.f32.mrb[0].mxu0
          %v1149 = vadd.f32 %v1108, %v1148
          %v1150 = vpop.f32.mrb[0].mxu0
          %v1151 = vadd.f32 %v1110, %v1150
          %v1152 = vpop.f32.mrb[0].mxu0
          %v1153 = vpop.f32.mrb[0].mxu0
          %1154 = vdwg.mxu0
          %v1157 = vlaneseq
          %v1158 = vshrl.u32 %v1157, 7
          %v1159 = vsub.s32 0, %v1158
          %v1160 = vrot.slane %v209, %v1159
          %v1161 = vlaneseq
          %v1162 = vshrl.u32 %v1161, 7
          %v1163 = vsub.s32 4, %v1162
          %v1164 = vrot.slane %v209, %v1163
          %v1165 = vlaneseq
          %v1166 = vshrl.u32 %v1165, 7
          %v1167 = vsub.s32 0, %v1166
          %v1168 = vrot.slane %v210, %v1167
          %v1169 = vlaneseq
          %v1170 = vshrl.u32 %v1169, 7
          %v1171 = vsub.s32 4, %v1170
          %v1172 = vrot.slane %v210, %v1171
          %v1177 = vlaneseq
          %v1178 = vshrl.u32 %v1177, 7
          %v1179 = vsub.s32 0, %v1178
          %v1180 = vrot.slane %v1160, %v1179
          %v1181 = vlaneseq
          %v1182 = vshrl.u32 %v1181, 7
          %v1183 = vsub.s32 0, %v1182
          %v1184 = vrot.slane %v1164, %v1183
          %v1185 = vlaneseq
          %v1186 = vshrl.u32 %v1185, 7
          %v1187 = vsub.s32 0, %v1186
          %v1188 = vrot.slane %v1168, %v1187
          %v1189 = vlaneseq
          %v1190 = vshrl.u32 %v1189, 7
          %v1191 = vsub.s32 0, %v1190
          %v1192 = vrot.slane %v1172, %v1191
          %v1193 = vadd.f32 %v1180, %v1067
          %v1194 = vadd.f32 %v1184, %v1069
          %v1195 = vadd.f32 %v1188, %v1149
          %v1196 = vadd.f32 %v1192, %v1151
          %v1197 = vld [vmem:[#allocation4 + $0x20] sm:$0xff]
          %v1198 = vld [vmem:[#allocation4 + $0x28] sm:$0xff]
          %v1199 = vld [vmem:[#allocation4 + $0x30] sm:$0xff]
          %v1200 = vld [vmem:[#allocation4 + $0x38] sm:$0xff]
          %v1201 = vpack.c.bf16 %v1197, %v1197
          %v1202 = vpack.c.bf16 %v1198, %v1198
          %v1203 = vpack.c.bf16 %v1199, %v1199
          %v1204 = vpack.c.bf16 %v1200, %v1200
          %s1205 = scalar_lea.vmem %s183, 1024 [#allocation7]
          %v1206 = vld [vmem:[%s1205] sm:$0xff]
          %v1207 = vld [vmem:[%s1205 + $0x8] sm:$0xff]
          %v1208 = vld [vmem:[%s1205 + $0x10] sm:$0xff]
          %v1209 = vld [vmem:[%s1205 + $0x18] sm:$0xff]
          %v1210 = vld [vmem:[%s1205 + $0x20] sm:$0xff]
          %v1211 = vld [vmem:[%s1205 + $0x28] sm:$0xff]
          %v1212 = vld [vmem:[%s1205 + $0x30] sm:$0xff]
          %v1213 = vld [vmem:[%s1205 + $0x38] sm:$0xff]
          %v1214 = vld [vmem:[%s1205 + $0x40] sm:$0xff]
          %v1215 = vld [vmem:[%s1205 + $0x48] sm:$0xff]
          %v1216 = vld [vmem:[%s1205 + $0x50] sm:$0xff]
          %v1217 = vld [vmem:[%s1205 + $0x58] sm:$0xff]
          %v1218 = vld [vmem:[%s1205 + $0x60] sm:$0xff]
          %v1219 = vld [vmem:[%s1205 + $0x68] sm:$0xff]
          %v1220 = vld [vmem:[%s1205 + $0x70] sm:$0xff]
          %v1221 = vld [vmem:[%s1205 + $0x78] sm:$0xff]
          %v1222 = vld [vmem:[%s1205 + $0x80] sm:$0xff]
          %v1223 = vld [vmem:[%s1205 + $0x88] sm:$0xff]
          %v1224 = vld [vmem:[%s1205 + $0x90] sm:$0xff]
          %v1225 = vld [vmem:[%s1205 + $0x98] sm:$0xff]
          %v1226 = vld [vmem:[%s1205 + $0xa0] sm:$0xff]
          %v1227 = vld [vmem:[%s1205 + $0xa8] sm:$0xff]
          %v1228 = vld [vmem:[%s1205 + $0xb0] sm:$0xff]
          %v1229 = vld [vmem:[%s1205 + $0xb8] sm:$0xff]
          %v1230 = vld [vmem:[%s1205 + $0xc0] sm:$0xff]
          %v1231 = vld [vmem:[%s1205 + $0xc8] sm:$0xff]
          %v1232 = vld [vmem:[%s1205 + $0xd0] sm:$0xff]
          %v1233 = vld [vmem:[%s1205 + $0xd8] sm:$0xff]
          %v1234 = vld [vmem:[%s1205 + $0xe0] sm:$0xff]
          %v1235 = vld [vmem:[%s1205 + $0xe8] sm:$0xff]
          %v1236 = vld [vmem:[%s1205 + $0xf0] sm:$0xff]
          %v1237 = vld [vmem:[%s1205 + $0xf8] sm:$0xff]
          %v1238 = vld [vmem:[%s1205 + $0x100] sm:$0xff]
          %v1239 = vld [vmem:[%s1205 + $0x108] sm:$0xff]
          %v1240 = vld [vmem:[%s1205 + $0x110] sm:$0xff]
          %v1241 = vld [vmem:[%s1205 + $0x118] sm:$0xff]
          %v1242 = vld [vmem:[%s1205 + $0x120] sm:$0xff]
          %v1243 = vld [vmem:[%s1205 + $0x128] sm:$0xff]
          %v1244 = vld [vmem:[%s1205 + $0x130] sm:$0xff]
          %v1245 = vld [vmem:[%s1205 + $0x138] sm:$0xff]
          %v1246 = vld [vmem:[%s1205 + $0x140] sm:$0xff]
          %v1247 = vld [vmem:[%s1205 + $0x148] sm:$0xff]
          %v1248 = vld [vmem:[%s1205 + $0x150] sm:$0xff]
          %v1249 = vld [vmem:[%s1205 + $0x158] sm:$0xff]
          %v1250 = vld [vmem:[%s1205 + $0x160] sm:$0xff]
          %v1251 = vld [vmem:[%s1205 + $0x168] sm:$0xff]
          %v1252 = vld [vmem:[%s1205 + $0x170] sm:$0xff]
          %v1253 = vld [vmem:[%s1205 + $0x178] sm:$0xff]
          %v1254 = vld [vmem:[%s1205 + $0x180] sm:$0xff]
          %v1255 = vld [vmem:[%s1205 + $0x188] sm:$0xff]
          %v1256 = vld [vmem:[%s1205 + $0x190] sm:$0xff]
          %v1257 = vld [vmem:[%s1205 + $0x198] sm:$0xff]
          %v1258 = vld [vmem:[%s1205 + $0x1a0] sm:$0xff]
          %v1259 = vld [vmem:[%s1205 + $0x1a8] sm:$0xff]
          %v1260 = vld [vmem:[%s1205 + $0x1b0] sm:$0xff]
          %v1261 = vld [vmem:[%s1205 + $0x1b8] sm:$0xff]
          %v1262 = vld [vmem:[%s1205 + $0x1c0] sm:$0xff]
          %v1263 = vld [vmem:[%s1205 + $0x1c8] sm:$0xff]
          %v1264 = vld [vmem:[%s1205 + $0x1d0] sm:$0xff]
          %v1265 = vld [vmem:[%s1205 + $0x1d8] sm:$0xff]
          %v1266 = vld [vmem:[%s1205 + $0x1e0] sm:$0xff]
          %v1267 = vld [vmem:[%s1205 + $0x1e8] sm:$0xff]
          %v1268 = vld [vmem:[%s1205 + $0x1f0] sm:$0xff]
          %v1269 = vld [vmem:[%s1205 + $0x1f8] sm:$0xff]
          %v1270 = vld [vmem:[%s1205 + $0x200] sm:$0xff]
          %v1271 = vld [vmem:[%s1205 + $0x208] sm:$0xff]
          %v1272 = vld [vmem:[%s1205 + $0x210] sm:$0xff]
          %v1273 = vld [vmem:[%s1205 + $0x218] sm:$0xff]
          %v1274 = vld [vmem:[%s1205 + $0x220] sm:$0xff]
          %v1275 = vld [vmem:[%s1205 + $0x228] sm:$0xff]
          %v1276 = vld [vmem:[%s1205 + $0x230] sm:$0xff]
          %v1277 = vld [vmem:[%s1205 + $0x238] sm:$0xff]
          %v1278 = vld [vmem:[%s1205 + $0x240] sm:$0xff]
          %v1279 = vld [vmem:[%s1205 + $0x248] sm:$0xff]
          %v1280 = vld [vmem:[%s1205 + $0x250] sm:$0xff]
          %v1281 = vld [vmem:[%s1205 + $0x258] sm:$0xff]
          %v1282 = vld [vmem:[%s1205 + $0x260] sm:$0xff]
          %v1283 = vld [vmem:[%s1205 + $0x268] sm:$0xff]
          %v1284 = vld [vmem:[%s1205 + $0x270] sm:$0xff]
          %v1285 = vld [vmem:[%s1205 + $0x278] sm:$0xff]
          %v1286 = vld [vmem:[%s1205 + $0x280] sm:$0xff]
          %v1287 = vld [vmem:[%s1205 + $0x288] sm:$0xff]
          %v1288 = vld [vmem:[%s1205 + $0x290] sm:$0xff]
          %v1289 = vld [vmem:[%s1205 + $0x298] sm:$0xff]
          %v1290 = vld [vmem:[%s1205 + $0x2a0] sm:$0xff]
          %v1291 = vld [vmem:[%s1205 + $0x2a8] sm:$0xff]
          %v1292 = vld [vmem:[%s1205 + $0x2b0] sm:$0xff]
          %v1293 = vld [vmem:[%s1205 + $0x2b8] sm:$0xff]
          %v1294 = vld [vmem:[%s1205 + $0x2c0] sm:$0xff]
          %v1295 = vld [vmem:[%s1205 + $0x2c8] sm:$0xff]
          %v1296 = vld [vmem:[%s1205 + $0x2d0] sm:$0xff]
          %v1297 = vld [vmem:[%s1205 + $0x2d8] sm:$0xff]
          %v1298 = vld [vmem:[%s1205 + $0x2e0] sm:$0xff]
          %v1299 = vld [vmem:[%s1205 + $0x2e8] sm:$0xff]
          %v1300 = vld [vmem:[%s1205 + $0x2f0] sm:$0xff]
          %v1301 = vld [vmem:[%s1205 + $0x2f8] sm:$0xff]
          %v1302 = vld [vmem:[%s1205 + $0x300] sm:$0xff]
          %v1303 = vld [vmem:[%s1205 + $0x308] sm:$0xff]
          %v1304 = vld [vmem:[%s1205 + $0x310] sm:$0xff]
          %v1305 = vld [vmem:[%s1205 + $0x318] sm:$0xff]
          %v1306 = vld [vmem:[%s1205 + $0x320] sm:$0xff]
          %v1307 = vld [vmem:[%s1205 + $0x328] sm:$0xff]
          %v1308 = vld [vmem:[%s1205 + $0x330] sm:$0xff]
          %v1309 = vld [vmem:[%s1205 + $0x338] sm:$0xff]
          %v1310 = vld [vmem:[%s1205 + $0x340] sm:$0xff]
          %v1311 = vld [vmem:[%s1205 + $0x348] sm:$0xff]
          %v1312 = vld [vmem:[%s1205 + $0x350] sm:$0xff]
          %v1313 = vld [vmem:[%s1205 + $0x358] sm:$0xff]
          %v1314 = vld [vmem:[%s1205 + $0x360] sm:$0xff]
          %v1315 = vld [vmem:[%s1205 + $0x368] sm:$0xff]
          %v1316 = vld [vmem:[%s1205 + $0x370] sm:$0xff]
          %v1317 = vld [vmem:[%s1205 + $0x378] sm:$0xff]
          %v1318 = vld [vmem:[%s1205 + $0x380] sm:$0xff]
          %v1319 = vld [vmem:[%s1205 + $0x388] sm:$0xff]
          %v1320 = vld [vmem:[%s1205 + $0x390] sm:$0xff]
          %v1321 = vld [vmem:[%s1205 + $0x398] sm:$0xff]
          %v1322 = vld [vmem:[%s1205 + $0x3a0] sm:$0xff]
          %v1323 = vld [vmem:[%s1205 + $0x3a8] sm:$0xff]
          %v1324 = vld [vmem:[%s1205 + $0x3b0] sm:$0xff]
          %v1325 = vld [vmem:[%s1205 + $0x3b8] sm:$0xff]
          %v1326 = vld [vmem:[%s1205 + $0x3c0] sm:$0xff]
          %v1327 = vld [vmem:[%s1205 + $0x3c8] sm:$0xff]
          %v1328 = vld [vmem:[%s1205 + $0x3d0] sm:$0xff]
          %v1329 = vld [vmem:[%s1205 + $0x3d8] sm:$0xff]
          %v1330 = vld [vmem:[%s1205 + $0x3e0] sm:$0xff]
          %v1331 = vld [vmem:[%s1205 + $0x3e8] sm:$0xff]
          %v1332 = vld [vmem:[%s1205 + $0x3f0] sm:$0xff]
          %v1333 = vld [vmem:[%s1205 + $0x3f8] sm:$0xff]
          %v1462 = vunpack.c.l.b16 %v1206
          %v1463 = vunpack.c.h.b16 %v1206
          %v1464 = vunpack.c.l.b16 %v1207
          %v1465 = vunpack.c.h.b16 %v1207
          %v1466 = vunpack.c.l.b16 %v1208
          %v1467 = vunpack.c.h.b16 %v1208
          %v1468 = vunpack.c.l.b16 %v1209
          %v1469 = vunpack.c.h.b16 %v1209
          %v1470 = vunpack.c.l.b16 %v1210
          %v1471 = vunpack.c.h.b16 %v1210
          %v1472 = vunpack.c.l.b16 %v1211
          %v1473 = vunpack.c.h.b16 %v1211
          %v1474 = vunpack.c.l.b16 %v1212
          %v1475 = vunpack.c.h.b16 %v1212
          %v1476 = vunpack.c.l.b16 %v1213
          %v1477 = vunpack.c.h.b16 %v1213
          %v1478 = vunpack.c.l.b16 %v1214
          %v1479 = vunpack.c.h.b16 %v1214
          %v1480 = vunpack.c.l.b16 %v1215
          %v1481 = vunpack.c.h.b16 %v1215
          %v1482 = vunpack.c.l.b16 %v1216
          %v1483 = vunpack.c.h.b16 %v1216
          %v1484 = vunpack.c.l.b16 %v1217
          %v1485 = vunpack.c.h.b16 %v1217
          %v1486 = vunpack.c.l.b16 %v1218
          %v1487 = vunpack.c.h.b16 %v1218
          %v1488 = vunpack.c.l.b16 %v1219
          %v1489 = vunpack.c.h.b16 %v1219
          %v1490 = vunpack.c.l.b16 %v1220
          %v1491 = vunpack.c.h.b16 %v1220
          %v1492 = vunpack.c.l.b16 %v1221
          %v1493 = vunpack.c.h.b16 %v1221
          %v1494 = vunpack.c.l.b16 %v1222
          %v1495 = vunpack.c.h.b16 %v1222
          %v1496 = vunpack.c.l.b16 %v1223
          %v1497 = vunpack.c.h.b16 %v1223
          %v1498 = vunpack.c.l.b16 %v1224
          %v1499 = vunpack.c.h.b16 %v1224
          %v1500 = vunpack.c.l.b16 %v1225
          %v1501 = vunpack.c.h.b16 %v1225
          %v1502 = vunpack.c.l.b16 %v1226
          %v1503 = vunpack.c.h.b16 %v1226
          %v1504 = vunpack.c.l.b16 %v1227
          %v1505 = vunpack.c.h.b16 %v1227
          %v1506 = vunpack.c.l.b16 %v1228
          %v1507 = vunpack.c.h.b16 %v1228
          %v1508 = vunpack.c.l.b16 %v1229
          %v1509 = vunpack.c.h.b16 %v1229
          %v1510 = vunpack.c.l.b16 %v1230
          %v1511 = vunpack.c.h.b16 %v1230
          %v1512 = vunpack.c.l.b16 %v1231
          %v1513 = vunpack.c.h.b16 %v1231
          %v1514 = vunpack.c.l.b16 %v1232
          %v1515 = vunpack.c.h.b16 %v1232
          %v1516 = vunpack.c.l.b16 %v1233
          %v1517 = vunpack.c.h.b16 %v1233
          %v1518 = vunpack.c.l.b16 %v1234
          %v1519 = vunpack.c.h.b16 %v1234
          %v1520 = vunpack.c.l.b16 %v1235
          %v1521 = vunpack.c.h.b16 %v1235
          %v1522 = vunpack.c.l.b16 %v1236
          %v1523 = vunpack.c.h.b16 %v1236
          %v1524 = vunpack.c.l.b16 %v1237
          %v1525 = vunpack.c.h.b16 %v1237
          %v1526 = vunpack.c.l.b16 %v1238
          %v1527 = vunpack.c.h.b16 %v1238
          %v1528 = vunpack.c.l.b16 %v1239
          %v1529 = vunpack.c.h.b16 %v1239
          %v1530 = vunpack.c.l.b16 %v1240
          %v1531 = vunpack.c.h.b16 %v1240
          %v1532 = vunpack.c.l.b16 %v1241
          %v1533 = vunpack.c.h.b16 %v1241
          %v1534 = vunpack.c.l.b16 %v1242
          %v1535 = vunpack.c.h.b16 %v1242
          %v1536 = vunpack.c.l.b16 %v1243
          %v1537 = vunpack.c.h.b16 %v1243
          %v1538 = vunpack.c.l.b16 %v1244
          %v1539 = vunpack.c.h.b16 %v1244
          %v1540 = vunpack.c.l.b16 %v1245
          %v1541 = vunpack.c.h.b16 %v1245
          %v1542 = vunpack.c.l.b16 %v1246
          %v1543 = vunpack.c.h.b16 %v1246
          %v1544 = vunpack.c.l.b16 %v1247
          %v1545 = vunpack.c.h.b16 %v1247
          %v1546 = vunpack.c.l.b16 %v1248
          %v1547 = vunpack.c.h.b16 %v1248
          %v1548 = vunpack.c.l.b16 %v1249
          %v1549 = vunpack.c.h.b16 %v1249
          %v1550 = vunpack.c.l.b16 %v1250
          %v1551 = vunpack.c.h.b16 %v1250
          %v1552 = vunpack.c.l.b16 %v1251
          %v1553 = vunpack.c.h.b16 %v1251
          %v1554 = vunpack.c.l.b16 %v1252
          %v1555 = vunpack.c.h.b16 %v1252
          %v1556 = vunpack.c.l.b16 %v1253
          %v1557 = vunpack.c.h.b16 %v1253
          %v1558 = vunpack.c.l.b16 %v1254
          %v1559 = vunpack.c.h.b16 %v1254
          %v1560 = vunpack.c.l.b16 %v1255
          %v1561 = vunpack.c.h.b16 %v1255
          %v1562 = vunpack.c.l.b16 %v1256
          %v1563 = vunpack.c.h.b16 %v1256
          %v1564 = vunpack.c.l.b16 %v1257
          %v1565 = vunpack.c.h.b16 %v1257
          %v1566 = vunpack.c.l.b16 %v1258
          %v1567 = vunpack.c.h.b16 %v1258
          %v1568 = vunpack.c.l.b16 %v1259
          %v1569 = vunpack.c.h.b16 %v1259
          %v1570 = vunpack.c.l.b16 %v1260
          %v1571 = vunpack.c.h.b16 %v1260
          %v1572 = vunpack.c.l.b16 %v1261
          %v1573 = vunpack.c.h.b16 %v1261
          %v1574 = vunpack.c.l.b16 %v1262
          %v1575 = vunpack.c.h.b16 %v1262
          %v1576 = vunpack.c.l.b16 %v1263
          %v1577 = vunpack.c.h.b16 %v1263
          %v1578 = vunpack.c.l.b16 %v1264
          %v1579 = vunpack.c.h.b16 %v1264
          %v1580 = vunpack.c.l.b16 %v1265
          %v1581 = vunpack.c.h.b16 %v1265
          %v1582 = vunpack.c.l.b16 %v1266
          %v1583 = vunpack.c.h.b16 %v1266
          %v1584 = vunpack.c.l.b16 %v1267
          %v1585 = vunpack.c.h.b16 %v1267
          %v1586 = vunpack.c.l.b16 %v1268
          %v1587 = vunpack.c.h.b16 %v1268
          %v1588 = vunpack.c.l.b16 %v1269
          %v1589 = vunpack.c.h.b16 %v1269
          %v1590 = vunpack.c.l.b16 %v1270
          %v1591 = vunpack.c.h.b16 %v1270
          %v1592 = vunpack.c.l.b16 %v1271
          %v1593 = vunpack.c.h.b16 %v1271
          %v1594 = vunpack.c.l.b16 %v1272
          %v1595 = vunpack.c.h.b16 %v1272
          %v1596 = vunpack.c.l.b16 %v1273
          %v1597 = vunpack.c.h.b16 %v1273
          %v1598 = vunpack.c.l.b16 %v1274
          %v1599 = vunpack.c.h.b16 %v1274
          %v1600 = vunpack.c.l.b16 %v1275
          %v1601 = vunpack.c.h.b16 %v1275
          %v1602 = vunpack.c.l.b16 %v1276
          %v1603 = vunpack.c.h.b16 %v1276
          %v1604 = vunpack.c.l.b16 %v1277
          %v1605 = vunpack.c.h.b16 %v1277
          %v1606 = vunpack.c.l.b16 %v1278
          %v1607 = vunpack.c.h.b16 %v1278
          %v1608 = vunpack.c.l.b16 %v1279
          %v1609 = vunpack.c.h.b16 %v1279
          %v1610 = vunpack.c.l.b16 %v1280
          %v1611 = vunpack.c.h.b16 %v1280
          %v1612 = vunpack.c.l.b16 %v1281
          %v1613 = vunpack.c.h.b16 %v1281
          %v1614 = vunpack.c.l.b16 %v1282
          %v1615 = vunpack.c.h.b16 %v1282
          %v1616 = vunpack.c.l.b16 %v1283
          %v1617 = vunpack.c.h.b16 %v1283
          %v1618 = vunpack.c.l.b16 %v1284
          %v1619 = vunpack.c.h.b16 %v1284
          %v1620 = vunpack.c.l.b16 %v1285
          %v1621 = vunpack.c.h.b16 %v1285
          %v1622 = vunpack.c.l.b16 %v1286
          %v1623 = vunpack.c.h.b16 %v1286
          %v1624 = vunpack.c.l.b16 %v1287
          %v1625 = vunpack.c.h.b16 %v1287
          %v1626 = vunpack.c.l.b16 %v1288
          %v1627 = vunpack.c.h.b16 %v1288
          %v1628 = vunpack.c.l.b16 %v1289
          %v1629 = vunpack.c.h.b16 %v1289
          %v1630 = vunpack.c.l.b16 %v1290
          %v1631 = vunpack.c.h.b16 %v1290
          %v1632 = vunpack.c.l.b16 %v1291
          %v1633 = vunpack.c.h.b16 %v1291
          %v1634 = vunpack.c.l.b16 %v1292
          %v1635 = vunpack.c.h.b16 %v1292
          %v1636 = vunpack.c.l.b16 %v1293
          %v1637 = vunpack.c.h.b16 %v1293
          %v1638 = vunpack.c.l.b16 %v1294
          %v1639 = vunpack.c.h.b16 %v1294
          %v1640 = vunpack.c.l.b16 %v1295
          %v1641 = vunpack.c.h.b16 %v1295
          %v1642 = vunpack.c.l.b16 %v1296
          %v1643 = vunpack.c.h.b16 %v1296
          %v1644 = vunpack.c.l.b16 %v1297
          %v1645 = vunpack.c.h.b16 %v1297
          %v1646 = vunpack.c.l.b16 %v1298
          %v1647 = vunpack.c.h.b16 %v1298
          %v1648 = vunpack.c.l.b16 %v1299
          %v1649 = vunpack.c.h.b16 %v1299
          %v1650 = vunpack.c.l.b16 %v1300
          %v1651 = vunpack.c.h.b16 %v1300
          %v1652 = vunpack.c.l.b16 %v1301
          %v1653 = vunpack.c.h.b16 %v1301
          %v1654 = vunpack.c.l.b16 %v1302
          %v1655 = vunpack.c.h.b16 %v1302
          %v1656 = vunpack.c.l.b16 %v1303
          %v1657 = vunpack.c.h.b16 %v1303
          %v1658 = vunpack.c.l.b16 %v1304
          %v1659 = vunpack.c.h.b16 %v1304
          %v1660 = vunpack.c.l.b16 %v1305
          %v1661 = vunpack.c.h.b16 %v1305
          %v1662 = vunpack.c.l.b16 %v1306
          %v1663 = vunpack.c.h.b16 %v1306
          %v1664 = vunpack.c.l.b16 %v1307
          %v1665 = vunpack.c.h.b16 %v1307
          %v1666 = vunpack.c.l.b16 %v1308
          %v1667 = vunpack.c.h.b16 %v1308
          %v1668 = vunpack.c.l.b16 %v1309
          %v1669 = vunpack.c.h.b16 %v1309
          %v1670 = vunpack.c.l.b16 %v1310
          %v1671 = vunpack.c.h.b16 %v1310
          %v1672 = vunpack.c.l.b16 %v1311
          %v1673 = vunpack.c.h.b16 %v1311
          %v1674 = vunpack.c.l.b16 %v1312
          %v1675 = vunpack.c.h.b16 %v1312
          %v1676 = vunpack.c.l.b16 %v1313
          %v1677 = vunpack.c.h.b16 %v1313
          %v1678 = vunpack.c.l.b16 %v1314
          %v1679 = vunpack.c.h.b16 %v1314
          %v1680 = vunpack.c.l.b16 %v1315
          %v1681 = vunpack.c.h.b16 %v1315
          %v1682 = vunpack.c.l.b16 %v1316
          %v1683 = vunpack.c.h.b16 %v1316
          %v1684 = vunpack.c.l.b16 %v1317
          %v1685 = vunpack.c.h.b16 %v1317
          %v1686 = vunpack.c.l.b16 %v1318
          %v1687 = vunpack.c.h.b16 %v1318
          %v1688 = vunpack.c.l.b16 %v1319
          %v1689 = vunpack.c.h.b16 %v1319
          %v1690 = vunpack.c.l.b16 %v1320
          %v1691 = vunpack.c.h.b16 %v1320
          %v1692 = vunpack.c.l.b16 %v1321
          %v1693 = vunpack.c.h.b16 %v1321
          %v1694 = vunpack.c.l.b16 %v1322
          %v1695 = vunpack.c.h.b16 %v1322
          %v1696 = vunpack.c.l.b16 %v1323
          %v1697 = vunpack.c.h.b16 %v1323
          %v1698 = vunpack.c.l.b16 %v1324
          %v1699 = vunpack.c.h.b16 %v1324
          %v1700 = vunpack.c.l.b16 %v1325
          %v1701 = vunpack.c.h.b16 %v1325
          %v1702 = vunpack.c.l.b16 %v1326
          %v1703 = vunpack.c.h.b16 %v1326
          %v1704 = vunpack.c.l.b16 %v1327
          %v1705 = vunpack.c.h.b16 %v1327
          %v1706 = vunpack.c.l.b16 %v1328
          %v1707 = vunpack.c.h.b16 %v1328
          %v1708 = vunpack.c.l.b16 %v1329
          %v1709 = vunpack.c.h.b16 %v1329
          %v1710 = vunpack.c.l.b16 %v1330
          %v1711 = vunpack.c.h.b16 %v1330
          %v1712 = vunpack.c.l.b16 %v1331
          %v1713 = vunpack.c.h.b16 %v1331
          %v1714 = vunpack.c.l.b16 %v1332
          %v1715 = vunpack.c.h.b16 %v1332
          %v1716 = vunpack.c.l.b16 %v1333
          %v1717 = vunpack.c.h.b16 %v1333
          %v1718 = vpack.c.b16 %v1466, %v1462
          %v1719 = vpack.c.b16 %v1467, %v1463
          %v1720 = vpack.c.b16 %v1468, %v1464
          %v1721 = vpack.c.b16 %v1469, %v1465
          %v1722 = vpack.c.b16 %v1474, %v1470
          %v1723 = vpack.c.b16 %v1475, %v1471
          %v1724 = vpack.c.b16 %v1476, %v1472
          %v1725 = vpack.c.b16 %v1477, %v1473
          %v1726 = vpack.c.b16 %v1482, %v1478
          %v1727 = vpack.c.b16 %v1483, %v1479
          %v1728 = vpack.c.b16 %v1484, %v1480
          %v1729 = vpack.c.b16 %v1485, %v1481
          %v1730 = vpack.c.b16 %v1490, %v1486
          %v1731 = vpack.c.b16 %v1491, %v1487
          %v1732 = vpack.c.b16 %v1492, %v1488
          %v1733 = vpack.c.b16 %v1493, %v1489
          %v1734 = vpack.c.b16 %v1498, %v1494
          %v1735 = vpack.c.b16 %v1499, %v1495
          %v1736 = vpack.c.b16 %v1500, %v1496
          %v1737 = vpack.c.b16 %v1501, %v1497
          %v1738 = vpack.c.b16 %v1506, %v1502
          %v1739 = vpack.c.b16 %v1507, %v1503
          %v1740 = vpack.c.b16 %v1508, %v1504
          %v1741 = vpack.c.b16 %v1509, %v1505
          %v1742 = vpack.c.b16 %v1514, %v1510
          %v1743 = vpack.c.b16 %v1515, %v1511
          %v1744 = vpack.c.b16 %v1516, %v1512
          %v1745 = vpack.c.b16 %v1517, %v1513
          %v1746 = vpack.c.b16 %v1522, %v1518
          %v1747 = vpack.c.b16 %v1523, %v1519
          %v1748 = vpack.c.b16 %v1524, %v1520
          %v1749 = vpack.c.b16 %v1525, %v1521
          %v1750 = vpack.c.b16 %v1530, %v1526
          %v1751 = vpack.c.b16 %v1531, %v1527
          %v1752 = vpack.c.b16 %v1532, %v1528
          %v1753 = vpack.c.b16 %v1533, %v1529
          %v1754 = vpack.c.b16 %v1538, %v1534
          %v1755 = vpack.c.b16 %v1539, %v1535
          %v1756 = vpack.c.b16 %v1540, %v1536
          %v1757 = vpack.c.b16 %v1541, %v1537
          %v1758 = vpack.c.b16 %v1546, %v1542
          %v1759 = vpack.c.b16 %v1547, %v1543
          %v1760 = vpack.c.b16 %v1548, %v1544
          %v1761 = vpack.c.b16 %v1549, %v1545
          %v1762 = vpack.c.b16 %v1554, %v1550
          %v1763 = vpack.c.b16 %v1555, %v1551
          %v1764 = vpack.c.b16 %v1556, %v1552
          %v1765 = vpack.c.b16 %v1557, %v1553
          %v1766 = vpack.c.b16 %v1562, %v1558
          %v1767 = vpack.c.b16 %v1563, %v1559
          %v1768 = vpack.c.b16 %v1564, %v1560
          %v1769 = vpack.c.b16 %v1565, %v1561
          %v1770 = vpack.c.b16 %v1570, %v1566
          %v1771 = vpack.c.b16 %v1571, %v1567
          %v1772 = vpack.c.b16 %v1572, %v1568
          %v1773 = vpack.c.b16 %v1573, %v1569
          %v1774 = vpack.c.b16 %v1578, %v1574
          %v1775 = vpack.c.b16 %v1579, %v1575
          %v1776 = vpack.c.b16 %v1580, %v1576
          %v1777 = vpack.c.b16 %v1581, %v1577
          %v1778 = vpack.c.b16 %v1586, %v1582
          %v1779 = vpack.c.b16 %v1587, %v1583
          %v1780 = vpack.c.b16 %v1588, %v1584
          %v1781 = vpack.c.b16 %v1589, %v1585
          %v1782 = vpack.c.b16 %v1594, %v1590
          %v1783 = vpack.c.b16 %v1595, %v1591
          %v1784 = vpack.c.b16 %v1596, %v1592
          %v1785 = vpack.c.b16 %v1597, %v1593
          %v1786 = vpack.c.b16 %v1602, %v1598
          %v1787 = vpack.c.b16 %v1603, %v1599
          %v1788 = vpack.c.b16 %v1604, %v1600
          %v1789 = vpack.c.b16 %v1605, %v1601
          %v1790 = vpack.c.b16 %v1610, %v1606
          %v1791 = vpack.c.b16 %v1611, %v1607
          %v1792 = vpack.c.b16 %v1612, %v1608
          %v1793 = vpack.c.b16 %v1613, %v1609
          %v1794 = vpack.c.b16 %v1618, %v1614
          %v1795 = vpack.c.b16 %v1619, %v1615
          %v1796 = vpack.c.b16 %v1620, %v1616
          %v1797 = vpack.c.b16 %v1621, %v1617
          %v1798 = vpack.c.b16 %v1626, %v1622
          %v1799 = vpack.c.b16 %v1627, %v1623
          %v1800 = vpack.c.b16 %v1628, %v1624
          %v1801 = vpack.c.b16 %v1629, %v1625
          %v1802 = vpack.c.b16 %v1634, %v1630
          %v1803 = vpack.c.b16 %v1635, %v1631
          %v1804 = vpack.c.b16 %v1636, %v1632
          %v1805 = vpack.c.b16 %v1637, %v1633
          %v1806 = vpack.c.b16 %v1642, %v1638
          %v1807 = vpack.c.b16 %v1643, %v1639
          %v1808 = vpack.c.b16 %v1644, %v1640
          %v1809 = vpack.c.b16 %v1645, %v1641
          %v1810 = vpack.c.b16 %v1650, %v1646
          %v1811 = vpack.c.b16 %v1651, %v1647
          %v1812 = vpack.c.b16 %v1652, %v1648
          %v1813 = vpack.c.b16 %v1653, %v1649
          %v1814 = vpack.c.b16 %v1658, %v1654
          %v1815 = vpack.c.b16 %v1659, %v1655
          %v1816 = vpack.c.b16 %v1660, %v1656
          %v1817 = vpack.c.b16 %v1661, %v1657
          %v1818 = vpack.c.b16 %v1666, %v1662
          %v1819 = vpack.c.b16 %v1667, %v1663
          %v1820 = vpack.c.b16 %v1668, %v1664
          %v1821 = vpack.c.b16 %v1669, %v1665
          %v1822 = vpack.c.b16 %v1674, %v1670
          %v1823 = vpack.c.b16 %v1675, %v1671
          %v1824 = vpack.c.b16 %v1676, %v1672
          %v1825 = vpack.c.b16 %v1677, %v1673
          %v1826 = vpack.c.b16 %v1682, %v1678
          %v1827 = vpack.c.b16 %v1683, %v1679
          %v1828 = vpack.c.b16 %v1684, %v1680
          %v1829 = vpack.c.b16 %v1685, %v1681
          %v1830 = vpack.c.b16 %v1690, %v1686
          %v1831 = vpack.c.b16 %v1691, %v1687
          %v1832 = vpack.c.b16 %v1692, %v1688
          %v1833 = vpack.c.b16 %v1693, %v1689
          %v1834 = vpack.c.b16 %v1698, %v1694
          %v1835 = vpack.c.b16 %v1699, %v1695
          %v1836 = vpack.c.b16 %v1700, %v1696
          %v1837 = vpack.c.b16 %v1701, %v1697
          %v1838 = vpack.c.b16 %v1706, %v1702
          %v1839 = vpack.c.b16 %v1707, %v1703
          %v1840 = vpack.c.b16 %v1708, %v1704
          %v1841 = vpack.c.b16 %v1709, %v1705
          %v1842 = vpack.c.b16 %v1714, %v1710
          %v1843 = vpack.c.b16 %v1715, %v1711
          %v1844 = vpack.c.b16 %v1716, %v1712
          %v1845 = vpack.c.b16 %v1717, %v1713
          %1974 = vmatprep.subr.bf16.mxu0 %v1719
          %1975 = vmatpush1.bf16.msra.mxu0 %v1718
          %1976 = vmatprep.subr.bf16.mxu0 %v1723
          %1977 = vmatpush1.bf16.msra.mxu0 %v1722
          %1978 = vmatprep.subr.bf16.mxu0 %v1727
          %1979 = vmatpush1.bf16.msra.mxu0 %v1726
          %1980 = vmatprep.subr.bf16.mxu0 %v1731
          %1981 = vmatpush1.bf16.msra.mxu0 %v1730
          %1982 = vmatprep.subr.bf16.mxu0 %v1735
          %1983 = vmatpush1.bf16.msra.mxu0 %v1734
          %1984 = vmatprep.subr.bf16.mxu0 %v1739
          %1985 = vmatpush1.bf16.msra.mxu0 %v1738
          %1986 = vmatprep.subr.bf16.mxu0 %v1743
          %1987 = vmatpush1.bf16.msra.mxu0 %v1742
          %1988 = vmatprep.subr.bf16.mxu0 %v1747
          %1989 = vmatpush1.bf16.msra.mxu0 %v1746
          %1990 = vmatprep.subr.bf16.mxu0 %v1751
          %1991 = vmatpush1.bf16.msra.mxu0 %v1750
          %1992 = vmatprep.subr.bf16.mxu0 %v1755
          %1993 = vmatpush1.bf16.msra.mxu0 %v1754
          %1994 = vmatprep.subr.bf16.mxu0 %v1759
          %1995 = vmatpush1.bf16.msra.mxu0 %v1758
          %1996 = vmatprep.subr.bf16.mxu0 %v1763
          %1997 = vmatpush1.bf16.msra.mxu0 %v1762
          %1998 = vmatprep.subr.bf16.mxu0 %v1767
          %1999 = vmatpush1.bf16.msra.mxu0 %v1766
          %2000 = vmatprep.subr.bf16.mxu0 %v1771
          %2001 = vmatpush1.bf16.msra.mxu0 %v1770
          %2002 = vmatprep.subr.bf16.mxu0 %v1775
          %2003 = vmatpush1.bf16.msra.mxu0 %v1774
          %2004 = vmatprep.subr.bf16.mxu0 %v1779
          %2005 = vmatpush1.bf16.msra.mxu0 %v1778
          %2006 = vmatprep.mubr.bf16.mxu0 %v1202
          %2007 = vmatmul.mubr.bf16.gmra.mrb[0].mxu0 %v1201
          %v2008 = vpop.f32.mrb[0].mxu0
          %v2009 = vadd.f32 0.0, %v2008
          %v2010 = vpop.f32.mrb[0].mxu0
          %v2011 = vadd.f32 0.0, %v2010
          %v2012 = vpop.f32.mrb[0].mxu0
          %v2013 = vpop.f32.mrb[0].mxu0
          %2014 = vdwg.mxu0
          %2015 = vmatprep.subr.bf16.mxu0 %v1783
          %2016 = vmatpush1.bf16.msra.mxu0 %v1782
          %2017 = vmatprep.subr.bf16.mxu0 %v1787
          %2018 = vmatpush1.bf16.msra.mxu0 %v1786
          %2019 = vmatprep.subr.bf16.mxu0 %v1791
          %2020 = vmatpush1.bf16.msra.mxu0 %v1790
          %2021 = vmatprep.subr.bf16.mxu0 %v1795
          %2022 = vmatpush1.bf16.msra.mxu0 %v1794
          %2023 = vmatprep.subr.bf16.mxu0 %v1799
          %2024 = vmatpush1.bf16.msra.mxu0 %v1798
          %2025 = vmatprep.subr.bf16.mxu0 %v1803
          %2026 = vmatpush1.bf16.msra.mxu0 %v1802
          %2027 = vmatprep.subr.bf16.mxu0 %v1807
          %2028 = vmatpush1.bf16.msra.mxu0 %v1806
          %2029 = vmatprep.subr.bf16.mxu0 %v1811
          %2030 = vmatpush1.bf16.msra.mxu0 %v1810
          %2031 = vmatprep.subr.bf16.mxu0 %v1815
          %2032 = vmatpush1.bf16.msra.mxu0 %v1814
          %2033 = vmatprep.subr.bf16.mxu0 %v1819
          %2034 = vmatpush1.bf16.msra.mxu0 %v1818
          %2035 = vmatprep.subr.bf16.mxu0 %v1823
          %2036 = vmatpush1.bf16.msra.mxu0 %v1822
          %2037 = vmatprep.subr.bf16.mxu0 %v1827
          %2038 = vmatpush1.bf16.msra.mxu0 %v1826
          %2039 = vmatprep.subr.bf16.mxu0 %v1831
          %2040 = vmatpush1.bf16.msra.mxu0 %v1830
          %2041 = vmatprep.subr.bf16.mxu0 %v1835
          %2042 = vmatpush1.bf16.msra.mxu0 %v1834
          %2043 = vmatprep.subr.bf16.mxu0 %v1839
          %2044 = vmatpush1.bf16.msra.mxu0 %v1838
          %2045 = vmatprep.subr.bf16.mxu0 %v1843
          %2046 = vmatpush1.bf16.msra.mxu0 %v1842
          %2047 = vmatprep.mubr.bf16.mxu0 %v1204
          %2048 = vmatmul.mubr.bf16.gmra.mrb[0].mxu0 %v1203
          %v2049 = vpop.f32.mrb[0].mxu0
          %v2050 = vadd.f32 %v2009, %v2049
          %v2051 = vpop.f32.mrb[0].mxu0
          %v2052 = vadd.f32 %v2011, %v2051
          %v2053 = vpop.f32.mrb[0].mxu0
          %v2054 = vpop.f32.mrb[0].mxu0
          %2055 = vdwg.mxu0
          %2056 = vmatprep.subr.bf16.mxu0 %v1721
          %2057 = vmatpush1.bf16.msra.mxu0 %v1720
          %2058 = vmatprep.subr.bf16.mxu0 %v1725
          %2059 = vmatpush1.bf16.msra.mxu0 %v1724
          %2060 = vmatprep.subr.bf16.mxu0 %v1729
          %2061 = vmatpush1.bf16.msra.mxu0 %v1728
          %2062 = vmatprep.subr.bf16.mxu0 %v1733
          %2063 = vmatpush1.bf16.msra.mxu0 %v1732
          %2064 = vmatprep.subr.bf16.mxu0 %v1737
          %2065 = vmatpush1.bf16.msra.mxu0 %v1736
          %2066 = vmatprep.subr.bf16.mxu0 %v1741
          %2067 = vmatpush1.bf16.msra.mxu0 %v1740
          %2068 = vmatprep.subr.bf16.mxu0 %v1745
          %2069 = vmatpush1.bf16.msra.mxu0 %v1744
          %2070 = vmatprep.subr.bf16.mxu0 %v1749
          %2071 = vmatpush1.bf16.msra.mxu0 %v1748
          %2072 = vmatprep.subr.bf16.mxu0 %v1753
          %2073 = vmatpush1.bf16.msra.mxu0 %v1752
          %2074 = vmatprep.subr.bf16.mxu0 %v1757
          %2075 = vmatpush1.bf16.msra.mxu0 %v1756
          %2076 = vmatprep.subr.bf16.mxu0 %v1761
          %2077 = vmatpush1.bf16.msra.mxu0 %v1760
          %2078 = vmatprep.subr.bf16.mxu0 %v1765
          %2079 = vmatpush1.bf16.msra.mxu0 %v1764
          %2080 = vmatprep.subr.bf16.mxu0 %v1769
          %2081 = vmatpush1.bf16.msra.mxu0 %v1768
          %2082 = vmatprep.subr.bf16.mxu0 %v1773
          %2083 = vmatpush1.bf16.msra.mxu0 %v1772
          %2084 = vmatprep.subr.bf16.mxu0 %v1777
          %2085 = vmatpush1.bf16.msra.mxu0 %v1776
          %2086 = vmatprep.subr.bf16.mxu0 %v1781
          %2087 = vmatpush1.bf16.msra.mxu0 %v1780
          %2088 = vmatprep.mubr.bf16.mxu0 %v1202
          %2089 = vmatmul.mubr.bf16.gmra.mrb[0].mxu0 %v1201
          %v2090 = vpop.f32.mrb[0].mxu0
          %v2091 = vadd.f32 0.0, %v2090
          %v2092 = vpop.f32.mrb[0].mxu0
          %v2093 = vadd.f32 0.0, %v2092
          %v2094 = vpop.f32.mrb[0].mxu0
          %v2095 = vpop.f32.mrb[0].mxu0
          %2096 = vdwg.mxu0
          %2097 = vmatprep.subr.bf16.mxu0 %v1785
          %2098 = vmatpush1.bf16.msra.mxu0 %v1784
          %2099 = vmatprep.subr.bf16.mxu0 %v1789
          %2100 = vmatpush1.bf16.msra.mxu0 %v1788
          %2101 = vmatprep.subr.bf16.mxu0 %v1793
          %2102 = vmatpush1.bf16.msra.mxu0 %v1792
          %2103 = vmatprep.subr.bf16.mxu0 %v1797
          %2104 = vmatpush1.bf16.msra.mxu0 %v1796
          %2105 = vmatprep.subr.bf16.mxu0 %v1801
          %2106 = vmatpush1.bf16.msra.mxu0 %v1800
          %2107 = vmatprep.subr.bf16.mxu0 %v1805
          %2108 = vmatpush1.bf16.msra.mxu0 %v1804
          %2109 = vmatprep.subr.bf16.mxu0 %v1809
          %2110 = vmatpush1.bf16.msra.mxu0 %v1808
          %2111 = vmatprep.subr.bf16.mxu0 %v1813
          %2112 = vmatpush1.bf16.msra.mxu0 %v1812
          %2113 = vmatprep.subr.bf16.mxu0 %v1817
          %2114 = vmatpush1.bf16.msra.mxu0 %v1816
          %2115 = vmatprep.subr.bf16.mxu0 %v1821
          %2116 = vmatpush1.bf16.msra.mxu0 %v1820
          %2117 = vmatprep.subr.bf16.mxu0 %v1825
          %2118 = vmatpush1.bf16.msra.mxu0 %v1824
          %2119 = vmatprep.subr.bf16.mxu0 %v1829
          %2120 = vmatpush1.bf16.msra.mxu0 %v1828
          %2121 = vmatprep.subr.bf16.mxu0 %v1833
          %2122 = vmatpush1.bf16.msra.mxu0 %v1832
          %2123 = vmatprep.subr.bf16.mxu0 %v1837
          %2124 = vmatpush1.bf16.msra.mxu0 %v1836
          %2125 = vmatprep.subr.bf16.mxu0 %v1841
          %2126 = vmatpush1.bf16.msra.mxu0 %v1840
          %2127 = vmatprep.subr.bf16.mxu0 %v1845
          %2128 = vmatpush1.bf16.msra.mxu0 %v1844
          %2129 = vmatprep.mubr.bf16.mxu0 %v1204
          %2130 = vmatmul.mubr.bf16.gmra.mrb[0].mxu0 %v1203
          %v2131 = vpop.f32.mrb[0].mxu0
          %v2132 = vadd.f32 %v2091, %v2131
          %v2133 = vpop.f32.mrb[0].mxu0
          %v2134 = vadd.f32 %v2093, %v2133
          %v2135 = vpop.f32.mrb[0].mxu0
          %v2136 = vpop.f32.mrb[0].mxu0
          %2137 = vdwg.mxu0
          %v2138 = vadd.f32 %v1193, %v2050
          %v2139 = vadd.f32 %v1194, %v2052
          %v2140 = vadd.f32 %v1195, %v2132
          %v2141 = vadd.f32 %v1196, %v2134
          %v2142 = vld [vmem:[#allocation4 + $0x40] sm:$0xff]
          %v2143 = vld [vmem:[#allocation4 + $0x48] sm:$0xff]
          %v2144 = vld [vmem:[#allocation4 + $0x50] sm:$0xff]
          %v2145 = vld [vmem:[#allocation4 + $0x58] sm:$0xff]
          %v2146 = vpack.c.bf16 %v2142, %v2142
          %v2147 = vpack.c.bf16 %v2143, %v2143
          %v2148 = vpack.c.bf16 %v2144, %v2144
          %v2149 = vpack.c.bf16 %v2145, %v2145
          %s2150 = scalar_lea.vmem %s183, 2048 [#allocation7]
          %v2151 = vld [vmem:[%s2150] sm:$0xff]
          %v2152 = vld [vmem:[%s2150 + $0x8] sm:$0xff]
          %v2153 = vld [vmem:[%s2150 + $0x10] sm:$0xff]
          %v2154 = vld [vmem:[%s2150 + $0x18] sm:$0xff]
          %v2155 = vld [vmem:[%s2150 + $0x20] sm:$0xff]
          %v2156 = vld [vmem:[%s2150 + $0x28] sm:$0xff]
          %v2157 = vld [vmem:[%s2150 + $0x30] sm:$0xff]
          %v2158 = vld [vmem:[%s2150 + $0x38] sm:$0xff]
          %v2159 = vld [vmem:[%s2150 + $0x40] sm:$0xff]
          %v2160 = vld [vmem:[%s2150 + $0x48] sm:$0xff]
          %v2161 = vld [vmem:[%s2150 + $0x50] sm:$0xff]
          %v2162 = vld [vmem:[%s2150 + $0x58] sm:$0xff]
          %v2163 = vld [vmem:[%s2150 + $0x60] sm:$0xff]
          %v2164 = vld [vmem:[%s2150 + $0x68] sm:$0xff]
          %v2165 = vld [vmem:[%s2150 + $0x70] sm:$0xff]
          %v2166 = vld [vmem:[%s2150 + $0x78] sm:$0xff]
          %v2167 = vld [vmem:[%s2150 + $0x80] sm:$0xff]
          %v2168 = vld [vmem:[%s2150 + $0x88] sm:$0xff]
          %v2169 = vld [vmem:[%s2150 + $0x90] sm:$0xff]
          %v2170 = vld [vmem:[%s2150 + $0x98] sm:$0xff]
          %v2171 = vld [vmem:[%s2150 + $0xa0] sm:$0xff]
          %v2172 = vld [vmem:[%s2150 + $0xa8] sm:$0xff]
          %v2173 = vld [vmem:[%s2150 + $0xb0] sm:$0xff]
          %v2174 = vld [vmem:[%s2150 + $0xb8] sm:$0xff]
          %v2175 = vld [vmem:[%s2150 + $0xc0] sm:$0xff]
          %v2176 = vld [vmem:[%s2150 + $0xc8] sm:$0xff]
          %v2177 = vld [vmem:[%s2150 + $0xd0] sm:$0xff]
          %v2178 = vld [vmem:[%s2150 + $0xd8] sm:$0xff]
          %v2179 = vld [vmem:[%s2150 + $0xe0] sm:$0xff]
          %v2180 = vld [vmem:[%s2150 + $0xe8] sm:$0xff]
          %v2181 = vld [vmem:[%s2150 + $0xf0] sm:$0xff]
          %v2182 = vld [vmem:[%s2150 + $0xf8] sm:$0xff]
          %v2183 = vld [vmem:[%s2150 + $0x100] sm:$0xff]
          %v2184 = vld [vmem:[%s2150 + $0x108] sm:$0xff]
          %v2185 = vld [vmem:[%s2150 + $0x110] sm:$0xff]
          %v2186 = vld [vmem:[%s2150 + $0x118] sm:$0xff]
          %v2187 = vld [vmem:[%s2150 + $0x120] sm:$0xff]
          %v2188 = vld [vmem:[%s2150 + $0x128] sm:$0xff]
          %v2189 = vld [vmem:[%s2150 + $0x130] sm:$0xff]
          %v2190 = vld [vmem:[%s2150 + $0x138] sm:$0xff]
          %v2191 = vld [vmem:[%s2150 + $0x140] sm:$0xff]
          %v2192 = vld [vmem:[%s2150 + $0x148] sm:$0xff]
          %v2193 = vld [vmem:[%s2150 + $0x150] sm:$0xff]
          %v2194 = vld [vmem:[%s2150 + $0x158] sm:$0xff]
          %v2195 = vld [vmem:[%s2150 + $0x160] sm:$0xff]
          %v2196 = vld [vmem:[%s2150 + $0x168] sm:$0xff]
          %v2197 = vld [vmem:[%s2150 + $0x170] sm:$0xff]
          %v2198 = vld [vmem:[%s2150 + $0x178] sm:$0xff]
          %v2199 = vld [vmem:[%s2150 + $0x180] sm:$0xff]
          %v2200 = vld [vmem:[%s2150 + $0x188] sm:$0xff]
          %v2201 = vld [vmem:[%s2150 + $0x190] sm:$0xff]
          %v2202 = vld [vmem:[%s2150 + $0x198] sm:$0xff]
          %v2203 = vld [vmem:[%s2150 + $0x1a0] sm:$0xff]
          %v2204 = vld [vmem:[%s2150 + $0x1a8] sm:$0xff]
          %v2205 = vld [vmem:[%s2150 + $0x1b0] sm:$0xff]
          %v2206 = vld [vmem:[%s2150 + $0x1b8] sm:$0xff]
          %v2207 = vld [vmem:[%s2150 + $0x1c0] sm:$0xff]
          %v2208 = vld [vmem:[%s2150 + $0x1c8] sm:$0xff]
          %v2209 = vld [vmem:[%s2150 + $0x1d0] sm:$0xff]
          %v2210 = vld [vmem:[%s2150 + $0x1d8] sm:$0xff]
          %v2211 = vld [vmem:[%s2150 + $0x1e0] sm:$0xff]
          %v2212 = vld [vmem:[%s2150 + $0x1e8] sm:$0xff]
          %v2213 = vld [vmem:[%s2150 + $0x1f0] sm:$0xff]
          %v2214 = vld [vmem:[%s2150 + $0x1f8] sm:$0xff]
          %v2215 = vld [vmem:[%s2150 + $0x200] sm:$0xff]
          %v2216 = vld [vmem:[%s2150 + $0x208] sm:$0xff]
          %v2217 = vld [vmem:[%s2150 + $0x210] sm:$0xff]
          %v2218 = vld [vmem:[%s2150 + $0x218] sm:$0xff]
          %v2219 = vld [vmem:[%s2150 + $0x220] sm:$0xff]
          %v2220 = vld [vmem:[%s2150 + $0x228] sm:$0xff]
          %v2221 = vld [vmem:[%s2150 + $0x230] sm:$0xff]
          %v2222 = vld [vmem:[%s2150 + $0x238] sm:$0xff]
          %v2223 = vld [vmem:[%s2150 + $0x240] sm:$0xff]
          %v2224 = vld [vmem:[%s2150 + $0x248] sm:$0xff]
          %v2225 = vld [vmem:[%s2150 + $0x250] sm:$0xff]
          %v2226 = vld [vmem:[%s2150 + $0x258] sm:$0xff]
          %v2227 = vld [vmem:[%s2150 + $0x260] sm:$0xff]
          %v2228 = vld [vmem:[%s2150 + $0x268] sm:$0xff]
          %v2229 = vld [vmem:[%s2150 + $0x270] sm:$0xff]
          %v2230 = vld [vmem:[%s2150 + $0x278] sm:$0xff]
          %v2231 = vld [vmem:[%s2150 + $0x280] sm:$0xff]
          %v2232 = vld [vmem:[%s2150 + $0x288] sm:$0xff]
          %v2233 = vld [vmem:[%s2150 + $0x290] sm:$0xff]
          %v2234 = vld [vmem:[%s2150 + $0x298] sm:$0xff]
          %v2235 = vld [vmem:[%s2150 + $0x2a0] sm:$0xff]
          %v2236 = vld [vmem:[%s2150 + $0x2a8] sm:$0xff]
          %v2237 = vld [vmem:[%s2150 + $0x2b0] sm:$0xff]
          %v2238 = vld [vmem:[%s2150 + $0x2b8] sm:$0xff]
          %v2239 = vld [vmem:[%s2150 + $0x2c0] sm:$0xff]
          %v2240 = vld [vmem:[%s2150 + $0x2c8] sm:$0xff]
          %v2241 = vld [vmem:[%s2150 + $0x2d0] sm:$0xff]
          %v2242 = vld [vmem:[%s2150 + $0x2d8] sm:$0xff]
          %v2243 = vld [vmem:[%s2150 + $0x2e0] sm:$0xff]
          %v2244 = vld [vmem:[%s2150 + $0x2e8] sm:$0xff]
          %v2245 = vld [vmem:[%s2150 + $0x2f0] sm:$0xff]
          %v2246 = vld [vmem:[%s2150 + $0x2f8] sm:$0xff]
          %v2247 = vld [vmem:[%s2150 + $0x300] sm:$0xff]
          %v2248 = vld [vmem:[%s2150 + $0x308] sm:$0xff]
          %v2249 = vld [vmem:[%s2150 + $0x310] sm:$0xff]
          %v2250 = vld [vmem:[%s2150 + $0x318] sm:$0xff]
          %v2251 = vld [vmem:[%s2150 + $0x320] sm:$0xff]
          %v2252 = vld [vmem:[%s2150 + $0x328] sm:$0xff]
          %v2253 = vld [vmem:[%s2150 + $0x330] sm:$0xff]
          %v2254 = vld [vmem:[%s2150 + $0x338] sm:$0xff]
          %v2255 = vld [vmem:[%s2150 + $0x340] sm:$0xff]
          %v2256 = vld [vmem:[%s2150 + $0x348] sm:$0xff]
          %v2257 = vld [vmem:[%s2150 + $0x350] sm:$0xff]
          %v2258 = vld [vmem:[%s2150 + $0x358] sm:$0xff]
          %v2259 = vld [vmem:[%s2150 + $0x360] sm:$0xff]
          %v2260 = vld [vmem:[%s2150 + $0x368] sm:$0xff]
          %v2261 = vld [vmem:[%s2150 + $0x370] sm:$0xff]
          %v2262 = vld [vmem:[%s2150 + $0x378] sm:$0xff]
          %v2263 = vld [vmem:[%s2150 + $0x380] sm:$0xff]
          %v2264 = vld [vmem:[%s2150 + $0x388] sm:$0xff]
          %v2265 = vld [vmem:[%s2150 + $0x390] sm:$0xff]
          %v2266 = vld [vmem:[%s2150 + $0x398] sm:$0xff]
          %v2267 = vld [vmem:[%s2150 + $0x3a0] sm:$0xff]
          %v2268 = vld [vmem:[%s2150 + $0x3a8] sm:$0xff]
          %v2269 = vld [vmem:[%s2150 + $0x3b0] sm:$0xff]
          %v2270 = vld [vmem:[%s2150 + $0x3b8] sm:$0xff]
          %v2271 = vld [vmem:[%s2150 + $0x3c0] sm:$0xff]
          %v2272 = vld [vmem:[%s2150 + $0x3c8] sm:$0xff]
          %v2273 = vld [vmem:[%s2150 + $0x3d0] sm:$0xff]
          %v2274 = vld [vmem:[%s2150 + $0x3d8] sm:$0xff]
          %v2275 = vld [vmem:[%s2150 + $0x3e0] sm:$0xff]
          %v2276 = vld [vmem:[%s2150 + $0x3e8] sm:$0xff]
          %v2277 = vld [vmem:[%s2150 + $0x3f0] sm:$0xff]
          %v2278 = vld [vmem:[%s2150 + $0x3f8] sm:$0xff]
          %v2407 = vunpack.c.l.b16 %v2151
          %v2408 = vunpack.c.h.b16 %v2151
          %v2409 = vunpack.c.l.b16 %v2152
          %v2410 = vunpack.c.h.b16 %v2152
          %v2411 = vunpack.c.l.b16 %v2153
          %v2412 = vunpack.c.h.b16 %v2153
          %v2413 = vunpack.c.l.b16 %v2154
          %v2414 = vunpack.c.h.b16 %v2154
          %v2415 = vunpack.c.l.b16 %v2155
          %v2416 = vunpack.c.h.b16 %v2155
          %v2417 = vunpack.c.l.b16 %v2156
          %v2418 = vunpack.c.h.b16 %v2156
          %v2419 = vunpack.c.l.b16 %v2157
          %v2420 = vunpack.c.h.b16 %v2157
          %v2421 = vunpack.c.l.b16 %v2158
          %v2422 = vunpack.c.h.b16 %v2158
          %v2423 = vunpack.c.l.b16 %v2159
          %v2424 = vunpack.c.h.b16 %v2159
          %v2425 = vunpack.c.l.b16 %v2160
          %v2426 = vunpack.c.h.b16 %v2160
          %v2427 = vunpack.c.l.b16 %v2161
          %v2428 = vunpack.c.h.b16 %v2161
          %v2429 = vunpack.c.l.b16 %v2162
          %v2430 = vunpack.c.h.b16 %v2162
          %v2431 = vunpack.c.l.b16 %v2163
          %v2432 = vunpack.c.h.b16 %v2163
          %v2433 = vunpack.c.l.b16 %v2164
          %v2434 = vunpack.c.h.b16 %v2164
          %v2435 = vunpack.c.l.b16 %v2165
          %v2436 = vunpack.c.h.b16 %v2165
          %v2437 = vunpack.c.l.b16 %v2166
          %v2438 = vunpack.c.h.b16 %v2166
          %v2439 = vunpack.c.l.b16 %v2167
          %v2440 = vunpack.c.h.b16 %v2167
          %v2441 = vunpack.c.l.b16 %v2168
          %v2442 = vunpack.c.h.b16 %v2168
          %v2443 = vunpack.c.l.b16 %v2169
          %v2444 = vunpack.c.h.b16 %v2169
          %v2445 = vunpack.c.l.b16 %v2170
          %v2446 = vunpack.c.h.b16 %v2170
          %v2447 = vunpack.c.l.b16 %v2171
          %v2448 = vunpack.c.h.b16 %v2171
          %v2449 = vunpack.c.l.b16 %v2172
          %v2450 = vunpack.c.h.b16 %v2172
          %v2451 = vunpack.c.l.b16 %v2173
          %v2452 = vunpack.c.h.b16 %v2173
          %v2453 = vunpack.c.l.b16 %v2174
          %v2454 = vunpack.c.h.b16 %v2174
          %v2455 = vunpack.c.l.b16 %v2175
          %v2456 = vunpack.c.h.b16 %v2175
          %v2457 = vunpack.c.l.b16 %v2176
          %v2458 = vunpack.c.h.b16 %v2176
          %v2459 = vunpack.c.l.b16 %v2177
          %v2460 = vunpack.c.h.b16 %v2177
          %v2461 = vunpack.c.l.b16 %v2178
          %v2462 = vunpack.c.h.b16 %v2178
          %v2463 = vunpack.c.l.b16 %v2179
          %v2464 = vunpack.c.h.b16 %v2179
          %v2465 = vunpack.c.l.b16 %v2180
          %v2466 = vunpack.c.h.b16 %v2180
          %v2467 = vunpack.c.l.b16 %v2181
          %v2468 = vunpack.c.h.b16 %v2181
          %v2469 = vunpack.c.l.b16 %v2182
          %v2470 = vunpack.c.h.b16 %v2182
          %v2471 = vunpack.c.l.b16 %v2183
          %v2472 = vunpack.c.h.b16 %v2183
          %v2473 = vunpack.c.l.b16 %v2184
          %v2474 = vunpack.c.h.b16 %v2184
          %v2475 = vunpack.c.l.b16 %v2185
          %v2476 = vunpack.c.h.b16 %v2185
          %v2477 = vunpack.c.l.b16 %v2186
          %v2478 = vunpack.c.h.b16 %v2186
          %v2479 = vunpack.c.l.b16 %v2187
          %v2480 = vunpack.c.h.b16 %v2187
          %v2481 = vunpack.c.l.b16 %v2188
          %v2482 = vunpack.c.h.b16 %v2188
          %v2483 = vunpack.c.l.b16 %v2189
          %v2484 = vunpack.c.h.b16 %v2189
          %v2485 = vunpack.c.l.b16 %v2190
          %v2486 = vunpack.c.h.b16 %v2190
          %v2487 = vunpack.c.l.b16 %v2191
          %v2488 = vunpack.c.h.b16 %v2191
          %v2489 = vunpack.c.l.b16 %v2192
          %v2490 = vunpack.c.h.b16 %v2192
          %v2491 = vunpack.c.l.b16 %v2193
          %v2492 = vunpack.c.h.b16 %v2193
          %v2493 = vunpack.c.l.b16 %v2194
          %v2494 = vunpack.c.h.b16 %v2194
          %v2495 = vunpack.c.l.b16 %v2195
          %v2496 = vunpack.c.h.b16 %v2195
          %v2497 = vunpack.c.l.b16 %v2196
          %v2498 = vunpack.c.h.b16 %v2196
          %v2499 = vunpack.c.l.b16 %v2197
          %v2500 = vunpack.c.h.b16 %v2197
          %v2501 = vunpack.c.l.b16 %v2198
          %v2502 = vunpack.c.h.b16 %v2198
          %v2503 = vunpack.c.l.b16 %v2199
          %v2504 = vunpack.c.h.b16 %v2199
          %v2505 = vunpack.c.l.b16 %v2200
          %v2506 = vunpack.c.h.b16 %v2200
          %v2507 = vunpack.c.l.b16 %v2201
          %v2508 = vunpack.c.h.b16 %v2201
          %v2509 = vunpack.c.l.b16 %v2202
          %v2510 = vunpack.c.h.b16 %v2202
          %v2511 = vunpack.c.l.b16 %v2203
          %v2512 = vunpack.c.h.b16 %v2203
          %v2513 = vunpack.c.l.b16 %v2204
          %v2514 = vunpack.c.h.b16 %v2204
          %v2515 = vunpack.c.l.b16 %v2205
          %v2516 = vunpack.c.h.b16 %v2205
          %v2517 = vunpack.c.l.b16 %v2206
          %v2518 = vunpack.c.h.b16 %v2206
          %v2519 = vunpack.c.l.b16 %v2207
          %v2520 = vunpack.c.h.b16 %v2207
          %v2521 = vunpack.c.l.b16 %v2208
          %v2522 = vunpack.c.h.b16 %v2208
          %v2523 = vunpack.c.l.b16 %v2209
          %v2524 = vunpack.c.h.b16 %v2209
          %v2525 = vunpack.c.l.b16 %v2210
          %v2526 = vunpack.c.h.b16 %v2210
          %v2527 = vunpack.c.l.b16 %v2211
          %v2528 = vunpack.c.h.b16 %v2211
          %v2529 = vunpack.c.l.b16 %v2212
          %v2530 = vunpack.c.h.b16 %v2212
          %v2531 = vunpack.c.l.b16 %v2213
          %v2532 = vunpack.c.h.b16 %v2213
          %v2533 = vunpack.c.l.b16 %v2214
          %v2534 = vunpack.c.h.b16 %v2214
          %v2535 = vunpack.c.l.b16 %v2215
          %v2536 = vunpack.c.h.b16 %v2215
          %v2537 = vunpack.c.l.b16 %v2216
          %v2538 = vunpack.c.h.b16 %v2216
          %v2539 = vunpack.c.l.b16 %v2217
          %v2540 = vunpack.c.h.b16 %v2217
          %v2541 = vunpack.c.l.b16 %v2218
          %v2542 = vunpack.c.h.b16 %v2218
          %v2543 = vunpack.c.l.b16 %v2219
          %v2544 = vunpack.c.h.b16 %v2219
          %v2545 = vunpack.c.l.b16 %v2220
          %v2546 = vunpack.c.h.b16 %v2220
          %v2547 = vunpack.c.l.b16 %v2221
          %v2548 = vunpack.c.h.b16 %v2221
          %v2549 = vunpack.c.l.b16 %v2222
          %v2550 = vunpack.c.h.b16 %v2222
          %v2551 = vunpack.c.l.b16 %v2223
          %v2552 = vunpack.c.h.b16 %v2223
          %v2553 = vunpack.c.l.b16 %v2224
          %v2554 = vunpack.c.h.b16 %v2224
          %v2555 = vunpack.c.l.b16 %v2225
          %v2556 = vunpack.c.h.b16 %v2225
          %v2557 = vunpack.c.l.b16 %v2226
          %v2558 = vunpack.c.h.b16 %v2226
          %v2559 = vunpack.c.l.b16 %v2227
          %v2560 = vunpack.c.h.b16 %v2227
          %v2561 = vunpack.c.l.b16 %v2228
          %v2562 = vunpack.c.h.b16 %v2228
          %v2563 = vunpack.c.l.b16 %v2229
          %v2564 = vunpack.c.h.b16 %v2229
          %v2565 = vunpack.c.l.b16 %v2230
          %v2566 = vunpack.c.h.b16 %v2230
          %v2567 = vunpack.c.l.b16 %v2231
          %v2568 = vunpack.c.h.b16 %v2231
          %v2569 = vunpack.c.l.b16 %v2232
          %v2570 = vunpack.c.h.b16 %v2232
          %v2571 = vunpack.c.l.b16 %v2233
          %v2572 = vunpack.c.h.b16 %v2233
          %v2573 = vunpack.c.l.b16 %v2234
          %v2574 = vunpack.c.h.b16 %v2234
          %v2575 = vunpack.c.l.b16 %v2235
          %v2576 = vunpack.c.h.b16 %v2235
          %v2577 = vunpack.c.l.b16 %v2236
          %v2578 = vunpack.c.h.b16 %v2236
          %v2579 = vunpack.c.l.b16 %v2237
          %v2580 = vunpack.c.h.b16 %v2237
          %v2581 = vunpack.c.l.b16 %v2238
          %v2582 = vunpack.c.h.b16 %v2238
          %v2583 = vunpack.c.l.b16 %v2239
          %v2584 = vunpack.c.h.b16 %v2239
          %v2585 = vunpack.c.l.b16 %v2240
          %v2586 = vunpack.c.h.b16 %v2240
          %v2587 = vunpack.c.l.b16 %v2241
          %v2588 = vunpack.c.h.b16 %v2241
          %v2589 = vunpack.c.l.b16 %v2242
          %v2590 = vunpack.c.h.b16 %v2242
          %v2591 = vunpack.c.l.b16 %v2243
          %v2592 = vunpack.c.h.b16 %v2243
          %v2593 = vunpack.c.l.b16 %v2244
          %v2594 = vunpack.c.h.b16 %v2244
          %v2595 = vunpack.c.l.b16 %v2245
          %v2596 = vunpack.c.h.b16 %v2245
          %v2597 = vunpack.c.l.b16 %v2246
          %v2598 = vunpack.c.h.b16 %v2246
          %v2599 = vunpack.c.l.b16 %v2247
          %v2600 = vunpack.c.h.b16 %v2247
          %v2601 = vunpack.c.l.b16 %v2248
          %v2602 = vunpack.c.h.b16 %v2248
          %v2603 = vunpack.c.l.b16 %v2249
          %v2604 = vunpack.c.h.b16 %v2249
          %v2605 = vunpack.c.l.b16 %v2250
          %v2606 = vunpack.c.h.b16 %v2250
          %v2607 = vunpack.c.l.b16 %v2251
          %v2608 = vunpack.c.h.b16 %v2251
          %v2609 = vunpack.c.l.b16 %v2252
          %v2610 = vunpack.c.h.b16 %v2252
          %v2611 = vunpack.c.l.b16 %v2253
          %v2612 = vunpack.c.h.b16 %v2253
          %v2613 = vunpack.c.l.b16 %v2254
          %v2614 = vunpack.c.h.b16 %v2254
          %v2615 = vunpack.c.l.b16 %v2255
          %v2616 = vunpack.c.h.b16 %v2255
          %v2617 = vunpack.c.l.b16 %v2256
          %v2618 = vunpack.c.h.b16 %v2256
          %v2619 = vunpack.c.l.b16 %v2257
          %v2620 = vunpack.c.h.b16 %v2257
          %v2621 = vunpack.c.l.b16 %v2258
          %v2622 = vunpack.c.h.b16 %v2258
          %v2623 = vunpack.c.l.b16 %v2259
          %v2624 = vunpack.c.h.b16 %v2259
          %v2625 = vunpack.c.l.b16 %v2260
          %v2626 = vunpack.c.h.b16 %v2260
          %v2627 = vunpack.c.l.b16 %v2261
          %v2628 = vunpack.c.h.b16 %v2261
          %v2629 = vunpack.c.l.b16 %v2262
          %v2630 = vunpack.c.h.b16 %v2262
          %v2631 = vunpack.c.l.b16 %v2263
          %v2632 = vunpack.c.h.b16 %v2263
          %v2633 = vunpack.c.l.b16 %v2264
          %v2634 = vunpack.c.h.b16 %v2264
          %v2635 = vunpack.c.l.b16 %v2265
          %v2636 = vunpack.c.h.b16 %v2265
          %v2637 = vunpack.c.l.b16 %v2266
          %v2638 = vunpack.c.h.b16 %v2266
          %v2639 = vunpack.c.l.b16 %v2267
          %v2640 = vunpack.c.h.b16 %v2267
          %v2641 = vunpack.c.l.b16 %v2268
          %v2642 = vunpack.c.h.b16 %v2268
          %v2643 = vunpack.c.l.b16 %v2269
          %v2644 = vunpack.c.h.b16 %v2269
          %v2645 = vunpack.c.l.b16 %v2270
          %v2646 = vunpack.c.h.b16 %v2270
          %v2647 = vunpack.c.l.b16 %v2271
          %v2648 = vunpack.c.h.b16 %v2271
          %v2649 = vunpack.c.l.b16 %v2272
          %v2650 = vunpack.c.h.b16 %v2272
          %v2651 = vunpack.c.l.b16 %v2273
          %v2652 = vunpack.c.h.b16 %v2273
          %v2653 = vunpack.c.l.b16 %v2274
          %v2654 = vunpack.c.h.b16 %v2274
          %v2655 = vunpack.c.l.b16 %v2275
          %v2656 = vunpack.c.h.b16 %v2275
          %v2657 = vunpack.c.l.b16 %v2276
          %v2658 = vunpack.c.h.b16 %v2276
          %v2659 = vunpack.c.l.b16 %v2277
          %v2660 = vunpack.c.h.b16 %v2277
          %v2661 = vunpack.c.l.b16 %v2278
          %v2662 = vunpack.c.h.b16 %v2278
          %v2663 = vpack.c.b16 %v2411, %v2407
          %v2664 = vpack.c.b16 %v2412, %v2408
          %v2665 = vpack.c.b16 %v2413, %v2409
          %v2666 = vpack.c.b16 %v2414, %v2410
          %v2667 = vpack.c.b16 %v2419, %v2415
          %v2668 = vpack.c.b16 %v2420, %v2416
          %v2669 = vpack.c.b16 %v2421, %v2417
          %v2670 = vpack.c.b16 %v2422, %v2418
          %v2671 = vpack.c.b16 %v2427, %v2423
          %v2672 = vpack.c.b16 %v2428, %v2424
          %v2673 = vpack.c.b16 %v2429, %v2425
          %v2674 = vpack.c.b16 %v2430, %v2426
          %v2675 = vpack.c.b16 %v2435, %v2431
          %v2676 = vpack.c.b16 %v2436, %v2432
          %v2677 = vpack.c.b16 %v2437, %v2433
          %v2678 = vpack.c.b16 %v2438, %v2434
          %v2679 = vpack.c.b16 %v2443, %v2439
          %v2680 = vpack.c.b16 %v2444, %v2440
          %v2681 = vpack.c.b16 %v2445, %v2441
          %v2682 = vpack.c.b16 %v2446, %v2442
          %v2683 = vpack.c.b16 %v2451, %v2447
          %v2684 = vpack.c.b16 %v2452, %v2448
          %v2685 = vpack.c.b16 %v2453, %v2449
          %v2686 = vpack.c.b16 %v2454, %v2450
          %v2687 = vpack.c.b16 %v2459, %v2455
          %v2688 = vpack.c.b16 %v2460, %v2456
          %v2689 = vpack.c.b16 %v2461, %v2457
          %v2690 = vpack.c.b16 %v2462, %v2458
          %v2691 = vpack.c.b16 %v2467, %v2463
          %v2692 = vpack.c.b16 %v2468, %v2464
          %v2693 = vpack.c.b16 %v2469, %v2465
          %v2694 = vpack.c.b16 %v2470, %v2466
          %v2695 = vpack.c.b16 %v2475, %v2471
          %v2696 = vpack.c.b16 %v2476, %v2472
          %v2697 = vpack.c.b16 %v2477, %v2473
          %v2698 = vpack.c.b16 %v2478, %v2474
          %v2699 = vpack.c.b16 %v2483, %v2479
          %v2700 = vpack.c.b16 %v2484, %v2480
          %v2701 = vpack.c.b16 %v2485, %v2481
          %v2702 = vpack.c.b16 %v2486, %v2482
          %v2703 = vpack.c.b16 %v2491, %v2487
          %v2704 = vpack.c.b16 %v2492, %v2488
          %v2705 = vpack.c.b16 %v2493, %v2489
          %v2706 = vpack.c.b16 %v2494, %v2490
          %v2707 = vpack.c.b16 %v2499, %v2495
          %v2708 = vpack.c.b16 %v2500, %v2496
          %v2709 = vpack.c.b16 %v2501, %v2497
          %v2710 = vpack.c.b16 %v2502, %v2498
          %v2711 = vpack.c.b16 %v2507, %v2503
          %v2712 = vpack.c.b16 %v2508, %v2504
          %v2713 = vpack.c.b16 %v2509, %v2505
          %v2714 = vpack.c.b16 %v2510, %v2506
          %v2715 = vpack.c.b16 %v2515, %v2511
          %v2716 = vpack.c.b16 %v2516, %v2512
          %v2717 = vpack.c.b16 %v2517, %v2513
          %v2718 = vpack.c.b16 %v2518, %v2514
          %v2719 = vpack.c.b16 %v2523, %v2519
          %v2720 = vpack.c.b16 %v2524, %v2520
          %v2721 = vpack.c.b16 %v2525, %v2521
          %v2722 = vpack.c.b16 %v2526, %v2522
          %v2723 = vpack.c.b16 %v2531, %v2527
          %v2724 = vpack.c.b16 %v2532, %v2528
          %v2725 = vpack.c.b16 %v2533, %v2529
          %v2726 = vpack.c.b16 %v2534, %v2530
          %v2727 = vpack.c.b16 %v2539, %v2535
          %v2728 = vpack.c.b16 %v2540, %v2536
          %v2729 = vpack.c.b16 %v2541, %v2537
          %v2730 = vpack.c.b16 %v2542, %v2538
          %v2731 = vpack.c.b16 %v2547, %v2543
          %v2732 = vpack.c.b16 %v2548, %v2544
          %v2733 = vpack.c.b16 %v2549, %v2545
          %v2734 = vpack.c.b16 %v2550, %v2546
          %v2735 = vpack.c.b16 %v2555, %v2551
          %v2736 = vpack.c.b16 %v2556, %v2552
          %v2737 = vpack.c.b16 %v2557, %v2553
          %v2738 = vpack.c.b16 %v2558, %v2554
          %v2739 = vpack.c.b16 %v2563, %v2559
          %v2740 = vpack.c.b16 %v2564, %v2560
          %v2741 = vpack.c.b16 %v2565, %v2561
          %v2742 = vpack.c.b16 %v2566, %v2562
          %v2743 = vpack.c.b16 %v2571, %v2567
          %v2744 = vpack.c.b16 %v2572, %v2568
          %v2745 = vpack.c.b16 %v2573, %v2569
          %v2746 = vpack.c.b16 %v2574, %v2570
          %v2747 = vpack.c.b16 %v2579, %v2575
          %v2748 = vpack.c.b16 %v2580, %v2576
          %v2749 = vpack.c.b16 %v2581, %v2577
          %v2750 = vpack.c.b16 %v2582, %v2578
          %v2751 = vpack.c.b16 %v2587, %v2583
          %v2752 = vpack.c.b16 %v2588, %v2584
          %v2753 = vpack.c.b16 %v2589, %v2585
          %v2754 = vpack.c.b16 %v2590, %v2586
          %v2755 = vpack.c.b16 %v2595, %v2591
          %v2756 = vpack.c.b16 %v2596, %v2592
          %v2757 = vpack.c.b16 %v2597, %v2593
          %v2758 = vpack.c.b16 %v2598, %v2594
          %v2759 = vpack.c.b16 %v2603, %v2599
          %v2760 = vpack.c.b16 %v2604, %v2600
          %v2761 = vpack.c.b16 %v2605, %v2601
          %v2762 = vpack.c.b16 %v2606, %v2602
          %v2763 = vpack.c.b16 %v2611, %v2607
          %v2764 = vpack.c.b16 %v2612, %v2608
          %v2765 = vpack.c.b16 %v2613, %v2609
          %v2766 = vpack.c.b16 %v2614, %v2610
          %v2767 = vpack.c.b16 %v2619, %v2615
          %v2768 = vpack.c.b16 %v2620, %v2616
          %v2769 = vpack.c.b16 %v2621, %v2617
          %v2770 = vpack.c.b16 %v2622, %v2618
          %v2771 = vpack.c.b16 %v2627, %v2623
          %v2772 = vpack.c.b16 %v2628, %v2624
          %v2773 = vpack.c.b16 %v2629, %v2625
          %v2774 = vpack.c.b16 %v2630, %v2626
          %v2775 = vpack.c.b16 %v2635, %v2631
          %v2776 = vpack.c.b16 %v2636, %v2632
          %v2777 = vpack.c.b16 %v2637, %v2633
          %v2778 = vpack.c.b16 %v2638, %v2634
          %v2779 = vpack.c.b16 %v2643, %v2639
          %v2780 = vpack.c.b16 %v2644, %v2640
          %v2781 = vpack.c.b16 %v2645, %v2641
          %v2782 = vpack.c.b16 %v2646, %v2642
          %v2783 = vpack.c.b16 %v2651, %v2647
          %v2784 = vpack.c.b16 %v2652, %v2648
          %v2785 = vpack.c.b16 %v2653, %v2649
          %v2786 = vpack.c.b16 %v2654, %v2650
          %v2787 = vpack.c.b16 %v2659, %v2655
          %v2788 = vpack.c.b16 %v2660, %v2656
          %v2789 = vpack.c.b16 %v2661, %v2657
          %v2790 = vpack.c.b16 %v2662, %v2658
          %2919 = vmatprep.subr.bf16.mxu0 %v2664
          %2920 = vmatpush1.bf16.msra.mxu0 %v2663
          %2921 = vmatprep.subr.bf16.mxu0 %v2668
          %2922 = vmatpush1.bf16.msra.mxu0 %v2667
          %2923 = vmatprep.subr.bf16.mxu0 %v2672
          %2924 = vmatpush1.bf16.msra.mxu0 %v2671
          %2925 = vmatprep.subr.bf16.mxu0 %v2676
          %2926 = vmatpush1.bf16.msra.mxu0 %v2675
          %2927 = vmatprep.subr.bf16.mxu0 %v2680
          %2928 = vmatpush1.bf16.msra.mxu0 %v2679
          %2929 = vmatprep.subr.bf16.mxu0 %v2684
          %2930 = vmatpush1.bf16.msra.mxu0 %v2683
          %2931 = vmatprep.subr.bf16.mxu0 %v2688
          %2932 = vmatpush1.bf16.msra.mxu0 %v2687
          %2933 = vmatprep.subr.bf16.mxu0 %v2692
          %2934 = vmatpush1.bf16.msra.mxu0 %v2691
          %2935 = vmatprep.subr.bf16.mxu0 %v2696
          %2936 = vmatpush1.bf16.msra.mxu0 %v2695
          %2937 = vmatprep.subr.bf16.mxu0 %v2700
          %2938 = vmatpush1.bf16.msra.mxu0 %v2699
          %2939 = vmatprep.subr.bf16.mxu0 %v2704
          %2940 = vmatpush1.bf16.msra.mxu0 %v2703
          %2941 = vmatprep.subr.bf16.mxu0 %v2708
          %2942 = vmatpush1.bf16.msra.mxu0 %v2707
          %2943 = vmatprep.subr.bf16.mxu0 %v2712
          %2944 = vmatpush1.bf16.msra.mxu0 %v2711
          %2945 = vmatprep.subr.bf16.mxu0 %v2716
          %2946 = vmatpush1.bf16.msra.mxu0 %v2715
          %2947 = vmatprep.subr.bf16.mxu0 %v2720
          %2948 = vmatpush1.bf16.msra.mxu0 %v2719
          %2949 = vmatprep.subr.bf16.mxu0 %v2724
          %2950 = vmatpush1.bf16.msra.mxu0 %v2723
          %2951 = vmatprep.mubr.bf16.mxu0 %v2147
          %2952 = vmatmul.mubr.bf16.gmra.mrb[0].mxu0 %v2146
          %v2953 = vpop.f32.mrb[0].mxu0
          %v2954 = vadd.f32 0.0, %v2953
          %v2955 = vpop.f32.mrb[0].mxu0
          %v2956 = vadd.f32 0.0, %v2955
          %v2957 = vpop.f32.mrb[0].mxu0
          %v2958 = vpop.f32.mrb[0].mxu0
          %2959 = vdwg.mxu0
          %2960 = vmatprep.subr.bf16.mxu0 %v2728
          %2961 = vmatpush1.bf16.msra.mxu0 %v2727
          %2962 = vmatprep.subr.bf16.mxu0 %v2732
          %2963 = vmatpush1.bf16.msra.mxu0 %v2731
          %2964 = vmatprep.subr.bf16.mxu0 %v2736
          %2965 = vmatpush1.bf16.msra.mxu0 %v2735
          %2966 = vmatprep.subr.bf16.mxu0 %v2740
          %2967 = vmatpush1.bf16.msra.mxu0 %v2739
          %2968 = vmatprep.subr.bf16.mxu0 %v2744
          %2969 = vmatpush1.bf16.msra.mxu0 %v2743
          %2970 = vmatprep.subr.bf16.mxu0 %v2748
          %2971 = vmatpush1.bf16.msra.mxu0 %v2747
          %2972 = vmatprep.subr.bf16.mxu0 %v2752
          %2973 = vmatpush1.bf16.msra.mxu0 %v2751
          %2974 = vmatprep.subr.bf16.mxu0 %v2756
          %2975 = vmatpush1.bf16.msra.mxu0 %v2755
          %2976 = vmatprep.subr.bf16.mxu0 %v2760
          %2977 = vmatpush1.bf16.msra.mxu0 %v2759
          %2978 = vmatprep.subr.bf16.mxu0 %v2764
          %2979 = vmatpush1.bf16.msra.mxu0 %v2763
          %2980 = vmatprep.subr.bf16.mxu0 %v2768
          %2981 = vmatpush1.bf16.msra.mxu0 %v2767
          %2982 = vmatprep.subr.bf16.mxu0 %v2772
          %2983 = vmatpush1.bf16.msra.mxu0 %v2771
          %2984 = vmatprep.subr.bf16.mxu0 %v2776
          %2985 = vmatpush1.bf16.msra.mxu0 %v2775
          %2986 = vmatprep.subr.bf16.mxu0 %v2780
          %2987 = vmatpush1.bf16.msra.mxu0 %v2779
          %2988 = vmatprep.subr.bf16.mxu0 %v2784
          %2989 = vmatpush1.bf16.msra.mxu0 %v2783
          %2990 = vmatprep.subr.bf16.mxu0 %v2788
          %2991 = vmatpush1.bf16.msra.mxu0 %v2787
          %2992 = vmatprep.mubr.bf16.mxu0 %v2149
          %2993 = vmatmul.mubr.bf16.gmra.mrb[0].mxu0 %v2148
          %v2994 = vpop.f32.mrb[0].mxu0
          %v2995 = vadd.f32 %v2954, %v2994
          %v2996 = vpop.f32.mrb[0].mxu0
          %v2997 = vadd.f32 %v2956, %v2996
          %v2998 = vpop.f32.mrb[0].mxu0
          %v2999 = vpop.f32.mrb[0].mxu0
          %3000 = vdwg.mxu0
          %3001 = vmatprep.subr.bf16.mxu0 %v2666
          %3002 = vmatpush1.bf16.msra.mxu0 %v2665
          %3003 = vmatprep.subr.bf16.mxu0 %v2670
          %3004 = vmatpush1.bf16.msra.mxu0 %v2669
          %3005 = vmatprep.subr.bf16.mxu0 %v2674
          %3006 = vmatpush1.bf16.msra.mxu0 %v2673
          %3007 = vmatprep.subr.bf16.mxu0 %v2678
          %3008 = vmatpush1.bf16.msra.mxu0 %v2677
          %3009 = vmatprep.subr.bf16.mxu0 %v2682
          %3010 = vmatpush1.bf16.msra.mxu0 %v2681
          %3011 = vmatprep.subr.bf16.mxu0 %v2686
          %3012 = vmatpush1.bf16.msra.mxu0 %v2685
          %3013 = vmatprep.subr.bf16.mxu0 %v2690
          %3014 = vmatpush1.bf16.msra.mxu0 %v2689
          %3015 = vmatprep.subr.bf16.mxu0 %v2694
          %3016 = vmatpush1.bf16.msra.mxu0 %v2693
          %3017 = vmatprep.subr.bf16.mxu0 %v2698
          %3018 = vmatpush1.bf16.msra.mxu0 %v2697
          %3019 = vmatprep.subr.bf16.mxu0 %v2702
          %3020 = vmatpush1.bf16.msra.mxu0 %v2701
          %3021 = vmatprep.subr.bf16.mxu0 %v2706
          %3022 = vmatpush1.bf16.msra.mxu0 %v2705
          %3023 = vmatprep.subr.bf16.mxu0 %v2710
          %3024 = vmatpush1.bf16.msra.mxu0 %v2709
          %3025 = vmatprep.subr.bf16.mxu0 %v2714
          %3026 = vmatpush1.bf16.msra.mxu0 %v2713
          %3027 = vmatprep.subr.bf16.mxu0 %v2718
          %3028 = vmatpush1.bf16.msra.mxu0 %v2717
          %3029 = vmatprep.subr.bf16.mxu0 %v2722
          %3030 = vmatpush1.bf16.msra.mxu0 %v2721
          %3031 = vmatprep.subr.bf16.mxu0 %v2726
          %3032 = vmatpush1.bf16.msra.mxu0 %v2725
          %3033 = vmatprep.mubr.bf16.mxu0 %v2147
          %3034 = vmatmul.mubr.bf16.gmra.mrb[0].mxu0 %v2146
          %v3035 = vpop.f32.mrb[0].mxu0
          %v3036 = vadd.f32 0.0, %v3035
          %v3037 = vpop.f32.mrb[0].mxu0
          %v3038 = vadd.f32 0.0, %v3037
          %v3039 = vpop.f32.mrb[0].mxu0
          %v3040 = vpop.f32.mrb[0].mxu0
          %3041 = vdwg.mxu0
          %3042 = vmatprep.subr.bf16.mxu0 %v2730
          %3043 = vmatpush1.bf16.msra.mxu0 %v2729
          %3044 = vmatprep.subr.bf16.mxu0 %v2734
          %3045 = vmatpush1.bf16.msra.mxu0 %v2733
          %3046 = vmatprep.subr.bf16.mxu0 %v2738
          %3047 = vmatpush1.bf16.msra.mxu0 %v2737
          %3048 = vmatprep.subr.bf16.mxu0 %v2742
          %3049 = vmatpush1.bf16.msra.mxu0 %v2741
          %3050 = vmatprep.subr.bf16.mxu0 %v2746
          %3051 = vmatpush1.bf16.msra.mxu0 %v2745
          %3052 = vmatprep.subr.bf16.mxu0 %v2750
          %3053 = vmatpush1.bf16.msra.mxu0 %v2749
          %3054 = vmatprep.subr.bf16.mxu0 %v2754
          %3055 = vmatpush1.bf16.msra.mxu0 %v2753
          %3056 = vmatprep.subr.bf16.mxu0 %v2758
          %3057 = vmatpush1.bf16.msra.mxu0 %v2757
          %3058 = vmatprep.subr.bf16.mxu0 %v2762
          %3059 = vmatpush1.bf16.msra.mxu0 %v2761
          %3060 = vmatprep.subr.bf16.mxu0 %v2766
          %3061 = vmatpush1.bf16.msra.mxu0 %v2765
          %3062 = vmatprep.subr.bf16.mxu0 %v2770
          %3063 = vmatpush1.bf16.msra.mxu0 %v2769
          %3064 = vmatprep.subr.bf16.mxu0 %v2774
          %3065 = vmatpush1.bf16.msra.mxu0 %v2773
          %3066 = vmatprep.subr.bf16.mxu0 %v2778
          %3067 = vmatpush1.bf16.msra.mxu0 %v2777
          %3068 = vmatprep.subr.bf16.mxu0 %v2782
          %3069 = vmatpush1.bf16.msra.mxu0 %v2781
          %3070 = vmatprep.subr.bf16.mxu0 %v2786
          %3071 = vmatpush1.bf16.msra.mxu0 %v2785
          %3072 = vmatprep.subr.bf16.mxu0 %v2790
          %3073 = vmatpush1.bf16.msra.mxu0 %v2789
          %3074 = vmatprep.mubr.bf16.mxu0 %v2149
          %3075 = vmatmul.mubr.bf16.gmra.mrb[0].mxu0 %v2148
          %v3076 = vpop.f32.mrb[0].mxu0
          %v3077 = vadd.f32 %v3036, %v3076
          %v3078 = vpop.f32.mrb[0].mxu0
          %v3079 = vadd.f32 %v3038, %v3078
          %v3080 = vpop.f32.mrb[0].mxu0
          %v3081 = vpop.f32.mrb[0].mxu0
          %3082 = vdwg.mxu0
          %v3083 = vadd.f32 %v2138, %v2995
          %v3084 = vadd.f32 %v2139, %v2997
          %v3085 = vadd.f32 %v2140, %v3077
          %v3086 = vadd.f32 %v2141, %v3079
          %v3087 = vld [vmem:[#allocation4 + $0x60] sm:$0xff]
          %v3088 = vld [vmem:[#allocation4 + $0x68] sm:$0xff]
          %v3089 = vld [vmem:[#allocation4 + $0x70] sm:$0xff]
          %v3090 = vld [vmem:[#allocation4 + $0x78] sm:$0xff]
          %v3091 = vpack.c.bf16 %v3087, %v3087
          %v3092 = vpack.c.bf16 %v3088, %v3088
          %v3093 = vpack.c.bf16 %v3089, %v3089
          %v3094 = vpack.c.bf16 %v3090, %v3090
          %s3095 = scalar_lea.vmem %s183, 3072 [#allocation7]
          %v3096 = vld [vmem:[%s3095] sm:$0xff]
          %v3097 = vld [vmem:[%s3095 + $0x8] sm:$0xff]
          %v3098 = vld [vmem:[%s3095 + $0x10] sm:$0xff]
          %v3099 = vld [vmem:[%s3095 + $0x18] sm:$0xff]
          %v3100 = vld [vmem:[%s3095 + $0x20] sm:$0xff]
          %v3101 = vld [vmem:[%s3095 + $0x28] sm:$0xff]
          %v3102 = vld [vmem:[%s3095 + $0x30] sm:$0xff]
          %v3103 = vld [vmem:[%s3095 + $0x38] sm:$0xff]
          %v3104 = vld [vmem:[%s3095 + $0x40] sm:$0xff]
          %v3105 = vld [vmem:[%s3095 + $0x48] sm:$0xff]
          %v3106 = vld [vmem:[%s3095 + $0x50] sm:$0xff]
          %v3107 = vld [vmem:[%s3095 + $0x58] sm:$0xff]
          %v3108 = vld [vmem:[%s3095 + $0x60] sm:$0xff]
          %v3109 = vld [vmem:[%s3095 + $0x68] sm:$0xff]
          %v3110 = vld [vmem:[%s3095 + $0x70] sm:$0xff]
          %v3111 = vld [vmem:[%s3095 + $0x78] sm:$0xff]
          %v3112 = vld [vmem:[%s3095 + $0x80] sm:$0xff]
          %v3113 = vld [vmem:[%s3095 + $0x88] sm:$0xff]
          %v3114 = vld [vmem:[%s3095 + $0x90] sm:$0xff]
          %v3115 = vld [vmem:[%s3095 + $0x98] sm:$0xff]
          %v3116 = vld [vmem:[%s3095 + $0xa0] sm:$0xff]
          %v3117 = vld [vmem:[%s3095 + $0xa8] sm:$0xff]
          %v3118 = vld [vmem:[%s3095 + $0xb0] sm:$0xff]
          %v3119 = vld [vmem:[%s3095 + $0xb8] sm:$0xff]
          %v3120 = vld [vmem:[%s3095 + $0xc0] sm:$0xff]
          %v3121 = vld [vmem:[%s3095 + $0xc8] sm:$0xff]
          %v3122 = vld [vmem:[%s3095 + $0xd0] sm:$0xff]
          %v3123 = vld [vmem:[%s3095 + $0xd8] sm:$0xff]
          %v3124 = vld [vmem:[%s3095 + $0xe0] sm:$0xff]
          %v3125 = vld [vmem:[%s3095 + $0xe8] sm:$0xff]
          %v3126 = vld [vmem:[%s3095 + $0xf0] sm:$0xff]
          %v3127 = vld [vmem:[%s3095 + $0xf8] sm:$0xff]
          %v3128 = vld [vmem:[%s3095 + $0x100] sm:$0xff]
          %v3129 = vld [vmem:[%s3095 + $0x108] sm:$0xff]
          %v3130 = vld [vmem:[%s3095 + $0x110] sm:$0xff]
          %v3131 = vld [vmem:[%s3095 + $0x118] sm:$0xff]
          %v3132 = vld [vmem:[%s3095 + $0x120] sm:$0xff]
          %v3133 = vld [vmem:[%s3095 + $0x128] sm:$0xff]
          %v3134 = vld [vmem:[%s3095 + $0x130] sm:$0xff]
          %v3135 = vld [vmem:[%s3095 + $0x138] sm:$0xff]
          %v3136 = vld [vmem:[%s3095 + $0x140] sm:$0xff]
          %v3137 = vld [vmem:[%s3095 + $0x148] sm:$0xff]
          %v3138 = vld [vmem:[%s3095 + $0x150] sm:$0xff]
          %v3139 = vld [vmem:[%s3095 + $0x158] sm:$0xff]
          %v3140 = vld [vmem:[%s3095 + $0x160] sm:$0xff]
          %v3141 = vld [vmem:[%s3095 + $0x168] sm:$0xff]
          %v3142 = vld [vmem:[%s3095 + $0x170] sm:$0xff]
          %v3143 = vld [vmem:[%s3095 + $0x178] sm:$0xff]
          %v3144 = vld [vmem:[%s3095 + $0x180] sm:$0xff]
          %v3145 = vld [vmem:[%s3095 + $0x188] sm:$0xff]
          %v3146 = vld [vmem:[%s3095 + $0x190] sm:$0xff]
          %v3147 = vld [vmem:[%s3095 + $0x198] sm:$0xff]
          %v3148 = vld [vmem:[%s3095 + $0x1a0] sm:$0xff]
          %v3149 = vld [vmem:[%s3095 + $0x1a8] sm:$0xff]
          %v3150 = vld [vmem:[%s3095 + $0x1b0] sm:$0xff]
          %v3151 = vld [vmem:[%s3095 + $0x1b8] sm:$0xff]
          %v3152 = vld [vmem:[%s3095 + $0x1c0] sm:$0xff]
          %v3153 = vld [vmem:[%s3095 + $0x1c8] sm:$0xff]
          %v3154 = vld [vmem:[%s3095 + $0x1d0] sm:$0xff]
          %v3155 = vld [vmem:[%s3095 + $0x1d8] sm:$0xff]
          %v3156 = vld [vmem:[%s3095 + $0x1e0] sm:$0xff]
          %v3157 = vld [vmem:[%s3095 + $0x1e8] sm:$0xff]
          %v3158 = vld [vmem:[%s3095 + $0x1f0] sm:$0xff]
          %v3159 = vld [vmem:[%s3095 + $0x1f8] sm:$0xff]
          %v3160 = vld [vmem:[%s3095 + $0x200] sm:$0xff]
          %v3161 = vld [vmem:[%s3095 + $0x208] sm:$0xff]
          %v3162 = vld [vmem:[%s3095 + $0x210] sm:$0xff]
          %v3163 = vld [vmem:[%s3095 + $0x218] sm:$0xff]
          %v3164 = vld [vmem:[%s3095 + $0x220] sm:$0xff]
          %v3165 = vld [vmem:[%s3095 + $0x228] sm:$0xff]
          %v3166 = vld [vmem:[%s3095 + $0x230] sm:$0xff]
          %v3167 = vld [vmem:[%s3095 + $0x238] sm:$0xff]
          %v3168 = vld [vmem:[%s3095 + $0x240] sm:$0xff]
          %v3169 = vld [vmem:[%s3095 + $0x248] sm:$0xff]
          %v3170 = vld [vmem:[%s3095 + $0x250] sm:$0xff]
          %v3171 = vld [vmem:[%s3095 + $0x258] sm:$0xff]
          %v3172 = vld [vmem:[%s3095 + $0x260] sm:$0xff]
          %v3173 = vld [vmem:[%s3095 + $0x268] sm:$0xff]
          %v3174 = vld [vmem:[%s3095 + $0x270] sm:$0xff]
          %v3175 = vld [vmem:[%s3095 + $0x278] sm:$0xff]
          %v3176 = vld [vmem:[%s3095 + $0x280] sm:$0xff]
          %v3177 = vld [vmem:[%s3095 + $0x288] sm:$0xff]
          %v3178 = vld [vmem:[%s3095 + $0x290] sm:$0xff]
          %v3179 = vld [vmem:[%s3095 + $0x298] sm:$0xff]
          %v3180 = vld [vmem:[%s3095 + $0x2a0] sm:$0xff]
          %v3181 = vld [vmem:[%s3095 + $0x2a8] sm:$0xff]
          %v3182 = vld [vmem:[%s3095 + $0x2b0] sm:$0xff]
          %v3183 = vld [vmem:[%s3095 + $0x2b8] sm:$0xff]
          %v3184 = vld [vmem:[%s3095 + $0x2c0] sm:$0xff]
          %v3185 = vld [vmem:[%s3095 + $0x2c8] sm:$0xff]
          %v3186 = vld [vmem:[%s3095 + $0x2d0] sm:$0xff]
          %v3187 = vld [vmem:[%s3095 + $0x2d8] sm:$0xff]
          %v3188 = vld [vmem:[%s3095 + $0x2e0] sm:$0xff]
          %v3189 = vld [vmem:[%s3095 + $0x2e8] sm:$0xff]
          %v3190 = vld [vmem:[%s3095 + $0x2f0] sm:$0xff]
          %v3191 = vld [vmem:[%s3095 + $0x2f8] sm:$0xff]
          %v3192 = vld [vmem:[%s3095 + $0x300] sm:$0xff]
          %v3193 = vld [vmem:[%s3095 + $0x308] sm:$0xff]
          %v3194 = vld [vmem:[%s3095 + $0x310] sm:$0xff]
          %v3195 = vld [vmem:[%s3095 + $0x318] sm:$0xff]
          %v3196 = vld [vmem:[%s3095 + $0x320] sm:$0xff]
          %v3197 = vld [vmem:[%s3095 + $0x328] sm:$0xff]
          %v3198 = vld [vmem:[%s3095 + $0x330] sm:$0xff]
          %v3199 = vld [vmem:[%s3095 + $0x338] sm:$0xff]
          %v3200 = vld [vmem:[%s3095 + $0x340] sm:$0xff]
          %v3201 = vld [vmem:[%s3095 + $0x348] sm:$0xff]
          %v3202 = vld [vmem:[%s3095 + $0x350] sm:$0xff]
          %v3203 = vld [vmem:[%s3095 + $0x358] sm:$0xff]
          %v3204 = vld [vmem:[%s3095 + $0x360] sm:$0xff]
          %v3205 = vld [vmem:[%s3095 + $0x368] sm:$0xff]
          %v3206 = vld [vmem:[%s3095 + $0x370] sm:$0xff]
          %v3207 = vld [vmem:[%s3095 + $0x378] sm:$0xff]
          %v3208 = vld [vmem:[%s3095 + $0x380] sm:$0xff]
          %v3209 = vld [vmem:[%s3095 + $0x388] sm:$0xff]
          %v3210 = vld [vmem:[%s3095 + $0x390] sm:$0xff]
          %v3211 = vld [vmem:[%s3095 + $0x398] sm:$0xff]
          %v3212 = vld [vmem:[%s3095 + $0x3a0] sm:$0xff]
          %v3213 = vld [vmem:[%s3095 + $0x3a8] sm:$0xff]
          %v3214 = vld [vmem:[%s3095 + $0x3b0] sm:$0xff]
          %v3215 = vld [vmem:[%s3095 + $0x3b8] sm:$0xff]
          %v3216 = vld [vmem:[%s3095 + $0x3c0] sm:$0xff]
          %v3217 = vld [vmem:[%s3095 + $0x3c8] sm:$0xff]
          %v3218 = vld [vmem:[%s3095 + $0x3d0] sm:$0xff]
          %v3219 = vld [vmem:[%s3095 + $0x3d8] sm:$0xff]
          %v3220 = vld [vmem:[%s3095 + $0x3e0] sm:$0xff]
          %v3221 = vld [vmem:[%s3095 + $0x3e8] sm:$0xff]
          %v3222 = vld [vmem:[%s3095 + $0x3f0] sm:$0xff]
          %v3223 = vld [vmem:[%s3095 + $0x3f8] sm:$0xff]
          %v3352 = vunpack.c.l.b16 %v3096
          %v3353 = vunpack.c.h.b16 %v3096
          %v3354 = vunpack.c.l.b16 %v3097
          %v3355 = vunpack.c.h.b16 %v3097
          %v3356 = vunpack.c.l.b16 %v3098
          %v3357 = vunpack.c.h.b16 %v3098
          %v3358 = vunpack.c.l.b16 %v3099
          %v3359 = vunpack.c.h.b16 %v3099
          %v3360 = vunpack.c.l.b16 %v3100
          %v3361 = vunpack.c.h.b16 %v3100
          %v3362 = vunpack.c.l.b16 %v3101
          %v3363 = vunpack.c.h.b16 %v3101
          %v3364 = vunpack.c.l.b16 %v3102
          %v3365 = vunpack.c.h.b16 %v3102
          %v3366 = vunpack.c.l.b16 %v3103
          %v3367 = vunpack.c.h.b16 %v3103
          %v3368 = vunpack.c.l.b16 %v3104
          %v3369 = vunpack.c.h.b16 %v3104
          %v3370 = vunpack.c.l.b16 %v3105
          %v3371 = vunpack.c.h.b16 %v3105
          %v3372 = vunpack.c.l.b16 %v3106
          %v3373 = vunpack.c.h.b16 %v3106
          %v3374 = vunpack.c.l.b16 %v3107
          %v3375 = vunpack.c.h.b16 %v3107
          %v3376 = vunpack.c.l.b16 %v3108
          %v3377 = vunpack.c.h.b16 %v3108
          %v3378 = vunpack.c.l.b16 %v3109
          %v3379 = vunpack.c.h.b16 %v3109
          %v3380 = vunpack.c.l.b16 %v3110
          %v3381 = vunpack.c.h.b16 %v3110
          %v3382 = vunpack.c.l.b16 %v3111
          %v3383 = vunpack.c.h.b16 %v3111
          %v3384 = vunpack.c.l.b16 %v3112
          %v3385 = vunpack.c.h.b16 %v3112
          %v3386 = vunpack.c.l.b16 %v3113
          %v3387 = vunpack.c.h.b16 %v3113
          %v3388 = vunpack.c.l.b16 %v3114
          %v3389 = vunpack.c.h.b16 %v3114
          %v3390 = vunpack.c.l.b16 %v3115
          %v3391 = vunpack.c.h.b16 %v3115
          %v3392 = vunpack.c.l.b16 %v3116
          %v3393 = vunpack.c.h.b16 %v3116
          %v3394 = vunpack.c.l.b16 %v3117
          %v3395 = vunpack.c.h.b16 %v3117
          %v3396 = vunpack.c.l.b16 %v3118
          %v3397 = vunpack.c.h.b16 %v3118
          %v3398 = vunpack.c.l.b16 %v3119
          %v3399 = vunpack.c.h.b16 %v3119
          %v3400 = vunpack.c.l.b16 %v3120
          %v3401 = vunpack.c.h.b16 %v3120
          %v3402 = vunpack.c.l.b16 %v3121
          %v3403 = vunpack.c.h.b16 %v3121
          %v3404 = vunpack.c.l.b16 %v3122
          %v3405 = vunpack.c.h.b16 %v3122
          %v3406 = vunpack.c.l.b16 %v3123
          %v3407 = vunpack.c.h.b16 %v3123
          %v3408 = vunpack.c.l.b16 %v3124
          %v3409 = vunpack.c.h.b16 %v3124
          %v3410 = vunpack.c.l.b16 %v3125
          %v3411 = vunpack.c.h.b16 %v3125
          %v3412 = vunpack.c.l.b16 %v3126
          %v3413 = vunpack.c.h.b16 %v3126
          %v3414 = vunpack.c.l.b16 %v3127
          %v3415 = vunpack.c.h.b16 %v3127
          %v3416 = vunpack.c.l.b16 %v3128
          %v3417 = vunpack.c.h.b16 %v3128
          %v3418 = vunpack.c.l.b16 %v3129
          %v3419 = vunpack.c.h.b16 %v3129
          %v3420 = vunpack.c.l.b16 %v3130
          %v3421 = vunpack.c.h.b16 %v3130
          %v3422 = vunpack.c.l.b16 %v3131
          %v3423 = vunpack.c.h.b16 %v3131
          %v3424 = vunpack.c.l.b16 %v3132
          %v3425 = vunpack.c.h.b16 %v3132
          %v3426 = vunpack.c.l.b16 %v3133
          %v3427 = vunpack.c.h.b16 %v3133
          %v3428 = vunpack.c.l.b16 %v3134
          %v3429 = vunpack.c.h.b16 %v3134
          %v3430 = vunpack.c.l.b16 %v3135
          %v3431 = vunpack.c.h.b16 %v3135
          %v3432 = vunpack.c.l.b16 %v3136
          %v3433 = vunpack.c.h.b16 %v3136
          %v3434 = vunpack.c.l.b16 %v3137
          %v3435 = vunpack.c.h.b16 %v3137
          %v3436 = vunpack.c.l.b16 %v3138
          %v3437 = vunpack.c.h.b16 %v3138
          %v3438 = vunpack.c.l.b16 %v3139
          %v3439 = vunpack.c.h.b16 %v3139
          %v3440 = vunpack.c.l.b16 %v3140
          %v3441 = vunpack.c.h.b16 %v3140
          %v3442 = vunpack.c.l.b16 %v3141
          %v3443 = vunpack.c.h.b16 %v3141
          %v3444 = vunpack.c.l.b16 %v3142
          %v3445 = vunpack.c.h.b16 %v3142
          %v3446 = vunpack.c.l.b16 %v3143
          %v3447 = vunpack.c.h.b16 %v3143
          %v3448 = vunpack.c.l.b16 %v3144
          %v3449 = vunpack.c.h.b16 %v3144
          %v3450 = vunpack.c.l.b16 %v3145
          %v3451 = vunpack.c.h.b16 %v3145
          %v3452 = vunpack.c.l.b16 %v3146
          %v3453 = vunpack.c.h.b16 %v3146
          %v3454 = vunpack.c.l.b16 %v3147
          %v3455 = vunpack.c.h.b16 %v3147
          %v3456 = vunpack.c.l.b16 %v3148
          %v3457 = vunpack.c.h.b16 %v3148
          %v3458 = vunpack.c.l.b16 %v3149
          %v3459 = vunpack.c.h.b16 %v3149
          %v3460 = vunpack.c.l.b16 %v3150
          %v3461 = vunpack.c.h.b16 %v3150
          %v3462 = vunpack.c.l.b16 %v3151
          %v3463 = vunpack.c.h.b16 %v3151
          %v3464 = vunpack.c.l.b16 %v3152
          %v3465 = vunpack.c.h.b16 %v3152
          %v3466 = vunpack.c.l.b16 %v3153
          %v3467 = vunpack.c.h.b16 %v3153
          %v3468 = vunpack.c.l.b16 %v3154
          %v3469 = vunpack.c.h.b16 %v3154
          %v3470 = vunpack.c.l.b16 %v3155
          %v3471 = vunpack.c.h.b16 %v3155
          %v3472 = vunpack.c.l.b16 %v3156
          %v3473 = vunpack.c.h.b16 %v3156
          %v3474 = vunpack.c.l.b16 %v3157
          %v3475 = vunpack.c.h.b16 %v3157
          %v3476 = vunpack.c.l.b16 %v3158
          %v3477 = vunpack.c.h.b16 %v3158
          %v3478 = vunpack.c.l.b16 %v3159
          %v3479 = vunpack.c.h.b16 %v3159
          %v3480 = vunpack.c.l.b16 %v3160
          %v3481 = vunpack.c.h.b16 %v3160
          %v3482 = vunpack.c.l.b16 %v3161
          %v3483 = vunpack.c.h.b16 %v3161
          %v3484 = vunpack.c.l.b16 %v3162
          %v3485 = vunpack.c.h.b16 %v3162
          %v3486 = vunpack.c.l.b16 %v3163
          %v3487 = vunpack.c.h.b16 %v3163
          %v3488 = vunpack.c.l.b16 %v3164
          %v3489 = vunpack.c.h.b16 %v3164
          %v3490 = vunpack.c.l.b16 %v3165
          %v3491 = vunpack.c.h.b16 %v3165
          %v3492 = vunpack.c.l.b16 %v3166
          %v3493 = vunpack.c.h.b16 %v3166
          %v3494 = vunpack.c.l.b16 %v3167
          %v3495 = vunpack.c.h.b16 %v3167
          %v3496 = vunpack.c.l.b16 %v3168
          %v3497 = vunpack.c.h.b16 %v3168
          %v3498 = vunpack.c.l.b16 %v3169
          %v3499 = vunpack.c.h.b16 %v3169
          %v3500 = vunpack.c.l.b16 %v3170
          %v3501 = vunpack.c.h.b16 %v3170
          %v3502 = vunpack.c.l.b16 %v3171
          %v3503 = vunpack.c.h.b16 %v3171
          %v3504 = vunpack.c.l.b16 %v3172
          %v3505 = vunpack.c.h.b16 %v3172
          %v3506 = vunpack.c.l.b16 %v3173
          %v3507 = vunpack.c.h.b16 %v3173
          %v3508 = vunpack.c.l.b16 %v3174
          %v3509 = vunpack.c.h.b16 %v3174
          %v3510 = vunpack.c.l.b16 %v3175
          %v3511 = vunpack.c.h.b16 %v3175
          %v3512 = vunpack.c.l.b16 %v3176
          %v3513 = vunpack.c.h.b16 %v3176
          %v3514 = vunpack.c.l.b16 %v3177
          %v3515 = vunpack.c.h.b16 %v3177
          %v3516 = vunpack.c.l.b16 %v3178
          %v3517 = vunpack.c.h.b16 %v3178
          %v3518 = vunpack.c.l.b16 %v3179
          %v3519 = vunpack.c.h.b16 %v3179
          %v3520 = vunpack.c.l.b16 %v3180
          %v3521 = vunpack.c.h.b16 %v3180
          %v3522 = vunpack.c.l.b16 %v3181
          %v3523 = vunpack.c.h.b16 %v3181
          %v3524 = vunpack.c.l.b16 %v3182
          %v3525 = vunpack.c.h.b16 %v3182
          %v3526 = vunpack.c.l.b16 %v3183
          %v3527 = vunpack.c.h.b16 %v3183
          %v3528 = vunpack.c.l.b16 %v3184
          %v3529 = vunpack.c.h.b16 %v3184
          %v3530 = vunpack.c.l.b16 %v3185
          %v3531 = vunpack.c.h.b16 %v3185
          %v3532 = vunpack.c.l.b16 %v3186
          %v3533 = vunpack.c.h.b16 %v3186
          %v3534 = vunpack.c.l.b16 %v3187
          %v3535 = vunpack.c.h.b16 %v3187
          %v3536 = vunpack.c.l.b16 %v3188
          %v3537 = vunpack.c.h.b16 %v3188
          %v3538 = vunpack.c.l.b16 %v3189
          %v3539 = vunpack.c.h.b16 %v3189
          %v3540 = vunpack.c.l.b16 %v3190
          %v3541 = vunpack.c.h.b16 %v3190
          %v3542 = vunpack.c.l.b16 %v3191
          %v3543 = vunpack.c.h.b16 %v3191
          %v3544 = vunpack.c.l.b16 %v3192
          %v3545 = vunpack.c.h.b16 %v3192
          %v3546 = vunpack.c.l.b16 %v3193
          %v3547 = vunpack.c.h.b16 %v3193
          %v3548 = vunpack.c.l.b16 %v3194
          %v3549 = vunpack.c.h.b16 %v3194
          %v3550 = vunpack.c.l.b16 %v3195
          %v3551 = vunpack.c.h.b16 %v3195
          %v3552 = vunpack.c.l.b16 %v3196
          %v3553 = vunpack.c.h.b16 %v3196
          %v3554 = vunpack.c.l.b16 %v3197
          %v3555 = vunpack.c.h.b16 %v3197
          %v3556 = vunpack.c.l.b16 %v3198
          %v3557 = vunpack.c.h.b16 %v3198
          %v3558 = vunpack.c.l.b16 %v3199
          %v3559 = vunpack.c.h.b16 %v3199
          %v3560 = vunpack.c.l.b16 %v3200
          %v3561 = vunpack.c.h.b16 %v3200
          %v3562 = vunpack.c.l.b16 %v3201
          %v3563 = vunpack.c.h.b16 %v3201
          %v3564 = vunpack.c.l.b16 %v3202
          %v3565 = vunpack.c.h.b16 %v3202
          %v3566 = vunpack.c.l.b16 %v3203
          %v3567 = vunpack.c.h.b16 %v3203
          %v3568 = vunpack.c.l.b16 %v3204
          %v3569 = vunpack.c.h.b16 %v3204
          %v3570 = vunpack.c.l.b16 %v3205
          %v3571 = vunpack.c.h.b16 %v3205
          %v3572 = vunpack.c.l.b16 %v3206
          %v3573 = vunpack.c.h.b16 %v3206
          %v3574 = vunpack.c.l.b16 %v3207
          %v3575 = vunpack.c.h.b16 %v3207
          %v3576 = vunpack.c.l.b16 %v3208
          %v3577 = vunpack.c.h.b16 %v3208
          %v3578 = vunpack.c.l.b16 %v3209
          %v3579 = vunpack.c.h.b16 %v3209
          %v3580 = vunpack.c.l.b16 %v3210
          %v3581 = vunpack.c.h.b16 %v3210
          %v3582 = vunpack.c.l.b16 %v3211
          %v3583 = vunpack.c.h.b16 %v3211
          %v3584 = vunpack.c.l.b16 %v3212
          %v3585 = vunpack.c.h.b16 %v3212
          %v3586 = vunpack.c.l.b16 %v3213
          %v3587 = vunpack.c.h.b16 %v3213
          %v3588 = vunpack.c.l.b16 %v3214
          %v3589 = vunpack.c.h.b16 %v3214
          %v3590 = vunpack.c.l.b16 %v3215
          %v3591 = vunpack.c.h.b16 %v3215
          %v3592 = vunpack.c.l.b16 %v3216
          %v3593 = vunpack.c.h.b16 %v3216
          %v3594 = vunpack.c.l.b16 %v3217
          %v3595 = vunpack.c.h.b16 %v3217
          %v3596 = vunpack.c.l.b16 %v3218
          %v3597 = vunpack.c.h.b16 %v3218
          %v3598 = vunpack.c.l.b16 %v3219
          %v3599 = vunpack.c.h.b16 %v3219
          %v3600 = vunpack.c.l.b16 %v3220
          %v3601 = vunpack.c.h.b16 %v3220
          %v3602 = vunpack.c.l.b16 %v3221
          %v3603 = vunpack.c.h.b16 %v3221
          %v3604 = vunpack.c.l.b16 %v3222
          %v3605 = vunpack.c.h.b16 %v3222
          %v3606 = vunpack.c.l.b16 %v3223
          %v3607 = vunpack.c.h.b16 %v3223
          %v3608 = vpack.c.b16 %v3356, %v3352
          %v3609 = vpack.c.b16 %v3357, %v3353
          %v3610 = vpack.c.b16 %v3358, %v3354
          %v3611 = vpack.c.b16 %v3359, %v3355
          %v3612 = vpack.c.b16 %v3364, %v3360
          %v3613 = vpack.c.b16 %v3365, %v3361
          %v3614 = vpack.c.b16 %v3366, %v3362
          %v3615 = vpack.c.b16 %v3367, %v3363
          %v3616 = vpack.c.b16 %v3372, %v3368
          %v3617 = vpack.c.b16 %v3373, %v3369
          %v3618 = vpack.c.b16 %v3374, %v3370
          %v3619 = vpack.c.b16 %v3375, %v3371
          %v3620 = vpack.c.b16 %v3380, %v3376
          %v3621 = vpack.c.b16 %v3381, %v3377
          %v3622 = vpack.c.b16 %v3382, %v3378
          %v3623 = vpack.c.b16 %v3383, %v3379
          %v3624 = vpack.c.b16 %v3388, %v3384
          %v3625 = vpack.c.b16 %v3389, %v3385
          %v3626 = vpack.c.b16 %v3390, %v3386
          %v3627 = vpack.c.b16 %v3391, %v3387
          %v3628 = vpack.c.b16 %v3396, %v3392
          %v3629 = vpack.c.b16 %v3397, %v3393
          %v3630 = vpack.c.b16 %v3398, %v3394
          %v3631 = vpack.c.b16 %v3399, %v3395
          %v3632 = vpack.c.b16 %v3404, %v3400
          %v3633 = vpack.c.b16 %v3405, %v3401
          %v3634 = vpack.c.b16 %v3406, %v3402
          %v3635 = vpack.c.b16 %v3407, %v3403
          %v3636 = vpack.c.b16 %v3412, %v3408
          %v3637 = vpack.c.b16 %v3413, %v3409
          %v3638 = vpack.c.b16 %v3414, %v3410
          %v3639 = vpack.c.b16 %v3415, %v3411
          %v3640 = vpack.c.b16 %v3420, %v3416
          %v3641 = vpack.c.b16 %v3421, %v3417
          %v3642 = vpack.c.b16 %v3422, %v3418
          %v3643 = vpack.c.b16 %v3423, %v3419
          %v3644 = vpack.c.b16 %v3428, %v3424
          %v3645 = vpack.c.b16 %v3429, %v3425
          %v3646 = vpack.c.b16 %v3430, %v3426
          %v3647 = vpack.c.b16 %v3431, %v3427
          %v3648 = vpack.c.b16 %v3436, %v3432
          %v3649 = vpack.c.b16 %v3437, %v3433
          %v3650 = vpack.c.b16 %v3438, %v3434
          %v3651 = vpack.c.b16 %v3439, %v3435
          %v3652 = vpack.c.b16 %v3444, %v3440
          %v3653 = vpack.c.b16 %v3445, %v3441
          %v3654 = vpack.c.b16 %v3446, %v3442
          %v3655 = vpack.c.b16 %v3447, %v3443
          %v3656 = vpack.c.b16 %v3452, %v3448
          %v3657 = vpack.c.b16 %v3453, %v3449
          %v3658 = vpack.c.b16 %v3454, %v3450
          %v3659 = vpack.c.b16 %v3455, %v3451
          %v3660 = vpack.c.b16 %v3460, %v3456
          %v3661 = vpack.c.b16 %v3461, %v3457
          %v3662 = vpack.c.b16 %v3462, %v3458
          %v3663 = vpack.c.b16 %v3463, %v3459
          %v3664 = vpack.c.b16 %v3468, %v3464
          %v3665 = vpack.c.b16 %v3469, %v3465
          %v3666 = vpack.c.b16 %v3470, %v3466
          %v3667 = vpack.c.b16 %v3471, %v3467
          %v3668 = vpack.c.b16 %v3476, %v3472
          %v3669 = vpack.c.b16 %v3477, %v3473
          %v3670 = vpack.c.b16 %v3478, %v3474
          %v3671 = vpack.c.b16 %v3479, %v3475
          %v3672 = vpack.c.b16 %v3484, %v3480
          %v3673 = vpack.c.b16 %v3485, %v3481
          %v3674 = vpack.c.b16 %v3486, %v3482
          %v3675 = vpack.c.b16 %v3487, %v3483
          %v3676 = vpack.c.b16 %v3492, %v3488
          %v3677 = vpack.c.b16 %v3493, %v3489
          %v3678 = vpack.c.b16 %v3494, %v3490
          %v3679 = vpack.c.b16 %v3495, %v3491
          %v3680 = vpack.c.b16 %v3500, %v3496
          %v3681 = vpack.c.b16 %v3501, %v3497
          %v3682 = vpack.c.b16 %v3502, %v3498
          %v3683 = vpack.c.b16 %v3503, %v3499
          %v3684 = vpack.c.b16 %v3508, %v3504
          %v3685 = vpack.c.b16 %v3509, %v3505
          %v3686 = vpack.c.b16 %v3510, %v3506
          %v3687 = vpack.c.b16 %v3511, %v3507
          %v3688 = vpack.c.b16 %v3516, %v3512
          %v3689 = vpack.c.b16 %v3517, %v3513
          %v3690 = vpack.c.b16 %v3518, %v3514
          %v3691 = vpack.c.b16 %v3519, %v3515
          %v3692 = vpack.c.b16 %v3524, %v3520
          %v3693 = vpack.c.b16 %v3525, %v3521
          %v3694 = vpack.c.b16 %v3526, %v3522
          %v3695 = vpack.c.b16 %v3527, %v3523
          %v3696 = vpack.c.b16 %v3532, %v3528
          %v3697 = vpack.c.b16 %v3533, %v3529
          %v3698 = vpack.c.b16 %v3534, %v3530
          %v3699 = vpack.c.b16 %v3535, %v3531
          %v3700 = vpack.c.b16 %v3540, %v3536
          %v3701 = vpack.c.b16 %v3541, %v3537
          %v3702 = vpack.c.b16 %v3542, %v3538
          %v3703 = vpack.c.b16 %v3543, %v3539
          %v3704 = vpack.c.b16 %v3548, %v3544
          %v3705 = vpack.c.b16 %v3549, %v3545
          %v3706 = vpack.c.b16 %v3550, %v3546
          %v3707 = vpack.c.b16 %v3551, %v3547
          %v3708 = vpack.c.b16 %v3556, %v3552
          %v3709 = vpack.c.b16 %v3557, %v3553
          %v3710 = vpack.c.b16 %v3558, %v3554
          %v3711 = vpack.c.b16 %v3559, %v3555
          %v3712 = vpack.c.b16 %v3564, %v3560
          %v3713 = vpack.c.b16 %v3565, %v3561
          %v3714 = vpack.c.b16 %v3566, %v3562
          %v3715 = vpack.c.b16 %v3567, %v3563
          %v3716 = vpack.c.b16 %v3572, %v3568
          %v3717 = vpack.c.b16 %v3573, %v3569
          %v3718 = vpack.c.b16 %v3574, %v3570
          %v3719 = vpack.c.b16 %v3575, %v3571
          %v3720 = vpack.c.b16 %v3580, %v3576
          %v3721 = vpack.c.b16 %v3581, %v3577
          %v3722 = vpack.c.b16 %v3582, %v3578
          %v3723 = vpack.c.b16 %v3583, %v3579
          %v3724 = vpack.c.b16 %v3588, %v3584
          %v3725 = vpack.c.b16 %v3589, %v3585
          %v3726 = vpack.c.b16 %v3590, %v3586
          %v3727 = vpack.c.b16 %v3591, %v3587
          %v3728 = vpack.c.b16 %v3596, %v3592
          %v3729 = vpack.c.b16 %v3597, %v3593
          %v3730 = vpack.c.b16 %v3598, %v3594
          %v3731 = vpack.c.b16 %v3599, %v3595
          %v3732 = vpack.c.b16 %v3604, %v3600
          %v3733 = vpack.c.b16 %v3605, %v3601
          %v3734 = vpack.c.b16 %v3606, %v3602
          %v3735 = vpack.c.b16 %v3607, %v3603
          %3864 = vmatprep.subr.bf16.mxu0 %v3609
          %3865 = vmatpush1.bf16.msra.mxu0 %v3608
          %3866 = vmatprep.subr.bf16.mxu0 %v3613
          %3867 = vmatpush1.bf16.msra.mxu0 %v3612
          %3868 = vmatprep.subr.bf16.mxu0 %v3617
          %3869 = vmatpush1.bf16.msra.mxu0 %v3616
          %3870 = vmatprep.subr.bf16.mxu0 %v3621
          %3871 = vmatpush1.bf16.msra.mxu0 %v3620
          %3872 = vmatprep.subr.bf16.mxu0 %v3625
          %3873 = vmatpush1.bf16.msra.mxu0 %v3624
          %3874 = vmatprep.subr.bf16.mxu0 %v3629
          %3875 = vmatpush1.bf16.msra.mxu0 %v3628
          %3876 = vmatprep.subr.bf16.mxu0 %v3633
          %3877 = vmatpush1.bf16.msra.mxu0 %v3632
          %3878 = vmatprep.subr.bf16.mxu0 %v3637
          %3879 = vmatpush1.bf16.msra.mxu0 %v3636
          %3880 = vmatprep.subr.bf16.mxu0 %v3641
          %3881 = vmatpush1.bf16.msra.mxu0 %v3640
          %3882 = vmatprep.subr.bf16.mxu0 %v3645
          %3883 = vmatpush1.bf16.msra.mxu0 %v3644
          %3884 = vmatprep.subr.bf16.mxu0 %v3649
          %3885 = vmatpush1.bf16.msra.mxu0 %v3648
          %3886 = vmatprep.subr.bf16.mxu0 %v3653
          %3887 = vmatpush1.bf16.msra.mxu0 %v3652
          %3888 = vmatprep.subr.bf16.mxu0 %v3657
          %3889 = vmatpush1.bf16.msra.mxu0 %v3656
          %3890 = vmatprep.subr.bf16.mxu0 %v3661
          %3891 = vmatpush1.bf16.msra.mxu0 %v3660
          %3892 = vmatprep.subr.bf16.mxu0 %v3665
          %3893 = vmatpush1.bf16.msra.mxu0 %v3664
          %3894 = vmatprep.subr.bf16.mxu0 %v3669
          %3895 = vmatpush1.bf16.msra.mxu0 %v3668
          %3896 = vmatprep.mubr.bf16.mxu0 %v3092
          %3897 = vmatmul.mubr.bf16.gmra.mrb[0].mxu0 %v3091
          %v3898 = vpop.f32.mrb[0].mxu0
          %v3899 = vadd.f32 0.0, %v3898
          %v3900 = vpop.f32.mrb[0].mxu0
          %v3901 = vadd.f32 0.0, %v3900
          %v3902 = vpop.f32.mrb[0].mxu0
          %v3903 = vpop.f32.mrb[0].mxu0
          %3904 = vdwg.mxu0
          %3905 = vmatprep.subr.bf16.mxu0 %v3673
          %3906 = vmatpush1.bf16.msra.mxu0 %v3672
          %3907 = vmatprep.subr.bf16.mxu0 %v3677
          %3908 = vmatpush1.bf16.msra.mxu0 %v3676
          %3909 = vmatprep.subr.bf16.mxu0 %v3681
          %3910 = vmatpush1.bf16.msra.mxu0 %v3680
          %3911 = vmatprep.subr.bf16.mxu0 %v3685
          %3912 = vmatpush1.bf16.msra.mxu0 %v3684
          %3913 = vmatprep.subr.bf16.mxu0 %v3689
          %3914 = vmatpush1.bf16.msra.mxu0 %v3688
          %3915 = vmatprep.subr.bf16.mxu0 %v3693
          %3916 = vmatpush1.bf16.msra.mxu0 %v3692
          %3917 = vmatprep.subr.bf16.mxu0 %v3697
          %3918 = vmatpush1.bf16.msra.mxu0 %v3696
          %3919 = vmatprep.subr.bf16.mxu0 %v3701
          %3920 = vmatpush1.bf16.msra.mxu0 %v3700
          %3921 = vmatprep.subr.bf16.mxu0 %v3705
          %3922 = vmatpush1.bf16.msra.mxu0 %v3704
          %3923 = vmatprep.subr.bf16.mxu0 %v3709
          %3924 = vmatpush1.bf16.msra.mxu0 %v3708
          %3925 = vmatprep.subr.bf16.mxu0 %v3713
          %3926 = vmatpush1.bf16.msra.mxu0 %v3712
          %3927 = vmatprep.subr.bf16.mxu0 %v3717
          %3928 = vmatpush1.bf16.msra.mxu0 %v3716
          %3929 = vmatprep.subr.bf16.mxu0 %v3721
          %3930 = vmatpush1.bf16.msra.mxu0 %v3720
          %3931 = vmatprep.subr.bf16.mxu0 %v3725
          %3932 = vmatpush1.bf16.msra.mxu0 %v3724
          %3933 = vmatprep.subr.bf16.mxu0 %v3729
          %3934 = vmatpush1.bf16.msra.mxu0 %v3728
          %3935 = vmatprep.subr.bf16.mxu0 %v3733
          %3936 = vmatpush1.bf16.msra.mxu0 %v3732
          %3937 = vmatprep.mubr.bf16.mxu0 %v3094
          %3938 = vmatmul.mubr.bf16.gmra.mrb[0].mxu0 %v3093
          %v3939 = vpop.f32.mrb[0].mxu0
          %v3940 = vadd.f32 %v3899, %v3939
          %v3941 = vpop.f32.mrb[0].mxu0
          %v3942 = vadd.f32 %v3901, %v3941
          %v3943 = vpop.f32.mrb[0].mxu0
          %v3944 = vpop.f32.mrb[0].mxu0
          %3945 = vdwg.mxu0
          %3946 = vmatprep.subr.bf16.mxu0 %v3611
          %3947 = vmatpush1.bf16.msra.mxu0 %v3610
          %3948 = vmatprep.subr.bf16.mxu0 %v3615
          %3949 = vmatpush1.bf16.msra.mxu0 %v3614
          %3950 = vmatprep.subr.bf16.mxu0 %v3619
          %3951 = vmatpush1.bf16.msra.mxu0 %v3618
          %3952 = vmatprep.subr.bf16.mxu0 %v3623
          %3953 = vmatpush1.bf16.msra.mxu0 %v3622
          %3954 = vmatprep.subr.bf16.mxu0 %v3627
          %3955 = vmatpush1.bf16.msra.mxu0 %v3626
          %3956 = vmatprep.subr.bf16.mxu0 %v3631
          %3957 = vmatpush1.bf16.msra.mxu0 %v3630
          %3958 = vmatprep.subr.bf16.mxu0 %v3635
          %3959 = vmatpush1.bf16.msra.mxu0 %v3634
          %3960 = vmatprep.subr.bf16.mxu0 %v3639
          %3961 = vmatpush1.bf16.msra.mxu0 %v3638
          %3962 = vmatprep.subr.bf16.mxu0 %v3643
          %3963 = vmatpush1.bf16.msra.mxu0 %v3642
          %3964 = vmatprep.subr.bf16.mxu0 %v3647
          %3965 = vmatpush1.bf16.msra.mxu0 %v3646
          %3966 = vmatprep.subr.bf16.mxu0 %v3651
          %3967 = vmatpush1.bf16.msra.mxu0 %v3650
          %3968 = vmatprep.subr.bf16.mxu0 %v3655
          %3969 = vmatpush1.bf16.msra.mxu0 %v3654
          %3970 = vmatprep.subr.bf16.mxu0 %v3659
          %3971 = vmatpush1.bf16.msra.mxu0 %v3658
          %3972 = vmatprep.subr.bf16.mxu0 %v3663
          %3973 = vmatpush1.bf16.msra.mxu0 %v3662
          %3974 = vmatprep.subr.bf16.mxu0 %v3667
          %3975 = vmatpush1.bf16.msra.mxu0 %v3666
          %3976 = vmatprep.subr.bf16.mxu0 %v3671
          %3977 = vmatpush1.bf16.msra.mxu0 %v3670
          %3978 = vmatprep.mubr.bf16.mxu0 %v3092
          %3979 = vmatmul.mubr.bf16.gmra.mrb[0].mxu0 %v3091
          %v3980 = vpop.f32.mrb[0].mxu0
          %v3981 = vadd.f32 0.0, %v3980
          %v3982 = vpop.f32.mrb[0].mxu0
          %v3983 = vadd.f32 0.0, %v3982
          %v3984 = vpop.f32.mrb[0].mxu0
          %v3985 = vpop.f32.mrb[0].mxu0
          %3986 = vdwg.mxu0
          %3987 = vmatprep.subr.bf16.mxu0 %v3675
          %3988 = vmatpush1.bf16.msra.mxu0 %v3674
          %3989 = vmatprep.subr.bf16.mxu0 %v3679
          %3990 = vmatpush1.bf16.msra.mxu0 %v3678
          %3991 = vmatprep.subr.bf16.mxu0 %v3683
          %3992 = vmatpush1.bf16.msra.mxu0 %v3682
          %3993 = vmatprep.subr.bf16.mxu0 %v3687
          %3994 = vmatpush1.bf16.msra.mxu0 %v3686
          %3995 = vmatprep.subr.bf16.mxu0 %v3691
          %3996 = vmatpush1.bf16.msra.mxu0 %v3690
          %3997 = vmatprep.subr.bf16.mxu0 %v3695
          %3998 = vmatpush1.bf16.msra.mxu0 %v3694
          %3999 = vmatprep.subr.bf16.mxu0 %v3699
          %4000 = vmatpush1.bf16.msra.mxu0 %v3698
          %4001 = vmatprep.subr.bf16.mxu0 %v3703
          %4002 = vmatpush1.bf16.msra.mxu0 %v3702
          %4003 = vmatprep.subr.bf16.mxu0 %v3707
          %4004 = vmatpush1.bf16.msra.mxu0 %v3706
          %4005 = vmatprep.subr.bf16.mxu0 %v3711
          %4006 = vmatpush1.bf16.msra.mxu0 %v3710
          %4007 = vmatprep.subr.bf16.mxu0 %v3715
          %4008 = vmatpush1.bf16.msra.mxu0 %v3714
          %4009 = vmatprep.subr.bf16.mxu0 %v3719
          %4010 = vmatpush1.bf16.msra.mxu0 %v3718
          %4011 = vmatprep.subr.bf16.mxu0 %v3723
          %4012 = vmatpush1.bf16.msra.mxu0 %v3722
          %4013 = vmatprep.subr.bf16.mxu0 %v3727
          %4014 = vmatpush1.bf16.msra.mxu0 %v3726
          %4015 = vmatprep.subr.bf16.mxu0 %v3731
          %4016 = vmatpush1.bf16.msra.mxu0 %v3730
          %4017 = vmatprep.subr.bf16.mxu0 %v3735
          %4018 = vmatpush1.bf16.msra.mxu0 %v3734
          %4019 = vmatprep.mubr.bf16.mxu0 %v3094
          %4020 = vmatmul.mubr.bf16.gmra.mrb[0].mxu0 %v3093
          %v4021 = vpop.f32.mrb[0].mxu0
          %v4022 = vadd.f32 %v3981, %v4021
          %v4023 = vpop.f32.mrb[0].mxu0
          %v4024 = vadd.f32 %v3983, %v4023
          %v4025 = vpop.f32.mrb[0].mxu0
          %v4026 = vpop.f32.mrb[0].mxu0
          %4027 = vdwg.mxu0
          %v4028 = vadd.f32 %v3083, %v3940
          %v4029 = vadd.f32 %v3084, %v3942
          %v4030 = vadd.f32 %v3085, %v4022
          %v4031 = vadd.f32 %v3086, %v4024
          %v4032 = vmax.f32 %v4028, 0.0
          %v4033 = vmax.f32 %v4029, 0.0
          %v4034 = vmax.f32 %v4030, 0.0
          %v4035 = vmax.f32 %v4031, 0.0
          %4036 = vst [vmem:[#allocation2] sm:$0xff] %v4032
          %4037 = vst [vmem:[#allocation2 + $0x8] sm:$0xff] %v4033
          %4038 = vst [vmem:[#allocation2 + $0x10] sm:$0xff] %v4034
          %4039 = vst [vmem:[#allocation2 + $0x18] sm:$0xff] %v4035
          %v4040 = vpack.c.bf16 %v4032, %v4032
          %v4041 = vpack.c.bf16 %v4033, %v4033
          %v4042 = vpack.c.bf16 %v4034, %v4034
          %v4043 = vpack.c.bf16 %v4035, %v4035
          %v4048 = vunpack.c.l.b16 %v4040
          %v4049 = vunpack.c.l.b16 %v4041
          %v4050 = vunpack.c.l.b16 %v4042
          %v4051 = vunpack.c.l.b16 %v4043
          %v4052 = vpack.c.b16 %v4049, %v4048
          %v4053 = vpack.c.b16 %v4051, %v4050
          %4056 = vst [vmem:[#allocation3] sm:$0xff] %v4052
          %4057 = vst [vmem:[#allocation3 + $0x8] sm:$0xff] %v4053
        $region48: #{backbone_forward.1} parent=31 // pred_fallthru
          _
        %p4058 = scmp.ne.s32.totalorder %s19, 0
        // Predicated region
        $region49: #{backbone_forward.1} parent=31 // pred_check
          %p4059 = pneg %p4058
        $region50: #{backbone_forward.1} parent=31 // pred_check_branch
          %4061 = sbr.rel (%p4059) target = $region52
        $region51: #{backbone_forward.1} parent=31 // pred_region
          %v4062 = vld [vmem:[#allocation3] sm:$0xff]
          %v4063 = vld [vmem:[#allocation3 + $0x8] sm:$0xff]
          %v4064 = vld [vmem:[%s183] sm:$0xff]
          %v4065 = vld [vmem:[%s183 + $0x8] sm:$0xff]
          %v4066 = vld [vmem:[%s183 + $0x10] sm:$0xff]
          %v4067 = vld [vmem:[%s183 + $0x18] sm:$0xff]
          %v4068 = vld [vmem:[%s183 + $0x20] sm:$0xff]
          %v4069 = vld [vmem:[%s183 + $0x28] sm:$0xff]
          %v4070 = vld [vmem:[%s183 + $0x30] sm:$0xff]
          %v4071 = vld [vmem:[%s183 + $0x38] sm:$0xff]
          %v4072 = vld [vmem:[%s183 + $0x40] sm:$0xff]
          %v4073 = vld [vmem:[%s183 + $0x48] sm:$0xff]
          %v4074 = vld [vmem:[%s183 + $0x50] sm:$0xff]
          %v4075 = vld [vmem:[%s183 + $0x58] sm:$0xff]
          %v4076 = vld [vmem:[%s183 + $0x60] sm:$0xff]
          %v4077 = vld [vmem:[%s183 + $0x68] sm:$0xff]
          %v4078 = vld [vmem:[%s183 + $0x70] sm:$0xff]
          %v4079 = vld [vmem:[%s183 + $0x78] sm:$0xff]
          %v4080 = vld [vmem:[%s183 + $0x80] sm:$0xff]
          %v4081 = vld [vmem:[%s183 + $0x88] sm:$0xff]
          %v4082 = vld [vmem:[%s183 + $0x90] sm:$0xff]
          %v4083 = vld [vmem:[%s183 + $0x98] sm:$0xff]
          %v4084 = vld [vmem:[%s183 + $0xa0] sm:$0xff]
          %v4085 = vld [vmem:[%s183 + $0xa8] sm:$0xff]
          %v4086 = vld [vmem:[%s183 + $0xb0] sm:$0xff]
          %v4087 = vld [vmem:[%s183 + $0xb8] sm:$0xff]
          %v4088 = vld [vmem:[%s183 + $0xc0] sm:$0xff]
          %v4089 = vld [vmem:[%s183 + $0xc8] sm:$0xff]
          %v4090 = vld [vmem:[%s183 + $0xd0] sm:$0xff]
          %v4091 = vld [vmem:[%s183 + $0xd8] sm:$0xff]
          %v4092 = vld [vmem:[%s183 + $0xe0] sm:$0xff]
          %v4093 = vld [vmem:[%s183 + $0xe8] sm:$0xff]
          %v4094 = vld [vmem:[%s183 + $0xf0] sm:$0xff]
          %v4095 = vld [vmem:[%s183 + $0xf8] sm:$0xff]
          %v4096 = vld [vmem:[%s183 + $0x100] sm:$0xff]
          %v4097 = vld [vmem:[%s183 + $0x108] sm:$0xff]
          %v4098 = vld [vmem:[%s183 + $0x110] sm:$0xff]
          %v4099 = vld [vmem:[%s183 + $0x118] sm:$0xff]
          %v4100 = vld [vmem:[%s183 + $0x120] sm:$0xff]
          %v4101 = vld [vmem:[%s183 + $0x128] sm:$0xff]
          %v4102 = vld [vmem:[%s183 + $0x130] sm:$0xff]
          %v4103 = vld [vmem:[%s183 + $0x138] sm:$0xff]
          %v4104 = vld [vmem:[%s183 + $0x140] sm:$0xff]
          %v4105 = vld [vmem:[%s183 + $0x148] sm:$0xff]
          %v4106 = vld [vmem:[%s183 + $0x150] sm:$0xff]
          %v4107 = vld [vmem:[%s183 + $0x158] sm:$0xff]
          %v4108 = vld [vmem:[%s183 + $0x160] sm:$0xff]
          %v4109 = vld [vmem:[%s183 + $0x168] sm:$0xff]
          %v4110 = vld [vmem:[%s183 + $0x170] sm:$0xff]
          %v4111 = vld [vmem:[%s183 + $0x178] sm:$0xff]
          %v4112 = vld [vmem:[%s183 + $0x180] sm:$0xff]
          %v4113 = vld [vmem:[%s183 + $0x188] sm:$0xff]
          %v4114 = vld [vmem:[%s183 + $0x190] sm:$0xff]
          %v4115 = vld [vmem:[%s183 + $0x198] sm:$0xff]
          %v4116 = vld [vmem:[%s183 + $0x1a0] sm:$0xff]
          %v4117 = vld [vmem:[%s183 + $0x1a8] sm:$0xff]
          %v4118 = vld [vmem:[%s183 + $0x1b0] sm:$0xff]
          %v4119 = vld [vmem:[%s183 + $0x1b8] sm:$0xff]
          %v4120 = vld [vmem:[%s183 + $0x1c0] sm:$0xff]
          %v4121 = vld [vmem:[%s183 + $0x1c8] sm:$0xff]
          %v4122 = vld [vmem:[%s183 + $0x1d0] sm:$0xff]
          %v4123 = vld [vmem:[%s183 + $0x1d8] sm:$0xff]
          %v4124 = vld [vmem:[%s183 + $0x1e0] sm:$0xff]
          %v4125 = vld [vmem:[%s183 + $0x1e8] sm:$0xff]
          %v4126 = vld [vmem:[%s183 + $0x1f0] sm:$0xff]
          %v4127 = vld [vmem:[%s183 + $0x1f8] sm:$0xff]
          %v4128 = vld [vmem:[%s183 + $0x200] sm:$0xff]
          %v4129 = vld [vmem:[%s183 + $0x208] sm:$0xff]
          %v4130 = vld [vmem:[%s183 + $0x210] sm:$0xff]
          %v4131 = vld [vmem:[%s183 + $0x218] sm:$0xff]
          %v4132 = vld [vmem:[%s183 + $0x220] sm:$0xff]
          %v4133 = vld [vmem:[%s183 + $0x228] sm:$0xff]
          %v4134 = vld [vmem:[%s183 + $0x230] sm:$0xff]
          %v4135 = vld [vmem:[%s183 + $0x238] sm:$0xff]
          %v4136 = vld [vmem:[%s183 + $0x240] sm:$0xff]
          %v4137 = vld [vmem:[%s183 + $0x248] sm:$0xff]
          %v4138 = vld [vmem:[%s183 + $0x250] sm:$0xff]
          %v4139 = vld [vmem:[%s183 + $0x258] sm:$0xff]
          %v4140 = vld [vmem:[%s183 + $0x260] sm:$0xff]
          %v4141 = vld [vmem:[%s183 + $0x268] sm:$0xff]
          %v4142 = vld [vmem:[%s183 + $0x270] sm:$0xff]
          %v4143 = vld [vmem:[%s183 + $0x278] sm:$0xff]
          %v4144 = vld [vmem:[%s183 + $0x280] sm:$0xff]
          %v4145 = vld [vmem:[%s183 + $0x288] sm:$0xff]
          %v4146 = vld [vmem:[%s183 + $0x290] sm:$0xff]
          %v4147 = vld [vmem:[%s183 + $0x298] sm:$0xff]
          %v4148 = vld [vmem:[%s183 + $0x2a0] sm:$0xff]
          %v4149 = vld [vmem:[%s183 + $0x2a8] sm:$0xff]
          %v4150 = vld [vmem:[%s183 + $0x2b0] sm:$0xff]
          %v4151 = vld [vmem:[%s183 + $0x2b8] sm:$0xff]
          %v4152 = vld [vmem:[%s183 + $0x2c0] sm:$0xff]
          %v4153 = vld [vmem:[%s183 + $0x2c8] sm:$0xff]
          %v4154 = vld [vmem:[%s183 + $0x2d0] sm:$0xff]
          %v4155 = vld [vmem:[%s183 + $0x2d8] sm:$0xff]
          %v4156 = vld [vmem:[%s183 + $0x2e0] sm:$0xff]
          %v4157 = vld [vmem:[%s183 + $0x2e8] sm:$0xff]
          %v4158 = vld [vmem:[%s183 + $0x2f0] sm:$0xff]
          %v4159 = vld [vmem:[%s183 + $0x2f8] sm:$0xff]
          %v4160 = vld [vmem:[%s183 + $0x300] sm:$0xff]
          %v4161 = vld [vmem:[%s183 + $0x308] sm:$0xff]
          %v4162 = vld [vmem:[%s183 + $0x310] sm:$0xff]
          %v4163 = vld [vmem:[%s183 + $0x318] sm:$0xff]
          %v4164 = vld [vmem:[%s183 + $0x320] sm:$0xff]
          %v4165 = vld [vmem:[%s183 + $0x328] sm:$0xff]
          %v4166 = vld [vmem:[%s183 + $0x330] sm:$0xff]
          %v4167 = vld [vmem:[%s183 + $0x338] sm:$0xff]
          %v4168 = vld [vmem:[%s183 + $0x340] sm:$0xff]
          %v4169 = vld [vmem:[%s183 + $0x348] sm:$0xff]
          %v4170 = vld [vmem:[%s183 + $0x350] sm:$0xff]
          %v4171 = vld [vmem:[%s183 + $0x358] sm:$0xff]
          %v4172 = vld [vmem:[%s183 + $0x360] sm:$0xff]
          %v4173 = vld [vmem:[%s183 + $0x368] sm:$0xff]
          %v4174 = vld [vmem:[%s183 + $0x370] sm:$0xff]
          %v4175 = vld [vmem:[%s183 + $0x378] sm:$0xff]
          %v4176 = vld [vmem:[%s183 + $0x380] sm:$0xff]
          %v4177 = vld [vmem:[%s183 + $0x388] sm:$0xff]
          %v4178 = vld [vmem:[%s183 + $0x390] sm:$0xff]
          %v4179 = vld [vmem:[%s183 + $0x398] sm:$0xff]
          %v4180 = vld [vmem:[%s183 + $0x3a0] sm:$0xff]
          %v4181 = vld [vmem:[%s183 + $0x3a8] sm:$0xff]
          %v4182 = vld [vmem:[%s183 + $0x3b0] sm:$0xff]
          %v4183 = vld [vmem:[%s183 + $0x3b8] sm:$0xff]
          %v4184 = vld [vmem:[%s183 + $0x3c0] sm:$0xff]
          %v4185 = vld [vmem:[%s183 + $0x3c8] sm:$0xff]
          %v4186 = vld [vmem:[%s183 + $0x3d0] sm:$0xff]
          %v4187 = vld [vmem:[%s183 + $0x3d8] sm:$0xff]
          %v4188 = vld [vmem:[%s183 + $0x3e0] sm:$0xff]
          %v4189 = vld [vmem:[%s183 + $0x3e8] sm:$0xff]
          %v4190 = vld [vmem:[%s183 + $0x3f0] sm:$0xff]
          %v4191 = vld [vmem:[%s183 + $0x3f8] sm:$0xff]
          %v4194 = vlaneseq
          %v4195 = vshrl.u32 %v4194, 7
          %v4196 = vsub.s32 0, %v4195
          %v4197 = vrot.slane %v209, %v4196
          %v4198 = vlaneseq
          %v4199 = vshrl.u32 %v4198, 7
          %v4200 = vsub.s32 4, %v4199
          %v4201 = vrot.slane %v209, %v4200
          %v4202 = vlaneseq
          %v4203 = vshrl.u32 %v4202, 7
          %v4204 = vsub.s32 0, %v4203
          %v4205 = vrot.slane %v210, %v4204
          %v4206 = vlaneseq
          %v4207 = vshrl.u32 %v4206, 7
          %v4208 = vsub.s32 4, %v4207
          %v4209 = vrot.slane %v210, %v4208
          %v4214 = vlaneseq
          %v4215 = vshrl.u32 %v4214, 7
          %v4216 = vsub.s32 0, %v4215
          %v4217 = vrot.slane %v4197, %v4216
          %v4218 = vlaneseq
          %v4219 = vshrl.u32 %v4218, 7
          %v4220 = vsub.s32 0, %v4219
          %v4221 = vrot.slane %v4201, %v4220
          %v4222 = vlaneseq
          %v4223 = vshrl.u32 %v4222, 7
          %v4224 = vsub.s32 0, %v4223
          %v4225 = vrot.slane %v4205, %v4224
          %v4226 = vlaneseq
          %v4227 = vshrl.u32 %v4226, 7
          %v4228 = vsub.s32 0, %v4227
          %v4229 = vrot.slane %v4209, %v4228
          %v4232 = vunpack.c.l.b16 %v4062
          %v4233 = vunpack.c.h.b16 %v4062
          %v4234 = vunpack.c.l.b16 %v4063
          %v4235 = vunpack.c.h.b16 %v4063
          %v4236 = vpack.c.b16 %v4232, %v4232
          %v4237 = vpack.c.b16 %v4233, %v4233
          %v4238 = vpack.c.b16 %v4234, %v4234
          %v4239 = vpack.c.b16 %v4235, %v4235
          %v4372 = vunpack.c.l.b16 %v4064
          %v4373 = vunpack.c.h.b16 %v4064
          %v4374 = vunpack.c.l.b16 %v4065
          %v4375 = vunpack.c.h.b16 %v4065
          %v4376 = vunpack.c.l.b16 %v4066
          %v4377 = vunpack.c.h.b16 %v4066
          %v4378 = vunpack.c.l.b16 %v4067
          %v4379 = vunpack.c.h.b16 %v4067
          %v4380 = vunpack.c.l.b16 %v4068
          %v4381 = vunpack.c.h.b16 %v4068
          %v4382 = vunpack.c.l.b16 %v4069
          %v4383 = vunpack.c.h.b16 %v4069
          %v4384 = vunpack.c.l.b16 %v4070
          %v4385 = vunpack.c.h.b16 %v4070
          %v4386 = vunpack.c.l.b16 %v4071
          %v4387 = vunpack.c.h.b16 %v4071
          %v4388 = vunpack.c.l.b16 %v4072
          %v4389 = vunpack.c.h.b16 %v4072
          %v4390 = vunpack.c.l.b16 %v4073
          %v4391 = vunpack.c.h.b16 %v4073
          %v4392 = vunpack.c.l.b16 %v4074
          %v4393 = vunpack.c.h.b16 %v4074
          %v4394 = vunpack.c.l.b16 %v4075
          %v4395 = vunpack.c.h.b16 %v4075
          %v4396 = vunpack.c.l.b16 %v4076
          %v4397 = vunpack.c.h.b16 %v4076
          %v4398 = vunpack.c.l.b16 %v4077
          %v4399 = vunpack.c.h.b16 %v4077
          %v4400 = vunpack.c.l.b16 %v4078
          %v4401 = vunpack.c.h.b16 %v4078
          %v4402 = vunpack.c.l.b16 %v4079
          %v4403 = vunpack.c.h.b16 %v4079
          %v4404 = vunpack.c.l.b16 %v4080
          %v4405 = vunpack.c.h.b16 %v4080
          %v4406 = vunpack.c.l.b16 %v4081
          %v4407 = vunpack.c.h.b16 %v4081
          %v4408 = vunpack.c.l.b16 %v4082
          %v4409 = vunpack.c.h.b16 %v4082
          %v4410 = vunpack.c.l.b16 %v4083
          %v4411 = vunpack.c.h.b16 %v4083
          %v4412 = vunpack.c.l.b16 %v4084
          %v4413 = vunpack.c.h.b16 %v4084
          %v4414 = vunpack.c.l.b16 %v4085
          %v4415 = vunpack.c.h.b16 %v4085
          %v4416 = vunpack.c.l.b16 %v4086
          %v4417 = vunpack.c.h.b16 %v4086
          %v4418 = vunpack.c.l.b16 %v4087
          %v4419 = vunpack.c.h.b16 %v4087
          %v4420 = vunpack.c.l.b16 %v4088
          %v4421 = vunpack.c.h.b16 %v4088
          %v4422 = vunpack.c.l.b16 %v4089
          %v4423 = vunpack.c.h.b16 %v4089
          %v4424 = vunpack.c.l.b16 %v4090
          %v4425 = vunpack.c.h.b16 %v4090
          %v4426 = vunpack.c.l.b16 %v4091
          %v4427 = vunpack.c.h.b16 %v4091
          %v4428 = vunpack.c.l.b16 %v4092
          %v4429 = vunpack.c.h.b16 %v4092
          %v4430 = vunpack.c.l.b16 %v4093
          %v4431 = vunpack.c.h.b16 %v4093
          %v4432 = vunpack.c.l.b16 %v4094
          %v4433 = vunpack.c.h.b16 %v4094
          %v4434 = vunpack.c.l.b16 %v4095
          %v4435 = vunpack.c.h.b16 %v4095
          %v4436 = vunpack.c.l.b16 %v4096
          %v4437 = vunpack.c.h.b16 %v4096
          %v4438 = vunpack.c.l.b16 %v4097
          %v4439 = vunpack.c.h.b16 %v4097
          %v4440 = vunpack.c.l.b16 %v4098
          %v4441 = vunpack.c.h.b16 %v4098
          %v4442 = vunpack.c.l.b16 %v4099
          %v4443 = vunpack.c.h.b16 %v4099
          %v4444 = vunpack.c.l.b16 %v4100
          %v4445 = vunpack.c.h.b16 %v4100
          %v4446 = vunpack.c.l.b16 %v4101
          %v4447 = vunpack.c.h.b16 %v4101
          %v4448 = vunpack.c.l.b16 %v4102
          %v4449 = vunpack.c.h.b16 %v4102
          %v4450 = vunpack.c.l.b16 %v4103
          %v4451 = vunpack.c.h.b16 %v4103
          %v4452 = vunpack.c.l.b16 %v4104
          %v4453 = vunpack.c.h.b16 %v4104
          %v4454 = vunpack.c.l.b16 %v4105
          %v4455 = vunpack.c.h.b16 %v4105
          %v4456 = vunpack.c.l.b16 %v4106
          %v4457 = vunpack.c.h.b16 %v4106
          %v4458 = vunpack.c.l.b16 %v4107
          %v4459 = vunpack.c.h.b16 %v4107
          %v4460 = vunpack.c.l.b16 %v4108
          %v4461 = vunpack.c.h.b16 %v4108
          %v4462 = vunpack.c.l.b16 %v4109
          %v4463 = vunpack.c.h.b16 %v4109
          %v4464 = vunpack.c.l.b16 %v4110
          %v4465 = vunpack.c.h.b16 %v4110
          %v4466 = vunpack.c.l.b16 %v4111
          %v4467 = vunpack.c.h.b16 %v4111
          %v4468 = vunpack.c.l.b16 %v4112
          %v4469 = vunpack.c.h.b16 %v4112
          %v4470 = vunpack.c.l.b16 %v4113
          %v4471 = vunpack.c.h.b16 %v4113
          %v4472 = vunpack.c.l.b16 %v4114
          %v4473 = vunpack.c.h.b16 %v4114
          %v4474 = vunpack.c.l.b16 %v4115
          %v4475 = vunpack.c.h.b16 %v4115
          %v4476 = vunpack.c.l.b16 %v4116
          %v4477 = vunpack.c.h.b16 %v4116
          %v4478 = vunpack.c.l.b16 %v4117
          %v4479 = vunpack.c.h.b16 %v4117
          %v4480 = vunpack.c.l.b16 %v4118
          %v4481 = vunpack.c.h.b16 %v4118
          %v4482 = vunpack.c.l.b16 %v4119
          %v4483 = vunpack.c.h.b16 %v4119
          %v4484 = vunpack.c.l.b16 %v4120
          %v4485 = vunpack.c.h.b16 %v4120
          %v4486 = vunpack.c.l.b16 %v4121
          %v4487 = vunpack.c.h.b16 %v4121
          %v4488 = vunpack.c.l.b16 %v4122
          %v4489 = vunpack.c.h.b16 %v4122
          %v4490 = vunpack.c.l.b16 %v4123
          %v4491 = vunpack.c.h.b16 %v4123
          %v4492 = vunpack.c.l.b16 %v4124
          %v4493 = vunpack.c.h.b16 %v4124
          %v4494 = vunpack.c.l.b16 %v4125
          %v4495 = vunpack.c.h.b16 %v4125
          %v4496 = vunpack.c.l.b16 %v4126
          %v4497 = vunpack.c.h.b16 %v4126
          %v4498 = vunpack.c.l.b16 %v4127
          %v4499 = vunpack.c.h.b16 %v4127
          %v4500 = vunpack.c.l.b16 %v4128
          %v4501 = vunpack.c.h.b16 %v4128
          %v4502 = vunpack.c.l.b16 %v4129
          %v4503 = vunpack.c.h.b16 %v4129
          %v4504 = vunpack.c.l.b16 %v4130
          %v4505 = vunpack.c.h.b16 %v4130
          %v4506 = vunpack.c.l.b16 %v4131
          %v4507 = vunpack.c.h.b16 %v4131
          %v4508 = vunpack.c.l.b16 %v4132
          %v4509 = vunpack.c.h.b16 %v4132
          %v4510 = vunpack.c.l.b16 %v4133
          %v4511 = vunpack.c.h.b16 %v4133
          %v4512 = vunpack.c.l.b16 %v4134
          %v4513 = vunpack.c.h.b16 %v4134
          %v4514 = vunpack.c.l.b16 %v4135
          %v4515 = vunpack.c.h.b16 %v4135
          %v4516 = vunpack.c.l.b16 %v4136
          %v4517 = vunpack.c.h.b16 %v4136
          %v4518 = vunpack.c.l.b16 %v4137
          %v4519 = vunpack.c.h.b16 %v4137
          %v4520 = vunpack.c.l.b16 %v4138
          %v4521 = vunpack.c.h.b16 %v4138
          %v4522 = vunpack.c.l.b16 %v4139
          %v4523 = vunpack.c.h.b16 %v4139
          %v4524 = vunpack.c.l.b16 %v4140
          %v4525 = vunpack.c.h.b16 %v4140
          %v4526 = vunpack.c.l.b16 %v4141
          %v4527 = vunpack.c.h.b16 %v4141
          %v4528 = vunpack.c.l.b16 %v4142
          %v4529 = vunpack.c.h.b16 %v4142
          %v4530 = vunpack.c.l.b16 %v4143
          %v4531 = vunpack.c.h.b16 %v4143
          %v4532 = vunpack.c.l.b16 %v4144
          %v4533 = vunpack.c.h.b16 %v4144
          %v4534 = vunpack.c.l.b16 %v4145
          %v4535 = vunpack.c.h.b16 %v4145
          %v4536 = vunpack.c.l.b16 %v4146
          %v4537 = vunpack.c.h.b16 %v4146
          %v4538 = vunpack.c.l.b16 %v4147
          %v4539 = vunpack.c.h.b16 %v4147
          %v4540 = vunpack.c.l.b16 %v4148
          %v4541 = vunpack.c.h.b16 %v4148
          %v4542 = vunpack.c.l.b16 %v4149
          %v4543 = vunpack.c.h.b16 %v4149
          %v4544 = vunpack.c.l.b16 %v4150
          %v4545 = vunpack.c.h.b16 %v4150
          %v4546 = vunpack.c.l.b16 %v4151
          %v4547 = vunpack.c.h.b16 %v4151
          %v4548 = vunpack.c.l.b16 %v4152
          %v4549 = vunpack.c.h.b16 %v4152
          %v4550 = vunpack.c.l.b16 %v4153
          %v4551 = vunpack.c.h.b16 %v4153
          %v4552 = vunpack.c.l.b16 %v4154
          %v4553 = vunpack.c.h.b16 %v4154
          %v4554 = vunpack.c.l.b16 %v4155
          %v4555 = vunpack.c.h.b16 %v4155
          %v4556 = vunpack.c.l.b16 %v4156
          %v4557 = vunpack.c.h.b16 %v4156
          %v4558 = vunpack.c.l.b16 %v4157
          %v4559 = vunpack.c.h.b16 %v4157
          %v4560 = vunpack.c.l.b16 %v4158
          %v4561 = vunpack.c.h.b16 %v4158
          %v4562 = vunpack.c.l.b16 %v4159
          %v4563 = vunpack.c.h.b16 %v4159
          %v4564 = vunpack.c.l.b16 %v4160
          %v4565 = vunpack.c.h.b16 %v4160
          %v4566 = vunpack.c.l.b16 %v4161
          %v4567 = vunpack.c.h.b16 %v4161
          %v4568 = vunpack.c.l.b16 %v4162
          %v4569 = vunpack.c.h.b16 %v4162
          %v4570 = vunpack.c.l.b16 %v4163
          %v4571 = vunpack.c.h.b16 %v4163
          %v4572 = vunpack.c.l.b16 %v4164
          %v4573 = vunpack.c.h.b16 %v4164
          %v4574 = vunpack.c.l.b16 %v4165
          %v4575 = vunpack.c.h.b16 %v4165
          %v4576 = vunpack.c.l.b16 %v4166
          %v4577 = vunpack.c.h.b16 %v4166
          %v4578 = vunpack.c.l.b16 %v4167
          %v4579 = vunpack.c.h.b16 %v4167
          %v4580 = vunpack.c.l.b16 %v4168
          %v4581 = vunpack.c.h.b16 %v4168
          %v4582 = vunpack.c.l.b16 %v4169
          %v4583 = vunpack.c.h.b16 %v4169
          %v4584 = vunpack.c.l.b16 %v4170
          %v4585 = vunpack.c.h.b16 %v4170
          %v4586 = vunpack.c.l.b16 %v4171
          %v4587 = vunpack.c.h.b16 %v4171
          %v4588 = vunpack.c.l.b16 %v4172
          %v4589 = vunpack.c.h.b16 %v4172
          %v4590 = vunpack.c.l.b16 %v4173
          %v4591 = vunpack.c.h.b16 %v4173
          %v4592 = vunpack.c.l.b16 %v4174
          %v4593 = vunpack.c.h.b16 %v4174
          %v4594 = vunpack.c.l.b16 %v4175
          %v4595 = vunpack.c.h.b16 %v4175
          %v4596 = vunpack.c.l.b16 %v4176
          %v4597 = vunpack.c.h.b16 %v4176
          %v4598 = vunpack.c.l.b16 %v4177
          %v4599 = vunpack.c.h.b16 %v4177
          %v4600 = vunpack.c.l.b16 %v4178
          %v4601 = vunpack.c.h.b16 %v4178
          %v4602 = vunpack.c.l.b16 %v4179
          %v4603 = vunpack.c.h.b16 %v4179
          %v4604 = vunpack.c.l.b16 %v4180
          %v4605 = vunpack.c.h.b16 %v4180
          %v4606 = vunpack.c.l.b16 %v4181
          %v4607 = vunpack.c.h.b16 %v4181
          %v4608 = vunpack.c.l.b16 %v4182
          %v4609 = vunpack.c.h.b16 %v4182
          %v4610 = vunpack.c.l.b16 %v4183
          %v4611 = vunpack.c.h.b16 %v4183
          %v4612 = vunpack.c.l.b16 %v4184
          %v4613 = vunpack.c.h.b16 %v4184
          %v4614 = vunpack.c.l.b16 %v4185
          %v4615 = vunpack.c.h.b16 %v4185
          %v4616 = vunpack.c.l.b16 %v4186
          %v4617 = vunpack.c.h.b16 %v4186
          %v4618 = vunpack.c.l.b16 %v4187
          %v4619 = vunpack.c.h.b16 %v4187
          %v4620 = vunpack.c.l.b16 %v4188
          %v4621 = vunpack.c.h.b16 %v4188
          %v4622 = vunpack.c.l.b16 %v4189
          %v4623 = vunpack.c.h.b16 %v4189
          %v4624 = vunpack.c.l.b16 %v4190
          %v4625 = vunpack.c.h.b16 %v4190
          %v4626 = vunpack.c.l.b16 %v4191
          %v4627 = vunpack.c.h.b16 %v4191
          %v4628 = vpack.c.b16 %v4376, %v4372
          %v4629 = vpack.c.b16 %v4377, %v4373
          %v4630 = vpack.c.b16 %v4378, %v4374
          %v4631 = vpack.c.b16 %v4379, %v4375
          %v4632 = vpack.c.b16 %v4384, %v4380
          %v4633 = vpack.c.b16 %v4385, %v4381
          %v4634 = vpack.c.b16 %v4386, %v4382
          %v4635 = vpack.c.b16 %v4387, %v4383
          %v4636 = vpack.c.b16 %v4392, %v4388
          %v4637 = vpack.c.b16 %v4393, %v4389
          %v4638 = vpack.c.b16 %v4394, %v4390
          %v4639 = vpack.c.b16 %v4395, %v4391
          %v4640 = vpack.c.b16 %v4400, %v4396
          %v4641 = vpack.c.b16 %v4401, %v4397
          %v4642 = vpack.c.b16 %v4402, %v4398
          %v4643 = vpack.c.b16 %v4403, %v4399
          %v4644 = vpack.c.b16 %v4408, %v4404
          %v4645 = vpack.c.b16 %v4409, %v4405
          %v4646 = vpack.c.b16 %v4410, %v4406
          %v4647 = vpack.c.b16 %v4411, %v4407
          %v4648 = vpack.c.b16 %v4416, %v4412
          %v4649 = vpack.c.b16 %v4417, %v4413
          %v4650 = vpack.c.b16 %v4418, %v4414
          %v4651 = vpack.c.b16 %v4419, %v4415
          %v4652 = vpack.c.b16 %v4424, %v4420
          %v4653 = vpack.c.b16 %v4425, %v4421
          %v4654 = vpack.c.b16 %v4426, %v4422
          %v4655 = vpack.c.b16 %v4427, %v4423
          %v4656 = vpack.c.b16 %v4432, %v4428
          %v4657 = vpack.c.b16 %v4433, %v4429
          %v4658 = vpack.c.b16 %v4434, %v4430
          %v4659 = vpack.c.b16 %v4435, %v4431
          %v4660 = vpack.c.b16 %v4440, %v4436
          %v4661 = vpack.c.b16 %v4441, %v4437
          %v4662 = vpack.c.b16 %v4442, %v4438
          %v4663 = vpack.c.b16 %v4443, %v4439
          %v4664 = vpack.c.b16 %v4448, %v4444
          %v4665 = vpack.c.b16 %v4449, %v4445
          %v4666 = vpack.c.b16 %v4450, %v4446
          %v4667 = vpack.c.b16 %v4451, %v4447
          %v4668 = vpack.c.b16 %v4456, %v4452
          %v4669 = vpack.c.b16 %v4457, %v4453
          %v4670 = vpack.c.b16 %v4458, %v4454
          %v4671 = vpack.c.b16 %v4459, %v4455
          %v4672 = vpack.c.b16 %v4464, %v4460
          %v4673 = vpack.c.b16 %v4465, %v4461
          %v4674 = vpack.c.b16 %v4466, %v4462
          %v4675 = vpack.c.b16 %v4467, %v4463
          %v4676 = vpack.c.b16 %v4472, %v4468
          %v4677 = vpack.c.b16 %v4473, %v4469
          %v4678 = vpack.c.b16 %v4474, %v4470
          %v4679 = vpack.c.b16 %v4475, %v4471
          %v4680 = vpack.c.b16 %v4480, %v4476
          %v4681 = vpack.c.b16 %v4481, %v4477
          %v4682 = vpack.c.b16 %v4482, %v4478
          %v4683 = vpack.c.b16 %v4483, %v4479
          %v4684 = vpack.c.b16 %v4488, %v4484
          %v4685 = vpack.c.b16 %v4489, %v4485
          %v4686 = vpack.c.b16 %v4490, %v4486
          %v4687 = vpack.c.b16 %v4491, %v4487
          %v4688 = vpack.c.b16 %v4496, %v4492
          %v4689 = vpack.c.b16 %v4497, %v4493
          %v4690 = vpack.c.b16 %v4498, %v4494
          %v4691 = vpack.c.b16 %v4499, %v4495
          %v4692 = vpack.c.b16 %v4504, %v4500
          %v4693 = vpack.c.b16 %v4505, %v4501
          %v4694 = vpack.c.b16 %v4506, %v4502
          %v4695 = vpack.c.b16 %v4507, %v4503
          %v4696 = vpack.c.b16 %v4512, %v4508
          %v4697 = vpack.c.b16 %v4513, %v4509
          %v4698 = vpack.c.b16 %v4514, %v4510
          %v4699 = vpack.c.b16 %v4515, %v4511
          %v4700 = vpack.c.b16 %v4520, %v4516
          %v4701 = vpack.c.b16 %v4521, %v4517
          %v4702 = vpack.c.b16 %v4522, %v4518
          %v4703 = vpack.c.b16 %v4523, %v4519
          %v4704 = vpack.c.b16 %v4528, %v4524
          %v4705 = vpack.c.b16 %v4529, %v4525
          %v4706 = vpack.c.b16 %v4530, %v4526
          %v4707 = vpack.c.b16 %v4531, %v4527
          %v4708 = vpack.c.b16 %v4536, %v4532
          %v4709 = vpack.c.b16 %v4537, %v4533
          %v4710 = vpack.c.b16 %v4538, %v4534
          %v4711 = vpack.c.b16 %v4539, %v4535
          %v4712 = vpack.c.b16 %v4544, %v4540
          %v4713 = vpack.c.b16 %v4545, %v4541
          %v4714 = vpack.c.b16 %v4546, %v4542
          %v4715 = vpack.c.b16 %v4547, %v4543
          %v4716 = vpack.c.b16 %v4552, %v4548
          %v4717 = vpack.c.b16 %v4553, %v4549
          %v4718 = vpack.c.b16 %v4554, %v4550
          %v4719 = vpack.c.b16 %v4555, %v4551
          %v4720 = vpack.c.b16 %v4560, %v4556
          %v4721 = vpack.c.b16 %v4561, %v4557
          %v4722 = vpack.c.b16 %v4562, %v4558
          %v4723 = vpack.c.b16 %v4563, %v4559
          %v4724 = vpack.c.b16 %v4568, %v4564
          %v4725 = vpack.c.b16 %v4569, %v4565
          %v4726 = vpack.c.b16 %v4570, %v4566
          %v4727 = vpack.c.b16 %v4571, %v4567
          %v4728 = vpack.c.b16 %v4576, %v4572
          %v4729 = vpack.c.b16 %v4577, %v4573
          %v4730 = vpack.c.b16 %v4578, %v4574
          %v4731 = vpack.c.b16 %v4579, %v4575
          %v4732 = vpack.c.b16 %v4584, %v4580
          %v4733 = vpack.c.b16 %v4585, %v4581
          %v4734 = vpack.c.b16 %v4586, %v4582
          %v4735 = vpack.c.b16 %v4587, %v4583
          %v4736 = vpack.c.b16 %v4592, %v4588
          %v4737 = vpack.c.b16 %v4593, %v4589
          %v4738 = vpack.c.b16 %v4594, %v4590
          %v4739 = vpack.c.b16 %v4595, %v4591
          %v4740 = vpack.c.b16 %v4600, %v4596
          %v4741 = vpack.c.b16 %v4601, %v4597
          %v4742 = vpack.c.b16 %v4602, %v4598
          %v4743 = vpack.c.b16 %v4603, %v4599
          %v4744 = vpack.c.b16 %v4608, %v4604
          %v4745 = vpack.c.b16 %v4609, %v4605
          %v4746 = vpack.c.b16 %v4610, %v4606
          %v4747 = vpack.c.b16 %v4611, %v4607
          %v4748 = vpack.c.b16 %v4616, %v4612
          %v4749 = vpack.c.b16 %v4617, %v4613
          %v4750 = vpack.c.b16 %v4618, %v4614
          %v4751 = vpack.c.b16 %v4619, %v4615
          %v4752 = vpack.c.b16 %v4624, %v4620
          %v4753 = vpack.c.b16 %v4625, %v4621
          %v4754 = vpack.c.b16 %v4626, %v4622
          %v4755 = vpack.c.b16 %v4627, %v4623
          %4884 = vmatprep.subr.bf16.mxu0 %v4629
          %4885 = vmatpush1.bf16.msra.mxu0 %v4628
          %4886 = vmatprep.subr.bf16.mxu0 %v4633
          %4887 = vmatpush1.bf16.msra.mxu0 %v4632
          %4888 = vmatprep.subr.bf16.mxu0 %v4637
          %4889 = vmatpush1.bf16.msra.mxu0 %v4636
          %4890 = vmatprep.subr.bf16.mxu0 %v4641
          %4891 = vmatpush1.bf16.msra.mxu0 %v4640
          %4892 = vmatprep.subr.bf16.mxu0 %v4645
          %4893 = vmatpush1.bf16.msra.mxu0 %v4644
          %4894 = vmatprep.subr.bf16.mxu0 %v4649
          %4895 = vmatpush1.bf16.msra.mxu0 %v4648
          %4896 = vmatprep.subr.bf16.mxu0 %v4653
          %4897 = vmatpush1.bf16.msra.mxu0 %v4652
          %4898 = vmatprep.subr.bf16.mxu0 %v4657
          %4899 = vmatpush1.bf16.msra.mxu0 %v4656
          %4900 = vmatprep.subr.bf16.mxu0 %v4661
          %4901 = vmatpush1.bf16.msra.mxu0 %v4660
          %4902 = vmatprep.subr.bf16.mxu0 %v4665
          %4903 = vmatpush1.bf16.msra.mxu0 %v4664
          %4904 = vmatprep.subr.bf16.mxu0 %v4669
          %4905 = vmatpush1.bf16.msra.mxu0 %v4668
          %4906 = vmatprep.subr.bf16.mxu0 %v4673
          %4907 = vmatpush1.bf16.msra.mxu0 %v4672
          %4908 = vmatprep.subr.bf16.mxu0 %v4677
          %4909 = vmatpush1.bf16.msra.mxu0 %v4676
          %4910 = vmatprep.subr.bf16.mxu0 %v4681
          %4911 = vmatpush1.bf16.msra.mxu0 %v4680
          %4912 = vmatprep.subr.bf16.mxu0 %v4685
          %4913 = vmatpush1.bf16.msra.mxu0 %v4684
          %4914 = vmatprep.subr.bf16.mxu0 %v4689
          %4915 = vmatpush1.bf16.msra.mxu0 %v4688
          %4916 = vmatprep.mubr.bf16.mxu0 %v4237
          %4917 = vmatmul.mubr.bf16.gmra.mrb[0].mxu0 %v4236
          %v4918 = vpop.f32.mrb[0].mxu0
          %v4919 = vadd.f32 %v4217, %v4918
          %v4920 = vpop.f32.mrb[0].mxu0
          %v4921 = vadd.f32 %v4221, %v4920
          %v4922 = vpop.f32.mrb[0].mxu0
          %v4923 = vpop.f32.mrb[0].mxu0
          %4924 = vdwg.mxu0
          %4925 = vmatprep.subr.bf16.mxu0 %v4693
          %4926 = vmatpush1.bf16.msra.mxu0 %v4692
          %4927 = vmatprep.subr.bf16.mxu0 %v4697
          %4928 = vmatpush1.bf16.msra.mxu0 %v4696
          %4929 = vmatprep.subr.bf16.mxu0 %v4701
          %4930 = vmatpush1.bf16.msra.mxu0 %v4700
          %4931 = vmatprep.subr.bf16.mxu0 %v4705
          %4932 = vmatpush1.bf16.msra.mxu0 %v4704
          %4933 = vmatprep.subr.bf16.mxu0 %v4709
          %4934 = vmatpush1.bf16.msra.mxu0 %v4708
          %4935 = vmatprep.subr.bf16.mxu0 %v4713
          %4936 = vmatpush1.bf16.msra.mxu0 %v4712
          %4937 = vmatprep.subr.bf16.mxu0 %v4717
          %4938 = vmatpush1.bf16.msra.mxu0 %v4716
          %4939 = vmatprep.subr.bf16.mxu0 %v4721
          %4940 = vmatpush1.bf16.msra.mxu0 %v4720
          %4941 = vmatprep.subr.bf16.mxu0 %v4725
          %4942 = vmatpush1.bf16.msra.mxu0 %v4724
          %4943 = vmatprep.subr.bf16.mxu0 %v4729
          %4944 = vmatpush1.bf16.msra.mxu0 %v4728
          %4945 = vmatprep.subr.bf16.mxu0 %v4733
          %4946 = vmatpush1.bf16.msra.mxu0 %v4732
          %4947 = vmatprep.subr.bf16.mxu0 %v4737
          %4948 = vmatpush1.bf16.msra.mxu0 %v4736
          %4949 = vmatprep.subr.bf16.mxu0 %v4741
          %4950 = vmatpush1.bf16.msra.mxu0 %v4740
          %4951 = vmatprep.subr.bf16.mxu0 %v4745
          %4952 = vmatpush1.bf16.msra.mxu0 %v4744
          %4953 = vmatprep.subr.bf16.mxu0 %v4749
          %4954 = vmatpush1.bf16.msra.mxu0 %v4748
          %4955 = vmatprep.subr.bf16.mxu0 %v4753
          %4956 = vmatpush1.bf16.msra.mxu0 %v4752
          %4957 = vmatprep.mubr.bf16.mxu0 %v4239
          %4958 = vmatmul.mubr.bf16.gmra.mrb[0].mxu0 %v4238
          %v4959 = vpop.f32.mrb[0].mxu0
          %v4960 = vadd.f32 %v4919, %v4959
          %v4961 = vpop.f32.mrb[0].mxu0
          %v4962 = vadd.f32 %v4921, %v4961
          %v4963 = vpop.f32.mrb[0].mxu0
          %v4964 = vpop.f32.mrb[0].mxu0
          %4965 = vdwg.mxu0
          %4966 = vmatprep.subr.bf16.mxu0 %v4631
          %4967 = vmatpush1.bf16.msra.mxu0 %v4630
          %4968 = vmatprep.subr.bf16.mxu0 %v4635
          %4969 = vmatpush1.bf16.msra.mxu0 %v4634
          %4970 = vmatprep.subr.bf16.mxu0 %v4639
          %4971 = vmatpush1.bf16.msra.mxu0 %v4638
          %4972 = vmatprep.subr.bf16.mxu0 %v4643
          %4973 = vmatpush1.bf16.msra.mxu0 %v4642
          %4974 = vmatprep.subr.bf16.mxu0 %v4647
          %4975 = vmatpush1.bf16.msra.mxu0 %v4646
          %4976 = vmatprep.subr.bf16.mxu0 %v4651
          %4977 = vmatpush1.bf16.msra.mxu0 %v4650
          %4978 = vmatprep.subr.bf16.mxu0 %v4655
          %4979 = vmatpush1.bf16.msra.mxu0 %v4654
          %4980 = vmatprep.subr.bf16.mxu0 %v4659
          %4981 = vmatpush1.bf16.msra.mxu0 %v4658
          %4982 = vmatprep.subr.bf16.mxu0 %v4663
          %4983 = vmatpush1.bf16.msra.mxu0 %v4662
          %4984 = vmatprep.subr.bf16.mxu0 %v4667
          %4985 = vmatpush1.bf16.msra.mxu0 %v4666
          %4986 = vmatprep.subr.bf16.mxu0 %v4671
          %4987 = vmatpush1.bf16.msra.mxu0 %v4670
          %4988 = vmatprep.subr.bf16.mxu0 %v4675
          %4989 = vmatpush1.bf16.msra.mxu0 %v4674
          %4990 = vmatprep.subr.bf16.mxu0 %v4679
          %4991 = vmatpush1.bf16.msra.mxu0 %v4678
          %4992 = vmatprep.subr.bf16.mxu0 %v4683
          %4993 = vmatpush1.bf16.msra.mxu0 %v4682
          %4994 = vmatprep.subr.bf16.mxu0 %v4687
          %4995 = vmatpush1.bf16.msra.mxu0 %v4686
          %4996 = vmatprep.subr.bf16.mxu0 %v4691
          %4997 = vmatpush1.bf16.msra.mxu0 %v4690
          %4998 = vmatprep.mubr.bf16.mxu0 %v4237
          %4999 = vmatmul.mubr.bf16.gmra.mrb[0].mxu0 %v4236
          %v5000 = vpop.f32.mrb[0].mxu0
          %v5001 = vadd.f32 %v4225, %v5000
          %v5002 = vpop.f32.mrb[0].mxu0
          %v5003 = vadd.f32 %v4229, %v5002
          %v5004 = vpop.f32.mrb[0].mxu0
          %v5005 = vpop.f32.mrb[0].mxu0
          %5006 = vdwg.mxu0
          %5007 = vmatprep.subr.bf16.mxu0 %v4695
          %5008 = vmatpush1.bf16.msra.mxu0 %v4694
          %5009 = vmatprep.subr.bf16.mxu0 %v4699
          %5010 = vmatpush1.bf16.msra.mxu0 %v4698
          %5011 = vmatprep.subr.bf16.mxu0 %v4703
          %5012 = vmatpush1.bf16.msra.mxu0 %v4702
          %5013 = vmatprep.subr.bf16.mxu0 %v4707
          %5014 = vmatpush1.bf16.msra.mxu0 %v4706
          %5015 = vmatprep.subr.bf16.mxu0 %v4711
          %5016 = vmatpush1.bf16.msra.mxu0 %v4710
          %5017 = vmatprep.subr.bf16.mxu0 %v4715
          %5018 = vmatpush1.bf16.msra.mxu0 %v4714
          %5019 = vmatprep.subr.bf16.mxu0 %v4719
          %5020 = vmatpush1.bf16.msra.mxu0 %v4718
          %5021 = vmatprep.subr.bf16.mxu0 %v4723
          %5022 = vmatpush1.bf16.msra.mxu0 %v4722
          %5023 = vmatprep.subr.bf16.mxu0 %v4727
          %5024 = vmatpush1.bf16.msra.mxu0 %v4726
          %5025 = vmatprep.subr.bf16.mxu0 %v4731
          %5026 = vmatpush1.bf16.msra.mxu0 %v4730
          %5027 = vmatprep.subr.bf16.mxu0 %v4735
          %5028 = vmatpush1.bf16.msra.mxu0 %v4734
          %5029 = vmatprep.subr.bf16.mxu0 %v4739
          %5030 = vmatpush1.bf16.msra.mxu0 %v4738
          %5031 = vmatprep.subr.bf16.mxu0 %v4743
          %5032 = vmatpush1.bf16.msra.mxu0 %v4742
          %5033 = vmatprep.subr.bf16.mxu0 %v4747
          %5034 = vmatpush1.bf16.msra.mxu0 %v4746
          %5035 = vmatprep.subr.bf16.mxu0 %v4751
          %5036 = vmatpush1.bf16.msra.mxu0 %v4750
          %5037 = vmatprep.subr.bf16.mxu0 %v4755
          %5038 = vmatpush1.bf16.msra.mxu0 %v4754
          %5039 = vmatprep.mubr.bf16.mxu0 %v4239
          %5040 = vmatmul.mubr.bf16.gmra.mrb[0].mxu0 %v4238
          %v5041 = vpop.f32.mrb[0].mxu0
          %v5042 = vadd.f32 %v5001, %v5041
          %v5043 = vpop.f32.mrb[0].mxu0
          %v5044 = vadd.f32 %v5003, %v5043
          %v5045 = vpop.f32.mrb[0].mxu0
          %v5046 = vpop.f32.mrb[0].mxu0
          %5047 = vdwg.mxu0
          %v5048 = vmax.f32 %v4960, 0.0
          %v5049 = vmax.f32 %v4962, 0.0
          %v5050 = vmax.f32 %v5042, 0.0
          %v5051 = vmax.f32 %v5044, 0.0
          %s5052 = scalar_lea.vmem %s183, 1024 [#allocation7]
          %v5053 = vld [vmem:[%s5052] sm:$0xff]
          %v5054 = vld [vmem:[%s5052 + $0x8] sm:$0xff]
          %v5055 = vld [vmem:[%s5052 + $0x10] sm:$0xff]
          %v5056 = vld [vmem:[%s5052 + $0x18] sm:$0xff]
          %v5057 = vld [vmem:[%s5052 + $0x20] sm:$0xff]
          %v5058 = vld [vmem:[%s5052 + $0x28] sm:$0xff]
          %v5059 = vld [vmem:[%s5052 + $0x30] sm:$0xff]
          %v5060 = vld [vmem:[%s5052 + $0x38] sm:$0xff]
          %v5061 = vld [vmem:[%s5052 + $0x40] sm:$0xff]
          %v5062 = vld [vmem:[%s5052 + $0x48] sm:$0xff]
          %v5063 = vld [vmem:[%s5052 + $0x50] sm:$0xff]
          %v5064 = vld [vmem:[%s5052 + $0x58] sm:$0xff]
          %v5065 = vld [vmem:[%s5052 + $0x60] sm:$0xff]
          %v5066 = vld [vmem:[%s5052 + $0x68] sm:$0xff]
          %v5067 = vld [vmem:[%s5052 + $0x70] sm:$0xff]
          %v5068 = vld [vmem:[%s5052 + $0x78] sm:$0xff]
          %v5069 = vld [vmem:[%s5052 + $0x80] sm:$0xff]
          %v5070 = vld [vmem:[%s5052 + $0x88] sm:$0xff]
          %v5071 = vld [vmem:[%s5052 + $0x90] sm:$0xff]
          %v5072 = vld [vmem:[%s5052 + $0x98] sm:$0xff]
          %v5073 = vld [vmem:[%s5052 + $0xa0] sm:$0xff]
          %v5074 = vld [vmem:[%s5052 + $0xa8] sm:$0xff]
          %v5075 = vld [vmem:[%s5052 + $0xb0] sm:$0xff]
          %v5076 = vld [vmem:[%s5052 + $0xb8] sm:$0xff]
          %v5077 = vld [vmem:[%s5052 + $0xc0] sm:$0xff]
          %v5078 = vld [vmem:[%s5052 + $0xc8] sm:$0xff]
          %v5079 = vld [vmem:[%s5052 + $0xd0] sm:$0xff]
          %v5080 = vld [vmem:[%s5052 + $0xd8] sm:$0xff]
          %v5081 = vld [vmem:[%s5052 + $0xe0] sm:$0xff]
          %v5082 = vld [vmem:[%s5052 + $0xe8] sm:$0xff]
          %v5083 = vld [vmem:[%s5052 + $0xf0] sm:$0xff]
          %v5084 = vld [vmem:[%s5052 + $0xf8] sm:$0xff]
          %v5085 = vld [vmem:[%s5052 + $0x100] sm:$0xff]
          %v5086 = vld [vmem:[%s5052 + $0x108] sm:$0xff]
          %v5087 = vld [vmem:[%s5052 + $0x110] sm:$0xff]
          %v5088 = vld [vmem:[%s5052 + $0x118] sm:$0xff]
          %v5089 = vld [vmem:[%s5052 + $0x120] sm:$0xff]
          %v5090 = vld [vmem:[%s5052 + $0x128] sm:$0xff]
          %v5091 = vld [vmem:[%s5052 + $0x130] sm:$0xff]
          %v5092 = vld [vmem:[%s5052 + $0x138] sm:$0xff]
          %v5093 = vld [vmem:[%s5052 + $0x140] sm:$0xff]
          %v5094 = vld [vmem:[%s5052 + $0x148] sm:$0xff]
          %v5095 = vld [vmem:[%s5052 + $0x150] sm:$0xff]
          %v5096 = vld [vmem:[%s5052 + $0x158] sm:$0xff]
          %v5097 = vld [vmem:[%s5052 + $0x160] sm:$0xff]
          %v5098 = vld [vmem:[%s5052 + $0x168] sm:$0xff]
          %v5099 = vld [vmem:[%s5052 + $0x170] sm:$0xff]
          %v5100 = vld [vmem:[%s5052 + $0x178] sm:$0xff]
          %v5101 = vld [vmem:[%s5052 + $0x180] sm:$0xff]
          %v5102 = vld [vmem:[%s5052 + $0x188] sm:$0xff]
          %v5103 = vld [vmem:[%s5052 + $0x190] sm:$0xff]
          %v5104 = vld [vmem:[%s5052 + $0x198] sm:$0xff]
          %v5105 = vld [vmem:[%s5052 + $0x1a0] sm:$0xff]
          %v5106 = vld [vmem:[%s5052 + $0x1a8] sm:$0xff]
          %v5107 = vld [vmem:[%s5052 + $0x1b0] sm:$0xff]
          %v5108 = vld [vmem:[%s5052 + $0x1b8] sm:$0xff]
          %v5109 = vld [vmem:[%s5052 + $0x1c0] sm:$0xff]
          %v5110 = vld [vmem:[%s5052 + $0x1c8] sm:$0xff]
          %v5111 = vld [vmem:[%s5052 + $0x1d0] sm:$0xff]
          %v5112 = vld [vmem:[%s5052 + $0x1d8] sm:$0xff]
          %v5113 = vld [vmem:[%s5052 + $0x1e0] sm:$0xff]
          %v5114 = vld [vmem:[%s5052 + $0x1e8] sm:$0xff]
          %v5115 = vld [vmem:[%s5052 + $0x1f0] sm:$0xff]
          %v5116 = vld [vmem:[%s5052 + $0x1f8] sm:$0xff]
          %v5117 = vld [vmem:[%s5052 + $0x200] sm:$0xff]
          %v5118 = vld [vmem:[%s5052 + $0x208] sm:$0xff]
          %v5119 = vld [vmem:[%s5052 + $0x210] sm:$0xff]
          %v5120 = vld [vmem:[%s5052 + $0x218] sm:$0xff]
          %v5121 = vld [vmem:[%s5052 + $0x220] sm:$0xff]
          %v5122 = vld [vmem:[%s5052 + $0x228] sm:$0xff]
          %v5123 = vld [vmem:[%s5052 + $0x230] sm:$0xff]
          %v5124 = vld [vmem:[%s5052 + $0x238] sm:$0xff]
          %v5125 = vld [vmem:[%s5052 + $0x240] sm:$0xff]
          %v5126 = vld [vmem:[%s5052 + $0x248] sm:$0xff]
          %v5127 = vld [vmem:[%s5052 + $0x250] sm:$0xff]
          %v5128 = vld [vmem:[%s5052 + $0x258] sm:$0xff]
          %v5129 = vld [vmem:[%s5052 + $0x260] sm:$0xff]
          %v5130 = vld [vmem:[%s5052 + $0x268] sm:$0xff]
          %v5131 = vld [vmem:[%s5052 + $0x270] sm:$0xff]
          %v5132 = vld [vmem:[%s5052 + $0x278] sm:$0xff]
          %v5133 = vld [vmem:[%s5052 + $0x280] sm:$0xff]
          %v5134 = vld [vmem:[%s5052 + $0x288] sm:$0xff]
          %v5135 = vld [vmem:[%s5052 + $0x290] sm:$0xff]
          %v5136 = vld [vmem:[%s5052 + $0x298] sm:$0xff]
          %v5137 = vld [vmem:[%s5052 + $0x2a0] sm:$0xff]
          %v5138 = vld [vmem:[%s5052 + $0x2a8] sm:$0xff]
          %v5139 = vld [vmem:[%s5052 + $0x2b0] sm:$0xff]
          %v5140 = vld [vmem:[%s5052 + $0x2b8] sm:$0xff]
          %v5141 = vld [vmem:[%s5052 + $0x2c0] sm:$0xff]
          %v5142 = vld [vmem:[%s5052 + $0x2c8] sm:$0xff]
          %v5143 = vld [vmem:[%s5052 + $0x2d0] sm:$0xff]
          %v5144 = vld [vmem:[%s5052 + $0x2d8] sm:$0xff]
          %v5145 = vld [vmem:[%s5052 + $0x2e0] sm:$0xff]
          %v5146 = vld [vmem:[%s5052 + $0x2e8] sm:$0xff]
          %v5147 = vld [vmem:[%s5052 + $0x2f0] sm:$0xff]
          %v5148 = vld [vmem:[%s5052 + $0x2f8] sm:$0xff]
          %v5149 = vld [vmem:[%s5052 + $0x300] sm:$0xff]
          %v5150 = vld [vmem:[%s5052 + $0x308] sm:$0xff]
          %v5151 = vld [vmem:[%s5052 + $0x310] sm:$0xff]
          %v5152 = vld [vmem:[%s5052 + $0x318] sm:$0xff]
          %v5153 = vld [vmem:[%s5052 + $0x320] sm:$0xff]
          %v5154 = vld [vmem:[%s5052 + $0x328] sm:$0xff]
          %v5155 = vld [vmem:[%s5052 + $0x330] sm:$0xff]
          %v5156 = vld [vmem:[%s5052 + $0x338] sm:$0xff]
          %v5157 = vld [vmem:[%s5052 + $0x340] sm:$0xff]
          %v5158 = vld [vmem:[%s5052 + $0x348] sm:$0xff]
          %v5159 = vld [vmem:[%s5052 + $0x350] sm:$0xff]
          %v5160 = vld [vmem:[%s5052 + $0x358] sm:$0xff]
          %v5161 = vld [vmem:[%s5052 + $0x360] sm:$0xff]
          %v5162 = vld [vmem:[%s5052 + $0x368] sm:$0xff]
          %v5163 = vld [vmem:[%s5052 + $0x370] sm:$0xff]
          %v5164 = vld [vmem:[%s5052 + $0x378] sm:$0xff]
          %v5165 = vld [vmem:[%s5052 + $0x380] sm:$0xff]
          %v5166 = vld [vmem:[%s5052 + $0x388] sm:$0xff]
          %v5167 = vld [vmem:[%s5052 + $0x390] sm:$0xff]
          %v5168 = vld [vmem:[%s5052 + $0x398] sm:$0xff]
          %v5169 = vld [vmem:[%s5052 + $0x3a0] sm:$0xff]
          %v5170 = vld [vmem:[%s5052 + $0x3a8] sm:$0xff]
          %v5171 = vld [vmem:[%s5052 + $0x3b0] sm:$0xff]
          %v5172 = vld [vmem:[%s5052 + $0x3b8] sm:$0xff]
          %v5173 = vld [vmem:[%s5052 + $0x3c0] sm:$0xff]
          %v5174 = vld [vmem:[%s5052 + $0x3c8] sm:$0xff]
          %v5175 = vld [vmem:[%s5052 + $0x3d0] sm:$0xff]
          %v5176 = vld [vmem:[%s5052 + $0x3d8] sm:$0xff]
          %v5177 = vld [vmem:[%s5052 + $0x3e0] sm:$0xff]
          %v5178 = vld [vmem:[%s5052 + $0x3e8] sm:$0xff]
          %v5179 = vld [vmem:[%s5052 + $0x3f0] sm:$0xff]
          %v5180 = vld [vmem:[%s5052 + $0x3f8] sm:$0xff]
          %v5181 = vlaneseq
          %v5182 = vshrl.u32 %v5181, 7
          %v5183 = vsub.s32 1, %v5182
          %v5184 = vrot.slane %v209, %v5183
          %v5185 = vlaneseq
          %v5186 = vshrl.u32 %v5185, 7
          %v5187 = vsub.s32 5, %v5186
          %v5188 = vrot.slane %v209, %v5187
          %v5189 = vlaneseq
          %v5190 = vshrl.u32 %v5189, 7
          %v5191 = vsub.s32 1, %v5190
          %v5192 = vrot.slane %v210, %v5191
          %v5193 = vlaneseq
          %v5194 = vshrl.u32 %v5193, 7
          %v5195 = vsub.s32 5, %v5194
          %v5196 = vrot.slane %v210, %v5195
          %v5201 = vlaneseq
          %v5202 = vshrl.u32 %v5201, 7
          %v5203 = vsub.s32 1, %v5202
          %v5204 = vrot.slane %v5184, %v5203
          %v5205 = vlaneseq
          %v5206 = vshrl.u32 %v5205, 7
          %v5207 = vsub.s32 1, %v5206
          %v5208 = vrot.slane %v5188, %v5207
          %v5209 = vlaneseq
          %v5210 = vshrl.u32 %v5209, 7
          %v5211 = vsub.s32 1, %v5210
          %v5212 = vrot.slane %v5192, %v5211
          %v5213 = vlaneseq
          %v5214 = vshrl.u32 %v5213, 7
          %v5215 = vsub.s32 1, %v5214
          %v5216 = vrot.slane %v5196, %v5215
          %v5345 = vunpack.c.l.b16 %v5053
          %v5346 = vunpack.c.h.b16 %v5053
          %v5347 = vunpack.c.l.b16 %v5054
          %v5348 = vunpack.c.h.b16 %v5054
          %v5349 = vunpack.c.l.b16 %v5055
          %v5350 = vunpack.c.h.b16 %v5055
          %v5351 = vunpack.c.l.b16 %v5056
          %v5352 = vunpack.c.h.b16 %v5056
          %v5353 = vunpack.c.l.b16 %v5057
          %v5354 = vunpack.c.h.b16 %v5057
          %v5355 = vunpack.c.l.b16 %v5058
          %v5356 = vunpack.c.h.b16 %v5058
          %v5357 = vunpack.c.l.b16 %v5059
          %v5358 = vunpack.c.h.b16 %v5059
          %v5359 = vunpack.c.l.b16 %v5060
          %v5360 = vunpack.c.h.b16 %v5060
          %v5361 = vunpack.c.l.b16 %v5061
          %v5362 = vunpack.c.h.b16 %v5061
          %v5363 = vunpack.c.l.b16 %v5062
          %v5364 = vunpack.c.h.b16 %v5062
          %v5365 = vunpack.c.l.b16 %v5063
          %v5366 = vunpack.c.h.b16 %v5063
          %v5367 = vunpack.c.l.b16 %v5064
          %v5368 = vunpack.c.h.b16 %v5064
          %v5369 = vunpack.c.l.b16 %v5065
          %v5370 = vunpack.c.h.b16 %v5065
          %v5371 = vunpack.c.l.b16 %v5066
          %v5372 = vunpack.c.h.b16 %v5066
          %v5373 = vunpack.c.l.b16 %v5067
          %v5374 = vunpack.c.h.b16 %v5067
          %v5375 = vunpack.c.l.b16 %v5068
          %v5376 = vunpack.c.h.b16 %v5068
          %v5377 = vunpack.c.l.b16 %v5069
          %v5378 = vunpack.c.h.b16 %v5069
          %v5379 = vunpack.c.l.b16 %v5070
          %v5380 = vunpack.c.h.b16 %v5070
          %v5381 = vunpack.c.l.b16 %v5071
          %v5382 = vunpack.c.h.b16 %v5071
          %v5383 = vunpack.c.l.b16 %v5072
          %v5384 = vunpack.c.h.b16 %v5072
          %v5385 = vunpack.c.l.b16 %v5073
          %v5386 = vunpack.c.h.b16 %v5073
          %v5387 = vunpack.c.l.b16 %v5074
          %v5388 = vunpack.c.h.b16 %v5074
          %v5389 = vunpack.c.l.b16 %v5075
          %v5390 = vunpack.c.h.b16 %v5075
          %v5391 = vunpack.c.l.b16 %v5076
          %v5392 = vunpack.c.h.b16 %v5076
          %v5393 = vunpack.c.l.b16 %v5077
          %v5394 = vunpack.c.h.b16 %v5077
          %v5395 = vunpack.c.l.b16 %v5078
          %v5396 = vunpack.c.h.b16 %v5078
          %v5397 = vunpack.c.l.b16 %v5079
          %v5398 = vunpack.c.h.b16 %v5079
          %v5399 = vunpack.c.l.b16 %v5080
          %v5400 = vunpack.c.h.b16 %v5080
          %v5401 = vunpack.c.l.b16 %v5081
          %v5402 = vunpack.c.h.b16 %v5081
          %v5403 = vunpack.c.l.b16 %v5082
          %v5404 = vunpack.c.h.b16 %v5082
          %v5405 = vunpack.c.l.b16 %v5083
          %v5406 = vunpack.c.h.b16 %v5083
          %v5407 = vunpack.c.l.b16 %v5084
          %v5408 = vunpack.c.h.b16 %v5084
          %v5409 = vunpack.c.l.b16 %v5085
          %v5410 = vunpack.c.h.b16 %v5085
          %v5411 = vunpack.c.l.b16 %v5086
          %v5412 = vunpack.c.h.b16 %v5086
          %v5413 = vunpack.c.l.b16 %v5087
          %v5414 = vunpack.c.h.b16 %v5087
          %v5415 = vunpack.c.l.b16 %v5088
          %v5416 = vunpack.c.h.b16 %v5088
          %v5417 = vunpack.c.l.b16 %v5089
          %v5418 = vunpack.c.h.b16 %v5089
          %v5419 = vunpack.c.l.b16 %v5090
          %v5420 = vunpack.c.h.b16 %v5090
          %v5421 = vunpack.c.l.b16 %v5091
          %v5422 = vunpack.c.h.b16 %v5091
          %v5423 = vunpack.c.l.b16 %v5092
          %v5424 = vunpack.c.h.b16 %v5092
          %v5425 = vunpack.c.l.b16 %v5093
          %v5426 = vunpack.c.h.b16 %v5093
          %v5427 = vunpack.c.l.b16 %v5094
          %v5428 = vunpack.c.h.b16 %v5094
          %v5429 = vunpack.c.l.b16 %v5095
          %v5430 = vunpack.c.h.b16 %v5095
          %v5431 = vunpack.c.l.b16 %v5096
          %v5432 = vunpack.c.h.b16 %v5096
          %v5433 = vunpack.c.l.b16 %v5097
          %v5434 = vunpack.c.h.b16 %v5097
          %v5435 = vunpack.c.l.b16 %v5098
          %v5436 = vunpack.c.h.b16 %v5098
          %v5437 = vunpack.c.l.b16 %v5099
          %v5438 = vunpack.c.h.b16 %v5099
          %v5439 = vunpack.c.l.b16 %v5100
          %v5440 = vunpack.c.h.b16 %v5100
          %v5441 = vunpack.c.l.b16 %v5101
          %v5442 = vunpack.c.h.b16 %v5101
          %v5443 = vunpack.c.l.b16 %v5102
          %v5444 = vunpack.c.h.b16 %v5102
          %v5445 = vunpack.c.l.b16 %v5103
          %v5446 = vunpack.c.h.b16 %v5103
          %v5447 = vunpack.c.l.b16 %v5104
          %v5448 = vunpack.c.h.b16 %v5104
          %v5449 = vunpack.c.l.b16 %v5105
          %v5450 = vunpack.c.h.b16 %v5105
          %v5451 = vunpack.c.l.b16 %v5106
          %v5452 = vunpack.c.h.b16 %v5106
          %v5453 = vunpack.c.l.b16 %v5107
          %v5454 = vunpack.c.h.b16 %v5107
          %v5455 = vunpack.c.l.b16 %v5108
          %v5456 = vunpack.c.h.b16 %v5108
          %v5457 = vunpack.c.l.b16 %v5109
          %v5458 = vunpack.c.h.b16 %v5109
          %v5459 = vunpack.c.l.b16 %v5110
          %v5460 = vunpack.c.h.b16 %v5110
          %v5461 = vunpack.c.l.b16 %v5111
          %v5462 = vunpack.c.h.b16 %v5111
          %v5463 = vunpack.c.l.b16 %v5112
          %v5464 = vunpack.c.h.b16 %v5112
          %v5465 = vunpack.c.l.b16 %v5113
          %v5466 = vunpack.c.h.b16 %v5113
          %v5467 = vunpack.c.l.b16 %v5114
          %v5468 = vunpack.c.h.b16 %v5114
          %v5469 = vunpack.c.l.b16 %v5115
          %v5470 = vunpack.c.h.b16 %v5115
          %v5471 = vunpack.c.l.b16 %v5116
          %v5472 = vunpack.c.h.b16 %v5116
          %v5473 = vunpack.c.l.b16 %v5117
          %v5474 = vunpack.c.h.b16 %v5117
          %v5475 = vunpack.c.l.b16 %v5118
          %v5476 = vunpack.c.h.b16 %v5118
          %v5477 = vunpack.c.l.b16 %v5119
          %v5478 = vunpack.c.h.b16 %v5119
          %v5479 = vunpack.c.l.b16 %v5120
          %v5480 = vunpack.c.h.b16 %v5120
          %v5481 = vunpack.c.l.b16 %v5121
          %v5482 = vunpack.c.h.b16 %v5121
          %v5483 = vunpack.c.l.b16 %v5122
          %v5484 = vunpack.c.h.b16 %v5122
          %v5485 = vunpack.c.l.b16 %v5123
          %v5486 = vunpack.c.h.b16 %v5123
          %v5487 = vunpack.c.l.b16 %v5124
          %v5488 = vunpack.c.h.b16 %v5124
          %v5489 = vunpack.c.l.b16 %v5125
          %v5490 = vunpack.c.h.b16 %v5125
          %v5491 = vunpack.c.l.b16 %v5126
          %v5492 = vunpack.c.h.b16 %v5126
          %v5493 = vunpack.c.l.b16 %v5127
          %v5494 = vunpack.c.h.b16 %v5127
          %v5495 = vunpack.c.l.b16 %v5128
          %v5496 = vunpack.c.h.b16 %v5128
          %v5497 = vunpack.c.l.b16 %v5129
          %v5498 = vunpack.c.h.b16 %v5129
          %v5499 = vunpack.c.l.b16 %v5130
          %v5500 = vunpack.c.h.b16 %v5130
          %v5501 = vunpack.c.l.b16 %v5131
          %v5502 = vunpack.c.h.b16 %v5131
          %v5503 = vunpack.c.l.b16 %v5132
          %v5504 = vunpack.c.h.b16 %v5132
          %v5505 = vunpack.c.l.b16 %v5133
          %v5506 = vunpack.c.h.b16 %v5133
          %v5507 = vunpack.c.l.b16 %v5134
          %v5508 = vunpack.c.h.b16 %v5134
          %v5509 = vunpack.c.l.b16 %v5135
          %v5510 = vunpack.c.h.b16 %v5135
          %v5511 = vunpack.c.l.b16 %v5136
          %v5512 = vunpack.c.h.b16 %v5136
          %v5513 = vunpack.c.l.b16 %v5137
          %v5514 = vunpack.c.h.b16 %v5137
          %v5515 = vunpack.c.l.b16 %v5138
          %v5516 = vunpack.c.h.b16 %v5138
          %v5517 = vunpack.c.l.b16 %v5139
          %v5518 = vunpack.c.h.b16 %v5139
          %v5519 = vunpack.c.l.b16 %v5140
          %v5520 = vunpack.c.h.b16 %v5140
          %v5521 = vunpack.c.l.b16 %v5141
          %v5522 = vunpack.c.h.b16 %v5141
          %v5523 = vunpack.c.l.b16 %v5142
          %v5524 = vunpack.c.h.b16 %v5142
          %v5525 = vunpack.c.l.b16 %v5143
          %v5526 = vunpack.c.h.b16 %v5143
          %v5527 = vunpack.c.l.b16 %v5144
          %v5528 = vunpack.c.h.b16 %v5144
          %v5529 = vunpack.c.l.b16 %v5145
          %v5530 = vunpack.c.h.b16 %v5145
          %v5531 = vunpack.c.l.b16 %v5146
          %v5532 = vunpack.c.h.b16 %v5146
          %v5533 = vunpack.c.l.b16 %v5147
          %v5534 = vunpack.c.h.b16 %v5147
          %v5535 = vunpack.c.l.b16 %v5148
          %v5536 = vunpack.c.h.b16 %v5148
          %v5537 = vunpack.c.l.b16 %v5149
          %v5538 = vunpack.c.h.b16 %v5149
          %v5539 = vunpack.c.l.b16 %v5150
          %v5540 = vunpack.c.h.b16 %v5150
          %v5541 = vunpack.c.l.b16 %v5151
          %v5542 = vunpack.c.h.b16 %v5151
          %v5543 = vunpack.c.l.b16 %v5152
          %v5544 = vunpack.c.h.b16 %v5152
          %v5545 = vunpack.c.l.b16 %v5153
          %v5546 = vunpack.c.h.b16 %v5153
          %v5547 = vunpack.c.l.b16 %v5154
          %v5548 = vunpack.c.h.b16 %v5154
          %v5549 = vunpack.c.l.b16 %v5155
          %v5550 = vunpack.c.h.b16 %v5155
          %v5551 = vunpack.c.l.b16 %v5156
          %v5552 = vunpack.c.h.b16 %v5156
          %v5553 = vunpack.c.l.b16 %v5157
          %v5554 = vunpack.c.h.b16 %v5157
          %v5555 = vunpack.c.l.b16 %v5158
          %v5556 = vunpack.c.h.b16 %v5158
          %v5557 = vunpack.c.l.b16 %v5159
          %v5558 = vunpack.c.h.b16 %v5159
          %v5559 = vunpack.c.l.b16 %v5160
          %v5560 = vunpack.c.h.b16 %v5160
          %v5561 = vunpack.c.l.b16 %v5161
          %v5562 = vunpack.c.h.b16 %v5161
          %v5563 = vunpack.c.l.b16 %v5162
          %v5564 = vunpack.c.h.b16 %v5162
          %v5565 = vunpack.c.l.b16 %v5163
          %v5566 = vunpack.c.h.b16 %v5163
          %v5567 = vunpack.c.l.b16 %v5164
          %v5568 = vunpack.c.h.b16 %v5164
          %v5569 = vunpack.c.l.b16 %v5165
          %v5570 = vunpack.c.h.b16 %v5165
          %v5571 = vunpack.c.l.b16 %v5166
          %v5572 = vunpack.c.h.b16 %v5166
          %v5573 = vunpack.c.l.b16 %v5167
          %v5574 = vunpack.c.h.b16 %v5167
          %v5575 = vunpack.c.l.b16 %v5168
          %v5576 = vunpack.c.h.b16 %v5168
          %v5577 = vunpack.c.l.b16 %v5169
          %v5578 = vunpack.c.h.b16 %v5169
          %v5579 = vunpack.c.l.b16 %v5170
          %v5580 = vunpack.c.h.b16 %v5170
          %v5581 = vunpack.c.l.b16 %v5171
          %v5582 = vunpack.c.h.b16 %v5171
          %v5583 = vunpack.c.l.b16 %v5172
          %v5584 = vunpack.c.h.b16 %v5172
          %v5585 = vunpack.c.l.b16 %v5173
          %v5586 = vunpack.c.h.b16 %v5173
          %v5587 = vunpack.c.l.b16 %v5174
          %v5588 = vunpack.c.h.b16 %v5174
          %v5589 = vunpack.c.l.b16 %v5175
          %v5590 = vunpack.c.h.b16 %v5175
          %v5591 = vunpack.c.l.b16 %v5176
          %v5592 = vunpack.c.h.b16 %v5176
          %v5593 = vunpack.c.l.b16 %v5177
          %v5594 = vunpack.c.h.b16 %v5177
          %v5595 = vunpack.c.l.b16 %v5178
          %v5596 = vunpack.c.h.b16 %v5178
          %v5597 = vunpack.c.l.b16 %v5179
          %v5598 = vunpack.c.h.b16 %v5179
          %v5599 = vunpack.c.l.b16 %v5180
          %v5600 = vunpack.c.h.b16 %v5180
          %v5601 = vpack.c.b16 %v5349, %v5345
          %v5602 = vpack.c.b16 %v5350, %v5346
          %v5603 = vpack.c.b16 %v5351, %v5347
          %v5604 = vpack.c.b16 %v5352, %v5348
          %v5605 = vpack.c.b16 %v5357, %v5353
          %v5606 = vpack.c.b16 %v5358, %v5354
          %v5607 = vpack.c.b16 %v5359, %v5355
          %v5608 = vpack.c.b16 %v5360, %v5356
          %v5609 = vpack.c.b16 %v5365, %v5361
          %v5610 = vpack.c.b16 %v5366, %v5362
          %v5611 = vpack.c.b16 %v5367, %v5363
          %v5612 = vpack.c.b16 %v5368, %v5364
          %v5613 = vpack.c.b16 %v5373, %v5369
          %v5614 = vpack.c.b16 %v5374, %v5370
          %v5615 = vpack.c.b16 %v5375, %v5371
          %v5616 = vpack.c.b16 %v5376, %v5372
          %v5617 = vpack.c.b16 %v5381, %v5377
          %v5618 = vpack.c.b16 %v5382, %v5378
          %v5619 = vpack.c.b16 %v5383, %v5379
          %v5620 = vpack.c.b16 %v5384, %v5380
          %v5621 = vpack.c.b16 %v5389, %v5385
          %v5622 = vpack.c.b16 %v5390, %v5386
          %v5623 = vpack.c.b16 %v5391, %v5387
          %v5624 = vpack.c.b16 %v5392, %v5388
          %v5625 = vpack.c.b16 %v5397, %v5393
          %v5626 = vpack.c.b16 %v5398, %v5394
          %v5627 = vpack.c.b16 %v5399, %v5395
          %v5628 = vpack.c.b16 %v5400, %v5396
          %v5629 = vpack.c.b16 %v5405, %v5401
          %v5630 = vpack.c.b16 %v5406, %v5402
          %v5631 = vpack.c.b16 %v5407, %v5403
          %v5632 = vpack.c.b16 %v5408, %v5404
          %v5633 = vpack.c.b16 %v5413, %v5409
          %v5634 = vpack.c.b16 %v5414, %v5410
          %v5635 = vpack.c.b16 %v5415, %v5411
          %v5636 = vpack.c.b16 %v5416, %v5412
          %v5637 = vpack.c.b16 %v5421, %v5417
          %v5638 = vpack.c.b16 %v5422, %v5418
          %v5639 = vpack.c.b16 %v5423, %v5419
          %v5640 = vpack.c.b16 %v5424, %v5420
          %v5641 = vpack.c.b16 %v5429, %v5425
          %v5642 = vpack.c.b16 %v5430, %v5426
          %v5643 = vpack.c.b16 %v5431, %v5427
          %v5644 = vpack.c.b16 %v5432, %v5428
          %v5645 = vpack.c.b16 %v5437, %v5433
          %v5646 = vpack.c.b16 %v5438, %v5434
          %v5647 = vpack.c.b16 %v5439, %v5435
          %v5648 = vpack.c.b16 %v5440, %v5436
          %v5649 = vpack.c.b16 %v5445, %v5441
          %v5650 = vpack.c.b16 %v5446, %v5442
          %v5651 = vpack.c.b16 %v5447, %v5443
          %v5652 = vpack.c.b16 %v5448, %v5444
          %v5653 = vpack.c.b16 %v5453, %v5449
          %v5654 = vpack.c.b16 %v5454, %v5450
          %v5655 = vpack.c.b16 %v5455, %v5451
          %v5656 = vpack.c.b16 %v5456, %v5452
          %v5657 = vpack.c.b16 %v5461, %v5457
          %v5658 = vpack.c.b16 %v5462, %v5458
          %v5659 = vpack.c.b16 %v5463, %v5459
          %v5660 = vpack.c.b16 %v5464, %v5460
          %v5661 = vpack.c.b16 %v5469, %v5465
          %v5662 = vpack.c.b16 %v5470, %v5466
          %v5663 = vpack.c.b16 %v5471, %v5467
          %v5664 = vpack.c.b16 %v5472, %v5468
          %v5665 = vpack.c.b16 %v5477, %v5473
          %v5666 = vpack.c.b16 %v5478, %v5474
          %v5667 = vpack.c.b16 %v5479, %v5475
          %v5668 = vpack.c.b16 %v5480, %v5476
          %v5669 = vpack.c.b16 %v5485, %v5481
          %v5670 = vpack.c.b16 %v5486, %v5482
          %v5671 = vpack.c.b16 %v5487, %v5483
          %v5672 = vpack.c.b16 %v5488, %v5484
          %v5673 = vpack.c.b16 %v5493, %v5489
          %v5674 = vpack.c.b16 %v5494, %v5490
          %v5675 = vpack.c.b16 %v5495, %v5491
          %v5676 = vpack.c.b16 %v5496, %v5492
          %v5677 = vpack.c.b16 %v5501, %v5497
          %v5678 = vpack.c.b16 %v5502, %v5498
          %v5679 = vpack.c.b16 %v5503, %v5499
          %v5680 = vpack.c.b16 %v5504, %v5500
          %v5681 = vpack.c.b16 %v5509, %v5505
          %v5682 = vpack.c.b16 %v5510, %v5506
          %v5683 = vpack.c.b16 %v5511, %v5507
          %v5684 = vpack.c.b16 %v5512, %v5508
          %v5685 = vpack.c.b16 %v5517, %v5513
          %v5686 = vpack.c.b16 %v5518, %v5514
          %v5687 = vpack.c.b16 %v5519, %v5515
          %v5688 = vpack.c.b16 %v5520, %v5516
          %v5689 = vpack.c.b16 %v5525, %v5521
          %v5690 = vpack.c.b16 %v5526, %v5522
          %v5691 = vpack.c.b16 %v5527, %v5523
          %v5692 = vpack.c.b16 %v5528, %v5524
          %v5693 = vpack.c.b16 %v5533, %v5529
          %v5694 = vpack.c.b16 %v5534, %v5530
          %v5695 = vpack.c.b16 %v5535, %v5531
          %v5696 = vpack.c.b16 %v5536, %v5532
          %v5697 = vpack.c.b16 %v5541, %v5537
          %v5698 = vpack.c.b16 %v5542, %v5538
          %v5699 = vpack.c.b16 %v5543, %v5539
          %v5700 = vpack.c.b16 %v5544, %v5540
          %v5701 = vpack.c.b16 %v5549, %v5545
          %v5702 = vpack.c.b16 %v5550, %v5546
          %v5703 = vpack.c.b16 %v5551, %v5547
          %v5704 = vpack.c.b16 %v5552, %v5548
          %v5705 = vpack.c.b16 %v5557, %v5553
          %v5706 = vpack.c.b16 %v5558, %v5554
          %v5707 = vpack.c.b16 %v5559, %v5555
          %v5708 = vpack.c.b16 %v5560, %v5556
          %v5709 = vpack.c.b16 %v5565, %v5561
          %v5710 = vpack.c.b16 %v5566, %v5562
          %v5711 = vpack.c.b16 %v5567, %v5563
          %v5712 = vpack.c.b16 %v5568, %v5564
          %v5713 = vpack.c.b16 %v5573, %v5569
          %v5714 = vpack.c.b16 %v5574, %v5570
          %v5715 = vpack.c.b16 %v5575, %v5571
          %v5716 = vpack.c.b16 %v5576, %v5572
          %v5717 = vpack.c.b16 %v5581, %v5577
          %v5718 = vpack.c.b16 %v5582, %v5578
          %v5719 = vpack.c.b16 %v5583, %v5579
          %v5720 = vpack.c.b16 %v5584, %v5580
          %v5721 = vpack.c.b16 %v5589, %v5585
          %v5722 = vpack.c.b16 %v5590, %v5586
          %v5723 = vpack.c.b16 %v5591, %v5587
          %v5724 = vpack.c.b16 %v5592, %v5588
          %v5725 = vpack.c.b16 %v5597, %v5593
          %v5726 = vpack.c.b16 %v5598, %v5594
          %v5727 = vpack.c.b16 %v5599, %v5595
          %v5728 = vpack.c.b16 %v5600, %v5596
          %5857 = vmatprep.subr.bf16.mxu0 %v5602
          %5858 = vmatpush1.bf16.msra.mxu0 %v5601
          %5859 = vmatprep.subr.bf16.mxu0 %v5606
          %5860 = vmatpush1.bf16.msra.mxu0 %v5605
          %5861 = vmatprep.subr.bf16.mxu0 %v5610
          %5862 = vmatpush1.bf16.msra.mxu0 %v5609
          %5863 = vmatprep.subr.bf16.mxu0 %v5614
          %5864 = vmatpush1.bf16.msra.mxu0 %v5613
          %5865 = vmatprep.subr.bf16.mxu0 %v5618
          %5866 = vmatpush1.bf16.msra.mxu0 %v5617
          %5867 = vmatprep.subr.bf16.mxu0 %v5622
          %5868 = vmatpush1.bf16.msra.mxu0 %v5621
          %5869 = vmatprep.subr.bf16.mxu0 %v5626
          %5870 = vmatpush1.bf16.msra.mxu0 %v5625
          %5871 = vmatprep.subr.bf16.mxu0 %v5630
          %5872 = vmatpush1.bf16.msra.mxu0 %v5629
          %5873 = vmatprep.subr.bf16.mxu0 %v5634
          %5874 = vmatpush1.bf16.msra.mxu0 %v5633
          %5875 = vmatprep.subr.bf16.mxu0 %v5638
          %5876 = vmatpush1.bf16.msra.mxu0 %v5637
          %5877 = vmatprep.subr.bf16.mxu0 %v5642
          %5878 = vmatpush1.bf16.msra.mxu0 %v5641
          %5879 = vmatprep.subr.bf16.mxu0 %v5646
          %5880 = vmatpush1.bf16.msra.mxu0 %v5645
          %5881 = vmatprep.subr.bf16.mxu0 %v5650
          %5882 = vmatpush1.bf16.msra.mxu0 %v5649
          %5883 = vmatprep.subr.bf16.mxu0 %v5654
          %5884 = vmatpush1.bf16.msra.mxu0 %v5653
          %5885 = vmatprep.subr.bf16.mxu0 %v5658
          %5886 = vmatpush1.bf16.msra.mxu0 %v5657
          %5887 = vmatprep.subr.bf16.mxu0 %v5662
          %5888 = vmatpush1.bf16.msra.mxu0 %v5661
          %5889 = vmatprep.mubr.bf16.mxu0 %v4237
          %5890 = vmatmul.mubr.bf16.gmra.mrb[0].mxu0 %v4236
          %v5891 = vpop.f32.mrb[0].mxu0
          %v5892 = vadd.f32 %v5204, %v5891
          %v5893 = vpop.f32.mrb[0].mxu0
          %v5894 = vadd.f32 %v5208, %v5893
          %v5895 = vpop.f32.mrb[0].mxu0
          %v5896 = vpop.f32.mrb[0].mxu0
          %5897 = vdwg.mxu0
          %5898 = vmatprep.subr.bf16.mxu0 %v5666
          %5899 = vmatpush1.bf16.msra.mxu0 %v5665
          %5900 = vmatprep.subr.bf16.mxu0 %v5670
          %5901 = vmatpush1.bf16.msra.mxu0 %v5669
          %5902 = vmatprep.subr.bf16.mxu0 %v5674
          %5903 = vmatpush1.bf16.msra.mxu0 %v5673
          %5904 = vmatprep.subr.bf16.mxu0 %v5678
          %5905 = vmatpush1.bf16.msra.mxu0 %v5677
          %5906 = vmatprep.subr.bf16.mxu0 %v5682
          %5907 = vmatpush1.bf16.msra.mxu0 %v5681
          %5908 = vmatprep.subr.bf16.mxu0 %v5686
          %5909 = vmatpush1.bf16.msra.mxu0 %v5685
          %5910 = vmatprep.subr.bf16.mxu0 %v5690
          %5911 = vmatpush1.bf16.msra.mxu0 %v5689
          %5912 = vmatprep.subr.bf16.mxu0 %v5694
          %5913 = vmatpush1.bf16.msra.mxu0 %v5693
          %5914 = vmatprep.subr.bf16.mxu0 %v5698
          %5915 = vmatpush1.bf16.msra.mxu0 %v5697
          %5916 = vmatprep.subr.bf16.mxu0 %v5702
          %5917 = vmatpush1.bf16.msra.mxu0 %v5701
          %5918 = vmatprep.subr.bf16.mxu0 %v5706
          %5919 = vmatpush1.bf16.msra.mxu0 %v5705
          %5920 = vmatprep.subr.bf16.mxu0 %v5710
          %5921 = vmatpush1.bf16.msra.mxu0 %v5709
          %5922 = vmatprep.subr.bf16.mxu0 %v5714
          %5923 = vmatpush1.bf16.msra.mxu0 %v5713
          %5924 = vmatprep.subr.bf16.mxu0 %v5718
          %5925 = vmatpush1.bf16.msra.mxu0 %v5717
          %5926 = vmatprep.subr.bf16.mxu0 %v5722
          %5927 = vmatpush1.bf16.msra.mxu0 %v5721
          %5928 = vmatprep.subr.bf16.mxu0 %v5726
          %5929 = vmatpush1.bf16.msra.mxu0 %v5725
          %5930 = vmatprep.mubr.bf16.mxu0 %v4239
          %5931 = vmatmul.mubr.bf16.gmra.mrb[0].mxu0 %v4238
          %v5932 = vpop.f32.mrb[0].mxu0
          %v5933 = vadd.f32 %v5892, %v5932
          %v5934 = vpop.f32.mrb[0].mxu0
          %v5935 = vadd.f32 %v5894, %v5934
          %v5936 = vpop.f32.mrb[0].mxu0
          %v5937 = vpop.f32.mrb[0].mxu0
          %5938 = vdwg.mxu0
          %5939 = vmatprep.subr.bf16.mxu0 %v5604
          %5940 = vmatpush1.bf16.msra.mxu0 %v5603
          %5941 = vmatprep.subr.bf16.mxu0 %v5608
          %5942 = vmatpush1.bf16.msra.mxu0 %v5607
          %5943 = vmatprep.subr.bf16.mxu0 %v5612
          %5944 = vmatpush1.bf16.msra.mxu0 %v5611
          %5945 = vmatprep.subr.bf16.mxu0 %v5616
          %5946 = vmatpush1.bf16.msra.mxu0 %v5615
          %5947 = vmatprep.subr.bf16.mxu0 %v5620
          %5948 = vmatpush1.bf16.msra.mxu0 %v5619
          %5949 = vmatprep.subr.bf16.mxu0 %v5624
          %5950 = vmatpush1.bf16.msra.mxu0 %v5623
          %5951 = vmatprep.subr.bf16.mxu0 %v5628
          %5952 = vmatpush1.bf16.msra.mxu0 %v5627
          %5953 = vmatprep.subr.bf16.mxu0 %v5632
          %5954 = vmatpush1.bf16.msra.mxu0 %v5631
          %5955 = vmatprep.subr.bf16.mxu0 %v5636
          %5956 = vmatpush1.bf16.msra.mxu0 %v5635
          %5957 = vmatprep.subr.bf16.mxu0 %v5640
          %5958 = vmatpush1.bf16.msra.mxu0 %v5639
          %5959 = vmatprep.subr.bf16.mxu0 %v5644
          %5960 = vmatpush1.bf16.msra.mxu0 %v5643
          %5961 = vmatprep.subr.bf16.mxu0 %v5648
          %5962 = vmatpush1.bf16.msra.mxu0 %v5647
          %5963 = vmatprep.subr.bf16.mxu0 %v5652
          %5964 = vmatpush1.bf16.msra.mxu0 %v5651
          %5965 = vmatprep.subr.bf16.mxu0 %v5656
          %5966 = vmatpush1.bf16.msra.mxu0 %v5655
          %5967 = vmatprep.subr.bf16.mxu0 %v5660
          %5968 = vmatpush1.bf16.msra.mxu0 %v5659
          %5969 = vmatprep.subr.bf16.mxu0 %v5664
          %5970 = vmatpush1.bf16.msra.mxu0 %v5663
          %5971 = vmatprep.mubr.bf16.mxu0 %v4237
          %5972 = vmatmul.mubr.bf16.gmra.mrb[0].mxu0 %v4236
          %v5973 = vpop.f32.mrb[0].mxu0
          %v5974 = vadd.f32 %v5212, %v5973
          %v5975 = vpop.f32.mrb[0].mxu0
          %v5976 = vadd.f32 %v5216, %v5975
          %v5977 = vpop.f32.mrb[0].mxu0
          %v5978 = vpop.f32.mrb[0].mxu0
          %5979 = vdwg.mxu0
          %5980 = vmatprep.subr.bf16.mxu0 %v5668
          %5981 = vmatpush1.bf16.msra.mxu0 %v5667
          %5982 = vmatprep.subr.bf16.mxu0 %v5672
          %5983 = vmatpush1.bf16.msra.mxu0 %v5671
          %5984 = vmatprep.subr.bf16.mxu0 %v5676
          %5985 = vmatpush1.bf16.msra.mxu0 %v5675
          %5986 = vmatprep.subr.bf16.mxu0 %v5680
          %5987 = vmatpush1.bf16.msra.mxu0 %v5679
          %5988 = vmatprep.subr.bf16.mxu0 %v5684
          %5989 = vmatpush1.bf16.msra.mxu0 %v5683
          %5990 = vmatprep.subr.bf16.mxu0 %v5688
          %5991 = vmatpush1.bf16.msra.mxu0 %v5687
          %5992 = vmatprep.subr.bf16.mxu0 %v5692
          %5993 = vmatpush1.bf16.msra.mxu0 %v5691
          %5994 = vmatprep.subr.bf16.mxu0 %v5696
          %5995 = vmatpush1.bf16.msra.mxu0 %v5695
          %5996 = vmatprep.subr.bf16.mxu0 %v5700
          %5997 = vmatpush1.bf16.msra.mxu0 %v5699
          %5998 = vmatprep.subr.bf16.mxu0 %v5704
          %5999 = vmatpush1.bf16.msra.mxu0 %v5703
          %6000 = vmatprep.subr.bf16.mxu0 %v5708
          %6001 = vmatpush1.bf16.msra.mxu0 %v5707
          %6002 = vmatprep.subr.bf16.mxu0 %v5712
          %6003 = vmatpush1.bf16.msra.mxu0 %v5711
          %6004 = vmatprep.subr.bf16.mxu0 %v5716
          %6005 = vmatpush1.bf16.msra.mxu0 %v5715
          %6006 = vmatprep.subr.bf16.mxu0 %v5720
          %6007 = vmatpush1.bf16.msra.mxu0 %v5719
          %6008 = vmatprep.subr.bf16.mxu0 %v5724
          %6009 = vmatpush1.bf16.msra.mxu0 %v5723
          %6010 = vmatprep.subr.bf16.mxu0 %v5728
          %6011 = vmatpush1.bf16.msra.mxu0 %v5727
          %6012 = vmatprep.mubr.bf16.mxu0 %v4239
          %6013 = vmatmul.mubr.bf16.gmra.mrb[0].mxu0 %v4238
          %v6014 = vpop.f32.mrb[0].mxu0
          %v6015 = vadd.f32 %v5974, %v6014
          %v6016 = vpop.f32.mrb[0].mxu0
          %v6017 = vadd.f32 %v5976, %v6016
          %v6018 = vpop.f32.mrb[0].mxu0
          %v6019 = vpop.f32.mrb[0].mxu0
          %6020 = vdwg.mxu0
          %v6021 = vmax.f32 %v5933, 0.0
          %v6022 = vmax.f32 %v5935, 0.0
          %v6023 = vmax.f32 %v6015, 0.0
          %v6024 = vmax.f32 %v6017, 0.0
          %v6025 = vld [vmem:[#allocation2] sm:$0xff]
          %v6026 = vld [vmem:[#allocation2 + $0x8] sm:$0xff]
          %v6027 = vld [vmem:[#allocation2 + $0x10] sm:$0xff]
          %v6028 = vld [vmem:[#allocation2 + $0x18] sm:$0xff]
          %v6029 = vlaneseq
          %v6030 = vshrl.u32 %v6029, 7
          %v6031 = vsub.s32 2, %v6030
          %v6032 = vrot.slane %v209, %v6031
          %v6033 = vlaneseq
          %v6034 = vshrl.u32 %v6033, 7
          %v6035 = vsub.s32 6, %v6034
          %v6036 = vrot.slane %v209, %v6035
          %v6037 = vlaneseq
          %v6038 = vshrl.u32 %v6037, 7
          %v6039 = vsub.s32 2, %v6038
          %v6040 = vrot.slane %v210, %v6039
          %v6041 = vlaneseq
          %v6042 = vshrl.u32 %v6041, 7
          %v6043 = vsub.s32 6, %v6042
          %v6044 = vrot.slane %v210, %v6043
          %v6049 = vlaneseq
          %v6050 = vshrl.u32 %v6049, 7
          %v6051 = vsub.s32 2, %v6050
          %v6052 = vrot.slane %v6032, %v6051
          %v6053 = vlaneseq
          %v6054 = vshrl.u32 %v6053, 7
          %v6055 = vsub.s32 2, %v6054
          %v6056 = vrot.slane %v6036, %v6055
          %v6057 = vlaneseq
          %v6058 = vshrl.u32 %v6057, 7
          %v6059 = vsub.s32 2, %v6058
          %v6060 = vrot.slane %v6040, %v6059
          %v6061 = vlaneseq
          %v6062 = vshrl.u32 %v6061, 7
          %v6063 = vsub.s32 2, %v6062
          %v6064 = vrot.slane %v6044, %v6063
          %v6065 = vadd.f32 %v6025, %v6052
          %v6066 = vadd.f32 %v6026, %v6056
          %v6067 = vadd.f32 %v6027, %v6060
          %v6068 = vadd.f32 %v6028, %v6064
          %v6069 = vpack.c.bf16 %v5048, %v5048
          %v6070 = vpack.c.bf16 %v5049, %v5049
          %v6071 = vpack.c.bf16 %v5050, %v5050
          %v6072 = vpack.c.bf16 %v5051, %v5051
          %s6073 = scalar_lea.vmem %s183, 2048 [#allocation7]
          %v6074 = vld [vmem:[%s6073] sm:$0xff]
          %v6075 = vld [vmem:[%s6073 + $0x8] sm:$0xff]
          %v6076 = vld [vmem:[%s6073 + $0x10] sm:$0xff]
          %v6077 = vld [vmem:[%s6073 + $0x18] sm:$0xff]
          %v6078 = vld [vmem:[%s6073 + $0x20] sm:$0xff]
          %v6079 = vld [vmem:[%s6073 + $0x28] sm:$0xff]
          %v6080 = vld [vmem:[%s6073 + $0x30] sm:$0xff]
          %v6081 = vld [vmem:[%s6073 + $0x38] sm:$0xff]
          %v6082 = vld [vmem:[%s6073 + $0x40] sm:$0xff]
          %v6083 = vld [vmem:[%s6073 + $0x48] sm:$0xff]
          %v6084 = vld [vmem:[%s6073 + $0x50] sm:$0xff]
          %v6085 = vld [vmem:[%s6073 + $0x58] sm:$0xff]
          %v6086 = vld [vmem:[%s6073 + $0x60] sm:$0xff]
          %v6087 = vld [vmem:[%s6073 + $0x68] sm:$0xff]
          %v6088 = vld [vmem:[%s6073 + $0x70] sm:$0xff]
          %v6089 = vld [vmem:[%s6073 + $0x78] sm:$0xff]
          %v6090 = vld [vmem:[%s6073 + $0x80] sm:$0xff]
          %v6091 = vld [vmem:[%s6073 + $0x88] sm:$0xff]
          %v6092 = vld [vmem:[%s6073 + $0x90] sm:$0xff]
          %v6093 = vld [vmem:[%s6073 + $0x98] sm:$0xff]
          %v6094 = vld [vmem:[%s6073 + $0xa0] sm:$0xff]
          %v6095 = vld [vmem:[%s6073 + $0xa8] sm:$0xff]
          %v6096 = vld [vmem:[%s6073 + $0xb0] sm:$0xff]
          %v6097 = vld [vmem:[%s6073 + $0xb8] sm:$0xff]
          %v6098 = vld [vmem:[%s6073 + $0xc0] sm:$0xff]
          %v6099 = vld [vmem:[%s6073 + $0xc8] sm:$0xff]
          %v6100 = vld [vmem:[%s6073 + $0xd0] sm:$0xff]
          %v6101 = vld [vmem:[%s6073 + $0xd8] sm:$0xff]
          %v6102 = vld [vmem:[%s6073 + $0xe0] sm:$0xff]
          %v6103 = vld [vmem:[%s6073 + $0xe8] sm:$0xff]
          %v6104 = vld [vmem:[%s6073 + $0xf0] sm:$0xff]
          %v6105 = vld [vmem:[%s6073 + $0xf8] sm:$0xff]
          %v6106 = vld [vmem:[%s6073 + $0x100] sm:$0xff]
          %v6107 = vld [vmem:[%s6073 + $0x108] sm:$0xff]
          %v6108 = vld [vmem:[%s6073 + $0x110] sm:$0xff]
          %v6109 = vld [vmem:[%s6073 + $0x118] sm:$0xff]
          %v6110 = vld [vmem:[%s6073 + $0x120] sm:$0xff]
          %v6111 = vld [vmem:[%s6073 + $0x128] sm:$0xff]
          %v6112 = vld [vmem:[%s6073 + $0x130] sm:$0xff]
          %v6113 = vld [vmem:[%s6073 + $0x138] sm:$0xff]
          %v6114 = vld [vmem:[%s6073 + $0x140] sm:$0xff]
          %v6115 = vld [vmem:[%s6073 + $0x148] sm:$0xff]
          %v6116 = vld [vmem:[%s6073 + $0x150] sm:$0xff]
          %v6117 = vld [vmem:[%s6073 + $0x158] sm:$0xff]
          %v6118 = vld [vmem:[%s6073 + $0x160] sm:$0xff]
          %v6119 = vld [vmem:[%s6073 + $0x168] sm:$0xff]
          %v6120 = vld [vmem:[%s6073 + $0x170] sm:$0xff]
          %v6121 = vld [vmem:[%s6073 + $0x178] sm:$0xff]
          %v6122 = vld [vmem:[%s6073 + $0x180] sm:$0xff]
          %v6123 = vld [vmem:[%s6073 + $0x188] sm:$0xff]
          %v6124 = vld [vmem:[%s6073 + $0x190] sm:$0xff]
          %v6125 = vld [vmem:[%s6073 + $0x198] sm:$0xff]
          %v6126 = vld [vmem:[%s6073 + $0x1a0] sm:$0xff]
          %v6127 = vld [vmem:[%s6073 + $0x1a8] sm:$0xff]
          %v6128 = vld [vmem:[%s6073 + $0x1b0] sm:$0xff]
          %v6129 = vld [vmem:[%s6073 + $0x1b8] sm:$0xff]
          %v6130 = vld [vmem:[%s6073 + $0x1c0] sm:$0xff]
          %v6131 = vld [vmem:[%s6073 + $0x1c8] sm:$0xff]
          %v6132 = vld [vmem:[%s6073 + $0x1d0] sm:$0xff]
          %v6133 = vld [vmem:[%s6073 + $0x1d8] sm:$0xff]
          %v6134 = vld [vmem:[%s6073 + $0x1e0] sm:$0xff]
          %v6135 = vld [vmem:[%s6073 + $0x1e8] sm:$0xff]
          %v6136 = vld [vmem:[%s6073 + $0x1f0] sm:$0xff]
          %v6137 = vld [vmem:[%s6073 + $0x1f8] sm:$0xff]
          %v6138 = vld [vmem:[%s6073 + $0x200] sm:$0xff]
          %v6139 = vld [vmem:[%s6073 + $0x208] sm:$0xff]
          %v6140 = vld [vmem:[%s6073 + $0x210] sm:$0xff]
          %v6141 = vld [vmem:[%s6073 + $0x218] sm:$0xff]
          %v6142 = vld [vmem:[%s6073 + $0x220] sm:$0xff]
          %v6143 = vld [vmem:[%s6073 + $0x228] sm:$0xff]
          %v6144 = vld [vmem:[%s6073 + $0x230] sm:$0xff]
          %v6145 = vld [vmem:[%s6073 + $0x238] sm:$0xff]
          %v6146 = vld [vmem:[%s6073 + $0x240] sm:$0xff]
          %v6147 = vld [vmem:[%s6073 + $0x248] sm:$0xff]
          %v6148 = vld [vmem:[%s6073 + $0x250] sm:$0xff]
          %v6149 = vld [vmem:[%s6073 + $0x258] sm:$0xff]
          %v6150 = vld [vmem:[%s6073 + $0x260] sm:$0xff]
          %v6151 = vld [vmem:[%s6073 + $0x268] sm:$0xff]
          %v6152 = vld [vmem:[%s6073 + $0x270] sm:$0xff]
          %v6153 = vld [vmem:[%s6073 + $0x278] sm:$0xff]
          %v6154 = vld [vmem:[%s6073 + $0x280] sm:$0xff]
          %v6155 = vld [vmem:[%s6073 + $0x288] sm:$0xff]
          %v6156 = vld [vmem:[%s6073 + $0x290] sm:$0xff]
          %v6157 = vld [vmem:[%s6073 + $0x298] sm:$0xff]
          %v6158 = vld [vmem:[%s6073 + $0x2a0] sm:$0xff]
          %v6159 = vld [vmem:[%s6073 + $0x2a8] sm:$0xff]
          %v6160 = vld [vmem:[%s6073 + $0x2b0] sm:$0xff]
          %v6161 = vld [vmem:[%s6073 + $0x2b8] sm:$0xff]
          %v6162 = vld [vmem:[%s6073 + $0x2c0] sm:$0xff]
          %v6163 = vld [vmem:[%s6073 + $0x2c8] sm:$0xff]
          %v6164 = vld [vmem:[%s6073 + $0x2d0] sm:$0xff]
          %v6165 = vld [vmem:[%s6073 + $0x2d8] sm:$0xff]
          %v6166 = vld [vmem:[%s6073 + $0x2e0] sm:$0xff]
          %v6167 = vld [vmem:[%s6073 + $0x2e8] sm:$0xff]
          %v6168 = vld [vmem:[%s6073 + $0x2f0] sm:$0xff]
          %v6169 = vld [vmem:[%s6073 + $0x2f8] sm:$0xff]
          %v6170 = vld [vmem:[%s6073 + $0x300] sm:$0xff]
          %v6171 = vld [vmem:[%s6073 + $0x308] sm:$0xff]
          %v6172 = vld [vmem:[%s6073 + $0x310] sm:$0xff]
          %v6173 = vld [vmem:[%s6073 + $0x318] sm:$0xff]
          %v6174 = vld [vmem:[%s6073 + $0x320] sm:$0xff]
          %v6175 = vld [vmem:[%s6073 + $0x328] sm:$0xff]
          %v6176 = vld [vmem:[%s6073 + $0x330] sm:$0xff]
          %v6177 = vld [vmem:[%s6073 + $0x338] sm:$0xff]
          %v6178 = vld [vmem:[%s6073 + $0x340] sm:$0xff]
          %v6179 = vld [vmem:[%s6073 + $0x348] sm:$0xff]
          %v6180 = vld [vmem:[%s6073 + $0x350] sm:$0xff]
          %v6181 = vld [vmem:[%s6073 + $0x358] sm:$0xff]
          %v6182 = vld [vmem:[%s6073 + $0x360] sm:$0xff]
          %v6183 = vld [vmem:[%s6073 + $0x368] sm:$0xff]
          %v6184 = vld [vmem:[%s6073 + $0x370] sm:$0xff]
          %v6185 = vld [vmem:[%s6073 + $0x378] sm:$0xff]
          %v6186 = vld [vmem:[%s6073 + $0x380] sm:$0xff]
          %v6187 = vld [vmem:[%s6073 + $0x388] sm:$0xff]
          %v6188 = vld [vmem:[%s6073 + $0x390] sm:$0xff]
          %v6189 = vld [vmem:[%s6073 + $0x398] sm:$0xff]
          %v6190 = vld [vmem:[%s6073 + $0x3a0] sm:$0xff]
          %v6191 = vld [vmem:[%s6073 + $0x3a8] sm:$0xff]
          %v6192 = vld [vmem:[%s6073 + $0x3b0] sm:$0xff]
          %v6193 = vld [vmem:[%s6073 + $0x3b8] sm:$0xff]
          %v6194 = vld [vmem:[%s6073 + $0x3c0] sm:$0xff]
          %v6195 = vld [vmem:[%s6073 + $0x3c8] sm:$0xff]
          %v6196 = vld [vmem:[%s6073 + $0x3d0] sm:$0xff]
          %v6197 = vld [vmem:[%s6073 + $0x3d8] sm:$0xff]
          %v6198 = vld [vmem:[%s6073 + $0x3e0] sm:$0xff]
          %v6199 = vld [vmem:[%s6073 + $0x3e8] sm:$0xff]
          %v6200 = vld [vmem:[%s6073 + $0x3f0] sm:$0xff]
          %v6201 = vld [vmem:[%s6073 + $0x3f8] sm:$0xff]
          %v6330 = vunpack.c.l.b16 %v6074
          %v6331 = vunpack.c.h.b16 %v6074
          %v6332 = vunpack.c.l.b16 %v6075
          %v6333 = vunpack.c.h.b16 %v6075
          %v6334 = vunpack.c.l.b16 %v6076
          %v6335 = vunpack.c.h.b16 %v6076
          %v6336 = vunpack.c.l.b16 %v6077
          %v6337 = vunpack.c.h.b16 %v6077
          %v6338 = vunpack.c.l.b16 %v6078
          %v6339 = vunpack.c.h.b16 %v6078
          %v6340 = vunpack.c.l.b16 %v6079
          %v6341 = vunpack.c.h.b16 %v6079
          %v6342 = vunpack.c.l.b16 %v6080
          %v6343 = vunpack.c.h.b16 %v6080
          %v6344 = vunpack.c.l.b16 %v6081
          %v6345 = vunpack.c.h.b16 %v6081
          %v6346 = vunpack.c.l.b16 %v6082
          %v6347 = vunpack.c.h.b16 %v6082
          %v6348 = vunpack.c.l.b16 %v6083
          %v6349 = vunpack.c.h.b16 %v6083
          %v6350 = vunpack.c.l.b16 %v6084
          %v6351 = vunpack.c.h.b16 %v6084
          %v6352 = vunpack.c.l.b16 %v6085
          %v6353 = vunpack.c.h.b16 %v6085
          %v6354 = vunpack.c.l.b16 %v6086
          %v6355 = vunpack.c.h.b16 %v6086
          %v6356 = vunpack.c.l.b16 %v6087
          %v6357 = vunpack.c.h.b16 %v6087
          %v6358 = vunpack.c.l.b16 %v6088
          %v6359 = vunpack.c.h.b16 %v6088
          %v6360 = vunpack.c.l.b16 %v6089
          %v6361 = vunpack.c.h.b16 %v6089
          %v6362 = vunpack.c.l.b16 %v6090
          %v6363 = vunpack.c.h.b16 %v6090
          %v6364 = vunpack.c.l.b16 %v6091
          %v6365 = vunpack.c.h.b16 %v6091
          %v6366 = vunpack.c.l.b16 %v6092
          %v6367 = vunpack.c.h.b16 %v6092
          %v6368 = vunpack.c.l.b16 %v6093
          %v6369 = vunpack.c.h.b16 %v6093
          %v6370 = vunpack.c.l.b16 %v6094
          %v6371 = vunpack.c.h.b16 %v6094
          %v6372 = vunpack.c.l.b16 %v6095
          %v6373 = vunpack.c.h.b16 %v6095
          %v6374 = vunpack.c.l.b16 %v6096
          %v6375 = vunpack.c.h.b16 %v6096
          %v6376 = vunpack.c.l.b16 %v6097
          %v6377 = vunpack.c.h.b16 %v6097
          %v6378 = vunpack.c.l.b16 %v6098
          %v6379 = vunpack.c.h.b16 %v6098
          %v6380 = vunpack.c.l.b16 %v6099
          %v6381 = vunpack.c.h.b16 %v6099
          %v6382 = vunpack.c.l.b16 %v6100
          %v6383 = vunpack.c.h.b16 %v6100
          %v6384 = vunpack.c.l.b16 %v6101
          %v6385 = vunpack.c.h.b16 %v6101
          %v6386 = vunpack.c.l.b16 %v6102
          %v6387 = vunpack.c.h.b16 %v6102
          %v6388 = vunpack.c.l.b16 %v6103
          %v6389 = vunpack.c.h.b16 %v6103
          %v6390 = vunpack.c.l.b16 %v6104
          %v6391 = vunpack.c.h.b16 %v6104
          %v6392 = vunpack.c.l.b16 %v6105
          %v6393 = vunpack.c.h.b16 %v6105
          %v6394 = vunpack.c.l.b16 %v6106
          %v6395 = vunpack.c.h.b16 %v6106
          %v6396 = vunpack.c.l.b16 %v6107
          %v6397 = vunpack.c.h.b16 %v6107
          %v6398 = vunpack.c.l.b16 %v6108
          %v6399 = vunpack.c.h.b16 %v6108
          %v6400 = vunpack.c.l.b16 %v6109
          %v6401 = vunpack.c.h.b16 %v6109
          %v6402 = vunpack.c.l.b16 %v6110
          %v6403 = vunpack.c.h.b16 %v6110
          %v6404 = vunpack.c.l.b16 %v6111
          %v6405 = vunpack.c.h.b16 %v6111
          %v6406 = vunpack.c.l.b16 %v6112
          %v6407 = vunpack.c.h.b16 %v6112
          %v6408 = vunpack.c.l.b16 %v6113
          %v6409 = vunpack.c.h.b16 %v6113
          %v6410 = vunpack.c.l.b16 %v6114
          %v6411 = vunpack.c.h.b16 %v6114
          %v6412 = vunpack.c.l.b16 %v6115
          %v6413 = vunpack.c.h.b16 %v6115
          %v6414 = vunpack.c.l.b16 %v6116
          %v6415 = vunpack.c.h.b16 %v6116
          %v6416 = vunpack.c.l.b16 %v6117
          %v6417 = vunpack.c.h.b16 %v6117
          %v6418 = vunpack.c.l.b16 %v6118
          %v6419 = vunpack.c.h.b16 %v6118
          %v6420 = vunpack.c.l.b16 %v6119
          %v6421 = vunpack.c.h.b16 %v6119
          %v6422 = vunpack.c.l.b16 %v6120
          %v6423 = vunpack.c.h.b16 %v6120
          %v6424 = vunpack.c.l.b16 %v6121
          %v6425 = vunpack.c.h.b16 %v6121
          %v6426 = vunpack.c.l.b16 %v6122
          %v6427 = vunpack.c.h.b16 %v6122
          %v6428 = vunpack.c.l.b16 %v6123
          %v6429 = vunpack.c.h.b16 %v6123
          %v6430 = vunpack.c.l.b16 %v6124
          %v6431 = vunpack.c.h.b16 %v6124
          %v6432 = vunpack.c.l.b16 %v6125
          %v6433 = vunpack.c.h.b16 %v6125
          %v6434 = vunpack.c.l.b16 %v6126
          %v6435 = vunpack.c.h.b16 %v6126
          %v6436 = vunpack.c.l.b16 %v6127
          %v6437 = vunpack.c.h.b16 %v6127
          %v6438 = vunpack.c.l.b16 %v6128
          %v6439 = vunpack.c.h.b16 %v6128
          %v6440 = vunpack.c.l.b16 %v6129
          %v6441 = vunpack.c.h.b16 %v6129
          %v6442 = vunpack.c.l.b16 %v6130
          %v6443 = vunpack.c.h.b16 %v6130
          %v6444 = vunpack.c.l.b16 %v6131
          %v6445 = vunpack.c.h.b16 %v6131
          %v6446 = vunpack.c.l.b16 %v6132
          %v6447 = vunpack.c.h.b16 %v6132
          %v6448 = vunpack.c.l.b16 %v6133
          %v6449 = vunpack.c.h.b16 %v6133
          %v6450 = vunpack.c.l.b16 %v6134
          %v6451 = vunpack.c.h.b16 %v6134
          %v6452 = vunpack.c.l.b16 %v6135
          %v6453 = vunpack.c.h.b16 %v6135
          %v6454 = vunpack.c.l.b16 %v6136
          %v6455 = vunpack.c.h.b16 %v6136
          %v6456 = vunpack.c.l.b16 %v6137
          %v6457 = vunpack.c.h.b16 %v6137
          %v6458 = vunpack.c.l.b16 %v6138
          %v6459 = vunpack.c.h.b16 %v6138
          %v6460 = vunpack.c.l.b16 %v6139
          %v6461 = vunpack.c.h.b16 %v6139
          %v6462 = vunpack.c.l.b16 %v6140
          %v6463 = vunpack.c.h.b16 %v6140
          %v6464 = vunpack.c.l.b16 %v6141
          %v6465 = vunpack.c.h.b16 %v6141
          %v6466 = vunpack.c.l.b16 %v6142
          %v6467 = vunpack.c.h.b16 %v6142
          %v6468 = vunpack.c.l.b16 %v6143
          %v6469 = vunpack.c.h.b16 %v6143
          %v6470 = vunpack.c.l.b16 %v6144
          %v6471 = vunpack.c.h.b16 %v6144
          %v6472 = vunpack.c.l.b16 %v6145
          %v6473 = vunpack.c.h.b16 %v6145
          %v6474 = vunpack.c.l.b16 %v6146
          %v6475 = vunpack.c.h.b16 %v6146
          %v6476 = vunpack.c.l.b16 %v6147
          %v6477 = vunpack.c.h.b16 %v6147
          %v6478 = vunpack.c.l.b16 %v6148
          %v6479 = vunpack.c.h.b16 %v6148
          %v6480 = vunpack.c.l.b16 %v6149
          %v6481 = vunpack.c.h.b16 %v6149
          %v6482 = vunpack.c.l.b16 %v6150
          %v6483 = vunpack.c.h.b16 %v6150
          %v6484 = vunpack.c.l.b16 %v6151
          %v6485 = vunpack.c.h.b16 %v6151
          %v6486 = vunpack.c.l.b16 %v6152
          %v6487 = vunpack.c.h.b16 %v6152
          %v6488 = vunpack.c.l.b16 %v6153
          %v6489 = vunpack.c.h.b16 %v6153
          %v6490 = vunpack.c.l.b16 %v6154
          %v6491 = vunpack.c.h.b16 %v6154
          %v6492 = vunpack.c.l.b16 %v6155
          %v6493 = vunpack.c.h.b16 %v6155
          %v6494 = vunpack.c.l.b16 %v6156
          %v6495 = vunpack.c.h.b16 %v6156
          %v6496 = vunpack.c.l.b16 %v6157
          %v6497 = vunpack.c.h.b16 %v6157
          %v6498 = vunpack.c.l.b16 %v6158
          %v6499 = vunpack.c.h.b16 %v6158
          %v6500 = vunpack.c.l.b16 %v6159
          %v6501 = vunpack.c.h.b16 %v6159
          %v6502 = vunpack.c.l.b16 %v6160
          %v6503 = vunpack.c.h.b16 %v6160
          %v6504 = vunpack.c.l.b16 %v6161
          %v6505 = vunpack.c.h.b16 %v6161
          %v6506 = vunpack.c.l.b16 %v6162
          %v6507 = vunpack.c.h.b16 %v6162
          %v6508 = vunpack.c.l.b16 %v6163
          %v6509 = vunpack.c.h.b16 %v6163
          %v6510 = vunpack.c.l.b16 %v6164
          %v6511 = vunpack.c.h.b16 %v6164
          %v6512 = vunpack.c.l.b16 %v6165
          %v6513 = vunpack.c.h.b16 %v6165
          %v6514 = vunpack.c.l.b16 %v6166
          %v6515 = vunpack.c.h.b16 %v6166
          %v6516 = vunpack.c.l.b16 %v6167
          %v6517 = vunpack.c.h.b16 %v6167
          %v6518 = vunpack.c.l.b16 %v6168
          %v6519 = vunpack.c.h.b16 %v6168
          %v6520 = vunpack.c.l.b16 %v6169
          %v6521 = vunpack.c.h.b16 %v6169
          %v6522 = vunpack.c.l.b16 %v6170
          %v6523 = vunpack.c.h.b16 %v6170
          %v6524 = vunpack.c.l.b16 %v6171
          %v6525 = vunpack.c.h.b16 %v6171
          %v6526 = vunpack.c.l.b16 %v6172
          %v6527 = vunpack.c.h.b16 %v6172
          %v6528 = vunpack.c.l.b16 %v6173
          %v6529 = vunpack.c.h.b16 %v6173
          %v6530 = vunpack.c.l.b16 %v6174
          %v6531 = vunpack.c.h.b16 %v6174
          %v6532 = vunpack.c.l.b16 %v6175
          %v6533 = vunpack.c.h.b16 %v6175
          %v6534 = vunpack.c.l.b16 %v6176
          %v6535 = vunpack.c.h.b16 %v6176
          %v6536 = vunpack.c.l.b16 %v6177
          %v6537 = vunpack.c.h.b16 %v6177
          %v6538 = vunpack.c.l.b16 %v6178
          %v6539 = vunpack.c.h.b16 %v6178
          %v6540 = vunpack.c.l.b16 %v6179
          %v6541 = vunpack.c.h.b16 %v6179
          %v6542 = vunpack.c.l.b16 %v6180
          %v6543 = vunpack.c.h.b16 %v6180
          %v6544 = vunpack.c.l.b16 %v6181
          %v6545 = vunpack.c.h.b16 %v6181
          %v6546 = vunpack.c.l.b16 %v6182
          %v6547 = vunpack.c.h.b16 %v6182
          %v6548 = vunpack.c.l.b16 %v6183
          %v6549 = vunpack.c.h.b16 %v6183
          %v6550 = vunpack.c.l.b16 %v6184
          %v6551 = vunpack.c.h.b16 %v6184
          %v6552 = vunpack.c.l.b16 %v6185
          %v6553 = vunpack.c.h.b16 %v6185
          %v6554 = vunpack.c.l.b16 %v6186
          %v6555 = vunpack.c.h.b16 %v6186
          %v6556 = vunpack.c.l.b16 %v6187
          %v6557 = vunpack.c.h.b16 %v6187
          %v6558 = vunpack.c.l.b16 %v6188
          %v6559 = vunpack.c.h.b16 %v6188
          %v6560 = vunpack.c.l.b16 %v6189
          %v6561 = vunpack.c.h.b16 %v6189
          %v6562 = vunpack.c.l.b16 %v6190
          %v6563 = vunpack.c.h.b16 %v6190
          %v6564 = vunpack.c.l.b16 %v6191
          %v6565 = vunpack.c.h.b16 %v6191
          %v6566 = vunpack.c.l.b16 %v6192
          %v6567 = vunpack.c.h.b16 %v6192
          %v6568 = vunpack.c.l.b16 %v6193
          %v6569 = vunpack.c.h.b16 %v6193
          %v6570 = vunpack.c.l.b16 %v6194
          %v6571 = vunpack.c.h.b16 %v6194
          %v6572 = vunpack.c.l.b16 %v6195
          %v6573 = vunpack.c.h.b16 %v6195
          %v6574 = vunpack.c.l.b16 %v6196
          %v6575 = vunpack.c.h.b16 %v6196
          %v6576 = vunpack.c.l.b16 %v6197
          %v6577 = vunpack.c.h.b16 %v6197
          %v6578 = vunpack.c.l.b16 %v6198
          %v6579 = vunpack.c.h.b16 %v6198
          %v6580 = vunpack.c.l.b16 %v6199
          %v6581 = vunpack.c.h.b16 %v6199
          %v6582 = vunpack.c.l.b16 %v6200
          %v6583 = vunpack.c.h.b16 %v6200
          %v6584 = vunpack.c.l.b16 %v6201
          %v6585 = vunpack.c.h.b16 %v6201
          %v6586 = vpack.c.b16 %v6334, %v6330
          %v6587 = vpack.c.b16 %v6335, %v6331
          %v6588 = vpack.c.b16 %v6336, %v6332
          %v6589 = vpack.c.b16 %v6337, %v6333
          %v6590 = vpack.c.b16 %v6342, %v6338
          %v6591 = vpack.c.b16 %v6343, %v6339
          %v6592 = vpack.c.b16 %v6344, %v6340
          %v6593 = vpack.c.b16 %v6345, %v6341
          %v6594 = vpack.c.b16 %v6350, %v6346
          %v6595 = vpack.c.b16 %v6351, %v6347
          %v6596 = vpack.c.b16 %v6352, %v6348
          %v6597 = vpack.c.b16 %v6353, %v6349
          %v6598 = vpack.c.b16 %v6358, %v6354
          %v6599 = vpack.c.b16 %v6359, %v6355
          %v6600 = vpack.c.b16 %v6360, %v6356
          %v6601 = vpack.c.b16 %v6361, %v6357
          %v6602 = vpack.c.b16 %v6366, %v6362
          %v6603 = vpack.c.b16 %v6367, %v6363
          %v6604 = vpack.c.b16 %v6368, %v6364
          %v6605 = vpack.c.b16 %v6369, %v6365
          %v6606 = vpack.c.b16 %v6374, %v6370
          %v6607 = vpack.c.b16 %v6375, %v6371
          %v6608 = vpack.c.b16 %v6376, %v6372
          %v6609 = vpack.c.b16 %v6377, %v6373
          %v6610 = vpack.c.b16 %v6382, %v6378
          %v6611 = vpack.c.b16 %v6383, %v6379
          %v6612 = vpack.c.b16 %v6384, %v6380
          %v6613 = vpack.c.b16 %v6385, %v6381
          %v6614 = vpack.c.b16 %v6390, %v6386
          %v6615 = vpack.c.b16 %v6391, %v6387
          %v6616 = vpack.c.b16 %v6392, %v6388
          %v6617 = vpack.c.b16 %v6393, %v6389
          %v6618 = vpack.c.b16 %v6398, %v6394
          %v6619 = vpack.c.b16 %v6399, %v6395
          %v6620 = vpack.c.b16 %v6400, %v6396
          %v6621 = vpack.c.b16 %v6401, %v6397
          %v6622 = vpack.c.b16 %v6406, %v6402
          %v6623 = vpack.c.b16 %v6407, %v6403
          %v6624 = vpack.c.b16 %v6408, %v6404
          %v6625 = vpack.c.b16 %v6409, %v6405
          %v6626 = vpack.c.b16 %v6414, %v6410
          %v6627 = vpack.c.b16 %v6415, %v6411
          %v6628 = vpack.c.b16 %v6416, %v6412
          %v6629 = vpack.c.b16 %v6417, %v6413
          %v6630 = vpack.c.b16 %v6422, %v6418
          %v6631 = vpack.c.b16 %v6423, %v6419
          %v6632 = vpack.c.b16 %v6424, %v6420
          %v6633 = vpack.c.b16 %v6425, %v6421
          %v6634 = vpack.c.b16 %v6430, %v6426
          %v6635 = vpack.c.b16 %v6431, %v6427
          %v6636 = vpack.c.b16 %v6432, %v6428
          %v6637 = vpack.c.b16 %v6433, %v6429
          %v6638 = vpack.c.b16 %v6438, %v6434
          %v6639 = vpack.c.b16 %v6439, %v6435
          %v6640 = vpack.c.b16 %v6440, %v6436
          %v6641 = vpack.c.b16 %v6441, %v6437
          %v6642 = vpack.c.b16 %v6446, %v6442
          %v6643 = vpack.c.b16 %v6447, %v6443
          %v6644 = vpack.c.b16 %v6448, %v6444
          %v6645 = vpack.c.b16 %v6449, %v6445
          %v6646 = vpack.c.b16 %v6454, %v6450
          %v6647 = vpack.c.b16 %v6455, %v6451
          %v6648 = vpack.c.b16 %v6456, %v6452
          %v6649 = vpack.c.b16 %v6457, %v6453
          %v6650 = vpack.c.b16 %v6462, %v6458
          %v6651 = vpack.c.b16 %v6463, %v6459
          %v6652 = vpack.c.b16 %v6464, %v6460
          %v6653 = vpack.c.b16 %v6465, %v6461
          %v6654 = vpack.c.b16 %v6470, %v6466
          %v6655 = vpack.c.b16 %v6471, %v6467
          %v6656 = vpack.c.b16 %v6472, %v6468
          %v6657 = vpack.c.b16 %v6473, %v6469
          %v6658 = vpack.c.b16 %v6478, %v6474
          %v6659 = vpack.c.b16 %v6479, %v6475
          %v6660 = vpack.c.b16 %v6480, %v6476
          %v6661 = vpack.c.b16 %v6481, %v6477
          %v6662 = vpack.c.b16 %v6486, %v6482
          %v6663 = vpack.c.b16 %v6487, %v6483
          %v6664 = vpack.c.b16 %v6488, %v6484
          %v6665 = vpack.c.b16 %v6489, %v6485
          %v6666 = vpack.c.b16 %v6494, %v6490
          %v6667 = vpack.c.b16 %v6495, %v6491
          %v6668 = vpack.c.b16 %v6496, %v6492
          %v6669 = vpack.c.b16 %v6497, %v6493
          %v6670 = vpack.c.b16 %v6502, %v6498
          %v6671 = vpack.c.b16 %v6503, %v6499
          %v6672 = vpack.c.b16 %v6504, %v6500
          %v6673 = vpack.c.b16 %v6505, %v6501
          %v6674 = vpack.c.b16 %v6510, %v6506
          %v6675 = vpack.c.b16 %v6511, %v6507
          %v6676 = vpack.c.b16 %v6512, %v6508
          %v6677 = vpack.c.b16 %v6513, %v6509
          %v6678 = vpack.c.b16 %v6518, %v6514
          %v6679 = vpack.c.b16 %v6519, %v6515
          %v6680 = vpack.c.b16 %v6520, %v6516
          %v6681 = vpack.c.b16 %v6521, %v6517
          %v6682 = vpack.c.b16 %v6526, %v6522
          %v6683 = vpack.c.b16 %v6527, %v6523
          %v6684 = vpack.c.b16 %v6528, %v6524
          %v6685 = vpack.c.b16 %v6529, %v6525
          %v6686 = vpack.c.b16 %v6534, %v6530
          %v6687 = vpack.c.b16 %v6535, %v6531
          %v6688 = vpack.c.b16 %v6536, %v6532
          %v6689 = vpack.c.b16 %v6537, %v6533
          %v6690 = vpack.c.b16 %v6542, %v6538
          %v6691 = vpack.c.b16 %v6543, %v6539
          %v6692 = vpack.c.b16 %v6544, %v6540
          %v6693 = vpack.c.b16 %v6545, %v6541
          %v6694 = vpack.c.b16 %v6550, %v6546
          %v6695 = vpack.c.b16 %v6551, %v6547
          %v6696 = vpack.c.b16 %v6552, %v6548
          %v6697 = vpack.c.b16 %v6553, %v6549
          %v6698 = vpack.c.b16 %v6558, %v6554
          %v6699 = vpack.c.b16 %v6559, %v6555
          %v6700 = vpack.c.b16 %v6560, %v6556
          %v6701 = vpack.c.b16 %v6561, %v6557
          %v6702 = vpack.c.b16 %v6566, %v6562
          %v6703 = vpack.c.b16 %v6567, %v6563
          %v6704 = vpack.c.b16 %v6568, %v6564
          %v6705 = vpack.c.b16 %v6569, %v6565
          %v6706 = vpack.c.b16 %v6574, %v6570
          %v6707 = vpack.c.b16 %v6575, %v6571
          %v6708 = vpack.c.b16 %v6576, %v6572
          %v6709 = vpack.c.b16 %v6577, %v6573
          %v6710 = vpack.c.b16 %v6582, %v6578
          %v6711 = vpack.c.b16 %v6583, %v6579
          %v6712 = vpack.c.b16 %v6584, %v6580
          %v6713 = vpack.c.b16 %v6585, %v6581
          %6842 = vmatprep.subr.bf16.mxu0 %v6587
          %6843 = vmatpush1.bf16.msra.mxu0 %v6586
          %6844 = vmatprep.subr.bf16.mxu0 %v6591
          %6845 = vmatpush1.bf16.msra.mxu0 %v6590
          %6846 = vmatprep.subr.bf16.mxu0 %v6595
          %6847 = vmatpush1.bf16.msra.mxu0 %v6594
          %6848 = vmatprep.subr.bf16.mxu0 %v6599
          %6849 = vmatpush1.bf16.msra.mxu0 %v6598
          %6850 = vmatprep.subr.bf16.mxu0 %v6603
          %6851 = vmatpush1.bf16.msra.mxu0 %v6602
          %6852 = vmatprep.subr.bf16.mxu0 %v6607
          %6853 = vmatpush1.bf16.msra.mxu0 %v6606
          %6854 = vmatprep.subr.bf16.mxu0 %v6611
          %6855 = vmatpush1.bf16.msra.mxu0 %v6610
          %6856 = vmatprep.subr.bf16.mxu0 %v6615
          %6857 = vmatpush1.bf16.msra.mxu0 %v6614
          %6858 = vmatprep.subr.bf16.mxu0 %v6619
          %6859 = vmatpush1.bf16.msra.mxu0 %v6618
          %6860 = vmatprep.subr.bf16.mxu0 %v6623
          %6861 = vmatpush1.bf16.msra.mxu0 %v6622
          %6862 = vmatprep.subr.bf16.mxu0 %v6627
          %6863 = vmatpush1.bf16.msra.mxu0 %v6626
          %6864 = vmatprep.subr.bf16.mxu0 %v6631
          %6865 = vmatpush1.bf16.msra.mxu0 %v6630
          %6866 = vmatprep.subr.bf16.mxu0 %v6635
          %6867 = vmatpush1.bf16.msra.mxu0 %v6634
          %6868 = vmatprep.subr.bf16.mxu0 %v6639
          %6869 = vmatpush1.bf16.msra.mxu0 %v6638
          %6870 = vmatprep.subr.bf16.mxu0 %v6643
          %6871 = vmatpush1.bf16.msra.mxu0 %v6642
          %6872 = vmatprep.subr.bf16.mxu0 %v6647
          %6873 = vmatpush1.bf16.msra.mxu0 %v6646
          %6874 = vmatprep.mubr.bf16.mxu0 %v6070
          %6875 = vmatmul.mubr.bf16.gmra.mrb[0].mxu0 %v6069
          %v6876 = vpop.f32.mrb[0].mxu0
          %v6877 = vadd.f32 0.0, %v6876
          %v6878 = vpop.f32.mrb[0].mxu0
          %v6879 = vadd.f32 0.0, %v6878
          %v6880 = vpop.f32.mrb[0].mxu0
          %v6881 = vpop.f32.mrb[0].mxu0
          %6882 = vdwg.mxu0
          %6883 = vmatprep.subr.bf16.mxu0 %v6651
          %6884 = vmatpush1.bf16.msra.mxu0 %v6650
          %6885 = vmatprep.subr.bf16.mxu0 %v6655
          %6886 = vmatpush1.bf16.msra.mxu0 %v6654
          %6887 = vmatprep.subr.bf16.mxu0 %v6659
          %6888 = vmatpush1.bf16.msra.mxu0 %v6658
          %6889 = vmatprep.subr.bf16.mxu0 %v6663
          %6890 = vmatpush1.bf16.msra.mxu0 %v6662
          %6891 = vmatprep.subr.bf16.mxu0 %v6667
          %6892 = vmatpush1.bf16.msra.mxu0 %v6666
          %6893 = vmatprep.subr.bf16.mxu0 %v6671
          %6894 = vmatpush1.bf16.msra.mxu0 %v6670
          %6895 = vmatprep.subr.bf16.mxu0 %v6675
          %6896 = vmatpush1.bf16.msra.mxu0 %v6674
          %6897 = vmatprep.subr.bf16.mxu0 %v6679
          %6898 = vmatpush1.bf16.msra.mxu0 %v6678
          %6899 = vmatprep.subr.bf16.mxu0 %v6683
          %6900 = vmatpush1.bf16.msra.mxu0 %v6682
          %6901 = vmatprep.subr.bf16.mxu0 %v6687
          %6902 = vmatpush1.bf16.msra.mxu0 %v6686
          %6903 = vmatprep.subr.bf16.mxu0 %v6691
          %6904 = vmatpush1.bf16.msra.mxu0 %v6690
          %6905 = vmatprep.subr.bf16.mxu0 %v6695
          %6906 = vmatpush1.bf16.msra.mxu0 %v6694
          %6907 = vmatprep.subr.bf16.mxu0 %v6699
          %6908 = vmatpush1.bf16.msra.mxu0 %v6698
          %6909 = vmatprep.subr.bf16.mxu0 %v6703
          %6910 = vmatpush1.bf16.msra.mxu0 %v6702
          %6911 = vmatprep.subr.bf16.mxu0 %v6707
          %6912 = vmatpush1.bf16.msra.mxu0 %v6706
          %6913 = vmatprep.subr.bf16.mxu0 %v6711
          %6914 = vmatpush1.bf16.msra.mxu0 %v6710
          %6915 = vmatprep.mubr.bf16.mxu0 %v6072
          %6916 = vmatmul.mubr.bf16.gmra.mrb[0].mxu0 %v6071
          %v6917 = vpop.f32.mrb[0].mxu0
          %v6918 = vadd.f32 %v6877, %v6917
          %v6919 = vpop.f32.mrb[0].mxu0
          %v6920 = vadd.f32 %v6879, %v6919
          %v6921 = vpop.f32.mrb[0].mxu0
          %v6922 = vpop.f32.mrb[0].mxu0
          %6923 = vdwg.mxu0
          %6924 = vmatprep.subr.bf16.mxu0 %v6589
          %6925 = vmatpush1.bf16.msra.mxu0 %v6588
          %6926 = vmatprep.subr.bf16.mxu0 %v6593
          %6927 = vmatpush1.bf16.msra.mxu0 %v6592
          %6928 = vmatprep.subr.bf16.mxu0 %v6597
          %6929 = vmatpush1.bf16.msra.mxu0 %v6596
          %6930 = vmatprep.subr.bf16.mxu0 %v6601
          %6931 = vmatpush1.bf16.msra.mxu0 %v6600
          %6932 = vmatprep.subr.bf16.mxu0 %v6605
          %6933 = vmatpush1.bf16.msra.mxu0 %v6604
          %6934 = vmatprep.subr.bf16.mxu0 %v6609
          %6935 = vmatpush1.bf16.msra.mxu0 %v6608
          %6936 = vmatprep.subr.bf16.mxu0 %v6613
          %6937 = vmatpush1.bf16.msra.mxu0 %v6612
          %6938 = vmatprep.subr.bf16.mxu0 %v6617
          %6939 = vmatpush1.bf16.msra.mxu0 %v6616
          %6940 = vmatprep.subr.bf16.mxu0 %v6621
          %6941 = vmatpush1.bf16.msra.mxu0 %v6620
          %6942 = vmatprep.subr.bf16.mxu0 %v6625
          %6943 = vmatpush1.bf16.msra.mxu0 %v6624
          %6944 = vmatprep.subr.bf16.mxu0 %v6629
          %6945 = vmatpush1.bf16.msra.mxu0 %v6628
          %6946 = vmatprep.subr.bf16.mxu0 %v6633
          %6947 = vmatpush1.bf16.msra.mxu0 %v6632
          %6948 = vmatprep.subr.bf16.mxu0 %v6637
          %6949 = vmatpush1.bf16.msra.mxu0 %v6636
          %6950 = vmatprep.subr.bf16.mxu0 %v6641
          %6951 = vmatpush1.bf16.msra.mxu0 %v6640
          %6952 = vmatprep.subr.bf16.mxu0 %v6645
          %6953 = vmatpush1.bf16.msra.mxu0 %v6644
          %6954 = vmatprep.subr.bf16.mxu0 %v6649
          %6955 = vmatpush1.bf16.msra.mxu0 %v6648
          %6956 = vmatprep.mubr.bf16.mxu0 %v6070
          %6957 = vmatmul.mubr.bf16.gmra.mrb[0].mxu0 %v6069
          %v6958 = vpop.f32.mrb[0].mxu0
          %v6959 = vadd.f32 0.0, %v6958
          %v6960 = vpop.f32.mrb[0].mxu0
          %v6961 = vadd.f32 0.0, %v6960
          %v6962 = vpop.f32.mrb[0].mxu0
          %v6963 = vpop.f32.mrb[0].mxu0
          %6964 = vdwg.mxu0
          %6965 = vmatprep.subr.bf16.mxu0 %v6653
          %6966 = vmatpush1.bf16.msra.mxu0 %v6652
          %6967 = vmatprep.subr.bf16.mxu0 %v6657
          %6968 = vmatpush1.bf16.msra.mxu0 %v6656
          %6969 = vmatprep.subr.bf16.mxu0 %v6661
          %6970 = vmatpush1.bf16.msra.mxu0 %v6660
          %6971 = vmatprep.subr.bf16.mxu0 %v6665
          %6972 = vmatpush1.bf16.msra.mxu0 %v6664
          %6973 = vmatprep.subr.bf16.mxu0 %v6669
          %6974 = vmatpush1.bf16.msra.mxu0 %v6668
          %6975 = vmatprep.subr.bf16.mxu0 %v6673
          %6976 = vmatpush1.bf16.msra.mxu0 %v6672
          %6977 = vmatprep.subr.bf16.mxu0 %v6677
          %6978 = vmatpush1.bf16.msra.mxu0 %v6676
          %6979 = vmatprep.subr.bf16.mxu0 %v6681
          %6980 = vmatpush1.bf16.msra.mxu0 %v6680
          %6981 = vmatprep.subr.bf16.mxu0 %v6685
          %6982 = vmatpush1.bf16.msra.mxu0 %v6684
          %6983 = vmatprep.subr.bf16.mxu0 %v6689
          %6984 = vmatpush1.bf16.msra.mxu0 %v6688
          %6985 = vmatprep.subr.bf16.mxu0 %v6693
          %6986 = vmatpush1.bf16.msra.mxu0 %v6692
          %6987 = vmatprep.subr.bf16.mxu0 %v6697
          %6988 = vmatpush1.bf16.msra.mxu0 %v6696
          %6989 = vmatprep.subr.bf16.mxu0 %v6701
          %6990 = vmatpush1.bf16.msra.mxu0 %v6700
          %6991 = vmatprep.subr.bf16.mxu0 %v6705
          %6992 = vmatpush1.bf16.msra.mxu0 %v6704
          %6993 = vmatprep.subr.bf16.mxu0 %v6709
          %6994 = vmatpush1.bf16.msra.mxu0 %v6708
          %6995 = vmatprep.subr.bf16.mxu0 %v6713
          %6996 = vmatpush1.bf16.msra.mxu0 %v6712
          %6997 = vmatprep.mubr.bf16.mxu0 %v6072
          %6998 = vmatmul.mubr.bf16.gmra.mrb[0].mxu0 %v6071
          %v6999 = vpop.f32.mrb[0].mxu0
          %v7000 = vadd.f32 %v6959, %v6999
          %v7001 = vpop.f32.mrb[0].mxu0
          %v7002 = vadd.f32 %v6961, %v7001
          %v7003 = vpop.f32.mrb[0].mxu0
          %v7004 = vpop.f32.mrb[0].mxu0
          %7005 = vdwg.mxu0
          %v7006 = vadd.f32 %v6065, %v6918
          %v7007 = vadd.f32 %v6066, %v6920
          %v7008 = vadd.f32 %v6067, %v7000
          %v7009 = vadd.f32 %v6068, %v7002
          %v7010 = vpack.c.bf16 %v6021, %v6021
          %v7011 = vpack.c.bf16 %v6022, %v6022
          %v7012 = vpack.c.bf16 %v6023, %v6023
          %v7013 = vpack.c.bf16 %v6024, %v6024
          %s7014 = scalar_lea.vmem %s183, 3072 [#allocation7]
          %v7015 = vld [vmem:[%s7014] sm:$0xff]
          %v7016 = vld [vmem:[%s7014 + $0x8] sm:$0xff]
          %v7017 = vld [vmem:[%s7014 + $0x10] sm:$0xff]
          %v7018 = vld [vmem:[%s7014 + $0x18] sm:$0xff]
          %v7019 = vld [vmem:[%s7014 + $0x20] sm:$0xff]
          %v7020 = vld [vmem:[%s7014 + $0x28] sm:$0xff]
          %v7021 = vld [vmem:[%s7014 + $0x30] sm:$0xff]
          %v7022 = vld [vmem:[%s7014 + $0x38] sm:$0xff]
          %v7023 = vld [vmem:[%s7014 + $0x40] sm:$0xff]
          %v7024 = vld [vmem:[%s7014 + $0x48] sm:$0xff]
          %v7025 = vld [vmem:[%s7014 + $0x50] sm:$0xff]
          %v7026 = vld [vmem:[%s7014 + $0x58] sm:$0xff]
          %v7027 = vld [vmem:[%s7014 + $0x60] sm:$0xff]
          %v7028 = vld [vmem:[%s7014 + $0x68] sm:$0xff]
          %v7029 = vld [vmem:[%s7014 + $0x70] sm:$0xff]
          %v7030 = vld [vmem:[%s7014 + $0x78] sm:$0xff]
          %v7031 = vld [vmem:[%s7014 + $0x80] sm:$0xff]
          %v7032 = vld [vmem:[%s7014 + $0x88] sm:$0xff]
          %v7033 = vld [vmem:[%s7014 + $0x90] sm:$0xff]
          %v7034 = vld [vmem:[%s7014 + $0x98] sm:$0xff]
          %v7035 = vld [vmem:[%s7014 + $0xa0] sm:$0xff]
          %v7036 = vld [vmem:[%s7014 + $0xa8] sm:$0xff]
          %v7037 = vld [vmem:[%s7014 + $0xb0] sm:$0xff]
          %v7038 = vld [vmem:[%s7014 + $0xb8] sm:$0xff]
          %v7039 = vld [vmem:[%s7014 + $0xc0] sm:$0xff]
          %v7040 = vld [vmem:[%s7014 + $0xc8] sm:$0xff]
          %v7041 = vld [vmem:[%s7014 + $0xd0] sm:$0xff]
          %v7042 = vld [vmem:[%s7014 + $0xd8] sm:$0xff]
          %v7043 = vld [vmem:[%s7014 + $0xe0] sm:$0xff]
          %v7044 = vld [vmem:[%s7014 + $0xe8] sm:$0xff]
          %v7045 = vld [vmem:[%s7014 + $0xf0] sm:$0xff]
          %v7046 = vld [vmem:[%s7014 + $0xf8] sm:$0xff]
          %v7047 = vld [vmem:[%s7014 + $0x100] sm:$0xff]
          %v7048 = vld [vmem:[%s7014 + $0x108] sm:$0xff]
          %v7049 = vld [vmem:[%s7014 + $0x110] sm:$0xff]
          %v7050 = vld [vmem:[%s7014 + $0x118] sm:$0xff]
          %v7051 = vld [vmem:[%s7014 + $0x120] sm:$0xff]
          %v7052 = vld [vmem:[%s7014 + $0x128] sm:$0xff]
          %v7053 = vld [vmem:[%s7014 + $0x130] sm:$0xff]
          %v7054 = vld [vmem:[%s7014 + $0x138] sm:$0xff]
          %v7055 = vld [vmem:[%s7014 + $0x140] sm:$0xff]
          %v7056 = vld [vmem:[%s7014 + $0x148] sm:$0xff]
          %v7057 = vld [vmem:[%s7014 + $0x150] sm:$0xff]
          %v7058 = vld [vmem:[%s7014 + $0x158] sm:$0xff]
          %v7059 = vld [vmem:[%s7014 + $0x160] sm:$0xff]
          %v7060 = vld [vmem:[%s7014 + $0x168] sm:$0xff]
          %v7061 = vld [vmem:[%s7014 + $0x170] sm:$0xff]
          %v7062 = vld [vmem:[%s7014 + $0x178] sm:$0xff]
          %v7063 = vld [vmem:[%s7014 + $0x180] sm:$0xff]
          %v7064 = vld [vmem:[%s7014 + $0x188] sm:$0xff]
          %v7065 = vld [vmem:[%s7014 + $0x190] sm:$0xff]
          %v7066 = vld [vmem:[%s7014 + $0x198] sm:$0xff]
          %v7067 = vld [vmem:[%s7014 + $0x1a0] sm:$0xff]
          %v7068 = vld [vmem:[%s7014 + $0x1a8] sm:$0xff]
          %v7069 = vld [vmem:[%s7014 + $0x1b0] sm:$0xff]
          %v7070 = vld [vmem:[%s7014 + $0x1b8] sm:$0xff]
          %v7071 = vld [vmem:[%s7014 + $0x1c0] sm:$0xff]
          %v7072 = vld [vmem:[%s7014 + $0x1c8] sm:$0xff]
          %v7073 = vld [vmem:[%s7014 + $0x1d0] sm:$0xff]
          %v7074 = vld [vmem:[%s7014 + $0x1d8] sm:$0xff]
          %v7075 = vld [vmem:[%s7014 + $0x1e0] sm:$0xff]
          %v7076 = vld [vmem:[%s7014 + $0x1e8] sm:$0xff]
          %v7077 = vld [vmem:[%s7014 + $0x1f0] sm:$0xff]
          %v7078 = vld [vmem:[%s7014 + $0x1f8] sm:$0xff]
          %v7079 = vld [vmem:[%s7014 + $0x200] sm:$0xff]
          %v7080 = vld [vmem:[%s7014 + $0x208] sm:$0xff]
          %v7081 = vld [vmem:[%s7014 + $0x210] sm:$0xff]
          %v7082 = vld [vmem:[%s7014 + $0x218] sm:$0xff]
          %v7083 = vld [vmem:[%s7014 + $0x220] sm:$0xff]
          %v7084 = vld [vmem:[%s7014 + $0x228] sm:$0xff]
          %v7085 = vld [vmem:[%s7014 + $0x230] sm:$0xff]
          %v7086 = vld [vmem:[%s7014 + $0x238] sm:$0xff]
          %v7087 = vld [vmem:[%s7014 + $0x240] sm:$0xff]
          %v7088 = vld [vmem:[%s7014 + $0x248] sm:$0xff]
          %v7089 = vld [vmem:[%s7014 + $0x250] sm:$0xff]
          %v7090 = vld [vmem:[%s7014 + $0x258] sm:$0xff]
          %v7091 = vld [vmem:[%s7014 + $0x260] sm:$0xff]
          %v7092 = vld [vmem:[%s7014 + $0x268] sm:$0xff]
          %v7093 = vld [vmem:[%s7014 + $0x270] sm:$0xff]
          %v7094 = vld [vmem:[%s7014 + $0x278] sm:$0xff]
          %v7095 = vld [vmem:[%s7014 + $0x280] sm:$0xff]
          %v7096 = vld [vmem:[%s7014 + $0x288] sm:$0xff]
          %v7097 = vld [vmem:[%s7014 + $0x290] sm:$0xff]
          %v7098 = vld [vmem:[%s7014 + $0x298] sm:$0xff]
          %v7099 = vld [vmem:[%s7014 + $0x2a0] sm:$0xff]
          %v7100 = vld [vmem:[%s7014 + $0x2a8] sm:$0xff]
          %v7101 = vld [vmem:[%s7014 + $0x2b0] sm:$0xff]
          %v7102 = vld [vmem:[%s7014 + $0x2b8] sm:$0xff]
          %v7103 = vld [vmem:[%s7014 + $0x2c0] sm:$0xff]
          %v7104 = vld [vmem:[%s7014 + $0x2c8] sm:$0xff]
          %v7105 = vld [vmem:[%s7014 + $0x2d0] sm:$0xff]
          %v7106 = vld [vmem:[%s7014 + $0x2d8] sm:$0xff]
          %v7107 = vld [vmem:[%s7014 + $0x2e0] sm:$0xff]
          %v7108 = vld [vmem:[%s7014 + $0x2e8] sm:$0xff]
          %v7109 = vld [vmem:[%s7014 + $0x2f0] sm:$0xff]
          %v7110 = vld [vmem:[%s7014 + $0x2f8] sm:$0xff]
          %v7111 = vld [vmem:[%s7014 + $0x300] sm:$0xff]
          %v7112 = vld [vmem:[%s7014 + $0x308] sm:$0xff]
          %v7113 = vld [vmem:[%s7014 + $0x310] sm:$0xff]
          %v7114 = vld [vmem:[%s7014 + $0x318] sm:$0xff]
          %v7115 = vld [vmem:[%s7014 + $0x320] sm:$0xff]
          %v7116 = vld [vmem:[%s7014 + $0x328] sm:$0xff]
          %v7117 = vld [vmem:[%s7014 + $0x330] sm:$0xff]
          %v7118 = vld [vmem:[%s7014 + $0x338] sm:$0xff]
          %v7119 = vld [vmem:[%s7014 + $0x340] sm:$0xff]
          %v7120 = vld [vmem:[%s7014 + $0x348] sm:$0xff]
          %v7121 = vld [vmem:[%s7014 + $0x350] sm:$0xff]
          %v7122 = vld [vmem:[%s7014 + $0x358] sm:$0xff]
          %v7123 = vld [vmem:[%s7014 + $0x360] sm:$0xff]
          %v7124 = vld [vmem:[%s7014 + $0x368] sm:$0xff]
          %v7125 = vld [vmem:[%s7014 + $0x370] sm:$0xff]
          %v7126 = vld [vmem:[%s7014 + $0x378] sm:$0xff]
          %v7127 = vld [vmem:[%s7014 + $0x380] sm:$0xff]
          %v7128 = vld [vmem:[%s7014 + $0x388] sm:$0xff]
          %v7129 = vld [vmem:[%s7014 + $0x390] sm:$0xff]
          %v7130 = vld [vmem:[%s7014 + $0x398] sm:$0xff]
          %v7131 = vld [vmem:[%s7014 + $0x3a0] sm:$0xff]
          %v7132 = vld [vmem:[%s7014 + $0x3a8] sm:$0xff]
          %v7133 = vld [vmem:[%s7014 + $0x3b0] sm:$0xff]
          %v7134 = vld [vmem:[%s7014 + $0x3b8] sm:$0xff]
          %v7135 = vld [vmem:[%s7014 + $0x3c0] sm:$0xff]
          %v7136 = vld [vmem:[%s7014 + $0x3c8] sm:$0xff]
          %v7137 = vld [vmem:[%s7014 + $0x3d0] sm:$0xff]
          %v7138 = vld [vmem:[%s7014 + $0x3d8] sm:$0xff]
          %v7139 = vld [vmem:[%s7014 + $0x3e0] sm:$0xff]
          %v7140 = vld [vmem:[%s7014 + $0x3e8] sm:$0xff]
          %v7141 = vld [vmem:[%s7014 + $0x3f0] sm:$0xff]
          %v7142 = vld [vmem:[%s7014 + $0x3f8] sm:$0xff]
          %v7271 = vunpack.c.l.b16 %v7015
          %v7272 = vunpack.c.h.b16 %v7015
          %v7273 = vunpack.c.l.b16 %v7016
          %v7274 = vunpack.c.h.b16 %v7016
          %v7275 = vunpack.c.l.b16 %v7017
          %v7276 = vunpack.c.h.b16 %v7017
          %v7277 = vunpack.c.l.b16 %v7018
          %v7278 = vunpack.c.h.b16 %v7018
          %v7279 = vunpack.c.l.b16 %v7019
          %v7280 = vunpack.c.h.b16 %v7019
          %v7281 = vunpack.c.l.b16 %v7020
          %v7282 = vunpack.c.h.b16 %v7020
          %v7283 = vunpack.c.l.b16 %v7021
          %v7284 = vunpack.c.h.b16 %v7021
          %v7285 = vunpack.c.l.b16 %v7022
          %v7286 = vunpack.c.h.b16 %v7022
          %v7287 = vunpack.c.l.b16 %v7023
          %v7288 = vunpack.c.h.b16 %v7023
          %v7289 = vunpack.c.l.b16 %v7024
          %v7290 = vunpack.c.h.b16 %v7024
          %v7291 = vunpack.c.l.b16 %v7025
          %v7292 = vunpack.c.h.b16 %v7025
          %v7293 = vunpack.c.l.b16 %v7026
          %v7294 = vunpack.c.h.b16 %v7026
          %v7295 = vunpack.c.l.b16 %v7027
          %v7296 = vunpack.c.h.b16 %v7027
          %v7297 = vunpack.c.l.b16 %v7028
          %v7298 = vunpack.c.h.b16 %v7028
          %v7299 = vunpack.c.l.b16 %v7029
          %v7300 = vunpack.c.h.b16 %v7029
          %v7301 = vunpack.c.l.b16 %v7030
          %v7302 = vunpack.c.h.b16 %v7030
          %v7303 = vunpack.c.l.b16 %v7031
          %v7304 = vunpack.c.h.b16 %v7031
          %v7305 = vunpack.c.l.b16 %v7032
          %v7306 = vunpack.c.h.b16 %v7032
          %v7307 = vunpack.c.l.b16 %v7033
          %v7308 = vunpack.c.h.b16 %v7033
          %v7309 = vunpack.c.l.b16 %v7034
          %v7310 = vunpack.c.h.b16 %v7034
          %v7311 = vunpack.c.l.b16 %v7035
          %v7312 = vunpack.c.h.b16 %v7035
          %v7313 = vunpack.c.l.b16 %v7036
          %v7314 = vunpack.c.h.b16 %v7036
          %v7315 = vunpack.c.l.b16 %v7037
          %v7316 = vunpack.c.h.b16 %v7037
          %v7317 = vunpack.c.l.b16 %v7038
          %v7318 = vunpack.c.h.b16 %v7038
          %v7319 = vunpack.c.l.b16 %v7039
          %v7320 = vunpack.c.h.b16 %v7039
          %v7321 = vunpack.c.l.b16 %v7040
          %v7322 = vunpack.c.h.b16 %v7040
          %v7323 = vunpack.c.l.b16 %v7041
          %v7324 = vunpack.c.h.b16 %v7041
          %v7325 = vunpack.c.l.b16 %v7042
          %v7326 = vunpack.c.h.b16 %v7042
          %v7327 = vunpack.c.l.b16 %v7043
          %v7328 = vunpack.c.h.b16 %v7043
          %v7329 = vunpack.c.l.b16 %v7044
          %v7330 = vunpack.c.h.b16 %v7044
          %v7331 = vunpack.c.l.b16 %v7045
          %v7332 = vunpack.c.h.b16 %v7045
          %v7333 = vunpack.c.l.b16 %v7046
          %v7334 = vunpack.c.h.b16 %v7046
          %v7335 = vunpack.c.l.b16 %v7047
          %v7336 = vunpack.c.h.b16 %v7047
          %v7337 = vunpack.c.l.b16 %v7048
          %v7338 = vunpack.c.h.b16 %v7048
          %v7339 = vunpack.c.l.b16 %v7049
          %v7340 = vunpack.c.h.b16 %v7049
          %v7341 = vunpack.c.l.b16 %v7050
          %v7342 = vunpack.c.h.b16 %v7050
          %v7343 = vunpack.c.l.b16 %v7051
          %v7344 = vunpack.c.h.b16 %v7051
          %v7345 = vunpack.c.l.b16 %v7052
          %v7346 = vunpack.c.h.b16 %v7052
          %v7347 = vunpack.c.l.b16 %v7053
          %v7348 = vunpack.c.h.b16 %v7053
          %v7349 = vunpack.c.l.b16 %v7054
          %v7350 = vunpack.c.h.b16 %v7054
          %v7351 = vunpack.c.l.b16 %v7055
          %v7352 = vunpack.c.h.b16 %v7055
          %v7353 = vunpack.c.l.b16 %v7056
          %v7354 = vunpack.c.h.b16 %v7056
          %v7355 = vunpack.c.l.b16 %v7057
          %v7356 = vunpack.c.h.b16 %v7057
          %v7357 = vunpack.c.l.b16 %v7058
          %v7358 = vunpack.c.h.b16 %v7058
          %v7359 = vunpack.c.l.b16 %v7059
          %v7360 = vunpack.c.h.b16 %v7059
          %v7361 = vunpack.c.l.b16 %v7060
          %v7362 = vunpack.c.h.b16 %v7060
          %v7363 = vunpack.c.l.b16 %v7061
          %v7364 = vunpack.c.h.b16 %v7061
          %v7365 = vunpack.c.l.b16 %v7062
          %v7366 = vunpack.c.h.b16 %v7062
          %v7367 = vunpack.c.l.b16 %v7063
          %v7368 = vunpack.c.h.b16 %v7063
          %v7369 = vunpack.c.l.b16 %v7064
          %v7370 = vunpack.c.h.b16 %v7064
          %v7371 = vunpack.c.l.b16 %v7065
          %v7372 = vunpack.c.h.b16 %v7065
          %v7373 = vunpack.c.l.b16 %v7066
          %v7374 = vunpack.c.h.b16 %v7066
          %v7375 = vunpack.c.l.b16 %v7067
          %v7376 = vunpack.c.h.b16 %v7067
          %v7377 = vunpack.c.l.b16 %v7068
          %v7378 = vunpack.c.h.b16 %v7068
          %v7379 = vunpack.c.l.b16 %v7069
          %v7380 = vunpack.c.h.b16 %v7069
          %v7381 = vunpack.c.l.b16 %v7070
          %v7382 = vunpack.c.h.b16 %v7070
          %v7383 = vunpack.c.l.b16 %v7071
          %v7384 = vunpack.c.h.b16 %v7071
          %v7385 = vunpack.c.l.b16 %v7072
          %v7386 = vunpack.c.h.b16 %v7072
          %v7387 = vunpack.c.l.b16 %v7073
          %v7388 = vunpack.c.h.b16 %v7073
          %v7389 = vunpack.c.l.b16 %v7074
          %v7390 = vunpack.c.h.b16 %v7074
          %v7391 = vunpack.c.l.b16 %v7075
          %v7392 = vunpack.c.h.b16 %v7075
          %v7393 = vunpack.c.l.b16 %v7076
          %v7394 = vunpack.c.h.b16 %v7076
          %v7395 = vunpack.c.l.b16 %v7077
          %v7396 = vunpack.c.h.b16 %v7077
          %v7397 = vunpack.c.l.b16 %v7078
          %v7398 = vunpack.c.h.b16 %v7078
          %v7399 = vunpack.c.l.b16 %v7079
          %v7400 = vunpack.c.h.b16 %v7079
          %v7401 = vunpack.c.l.b16 %v7080
          %v7402 = vunpack.c.h.b16 %v7080
          %v7403 = vunpack.c.l.b16 %v7081
          %v7404 = vunpack.c.h.b16 %v7081
          %v7405 = vunpack.c.l.b16 %v7082
          %v7406 = vunpack.c.h.b16 %v7082
          %v7407 = vunpack.c.l.b16 %v7083
          %v7408 = vunpack.c.h.b16 %v7083
          %v7409 = vunpack.c.l.b16 %v7084
          %v7410 = vunpack.c.h.b16 %v7084
          %v7411 = vunpack.c.l.b16 %v7085
          %v7412 = vunpack.c.h.b16 %v7085
          %v7413 = vunpack.c.l.b16 %v7086
          %v7414 = vunpack.c.h.b16 %v7086
          %v7415 = vunpack.c.l.b16 %v7087
          %v7416 = vunpack.c.h.b16 %v7087
          %v7417 = vunpack.c.l.b16 %v7088
          %v7418 = vunpack.c.h.b16 %v7088
          %v7419 = vunpack.c.l.b16 %v7089
          %v7420 = vunpack.c.h.b16 %v7089
          %v7421 = vunpack.c.l.b16 %v7090
          %v7422 = vunpack.c.h.b16 %v7090
          %v7423 = vunpack.c.l.b16 %v7091
          %v7424 = vunpack.c.h.b16 %v7091
          %v7425 = vunpack.c.l.b16 %v7092
          %v7426 = vunpack.c.h.b16 %v7092
          %v7427 = vunpack.c.l.b16 %v7093
          %v7428 = vunpack.c.h.b16 %v7093
          %v7429 = vunpack.c.l.b16 %v7094
          %v7430 = vunpack.c.h.b16 %v7094
          %v7431 = vunpack.c.l.b16 %v7095
          %v7432 = vunpack.c.h.b16 %v7095
          %v7433 = vunpack.c.l.b16 %v7096
          %v7434 = vunpack.c.h.b16 %v7096
          %v7435 = vunpack.c.l.b16 %v7097
          %v7436 = vunpack.c.h.b16 %v7097
          %v7437 = vunpack.c.l.b16 %v7098
          %v7438 = vunpack.c.h.b16 %v7098
          %v7439 = vunpack.c.l.b16 %v7099
          %v7440 = vunpack.c.h.b16 %v7099
          %v7441 = vunpack.c.l.b16 %v7100
          %v7442 = vunpack.c.h.b16 %v7100
          %v7443 = vunpack.c.l.b16 %v7101
          %v7444 = vunpack.c.h.b16 %v7101
          %v7445 = vunpack.c.l.b16 %v7102
          %v7446 = vunpack.c.h.b16 %v7102
          %v7447 = vunpack.c.l.b16 %v7103
          %v7448 = vunpack.c.h.b16 %v7103
          %v7449 = vunpack.c.l.b16 %v7104
          %v7450 = vunpack.c.h.b16 %v7104
          %v7451 = vunpack.c.l.b16 %v7105
          %v7452 = vunpack.c.h.b16 %v7105
          %v7453 = vunpack.c.l.b16 %v7106
          %v7454 = vunpack.c.h.b16 %v7106
          %v7455 = vunpack.c.l.b16 %v7107
          %v7456 = vunpack.c.h.b16 %v7107
          %v7457 = vunpack.c.l.b16 %v7108
          %v7458 = vunpack.c.h.b16 %v7108
          %v7459 = vunpack.c.l.b16 %v7109
          %v7460 = vunpack.c.h.b16 %v7109
          %v7461 = vunpack.c.l.b16 %v7110
          %v7462 = vunpack.c.h.b16 %v7110
          %v7463 = vunpack.c.l.b16 %v7111
          %v7464 = vunpack.c.h.b16 %v7111
          %v7465 = vunpack.c.l.b16 %v7112
          %v7466 = vunpack.c.h.b16 %v7112
          %v7467 = vunpack.c.l.b16 %v7113
          %v7468 = vunpack.c.h.b16 %v7113
          %v7469 = vunpack.c.l.b16 %v7114
          %v7470 = vunpack.c.h.b16 %v7114
          %v7471 = vunpack.c.l.b16 %v7115
          %v7472 = vunpack.c.h.b16 %v7115
          %v7473 = vunpack.c.l.b16 %v7116
          %v7474 = vunpack.c.h.b16 %v7116
          %v7475 = vunpack.c.l.b16 %v7117
          %v7476 = vunpack.c.h.b16 %v7117
          %v7477 = vunpack.c.l.b16 %v7118
          %v7478 = vunpack.c.h.b16 %v7118
          %v7479 = vunpack.c.l.b16 %v7119
          %v7480 = vunpack.c.h.b16 %v7119
          %v7481 = vunpack.c.l.b16 %v7120
          %v7482 = vunpack.c.h.b16 %v7120
          %v7483 = vunpack.c.l.b16 %v7121
          %v7484 = vunpack.c.h.b16 %v7121
          %v7485 = vunpack.c.l.b16 %v7122
          %v7486 = vunpack.c.h.b16 %v7122
          %v7487 = vunpack.c.l.b16 %v7123
          %v7488 = vunpack.c.h.b16 %v7123
          %v7489 = vunpack.c.l.b16 %v7124
          %v7490 = vunpack.c.h.b16 %v7124
          %v7491 = vunpack.c.l.b16 %v7125
          %v7492 = vunpack.c.h.b16 %v7125
          %v7493 = vunpack.c.l.b16 %v7126
          %v7494 = vunpack.c.h.b16 %v7126
          %v7495 = vunpack.c.l.b16 %v7127
          %v7496 = vunpack.c.h.b16 %v7127
          %v7497 = vunpack.c.l.b16 %v7128
          %v7498 = vunpack.c.h.b16 %v7128
          %v7499 = vunpack.c.l.b16 %v7129
          %v7500 = vunpack.c.h.b16 %v7129
          %v7501 = vunpack.c.l.b16 %v7130
          %v7502 = vunpack.c.h.b16 %v7130
          %v7503 = vunpack.c.l.b16 %v7131
          %v7504 = vunpack.c.h.b16 %v7131
          %v7505 = vunpack.c.l.b16 %v7132
          %v7506 = vunpack.c.h.b16 %v7132
          %v7507 = vunpack.c.l.b16 %v7133
          %v7508 = vunpack.c.h.b16 %v7133
          %v7509 = vunpack.c.l.b16 %v7134
          %v7510 = vunpack.c.h.b16 %v7134
          %v7511 = vunpack.c.l.b16 %v7135
          %v7512 = vunpack.c.h.b16 %v7135
          %v7513 = vunpack.c.l.b16 %v7136
          %v7514 = vunpack.c.h.b16 %v7136
          %v7515 = vunpack.c.l.b16 %v7137
          %v7516 = vunpack.c.h.b16 %v7137
          %v7517 = vunpack.c.l.b16 %v7138
          %v7518 = vunpack.c.h.b16 %v7138
          %v7519 = vunpack.c.l.b16 %v7139
          %v7520 = vunpack.c.h.b16 %v7139
          %v7521 = vunpack.c.l.b16 %v7140
          %v7522 = vunpack.c.h.b16 %v7140
          %v7523 = vunpack.c.l.b16 %v7141
          %v7524 = vunpack.c.h.b16 %v7141
          %v7525 = vunpack.c.l.b16 %v7142
          %v7526 = vunpack.c.h.b16 %v7142
          %v7527 = vpack.c.b16 %v7275, %v7271
          %v7528 = vpack.c.b16 %v7276, %v7272
          %v7529 = vpack.c.b16 %v7277, %v7273
          %v7530 = vpack.c.b16 %v7278, %v7274
          %v7531 = vpack.c.b16 %v7283, %v7279
          %v7532 = vpack.c.b16 %v7284, %v7280
          %v7533 = vpack.c.b16 %v7285, %v7281
          %v7534 = vpack.c.b16 %v7286, %v7282
          %v7535 = vpack.c.b16 %v7291, %v7287
          %v7536 = vpack.c.b16 %v7292, %v7288
          %v7537 = vpack.c.b16 %v7293, %v7289
          %v7538 = vpack.c.b16 %v7294, %v7290
          %v7539 = vpack.c.b16 %v7299, %v7295
          %v7540 = vpack.c.b16 %v7300, %v7296
          %v7541 = vpack.c.b16 %v7301, %v7297
          %v7542 = vpack.c.b16 %v7302, %v7298
          %v7543 = vpack.c.b16 %v7307, %v7303
          %v7544 = vpack.c.b16 %v7308, %v7304
          %v7545 = vpack.c.b16 %v7309, %v7305
          %v7546 = vpack.c.b16 %v7310, %v7306
          %v7547 = vpack.c.b16 %v7315, %v7311
          %v7548 = vpack.c.b16 %v7316, %v7312
          %v7549 = vpack.c.b16 %v7317, %v7313
          %v7550 = vpack.c.b16 %v7318, %v7314
          %v7551 = vpack.c.b16 %v7323, %v7319
          %v7552 = vpack.c.b16 %v7324, %v7320
          %v7553 = vpack.c.b16 %v7325, %v7321
          %v7554 = vpack.c.b16 %v7326, %v7322
          %v7555 = vpack.c.b16 %v7331, %v7327
          %v7556 = vpack.c.b16 %v7332, %v7328
          %v7557 = vpack.c.b16 %v7333, %v7329
          %v7558 = vpack.c.b16 %v7334, %v7330
          %v7559 = vpack.c.b16 %v7339, %v7335
          %v7560 = vpack.c.b16 %v7340, %v7336
          %v7561 = vpack.c.b16 %v7341, %v7337
          %v7562 = vpack.c.b16 %v7342, %v7338
          %v7563 = vpack.c.b16 %v7347, %v7343
          %v7564 = vpack.c.b16 %v7348, %v7344
          %v7565 = vpack.c.b16 %v7349, %v7345
          %v7566 = vpack.c.b16 %v7350, %v7346
          %v7567 = vpack.c.b16 %v7355, %v7351
          %v7568 = vpack.c.b16 %v7356, %v7352
          %v7569 = vpack.c.b16 %v7357, %v7353
          %v7570 = vpack.c.b16 %v7358, %v7354
          %v7571 = vpack.c.b16 %v7363, %v7359
          %v7572 = vpack.c.b16 %v7364, %v7360
          %v7573 = vpack.c.b16 %v7365, %v7361
          %v7574 = vpack.c.b16 %v7366, %v7362
          %v7575 = vpack.c.b16 %v7371, %v7367
          %v7576 = vpack.c.b16 %v7372, %v7368
          %v7577 = vpack.c.b16 %v7373, %v7369
          %v7578 = vpack.c.b16 %v7374, %v7370
          %v7579 = vpack.c.b16 %v7379, %v7375
          %v7580 = vpack.c.b16 %v7380, %v7376
          %v7581 = vpack.c.b16 %v7381, %v7377
          %v7582 = vpack.c.b16 %v7382, %v7378
          %v7583 = vpack.c.b16 %v7387, %v7383
          %v7584 = vpack.c.b16 %v7388, %v7384
          %v7585 = vpack.c.b16 %v7389, %v7385
          %v7586 = vpack.c.b16 %v7390, %v7386
          %v7587 = vpack.c.b16 %v7395, %v7391
          %v7588 = vpack.c.b16 %v7396, %v7392
          %v7589 = vpack.c.b16 %v7397, %v7393
          %v7590 = vpack.c.b16 %v7398, %v7394
          %v7591 = vpack.c.b16 %v7403, %v7399
          %v7592 = vpack.c.b16 %v7404, %v7400
          %v7593 = vpack.c.b16 %v7405, %v7401
          %v7594 = vpack.c.b16 %v7406, %v7402
          %v7595 = vpack.c.b16 %v7411, %v7407
          %v7596 = vpack.c.b16 %v7412, %v7408
          %v7597 = vpack.c.b16 %v7413, %v7409
          %v7598 = vpack.c.b16 %v7414, %v7410
          %v7599 = vpack.c.b16 %v7419, %v7415
          %v7600 = vpack.c.b16 %v7420, %v7416
          %v7601 = vpack.c.b16 %v7421, %v7417
          %v7602 = vpack.c.b16 %v7422, %v7418
          %v7603 = vpack.c.b16 %v7427, %v7423
          %v7604 = vpack.c.b16 %v7428, %v7424
          %v7605 = vpack.c.b16 %v7429, %v7425
          %v7606 = vpack.c.b16 %v7430, %v7426
          %v7607 = vpack.c.b16 %v7435, %v7431
          %v7608 = vpack.c.b16 %v7436, %v7432
          %v7609 = vpack.c.b16 %v7437, %v7433
          %v7610 = vpack.c.b16 %v7438, %v7434
          %v7611 = vpack.c.b16 %v7443, %v7439
          %v7612 = vpack.c.b16 %v7444, %v7440
          %v7613 = vpack.c.b16 %v7445, %v7441
          %v7614 = vpack.c.b16 %v7446, %v7442
          %v7615 = vpack.c.b16 %v7451, %v7447
          %v7616 = vpack.c.b16 %v7452, %v7448
          %v7617 = vpack.c.b16 %v7453, %v7449
          %v7618 = vpack.c.b16 %v7454, %v7450
          %v7619 = vpack.c.b16 %v7459, %v7455
          %v7620 = vpack.c.b16 %v7460, %v7456
          %v7621 = vpack.c.b16 %v7461, %v7457
          %v7622 = vpack.c.b16 %v7462, %v7458
          %v7623 = vpack.c.b16 %v7467, %v7463
          %v7624 = vpack.c.b16 %v7468, %v7464
          %v7625 = vpack.c.b16 %v7469, %v7465
          %v7626 = vpack.c.b16 %v7470, %v7466
          %v7627 = vpack.c.b16 %v7475, %v7471
          %v7628 = vpack.c.b16 %v7476, %v7472
          %v7629 = vpack.c.b16 %v7477, %v7473
          %v7630 = vpack.c.b16 %v7478, %v7474
          %v7631 = vpack.c.b16 %v7483, %v7479
          %v7632 = vpack.c.b16 %v7484, %v7480
          %v7633 = vpack.c.b16 %v7485, %v7481
          %v7634 = vpack.c.b16 %v7486, %v7482
          %v7635 = vpack.c.b16 %v7491, %v7487
          %v7636 = vpack.c.b16 %v7492, %v7488
          %v7637 = vpack.c.b16 %v7493, %v7489
          %v7638 = vpack.c.b16 %v7494, %v7490
          %v7639 = vpack.c.b16 %v7499, %v7495
          %v7640 = vpack.c.b16 %v7500, %v7496
          %v7641 = vpack.c.b16 %v7501, %v7497
          %v7642 = vpack.c.b16 %v7502, %v7498
          %v7643 = vpack.c.b16 %v7507, %v7503
          %v7644 = vpack.c.b16 %v7508, %v7504
          %v7645 = vpack.c.b16 %v7509, %v7505
          %v7646 = vpack.c.b16 %v7510, %v7506
          %v7647 = vpack.c.b16 %v7515, %v7511
          %v7648 = vpack.c.b16 %v7516, %v7512
          %v7649 = vpack.c.b16 %v7517, %v7513
          %v7650 = vpack.c.b16 %v7518, %v7514
          %v7651 = vpack.c.b16 %v7523, %v7519
          %v7652 = vpack.c.b16 %v7524, %v7520
          %v7653 = vpack.c.b16 %v7525, %v7521
          %v7654 = vpack.c.b16 %v7526, %v7522
          %7783 = vmatprep.subr.bf16.mxu0 %v7528
          %7784 = vmatpush1.bf16.msra.mxu0 %v7527
          %7785 = vmatprep.subr.bf16.mxu0 %v7532
          %7786 = vmatpush1.bf16.msra.mxu0 %v7531
          %7787 = vmatprep.subr.bf16.mxu0 %v7536
          %7788 = vmatpush1.bf16.msra.mxu0 %v7535
          %7789 = vmatprep.subr.bf16.mxu0 %v7540
          %7790 = vmatpush1.bf16.msra.mxu0 %v7539
          %7791 = vmatprep.subr.bf16.mxu0 %v7544
          %7792 = vmatpush1.bf16.msra.mxu0 %v7543
          %7793 = vmatprep.subr.bf16.mxu0 %v7548
          %7794 = vmatpush1.bf16.msra.mxu0 %v7547
          %7795 = vmatprep.subr.bf16.mxu0 %v7552
          %7796 = vmatpush1.bf16.msra.mxu0 %v7551
          %7797 = vmatprep.subr.bf16.mxu0 %v7556
          %7798 = vmatpush1.bf16.msra.mxu0 %v7555
          %7799 = vmatprep.subr.bf16.mxu0 %v7560
          %7800 = vmatpush1.bf16.msra.mxu0 %v7559
          %7801 = vmatprep.subr.bf16.mxu0 %v7564
          %7802 = vmatpush1.bf16.msra.mxu0 %v7563
          %7803 = vmatprep.subr.bf16.mxu0 %v7568
          %7804 = vmatpush1.bf16.msra.mxu0 %v7567
          %7805 = vmatprep.subr.bf16.mxu0 %v7572
          %7806 = vmatpush1.bf16.msra.mxu0 %v7571
          %7807 = vmatprep.subr.bf16.mxu0 %v7576
          %7808 = vmatpush1.bf16.msra.mxu0 %v7575
          %7809 = vmatprep.subr.bf16.mxu0 %v7580
          %7810 = vmatpush1.bf16.msra.mxu0 %v7579
          %7811 = vmatprep.subr.bf16.mxu0 %v7584
          %7812 = vmatpush1.bf16.msra.mxu0 %v7583
          %7813 = vmatprep.subr.bf16.mxu0 %v7588
          %7814 = vmatpush1.bf16.msra.mxu0 %v7587
          %7815 = vmatprep.mubr.bf16.mxu0 %v7011
          %7816 = vmatmul.mubr.bf16.gmra.mrb[0].mxu0 %v7010
          %v7817 = vpop.f32.mrb[0].mxu0
          %v7818 = vadd.f32 0.0, %v7817
          %v7819 = vpop.f32.mrb[0].mxu0
          %v7820 = vadd.f32 0.0, %v7819
          %v7821 = vpop.f32.mrb[0].mxu0
          %v7822 = vpop.f32.mrb[0].mxu0
          %7823 = vdwg.mxu0
          %7824 = vmatprep.subr.bf16.mxu0 %v7592
          %7825 = vmatpush1.bf16.msra.mxu0 %v7591
          %7826 = vmatprep.subr.bf16.mxu0 %v7596
          %7827 = vmatpush1.bf16.msra.mxu0 %v7595
          %7828 = vmatprep.subr.bf16.mxu0 %v7600
          %7829 = vmatpush1.bf16.msra.mxu0 %v7599
          %7830 = vmatprep.subr.bf16.mxu0 %v7604
          %7831 = vmatpush1.bf16.msra.mxu0 %v7603
          %7832 = vmatprep.subr.bf16.mxu0 %v7608
          %7833 = vmatpush1.bf16.msra.mxu0 %v7607
          %7834 = vmatprep.subr.bf16.mxu0 %v7612
          %7835 = vmatpush1.bf16.msra.mxu0 %v7611
          %7836 = vmatprep.subr.bf16.mxu0 %v7616
          %7837 = vmatpush1.bf16.msra.mxu0 %v7615
          %7838 = vmatprep.subr.bf16.mxu0 %v7620
          %7839 = vmatpush1.bf16.msra.mxu0 %v7619
          %7840 = vmatprep.subr.bf16.mxu0 %v7624
          %7841 = vmatpush1.bf16.msra.mxu0 %v7623
          %7842 = vmatprep.subr.bf16.mxu0 %v7628
          %7843 = vmatpush1.bf16.msra.mxu0 %v7627
          %7844 = vmatprep.subr.bf16.mxu0 %v7632
          %7845 = vmatpush1.bf16.msra.mxu0 %v7631
          %7846 = vmatprep.subr.bf16.mxu0 %v7636
          %7847 = vmatpush1.bf16.msra.mxu0 %v7635
          %7848 = vmatprep.subr.bf16.mxu0 %v7640
          %7849 = vmatpush1.bf16.msra.mxu0 %v7639
          %7850 = vmatprep.subr.bf16.mxu0 %v7644
          %7851 = vmatpush1.bf16.msra.mxu0 %v7643
          %7852 = vmatprep.subr.bf16.mxu0 %v7648
          %7853 = vmatpush1.bf16.msra.mxu0 %v7647
          %7854 = vmatprep.subr.bf16.mxu0 %v7652
          %7855 = vmatpush1.bf16.msra.mxu0 %v7651
          %7856 = vmatprep.mubr.bf16.mxu0 %v7013
          %7857 = vmatmul.mubr.bf16.gmra.mrb[0].mxu0 %v7012
          %v7858 = vpop.f32.mrb[0].mxu0
          %v7859 = vadd.f32 %v7818, %v7858
          %v7860 = vpop.f32.mrb[0].mxu0
          %v7861 = vadd.f32 %v7820, %v7860
          %v7862 = vpop.f32.mrb[0].mxu0
          %v7863 = vpop.f32.mrb[0].mxu0
          %7864 = vdwg.mxu0
          %7865 = vmatprep.subr.bf16.mxu0 %v7530
          %7866 = vmatpush1.bf16.msra.mxu0 %v7529
          %7867 = vmatprep.subr.bf16.mxu0 %v7534
          %7868 = vmatpush1.bf16.msra.mxu0 %v7533
          %7869 = vmatprep.subr.bf16.mxu0 %v7538
          %7870 = vmatpush1.bf16.msra.mxu0 %v7537
          %7871 = vmatprep.subr.bf16.mxu0 %v7542
          %7872 = vmatpush1.bf16.msra.mxu0 %v7541
          %7873 = vmatprep.subr.bf16.mxu0 %v7546
          %7874 = vmatpush1.bf16.msra.mxu0 %v7545
          %7875 = vmatprep.subr.bf16.mxu0 %v7550
          %7876 = vmatpush1.bf16.msra.mxu0 %v7549
          %7877 = vmatprep.subr.bf16.mxu0 %v7554
          %7878 = vmatpush1.bf16.msra.mxu0 %v7553
          %7879 = vmatprep.subr.bf16.mxu0 %v7558
          %7880 = vmatpush1.bf16.msra.mxu0 %v7557
          %7881 = vmatprep.subr.bf16.mxu0 %v7562
          %7882 = vmatpush1.bf16.msra.mxu0 %v7561
          %7883 = vmatprep.subr.bf16.mxu0 %v7566
          %7884 = vmatpush1.bf16.msra.mxu0 %v7565
          %7885 = vmatprep.subr.bf16.mxu0 %v7570
          %7886 = vmatpush1.bf16.msra.mxu0 %v7569
          %7887 = vmatprep.subr.bf16.mxu0 %v7574
          %7888 = vmatpush1.bf16.msra.mxu0 %v7573
          %7889 = vmatprep.subr.bf16.mxu0 %v7578
          %7890 = vmatpush1.bf16.msra.mxu0 %v7577
          %7891 = vmatprep.subr.bf16.mxu0 %v7582
          %7892 = vmatpush1.bf16.msra.mxu0 %v7581
          %7893 = vmatprep.subr.bf16.mxu0 %v7586
          %7894 = vmatpush1.bf16.msra.mxu0 %v7585
          %7895 = vmatprep.subr.bf16.mxu0 %v7590
          %7896 = vmatpush1.bf16.msra.mxu0 %v7589
          %7897 = vmatprep.mubr.bf16.mxu0 %v7011
          %7898 = vmatmul.mubr.bf16.gmra.mrb[0].mxu0 %v7010
          %v7899 = vpop.f32.mrb[0].mxu0
          %v7900 = vadd.f32 0.0, %v7899
          %v7901 = vpop.f32.mrb[0].mxu0
          %v7902 = vadd.f32 0.0, %v7901
          %v7903 = vpop.f32.mrb[0].mxu0
          %v7904 = vpop.f32.mrb[0].mxu0
          %7905 = vdwg.mxu0
          %7906 = vmatprep.subr.bf16.mxu0 %v7594
          %7907 = vmatpush1.bf16.msra.mxu0 %v7593
          %7908 = vmatprep.subr.bf16.mxu0 %v7598
          %7909 = vmatpush1.bf16.msra.mxu0 %v7597
          %7910 = vmatprep.subr.bf16.mxu0 %v7602
          %7911 = vmatpush1.bf16.msra.mxu0 %v7601
          %7912 = vmatprep.subr.bf16.mxu0 %v7606
          %7913 = vmatpush1.bf16.msra.mxu0 %v7605
          %7914 = vmatprep.subr.bf16.mxu0 %v7610
          %7915 = vmatpush1.bf16.msra.mxu0 %v7609
          %7916 = vmatprep.subr.bf16.mxu0 %v7614
          %7917 = vmatpush1.bf16.msra.mxu0 %v7613
          %7918 = vmatprep.subr.bf16.mxu0 %v7618
          %7919 = vmatpush1.bf16.msra.mxu0 %v7617
          %7920 = vmatprep.subr.bf16.mxu0 %v7622
          %7921 = vmatpush1.bf16.msra.mxu0 %v7621
          %7922 = vmatprep.subr.bf16.mxu0 %v7626
          %7923 = vmatpush1.bf16.msra.mxu0 %v7625
          %7924 = vmatprep.subr.bf16.mxu0 %v7630
          %7925 = vmatpush1.bf16.msra.mxu0 %v7629
          %7926 = vmatprep.subr.bf16.mxu0 %v7634
          %7927 = vmatpush1.bf16.msra.mxu0 %v7633
          %7928 = vmatprep.subr.bf16.mxu0 %v7638
          %7929 = vmatpush1.bf16.msra.mxu0 %v7637
          %7930 = vmatprep.subr.bf16.mxu0 %v7642
          %7931 = vmatpush1.bf16.msra.mxu0 %v7641
          %7932 = vmatprep.subr.bf16.mxu0 %v7646
          %7933 = vmatpush1.bf16.msra.mxu0 %v7645
          %7934 = vmatprep.subr.bf16.mxu0 %v7650
          %7935 = vmatpush1.bf16.msra.mxu0 %v7649
          %7936 = vmatprep.subr.bf16.mxu0 %v7654
          %7937 = vmatpush1.bf16.msra.mxu0 %v7653
          %7938 = vmatprep.mubr.bf16.mxu0 %v7013
          %7939 = vmatmul.mubr.bf16.gmra.mrb[0].mxu0 %v7012
          %v7940 = vpop.f32.mrb[0].mxu0
          %v7941 = vadd.f32 %v7900, %v7940
          %v7942 = vpop.f32.mrb[0].mxu0
          %v7943 = vadd.f32 %v7902, %v7942
          %v7944 = vpop.f32.mrb[0].mxu0
          %v7945 = vpop.f32.mrb[0].mxu0
          %7946 = vdwg.mxu0
          %v7947 = vadd.f32 %v7006, %v7859
          %v7948 = vadd.f32 %v7007, %v7861
          %v7949 = vadd.f32 %v7008, %v7941
          %v7950 = vadd.f32 %v7009, %v7943
          %v7951 = vmax.f32 %v7947, 0.0
          %v7952 = vmax.f32 %v7948, 0.0
          %v7953 = vmax.f32 %v7949, 0.0
          %v7954 = vmax.f32 %v7950, 0.0
          %7955 = vst [vmem:[#allocation2] sm:$0xff] %v7951
          %7956 = vst [vmem:[#allocation2 + $0x8] sm:$0xff] %v7952
          %7957 = vst [vmem:[#allocation2 + $0x10] sm:$0xff] %v7953
          %7958 = vst [vmem:[#allocation2 + $0x18] sm:$0xff] %v7954
          %v7959 = vpack.c.bf16 %v7951, %v7951
          %v7960 = vpack.c.bf16 %v7952, %v7952
          %v7961 = vpack.c.bf16 %v7953, %v7953
          %v7962 = vpack.c.bf16 %v7954, %v7954
          %v7967 = vunpack.c.l.b16 %v7959
          %v7968 = vunpack.c.l.b16 %v7960
          %v7969 = vunpack.c.l.b16 %v7961
          %v7970 = vunpack.c.l.b16 %v7962
          %v7971 = vpack.c.b16 %v7968, %v7967
          %v7972 = vpack.c.b16 %v7970, %v7969
          %7975 = vst [vmem:[#allocation3] sm:$0xff] %v7971
          %7976 = vst [vmem:[#allocation3 + $0x8] sm:$0xff] %v7972
        $region52: #{backbone_forward.1} parent=31 // pred_fallthru
          _
        %p7977 = scmp.eq.s32.totalorder %s19, 3
        // Predicated region
        $region53: #{backbone_forward.1} parent=31 // pred_check
          %p7978 = pneg %p7977
        $region54: #{backbone_forward.1} parent=31 // pred_check_branch
          %7980 = sbr.rel (%p7978) target = $region56
        $region55: #{backbone_forward.1} parent=31 // pred_region
          %v7981 = vld [vmem:[#allocation2] sm:$0xff]
          %v7982 = vld [vmem:[#allocation2 + $0x8] sm:$0xff]
          %v7983 = vld [vmem:[#allocation2 + $0x10] sm:$0xff]
          %v7984 = vld [vmem:[#allocation2 + $0x18] sm:$0xff]
          %7985 = vst [vmem:[#allocation10] sm:$0xff] %v7981
          %7986 = vst [vmem:[#allocation10 + $0x8] sm:$0xff] %v7982
          %7987 = vst [vmem:[#allocation10 + $0x10] sm:$0xff] %v7983
          %7988 = vst [vmem:[#allocation10 + $0x18] sm:$0xff] %v7984
        $region56: #{backbone_forward.1} parent=31 // pred_fallthru
          _
        // Predicated region
        $region57: #{backbone_forward.1} parent=31 // pred_check
          %p7989 = pneg %p100
        $region58: #{backbone_forward.1} parent=31 // pred_check_branch
          %7991 = sbr.rel (%p7989) target = $region60
        $region59: #{backbone_forward.1} parent=31 // pred_region
          %s7993 = ssub.s32 512, 512
          %7994 = vsyncadd [#allocation6], %s7993
          %s7996 = sshll.u32 [#allocation10], 4
          %s7997 = int_to_ptr.vmem [resolvable:$true] %s7996
          %7999 = dma.vmem_to_hbm [thread:$0]  %s7997, 512, %s3, [#allocation6]
        $region60: #{backbone_forward.1} parent=31 // pred_fallthru
          _
        // Predicated region
        $region61: #{backbone_forward.1} parent=31 // pred_check
          %p8000 = pneg %p100
        $region62: #{backbone_forward.1} parent=31 // pred_check_branch
          %8002 = sbr.rel (%p8000) target = $region64
        $region63: #{backbone_forward.1} parent=31 // pred_region
          %8003 = dma.done [#allocation6], 512
        $region64: #{backbone_forward.1} parent=31 // pred_fallthru
          _
      $region32: #{backbone_forward.1} parent=5 // pred_fallthru
        _
      %p8004 = scmp.le.s32.totalorder 2, %s14
      // Predicated region
      $region65: #{backbone_forward.1} parent=5 // pred_check
        %p8005 = pneg %p8004
      $region66: #{backbone_forward.1} parent=5 // pred_check_branch
        %8007 = sbr.rel (%p8005) target = $region68
      $region67: #{backbone_forward.1} parent=5 // pred_region
        %s8008 = ssub.s32 %s14, 2
      $region68: #{backbone_forward.1} parent=5 // pred_fallthru
        _
    $region6: #{backbone_forward.1} parent=1 // loop_footer
      %s18 = sadd.s32 1, %s14
    $region7: #{backbone_forward.1} parent=1 // loop_footer_branch
      %13 = sbr.rel target = $region3
    $region8: #{backbone_forward.1} parent=1 // loop_exit
      _
    %8009 = vsyncpa [#allocation5], 1
    %s8010 = scalar_lea.sflag [#allocation5], 1
    %8011 = vsyncpa %s8010, 1
    %8012 = vsyncpa [#allocation8], 1
    %s8013 = scalar_lea.sflag [#allocation8], 1
    %8014 = vsyncpa %s8013, 1
    %8015 = vsyncpa [#allocation6], 1
    %s8016 = scalar_lea.sflag [#allocation6], 1
    %8017 = vsyncpa %s8016, 1

</llo_original>
